<compile_context>
chip_gen: v6e
topology: v6e:2x2x1
jax: 0.10.0
libtpu: 0.0.40
codegen_flags: <defaults>
</compile_context>

<pallas_src>
import functools

import jax
import jax.numpy as jnp
from jax import lax
from jax.experimental import pallas as pl
from jax.experimental.pallas import tpu as pltpu


_VMEM = pl.BlockSpec(memory_space=pltpu.MemorySpace.VMEM)


# ---------------------------------------------------------------------------
# Fused conv block kernel: Conv3x3(pad=1) + BN(eval) + ReLU + MaxPool2x2
# ---------------------------------------------------------------------------

def _conv_block_kernel(x_ref, w_ref, scale_ref, bias_ref, sel_ref, o_ref,
                       xf_ref, acc_ref, *, H, W):
    HW = H * W
    pad = W + 1                      # row halo carried by the input block
    cout = w_ref.shape[2]

    # Stage the bf16 input block as f32 once (aligned full-tile copy); the 9 tap
    # reads below are then simple offset row-window loads from VMEM.
    xf_ref[...] = x_ref[...].astype(jnp.float32)

    # Left/right-edge validity masks (top/bottom edges read the zero halo rows).
    r = lax.broadcasted_iota(jnp.int32, (HW, 1), 0)
    col = jnp.bitwise_and(r, W - 1)          # r % W  (W is a power of two)
    w_ok_lo = col >= 1                       # left neighbour exists
    w_ok_hi = col <= W - 2                   # right neighbour exists

    acc = jnp.zeros((HW, cout), jnp.float32)
    for dy in range(3):
        for dx in range(3):
            oy, ox = dy - 1, dx - 1
            off = oy * W + ox
            tap = xf_ref[pl.ds(pad + off, HW), :]          # (HW, Cin) f32
            if ox < 0:
                tap = jnp.where(w_ok_lo, tap, 0.0)
            elif ox > 0:
                tap = jnp.where(w_ok_hi, tap, 0.0)
            acc = acc + jnp.dot(tap.astype(jnp.bfloat16), w_ref[dy * 3 + dx],
                                preferred_element_type=jnp.float32)

    # Fused BatchNorm(eval) + conv bias + ReLU epilogue (f32).
    acc = jnp.maximum(acc * scale_ref[...] + bias_ref[...], 0.0)

    # Fused 2x2 max-pool: stage the (HW, Cout) map with a zero tail, max with the
    # +1 / +W / +W+1 shifted windows, then compact the valid window-start rows
    # with a constant 0/1 selection matmul (keeps everything as offset loads + MXU).
    acc_ref[pl.ds(0, HW), :] = acc
    acc_ref[pl.ds(HW, W + 1), :] = jnp.zeros((W + 1, cout), jnp.float32)
    mx = jnp.maximum(jnp.maximum(acc, acc_ref[pl.ds(1, HW), :]),
                     jnp.maximum(acc_ref[pl.ds(W, HW), :],
                                 acc_ref[pl.ds(W + 1, HW), :]))
    pooled = jnp.dot(sel_ref[...], mx.astype(jnp.bfloat16),
                     preferred_element_type=jnp.float32)   # (Ho*Wo, Cout)
    o_ref[...] = pooled.astype(o_ref.dtype)


def _pool_select_matrix(H, W):
    """(Ho*Wo, H*W) 0/1 matrix selecting the top-left row of every 2x2 window."""
    Ho, Wo = H // 2, W // 2
    q = jnp.arange(Ho * Wo)
    r0 = (q // Wo) * (2 * W) + (q % Wo) * 2
    return (r0[:, None] == jnp.arange(H * W)[None, :]).astype(jnp.bfloat16)


def conv_bn_relu_pool(x, wconv, scale, bias, *, H, W):
    """x: (N, H*W, Cin) bf16, rows in (h, w) row-major order.
    Returns (N, (H//2)*(W//2), Cout) bf16 in the same flattened layout."""
    assert H % 2 == 0 and W % 2 == 0 and (W & (W - 1)) == 0, "even H/W, power-of-two W"
    N, HW, Cin = x.shape
    assert HW == H * W
    Cout = wconv.shape[-1]
    Ho, Wo = H // 2, W // 2
    pad = W + 1

    xp = jnp.pad(x, ((0, 0), (pad, pad), (0, 0)))            # zero row halo
    w9 = wconv.reshape(9, Cin, Cout).astype(jnp.bfloat16)    # tap-major (kh, kw)
    sel = _pool_select_matrix(H, W)

    kernel = functools.partial(_conv_block_kernel, H=H, W=W)
    return pl.pallas_call(
        kernel,
        out_shape=jax.ShapeDtypeStruct((N, Ho * Wo, Cout), jnp.bfloat16),
        grid_spec=pltpu.PrefetchScalarGridSpec(
            num_scalar_prefetch=0,
            grid=(N,),
            in_specs=[
                pl.BlockSpec((None, HW + 2 * pad, Cin), lambda n: (n, 0, 0)),
                pl.BlockSpec((9, Cin, Cout), lambda n: (0, 0, 0)),   # VMEM-resident
                pl.BlockSpec((1, Cout), lambda n: (0, 0)),
                pl.BlockSpec((1, Cout), lambda n: (0, 0)),
                pl.BlockSpec((Ho * Wo, HW), lambda n: (0, 0)),
            ],
            out_specs=pl.BlockSpec((None, Ho * Wo, Cout), lambda n: (n, 0, 0)),
            scratch_shapes=[
                pltpu.VMEM((HW + 2 * pad, Cin), jnp.float32),   # f32 staging of input
                pltpu.VMEM((HW + W + 1, Cout), jnp.float32),    # pre-pool map + zero tail
            ],
        ),
        compiler_params=pltpu.CompilerParams(
            dimension_semantics=("parallel",),
            vmem_limit_bytes=32 * 1024 * 1024,
        ),
    )(xp, w9,
      scale.reshape(1, Cout).astype(jnp.float32),
      bias.reshape(1, Cout).astype(jnp.float32),
      sel)


# ---------------------------------------------------------------------------
# Fused head: GAP + Linear(128->256) + ReLU + [Dropout eval] + Linear(256->100)
# ---------------------------------------------------------------------------

def _head_kernel(x_ref, w1_ref, b1_ref, w2_ref, b2_ref, o_ref, *, inv_hw):
    x = x_ref[...].astype(jnp.float32)                   # (N, HW, C)
    g = jnp.sum(x, axis=1) * inv_hw                      # global average pool -> (N, C)
    h = jnp.dot(g.astype(jnp.bfloat16), w1_ref[...], preferred_element_type=jnp.float32)
    h = jnp.maximum(h + b1_ref[...], 0.0)
    # Dropout(0.3): eval-mode identity.
    o = jnp.dot(h.astype(jnp.bfloat16), w2_ref[...], preferred_element_type=jnp.float32)
    o_ref[...] = (o + b2_ref[...]).astype(o_ref.dtype)


def gap_classifier(x, fc1_w, fc1_b, fc2_w, fc2_b):
    """x: (N, HW, 128) bf16 -> (N, num_classes) f32."""
    N, HW, _ = x.shape
    nout = fc2_w.shape[1]
    npad = ((nout + 127) // 128) * 128                   # lane-dense (full-width) store
    w2 = jnp.pad(fc2_w, ((0, 0), (0, npad - nout))).astype(jnp.bfloat16)
    b2 = jnp.pad(fc2_b, (0, npad - nout)).reshape(1, npad).astype(jnp.float32)
    kernel = functools.partial(_head_kernel, inv_hw=1.0 / HW)
    out = pl.pallas_call(
        kernel,
        out_shape=jax.ShapeDtypeStruct((N, npad), jnp.float32),
        in_specs=[_VMEM] * 5,
        out_specs=_VMEM,
    )(x, fc1_w.astype(jnp.bfloat16), fc1_b.reshape(1, -1).astype(jnp.float32), w2, b2)
    return out[:, :nout]


# ---------------------------------------------------------------------------
# Parameters (deterministic synthetic init, matching BasicCNN shapes)
# ---------------------------------------------------------------------------

def init_params(key):
    ks = jax.random.split(key, 16)
    p = {}

    def conv_block(i, cin, cout, name):
        p[f"{name}_w"] = 0.1 * jax.random.normal(ks[i], (3, 3, cin, cout), jnp.float32)
        p[f"{name}_b"] = 0.05 * jax.random.normal(ks[i + 1], (cout,), jnp.float32)
        p[f"{name}_gamma"] = 1.0 + 0.1 * jax.random.normal(ks[i + 2], (cout,), jnp.float32)
        p[f"{name}_beta"] = 0.1 * jax.random.normal(ks[i + 3], (cout,), jnp.float32)
        p[f"{name}_mean"] = jnp.zeros((cout,), jnp.float32)
        p[f"{name}_var"] = jnp.ones((cout,), jnp.float32)

    conv_block(0, 3, 32, "c1")
    conv_block(4, 32, 64, "c2")
    conv_block(8, 64, 128, "c3")

    p["fc1_w"] = 0.05 * jax.random.normal(ks[12], (128, 256), jnp.float32)
    p["fc1_b"] = 0.05 * jax.random.normal(ks[13], (256,), jnp.float32)
    p["fc2_w"] = 0.05 * jax.random.normal(ks[14], (256, 100), jnp.float32)
    p["fc2_b"] = 0.05 * jax.random.normal(ks[15], (100,), jnp.float32)
    return p


def _fold_bn(p, name, eps=1e-5):
    # PyTorch: BN( conv(x) + b ) == scale * conv(x) + (scale * (b - mean) + beta)
    scale = p[f"{name}_gamma"] / jnp.sqrt(p[f"{name}_var"] + eps)
    bias = scale * (p[f"{name}_b"] - p[f"{name}_mean"]) + p[f"{name}_beta"]
    return scale, bias


# ---------------------------------------------------------------------------
# Forward pass (matches BasicCNN.forward semantics, eval mode)
# ---------------------------------------------------------------------------

@jax.jit
def basic_cnn_forward(x_nchw, p):
    n, _, h, w = x_nchw.shape
    # NCHW -> NHWC -> flattened (N, H*W, C) bf16 rows; stays in this layout throughout.
    x = jnp.transpose(x_nchw, (0, 2, 3, 1)).reshape(n, h * w, -1).astype(jnp.bfloat16)
    for name in ("c1", "c2", "c3"):
        scale, bias = _fold_bn(p, name)
        x = conv_bn_relu_pool(x, p[f"{name}_w"], scale, bias, H=h, W=w)
        h, w = h // 2, w // 2
    # AdaptiveAvgPool2d(1) + Flatten + Linear + ReLU + Dropout(eval) + Linear
    return gap_classifier(x, p["fc1_w"], p["fc1_b"], p["fc2_w"], p["fc2_b"])


if __name__ == "__main__":
    key = jax.random.PRNGKey(0)
    k_x, k_p = jax.random.split(key)
    # Small NCHW input consistent with the module (3 input channels, spatial 16).
    x = jax.random.normal(k_x, (2, 3, 16, 16), jnp.float32)
    params = init_params(k_p)

    out = basic_cnn_forward(x, params)
    out = jax.block_until_ready(out)

    assert out.shape == (2, 100), out.shape
    assert bool(jnp.all(jnp.isfinite(out)))
    print("KERNEL_OK")
</pallas_src>

<mosaic_0001>
module attributes {stable_mosaic.version = 11 : i64} {
  func.func @_conv_block_kernel(%arg0: i32, %arg1: memref<1x290x3xbf16, #tpu.memory_space<vmem>>, %arg2: memref<9x3x32xbf16, #tpu.memory_space<vmem>>, %arg3: memref<1x32xf32, #tpu.memory_space<vmem>>, %arg4: memref<1x32xf32, #tpu.memory_space<vmem>>, %arg5: memref<64x256xbf16, #tpu.memory_space<vmem>>, %arg6: memref<1x64x32xbf16, #tpu.memory_space<vmem>>, %arg7: memref<290x3xf32, #tpu.memory_space<vmem>>, %arg8: memref<273x32xf32, #tpu.memory_space<vmem>>) attributes {dimension_semantics = [#tpu.dimension_semantics<parallel>], iteration_bounds = array<i64: 2>, scalar_prefetch = 0 : i64, scratch_operands = 2 : i64, tpu.core_type = #tpu.core_type<tc>, window_params = [{transform_indices = @transform_0, window_bounds = array<i64: 1, 290, 3>}, {pipeline_mode = #tpu.pipeline_mode<synchronous>, transform_indices = @transform_1, window_bounds = array<i64: 9, 3, 32>}, {pipeline_mode = #tpu.pipeline_mode<synchronous>, transform_indices = @transform_2, window_bounds = array<i64: 1, 32>}, {pipeline_mode = #tpu.pipeline_mode<synchronous>, transform_indices = @transform_3, window_bounds = array<i64: 1, 32>}, {pipeline_mode = #tpu.pipeline_mode<synchronous>, transform_indices = @transform_4, window_bounds = array<i64: 64, 256>}, {transform_indices = @transform_5, window_bounds = array<i64: 1, 64, 32>}]} {
    %c0 = arith.constant 0 : index
    %c0_0 = arith.constant 0 : index
    %c0_1 = arith.constant 0 : index
    %0 = vector.load %arg1[%c0, %c0_0, %c0_1] : memref<1x290x3xbf16, #tpu.memory_space<vmem>>, vector<1x290x3xbf16>
    %1 = vector.shape_cast %0 : vector<1x290x3xbf16> to vector<290x3xbf16>
    %2 = arith.extf %1 : vector<290x3xbf16> to vector<290x3xf32>
    %c0_2 = arith.constant 0 : index
    %c0_3 = arith.constant 0 : index
    %3 = vector.load %arg7[%c0_2, %c0_3] : memref<290x3xf32, #tpu.memory_space<vmem>>, vector<290x3xf32>
    tpu.vector_store %arg7[%c0_2, %c0_3], %2 {strides = array<i32>} : memref<290x3xf32, #tpu.memory_space<vmem>>, vector<290x3xf32>,
    %4 = tpu.iota {dimensions = array<i32: 0>} : vector<256x1xi32>
    %c15_i32 = arith.constant 15 : i32
    %5 = vector.broadcast %c15_i32 : i32 to vector<256x1xi32>
    %6 = arith.andi %4, %5 : vector<256x1xi32>
    %c1_i32 = arith.constant 1 : i32
    %7 = vector.broadcast %c1_i32 : i32 to vector<256x1xi32>
    %8 = arith.cmpi sge, %6, %7 : vector<256x1xi32>
    %c14_i32 = arith.constant 14 : i32
    %9 = vector.broadcast %c14_i32 : i32 to vector<256x1xi32>
    %10 = arith.cmpi sle, %6, %9 : vector<256x1xi32>
    %cst = arith.constant 0.000000e+00 : f32
    %11 = vector.broadcast %cst : f32 to vector<256x32xf32>
    %c0_4 = arith.constant 0 : index
    %c0_5 = arith.constant 0 : index
    %12 = vector.load %arg7[%c0_4, %c0_5] : memref<290x3xf32, #tpu.memory_space<vmem>>, vector<256x3xf32>
    %cst_6 = arith.constant 0.000000e+00 : f32
    %13 = vector.shape_cast %8 : vector<256x1xi1> to vector<256x1xi1>
    %14 = vector.broadcast %13 : vector<256x1xi1> to vector<256x3xi1>
    %15 = vector.broadcast %cst_6 : f32 to vector<256x3xf32>
    %16 = arith.select %14, %12, %15 : vector<256x3xi1>, vector<256x3xf32>
    %17 = arith.truncf %16 : vector<256x3xf32> to vector<256x3xbf16>
    %c0_7 = arith.constant 0 : index
    %c0_8 = arith.constant 0 : index
    %c0_9 = arith.constant 0 : index
    %18 = vector.load %arg2[%c0_7, %c0_8, %c0_9] : memref<9x3x32xbf16, #tpu.memory_space<vmem>>, vector<1x3x32xbf16>
    %19 = vector.shape_cast %18 : vector<1x3x32xbf16> to vector<3x32xbf16>
    %cst_10 = arith.constant dense<0.000000e+00> : vector<256x32xf32>
    %20 = tpu.matmul %17, %19, %cst_10 {dimension_numbers = #tpu.dot_dimension_numbers<[1], [0], [0], [1], [0, 0, 1, 1], [], []>} : vector<256x3xbf16>, vector<3x32xbf16>, vector<256x32xf32> -> vector<256x32xf32>
    %21 = arith.addf %11, %20 : vector<256x32xf32>
    %c1 = arith.constant 1 : index
    %c0_11 = arith.constant 0 : index
    %22 = vector.load %arg7[%c1, %c0_11] : memref<290x3xf32, #tpu.memory_space<vmem>>, vector<256x3xf32>
    %23 = arith.truncf %22 : vector<256x3xf32> to vector<256x3xbf16>
    %c1_12 = arith.constant 1 : index
    %c0_13 = arith.constant 0 : index
    %c0_14 = arith.constant 0 : index
    %24 = vector.load %arg2[%c1_12, %c0_13, %c0_14] : memref<9x3x32xbf16, #tpu.memory_space<vmem>>, vector<1x3x32xbf16>
    %25 = vector.shape_cast %24 : vector<1x3x32xbf16> to vector<3x32xbf16>
    %cst_15 = arith.constant dense<0.000000e+00> : vector<256x32xf32>
    %26 = tpu.matmul %23, %25, %cst_15 {dimension_numbers = #tpu.dot_dimension_numbers<[1], [0], [0], [1], [0, 0, 1, 1], [], []>} : vector<256x3xbf16>, vector<3x32xbf16>, vector<256x32xf32> -> vector<256x32xf32>
    %27 = arith.addf %21, %26 : vector<256x32xf32>
    %c2 = arith.constant 2 : index
    %c0_16 = arith.constant 0 : index
    %28 = vector.load %arg7[%c2, %c0_16] : memref<290x3xf32, #tpu.memory_space<vmem>>, vector<256x3xf32>
    %cst_17 = arith.constant 0.000000e+00 : f32
    %29 = vector.shape_cast %10 : vector<256x1xi1> to vector<256x1xi1>
    %30 = vector.broadcast %29 : vector<256x1xi1> to vector<256x3xi1>
    %31 = vector.broadcast %cst_17 : f32 to vector<256x3xf32>
    %32 = arith.select %30, %28, %31 : vector<256x3xi1>, vector<256x3xf32>
    %33 = arith.truncf %32 : vector<256x3xf32> to vector<256x3xbf16>
    %c2_18 = arith.constant 2 : index
    %c0_19 = arith.constant 0 : index
    %c0_20 = arith.constant 0 : index
    %34 = vector.load %arg2[%c2_18, %c0_19, %c0_20] : memref<9x3x32xbf16, #tpu.memory_space<vmem>>, vector<1x3x32xbf16>
    %35 = vector.shape_cast %34 : vector<1x3x32xbf16> to vector<3x32xbf16>
    %cst_21 = arith.constant dense<0.000000e+00> : vector<256x32xf32>
    %36 = tpu.matmul %33, %35, %cst_21 {dimension_numbers = #tpu.dot_dimension_numbers<[1], [0], [0], [1], [0, 0, 1, 1], [], []>} : vector<256x3xbf16>, vector<3x32xbf16>, vector<256x32xf32> -> vector<256x32xf32>
    %37 = arith.addf %27, %36 : vector<256x32xf32>
    %c16 = arith.constant 16 : index
    %c0_22 = arith.constant 0 : index
    %38 = vector.load %arg7[%c16, %c0_22] : memref<290x3xf32, #tpu.memory_space<vmem>>, vector<256x3xf32>
    %cst_23 = arith.constant 0.000000e+00 : f32
    %39 = vector.shape_cast %8 : vector<256x1xi1> to vector<256x1xi1>
    %40 = vector.broadcast %39 : vector<256x1xi1> to vector<256x3xi1>
    %41 = vector.broadcast %cst_23 : f32 to vector<256x3xf32>
    %42 = arith.select %40, %38, %41 : vector<256x3xi1>, vector<256x3xf32>
    %43 = arith.truncf %42 : vector<256x3xf32> to vector<256x3xbf16>
    %c3 = arith.constant 3 : index
    %c0_24 = arith.constant 0 : index
    %c0_25 = arith.constant 0 : index
    %44 = vector.load %arg2[%c3, %c0_24, %c0_25] : memref<9x3x32xbf16, #tpu.memory_space<vmem>>, vector<1x3x32xbf16>
    %45 = vector.shape_cast %44 : vector<1x3x32xbf16> to vector<3x32xbf16>
    %cst_26 = arith.constant dense<0.000000e+00> : vector<256x32xf32>
    %46 = tpu.matmul %43, %45, %cst_26 {dimension_numbers = #tpu.dot_dimension_numbers<[1], [0], [0], [1], [0, 0, 1, 1], [], []>} : vector<256x3xbf16>, vector<3x32xbf16>, vector<256x32xf32> -> vector<256x32xf32>
    %47 = arith.addf %37, %46 : vector<256x32xf32>
    %c17 = arith.constant 17 : index
    %c0_27 = arith.constant 0 : index
    %48 = vector.load %arg7[%c17, %c0_27] : memref<290x3xf32, #tpu.memory_space<vmem>>, vector<256x3xf32>
    %49 = arith.truncf %48 : vector<256x3xf32> to vector<256x3xbf16>
    %c4 = arith.constant 4 : index
    %c0_28 = arith.constant 0 : index
    %c0_29 = arith.constant 0 : index
    %50 = vector.load %arg2[%c4, %c0_28, %c0_29] : memref<9x3x32xbf16, #tpu.memory_space<vmem>>, vector<1x3x32xbf16>
    %51 = vector.shape_cast %50 : vector<1x3x32xbf16> to vector<3x32xbf16>
    %cst_30 = arith.constant dense<0.000000e+00> : vector<256x32xf32>
    %52 = tpu.matmul %49, %51, %cst_30 {dimension_numbers = #tpu.dot_dimension_numbers<[1], [0], [0], [1], [0, 0, 1, 1], [], []>} : vector<256x3xbf16>, vector<3x32xbf16>, vector<256x32xf32> -> vector<256x32xf32>
    %53 = arith.addf %47, %52 : vector<256x32xf32>
    %c18 = arith.constant 18 : index
    %c0_31 = arith.constant 0 : index
    %54 = vector.load %arg7[%c18, %c0_31] : memref<290x3xf32, #tpu.memory_space<vmem>>, vector<256x3xf32>
    %cst_32 = arith.constant 0.000000e+00 : f32
    %55 = vector.shape_cast %10 : vector<256x1xi1> to vector<256x1xi1>
    %56 = vector.broadcast %55 : vector<256x1xi1> to vector<256x3xi1>
    %57 = vector.broadcast %cst_32 : f32 to vector<256x3xf32>
    %58 = arith.select %56, %54, %57 : vector<256x3xi1>, vector<256x3xf32>
    %59 = arith.truncf %58 : vector<256x3xf32> to vector<256x3xbf16>
    %c5 = arith.constant 5 : index
    %c0_33 = arith.constant 0 : index
    %c0_34 = arith.constant 0 : index
    %60 = vector.load %arg2[%c5, %c0_33, %c0_34] : memref<9x3x32xbf16, #tpu.memory_space<vmem>>, vector<1x3x32xbf16>
    %61 = vector.shape_cast %60 : vector<1x3x32xbf16> to vector<3x32xbf16>
    %cst_35 = arith.constant dense<0.000000e+00> : vector<256x32xf32>
    %62 = tpu.matmul %59, %61, %cst_35 {dimension_numbers = #tpu.dot_dimension_numbers<[1], [0], [0], [1], [0, 0, 1, 1], [], []>} : vector<256x3xbf16>, vector<3x32xbf16>, vector<256x32xf32> -> vector<256x32xf32>
    %63 = arith.addf %53, %62 : vector<256x32xf32>
    %c32 = arith.constant 32 : index
    %c0_36 = arith.constant 0 : index
    %64 = vector.load %arg7[%c32, %c0_36] : memref<290x3xf32, #tpu.memory_space<vmem>>, vector<256x3xf32>
    %cst_37 = arith.constant 0.000000e+00 : f32
    %65 = vector.shape_cast %8 : vector<256x1xi1> to vector<256x1xi1>
    %66 = vector.broadcast %65 : vector<256x1xi1> to vector<256x3xi1>
    %67 = vector.broadcast %cst_37 : f32 to vector<256x3xf32>
    %68 = arith.select %66, %64, %67 : vector<256x3xi1>, vector<256x3xf32>
    %69 = arith.truncf %68 : vector<256x3xf32> to vector<256x3xbf16>
    %c6 = arith.constant 6 : index
    %c0_38 = arith.constant 0 : index
    %c0_39 = arith.constant 0 : index
    %70 = vector.load %arg2[%c6, %c0_38, %c0_39] : memref<9x3x32xbf16, #tpu.memory_space<vmem>>, vector<1x3x32xbf16>
    %71 = vector.shape_cast %70 : vector<1x3x32xbf16> to vector<3x32xbf16>
    %cst_40 = arith.constant dense<0.000000e+00> : vector<256x32xf32>
    %72 = tpu.matmul %69, %71, %cst_40 {dimension_numbers = #tpu.dot_dimension_numbers<[1], [0], [0], [1], [0, 0, 1, 1], [], []>} : vector<256x3xbf16>, vector<3x32xbf16>, vector<256x32xf32> -> vector<256x32xf32>
    %73 = arith.addf %63, %72 : vector<256x32xf32>
    %c33 = arith.constant 33 : index
    %c0_41 = arith.constant 0 : index
    %74 = vector.load %arg7[%c33, %c0_41] : memref<290x3xf32, #tpu.memory_space<vmem>>, vector<256x3xf32>
    %75 = arith.truncf %74 : vector<256x3xf32> to vector<256x3xbf16>
    %c7 = arith.constant 7 : index
    %c0_42 = arith.constant 0 : index
    %c0_43 = arith.constant 0 : index
    %76 = vector.load %arg2[%c7, %c0_42, %c0_43] : memref<9x3x32xbf16, #tpu.memory_space<vmem>>, vector<1x3x32xbf16>
    %77 = vector.shape_cast %76 : vector<1x3x32xbf16> to vector<3x32xbf16>
    %cst_44 = arith.constant dense<0.000000e+00> : vector<256x32xf32>
    %78 = tpu.matmul %75, %77, %cst_44 {dimension_numbers = #tpu.dot_dimension_numbers<[1], [0], [0], [1], [0, 0, 1, 1], [], []>} : vector<256x3xbf16>, vector<3x32xbf16>, vector<256x32xf32> -> vector<256x32xf32>
    %79 = arith.addf %73, %78 : vector<256x32xf32>
    %c34 = arith.constant 34 : index
    %c0_45 = arith.constant 0 : index
    %80 = vector.load %arg7[%c34, %c0_45] : memref<290x3xf32, #tpu.memory_space<vmem>>, vector<256x3xf32>
    %cst_46 = arith.constant 0.000000e+00 : f32
    %81 = vector.shape_cast %10 : vector<256x1xi1> to vector<256x1xi1>
    %82 = vector.broadcast %81 : vector<256x1xi1> to vector<256x3xi1>
    %83 = vector.broadcast %cst_46 : f32 to vector<256x3xf32>
    %84 = arith.select %82, %80, %83 : vector<256x3xi1>, vector<256x3xf32>
    %85 = arith.truncf %84 : vector<256x3xf32> to vector<256x3xbf16>
    %c8 = arith.constant 8 : index
    %c0_47 = arith.constant 0 : index
    %c0_48 = arith.constant 0 : index
    %86 = vector.load %arg2[%c8, %c0_47, %c0_48] : memref<9x3x32xbf16, #tpu.memory_space<vmem>>, vector<1x3x32xbf16>
    %87 = vector.shape_cast %86 : vector<1x3x32xbf16> to vector<3x32xbf16>
    %cst_49 = arith.constant dense<0.000000e+00> : vector<256x32xf32>
    %88 = tpu.matmul %85, %87, %cst_49 {dimension_numbers = #tpu.dot_dimension_numbers<[1], [0], [0], [1], [0, 0, 1, 1], [], []>} : vector<256x3xbf16>, vector<3x32xbf16>, vector<256x32xf32> -> vector<256x32xf32>
    %89 = arith.addf %79, %88 : vector<256x32xf32>
    %c0_50 = arith.constant 0 : index
    %c0_51 = arith.constant 0 : index
    %90 = vector.load %arg3[%c0_50, %c0_51] : memref<1x32xf32, #tpu.memory_space<vmem>>, vector<1x32xf32>
    %91 = vector.broadcast %90 : vector<1x32xf32> to vector<256x32xf32>
    %92 = arith.mulf %89, %91 : vector<256x32xf32>
    %c0_52 = arith.constant 0 : index
    %c0_53 = arith.constant 0 : index
    %93 = vector.load %arg4[%c0_52, %c0_53] : memref<1x32xf32, #tpu.memory_space<vmem>>, vector<1x32xf32>
    %94 = vector.broadcast %93 : vector<1x32xf32> to vector<256x32xf32>
    %95 = arith.addf %92, %94 : vector<256x32xf32>
    %cst_54 = arith.constant 0.000000e+00 : f32
    %96 = vector.broadcast %cst_54 : f32 to vector<256x32xf32>
    %97 = arith.maximumf %95, %96 : vector<256x32xf32>
    %c0_55 = arith.constant 0 : index
    %c0_56 = arith.constant 0 : index
    %98 = vector.load %arg8[%c0_55, %c0_56] : memref<273x32xf32, #tpu.memory_space<vmem>>, vector<256x32xf32>
    tpu.vector_store %arg8[%c0_55, %c0_56], %97 {strides = array<i32>} : memref<273x32xf32, #tpu.memory_space<vmem>>, vector<256x32xf32>,
    %cst_57 = arith.constant 0.000000e+00 : f32
    %99 = vector.broadcast %cst_57 : f32 to vector<17x32xf32>
    %c256 = arith.constant 256 : index
    %c0_58 = arith.constant 0 : index
    %100 = vector.load %arg8[%c256, %c0_58] : memref<273x32xf32, #tpu.memory_space<vmem>>, vector<17x32xf32>
    tpu.vector_store %arg8[%c256, %c0_58], %99 {strides = array<i32>} : memref<273x32xf32, #tpu.memory_space<vmem>>, vector<17x32xf32>,
    %c1_59 = arith.constant 1 : index
    %c0_60 = arith.constant 0 : index
    %101 = vector.load %arg8[%c1_59, %c0_60] : memref<273x32xf32, #tpu.memory_space<vmem>>, vector<256x32xf32>
    %102 = arith.maximumf %97, %101 : vector<256x32xf32>
    %c16_61 = arith.constant 16 : index
    %c0_62 = arith.constant 0 : index
    %103 = vector.load %arg8[%c16_61, %c0_62] : memref<273x32xf32, #tpu.memory_space<vmem>>, vector<256x32xf32>
    %c17_63 = arith.constant 17 : index
    %c0_64 = arith.constant 0 : index
    %104 = vector.load %arg8[%c17_63, %c0_64] : memref<273x32xf32, #tpu.memory_space<vmem>>, vector<256x32xf32>
    %105 = arith.maximumf %103, %104 : vector<256x32xf32>
    %106 = arith.maximumf %102, %105 : vector<256x32xf32>
    %c0_65 = arith.constant 0 : index
    %c0_66 = arith.constant 0 : index
    %107 = vector.load %arg5[%c0_65, %c0_66] : memref<64x256xbf16, #tpu.memory_space<vmem>>, vector<64x256xbf16>
    %108 = arith.truncf %106 : vector<256x32xf32> to vector<256x32xbf16>
    %cst_67 = arith.constant dense<0.000000e+00> : vector<64x32xf32>
    %109 = tpu.matmul %107, %108, %cst_67 {dimension_numbers = #tpu.dot_dimension_numbers<[1], [0], [0], [1], [0, 0, 1, 1], [], []>} : vector<64x256xbf16>, vector<256x32xbf16>, vector<64x32xf32> -> vector<64x32xf32>
    %110 = arith.truncf %109 : vector<64x32xf32> to vector<64x32xbf16>
    %c0_68 = arith.constant 0 : index
    %c0_69 = arith.constant 0 : index
    %c0_70 = arith.constant 0 : index
    %111 = vector.load %arg6[%c0_68, %c0_69, %c0_70] : memref<1x64x32xbf16, #tpu.memory_space<vmem>>, vector<1x64x32xbf16>
    %112 = vector.shape_cast %111 : vector<1x64x32xbf16> to vector<64x32xbf16>
    %113 = vector.shape_cast %110 : vector<64x32xbf16> to vector<1x64x32xbf16>
    tpu.vector_store %arg6[%c0_68, %c0_69, %c0_70], %113 {strides = array<i32>} : memref<1x64x32xbf16, #tpu.memory_space<vmem>>, vector<1x64x32xbf16>,
    return
  }
  func.func @transform_0(%arg0: i32) -> (i32, i32, i32) {
    %c0_i32 = arith.constant 0 : i32
    %c0_i32_0 = arith.constant 0 : i32
    %c0_i32_1 = arith.constant 0 : i32
    return %arg0, %c0_i32, %c0_i32_0 : i32, i32, i32
  }
  func.func @transform_1(%arg0: i32) -> (i32, i32, i32) {
    %c0_i32 = arith.constant 0 : i32
    %c0_i32_0 = arith.constant 0 : i32
    %c0_i32_1 = arith.constant 0 : i32
    %c0_i32_2 = arith.constant 0 : i32
    return %c0_i32, %c0_i32_0, %c0_i32_1 : i32, i32, i32
  }
  func.func @transform_2(%arg0: i32) -> (i32, i32) {
    %c0_i32 = arith.constant 0 : i32
    %c0_i32_0 = arith.constant 0 : i32
    %c0_i32_1 = arith.constant 0 : i32
    return %c0_i32, %c0_i32_0 : i32, i32
  }
  func.func @transform_3(%arg0: i32) -> (i32, i32) {
    %c0_i32 = arith.constant 0 : i32
    %c0_i32_0 = arith.constant 0 : i32
    %c0_i32_1 = arith.constant 0 : i32
    return %c0_i32, %c0_i32_0 : i32, i32
  }
  func.func @transform_4(%arg0: i32) -> (i32, i32) {
    %c0_i32 = arith.constant 0 : i32
    %c0_i32_0 = arith.constant 0 : i32
    %c0_i32_1 = arith.constant 0 : i32
    return %c0_i32, %c0_i32_0 : i32, i32
  }
  func.func @transform_5(%arg0: i32) -> (i32, i32, i32) {
    %c0_i32 = arith.constant 0 : i32
    %c0_i32_0 = arith.constant 0 : i32
    %c0_i32_1 = arith.constant 0 : i32
    return %arg0, %c0_i32, %c0_i32_0 : i32, i32, i32
  }
}

module attributes {stable_mosaic.version = 11 : i64} {
  func.func @_conv_block_kernel(%arg0: i32, %arg1: memref<1x82x32xbf16, #tpu.memory_space<vmem>>, %arg2: memref<9x32x64xbf16, #tpu.memory_space<vmem>>, %arg3: memref<1x64xf32, #tpu.memory_space<vmem>>, %arg4: memref<1x64xf32, #tpu.memory_space<vmem>>, %arg5: memref<16x64xbf16, #tpu.memory_space<vmem>>, %arg6: memref<1x16x64xbf16, #tpu.memory_space<vmem>>, %arg7: memref<82x32xf32, #tpu.memory_space<vmem>>, %arg8: memref<73x64xf32, #tpu.memory_space<vmem>>) attributes {dimension_semantics = [#tpu.dimension_semantics<parallel>], iteration_bounds = array<i64: 2>, scalar_prefetch = 0 : i64, scratch_operands = 2 : i64, tpu.core_type = #tpu.core_type<tc>, window_params = [{transform_indices = @transform_0, window_bounds = array<i64: 1, 82, 32>}, {pipeline_mode = #tpu.pipeline_mode<synchronous>, transform_indices = @transform_1, window_bounds = array<i64: 9, 32, 64>}, {pipeline_mode = #tpu.pipeline_mode<synchronous>, transform_indices = @transform_2, window_bounds = array<i64: 1, 64>}, {pipeline_mode = #tpu.pipeline_mode<synchronous>, transform_indices = @transform_3, window_bounds = array<i64: 1, 64>}, {pipeline_mode = #tpu.pipeline_mode<synchronous>, transform_indices = @transform_4, window_bounds = array<i64: 16, 64>}, {transform_indices = @transform_5, window_bounds = array<i64: 1, 16, 64>}]} {
    %c0 = arith.constant 0 : index
    %c0_0 = arith.constant 0 : index
    %c0_1 = arith.constant 0 : index
    %0 = vector.load %arg1[%c0, %c0_0, %c0_1] : memref<1x82x32xbf16, #tpu.memory_space<vmem>>, vector<1x82x32xbf16>
    %1 = vector.shape_cast %0 : vector<1x82x32xbf16> to vector<82x32xbf16>
    %2 = arith.extf %1 : vector<82x32xbf16> to vector<82x32xf32>
    %c0_2 = arith.constant 0 : index
    %c0_3 = arith.constant 0 : index
    %3 = vector.load %arg7[%c0_2, %c0_3] : memref<82x32xf32, #tpu.memory_space<vmem>>, vector<82x32xf32>
    tpu.vector_store %arg7[%c0_2, %c0_3], %2 {strides = array<i32>} : memref<82x32xf32, #tpu.memory_space<vmem>>, vector<82x32xf32>,
    %4 = tpu.iota {dimensions = array<i32: 0>} : vector<64x1xi32>
    %c7_i32 = arith.constant 7 : i32
    %5 = vector.broadcast %c7_i32 : i32 to vector<64x1xi32>
    %6 = arith.andi %4, %5 : vector<64x1xi32>
    %c1_i32 = arith.constant 1 : i32
    %7 = vector.broadcast %c1_i32 : i32 to vector<64x1xi32>
    %8 = arith.cmpi sge, %6, %7 : vector<64x1xi32>
    %c6_i32 = arith.constant 6 : i32
    %9 = vector.broadcast %c6_i32 : i32 to vector<64x1xi32>
    %10 = arith.cmpi sle, %6, %9 : vector<64x1xi32>
    %cst = arith.constant 0.000000e+00 : f32
    %11 = vector.broadcast %cst : f32 to vector<64x64xf32>
    %c0_4 = arith.constant 0 : index
    %c0_5 = arith.constant 0 : index
    %12 = vector.load %arg7[%c0_4, %c0_5] : memref<82x32xf32, #tpu.memory_space<vmem>>, vector<64x32xf32>
    %cst_6 = arith.constant 0.000000e+00 : f32
    %13 = vector.shape_cast %8 : vector<64x1xi1> to vector<64x1xi1>
    %14 = vector.broadcast %13 : vector<64x1xi1> to vector<64x32xi1>
    %15 = vector.broadcast %cst_6 : f32 to vector<64x32xf32>
    %16 = arith.select %14, %12, %15 : vector<64x32xi1>, vector<64x32xf32>
    %17 = arith.truncf %16 : vector<64x32xf32> to vector<64x32xbf16>
    %c0_7 = arith.constant 0 : index
    %c0_8 = arith.constant 0 : index
    %c0_9 = arith.constant 0 : index
    %18 = vector.load %arg2[%c0_7, %c0_8, %c0_9] : memref<9x32x64xbf16, #tpu.memory_space<vmem>>, vector<1x32x64xbf16>
    %19 = vector.shape_cast %18 : vector<1x32x64xbf16> to vector<32x64xbf16>
    %cst_10 = arith.constant dense<0.000000e+00> : vector<64x64xf32>
    %20 = tpu.matmul %17, %19, %cst_10 {dimension_numbers = #tpu.dot_dimension_numbers<[1], [0], [0], [1], [0, 0, 1, 1], [], []>} : vector<64x32xbf16>, vector<32x64xbf16>, vector<64x64xf32> -> vector<64x64xf32>
    %21 = arith.addf %11, %20 : vector<64x64xf32>
    %c1 = arith.constant 1 : index
    %c0_11 = arith.constant 0 : index
    %22 = vector.load %arg7[%c1, %c0_11] : memref<82x32xf32, #tpu.memory_space<vmem>>, vector<64x32xf32>
    %23 = arith.truncf %22 : vector<64x32xf32> to vector<64x32xbf16>
    %c1_12 = arith.constant 1 : index
    %c0_13 = arith.constant 0 : index
    %c0_14 = arith.constant 0 : index
    %24 = vector.load %arg2[%c1_12, %c0_13, %c0_14] : memref<9x32x64xbf16, #tpu.memory_space<vmem>>, vector<1x32x64xbf16>
    %25 = vector.shape_cast %24 : vector<1x32x64xbf16> to vector<32x64xbf16>
    %cst_15 = arith.constant dense<0.000000e+00> : vector<64x64xf32>
    %26 = tpu.matmul %23, %25, %cst_15 {dimension_numbers = #tpu.dot_dimension_numbers<[1], [0], [0], [1], [0, 0, 1, 1], [], []>} : vector<64x32xbf16>, vector<32x64xbf16>, vector<64x64xf32> -> vector<64x64xf32>
    %27 = arith.addf %21, %26 : vector<64x64xf32>
    %c2 = arith.constant 2 : index
    %c0_16 = arith.constant 0 : index
    %28 = vector.load %arg7[%c2, %c0_16] : memref<82x32xf32, #tpu.memory_space<vmem>>, vector<64x32xf32>
    %cst_17 = arith.constant 0.000000e+00 : f32
    %29 = vector.shape_cast %10 : vector<64x1xi1> to vector<64x1xi1>
    %30 = vector.broadcast %29 : vector<64x1xi1> to vector<64x32xi1>
    %31 = vector.broadcast %cst_17 : f32 to vector<64x32xf32>
    %32 = arith.select %30, %28, %31 : vector<64x32xi1>, vector<64x32xf32>
    %33 = arith.truncf %32 : vector<64x32xf32> to vector<64x32xbf16>
    %c2_18 = arith.constant 2 : index
    %c0_19 = arith.constant 0 : index
    %c0_20 = arith.constant 0 : index
    %34 = vector.load %arg2[%c2_18, %c0_19, %c0_20] : memref<9x32x64xbf16, #tpu.memory_space<vmem>>, vector<1x32x64xbf16>
    %35 = vector.shape_cast %34 : vector<1x32x64xbf16> to vector<32x64xbf16>
    %cst_21 = arith.constant dense<0.000000e+00> : vector<64x64xf32>
    %36 = tpu.matmul %33, %35, %cst_21 {dimension_numbers = #tpu.dot_dimension_numbers<[1], [0], [0], [1], [0, 0, 1, 1], [], []>} : vector<64x32xbf16>, vector<32x64xbf16>, vector<64x64xf32> -> vector<64x64xf32>
    %37 = arith.addf %27, %36 : vector<64x64xf32>
    %c8 = arith.constant 8 : index
    %c0_22 = arith.constant 0 : index
    %38 = vector.load %arg7[%c8, %c0_22] : memref<82x32xf32, #tpu.memory_space<vmem>>, vector<64x32xf32>
    %cst_23 = arith.constant 0.000000e+00 : f32
    %39 = vector.shape_cast %8 : vector<64x1xi1> to vector<64x1xi1>
    %40 = vector.broadcast %39 : vector<64x1xi1> to vector<64x32xi1>
    %41 = vector.broadcast %cst_23 : f32 to vector<64x32xf32>
    %42 = arith.select %40, %38, %41 : vector<64x32xi1>, vector<64x32xf32>
    %43 = arith.truncf %42 : vector<64x32xf32> to vector<64x32xbf16>
    %c3 = arith.constant 3 : index
    %c0_24 = arith.constant 0 : index
    %c0_25 = arith.constant 0 : index
    %44 = vector.load %arg2[%c3, %c0_24, %c0_25] : memref<9x32x64xbf16, #tpu.memory_space<vmem>>, vector<1x32x64xbf16>
    %45 = vector.shape_cast %44 : vector<1x32x64xbf16> to vector<32x64xbf16>
    %cst_26 = arith.constant dense<0.000000e+00> : vector<64x64xf32>
    %46 = tpu.matmul %43, %45, %cst_26 {dimension_numbers = #tpu.dot_dimension_numbers<[1], [0], [0], [1], [0, 0, 1, 1], [], []>} : vector<64x32xbf16>, vector<32x64xbf16>, vector<64x64xf32> -> vector<64x64xf32>
    %47 = arith.addf %37, %46 : vector<64x64xf32>
    %c9 = arith.constant 9 : index
    %c0_27 = arith.constant 0 : index
    %48 = vector.load %arg7[%c9, %c0_27] : memref<82x32xf32, #tpu.memory_space<vmem>>, vector<64x32xf32>
    %49 = arith.truncf %48 : vector<64x32xf32> to vector<64x32xbf16>
    %c4 = arith.constant 4 : index
    %c0_28 = arith.constant 0 : index
    %c0_29 = arith.constant 0 : index
    %50 = vector.load %arg2[%c4, %c0_28, %c0_29] : memref<9x32x64xbf16, #tpu.memory_space<vmem>>, vector<1x32x64xbf16>
    %51 = vector.shape_cast %50 : vector<1x32x64xbf16> to vector<32x64xbf16>
    %cst_30 = arith.constant dense<0.000000e+00> : vector<64x64xf32>
    %52 = tpu.matmul %49, %51, %cst_30 {dimension_numbers = #tpu.dot_dimension_numbers<[1], [0], [0], [1], [0, 0, 1, 1], [], []>} : vector<64x32xbf16>, vector<32x64xbf16>, vector<64x64xf32> -> vector<64x64xf32>
    %53 = arith.addf %47, %52 : vector<64x64xf32>
    %c10 = arith.constant 10 : index
    %c0_31 = arith.constant 0 : index
    %54 = vector.load %arg7[%c10, %c0_31] : memref<82x32xf32, #tpu.memory_space<vmem>>, vector<64x32xf32>
    %cst_32 = arith.constant 0.000000e+00 : f32
    %55 = vector.shape_cast %10 : vector<64x1xi1> to vector<64x1xi1>
    %56 = vector.broadcast %55 : vector<64x1xi1> to vector<64x32xi1>
    %57 = vector.broadcast %cst_32 : f32 to vector<64x32xf32>
    %58 = arith.select %56, %54, %57 : vector<64x32xi1>, vector<64x32xf32>
    %59 = arith.truncf %58 : vector<64x32xf32> to vector<64x32xbf16>
    %c5 = arith.constant 5 : index
    %c0_33 = arith.constant 0 : index
    %c0_34 = arith.constant 0 : index
    %60 = vector.load %arg2[%c5, %c0_33, %c0_34] : memref<9x32x64xbf16, #tpu.memory_space<vmem>>, vector<1x32x64xbf16>
    %61 = vector.shape_cast %60 : vector<1x32x64xbf16> to vector<32x64xbf16>
    %cst_35 = arith.constant dense<0.000000e+00> : vector<64x64xf32>
    %62 = tpu.matmul %59, %61, %cst_35 {dimension_numbers = #tpu.dot_dimension_numbers<[1], [0], [0], [1], [0, 0, 1, 1], [], []>} : vector<64x32xbf16>, vector<32x64xbf16>, vector<64x64xf32> -> vector<64x64xf32>
    %63 = arith.addf %53, %62 : vector<64x64xf32>
    %c16 = arith.constant 16 : index
    %c0_36 = arith.constant 0 : index
    %64 = vector.load %arg7[%c16, %c0_36] : memref<82x32xf32, #tpu.memory_space<vmem>>, vector<64x32xf32>
    %cst_37 = arith.constant 0.000000e+00 : f32
    %65 = vector.shape_cast %8 : vector<64x1xi1> to vector<64x1xi1>
    %66 = vector.broadcast %65 : vector<64x1xi1> to vector<64x32xi1>
    %67 = vector.broadcast %cst_37 : f32 to vector<64x32xf32>
    %68 = arith.select %66, %64, %67 : vector<64x32xi1>, vector<64x32xf32>
    %69 = arith.truncf %68 : vector<64x32xf32> to vector<64x32xbf16>
    %c6 = arith.constant 6 : index
    %c0_38 = arith.constant 0 : index
    %c0_39 = arith.constant 0 : index
    %70 = vector.load %arg2[%c6, %c0_38, %c0_39] : memref<9x32x64xbf16, #tpu.memory_space<vmem>>, vector<1x32x64xbf16>
    %71 = vector.shape_cast %70 : vector<1x32x64xbf16> to vector<32x64xbf16>
    %cst_40 = arith.constant dense<0.000000e+00> : vector<64x64xf32>
    %72 = tpu.matmul %69, %71, %cst_40 {dimension_numbers = #tpu.dot_dimension_numbers<[1], [0], [0], [1], [0, 0, 1, 1], [], []>} : vector<64x32xbf16>, vector<32x64xbf16>, vector<64x64xf32> -> vector<64x64xf32>
    %73 = arith.addf %63, %72 : vector<64x64xf32>
    %c17 = arith.constant 17 : index
    %c0_41 = arith.constant 0 : index
    %74 = vector.load %arg7[%c17, %c0_41] : memref<82x32xf32, #tpu.memory_space<vmem>>, vector<64x32xf32>
    %75 = arith.truncf %74 : vector<64x32xf32> to vector<64x32xbf16>
    %c7 = arith.constant 7 : index
    %c0_42 = arith.constant 0 : index
    %c0_43 = arith.constant 0 : index
    %76 = vector.load %arg2[%c7, %c0_42, %c0_43] : memref<9x32x64xbf16, #tpu.memory_space<vmem>>, vector<1x32x64xbf16>
    %77 = vector.shape_cast %76 : vector<1x32x64xbf16> to vector<32x64xbf16>
    %cst_44 = arith.constant dense<0.000000e+00> : vector<64x64xf32>
    %78 = tpu.matmul %75, %77, %cst_44 {dimension_numbers = #tpu.dot_dimension_numbers<[1], [0], [0], [1], [0, 0, 1, 1], [], []>} : vector<64x32xbf16>, vector<32x64xbf16>, vector<64x64xf32> -> vector<64x64xf32>
    %79 = arith.addf %73, %78 : vector<64x64xf32>
    %c18 = arith.constant 18 : index
    %c0_45 = arith.constant 0 : index
    %80 = vector.load %arg7[%c18, %c0_45] : memref<82x32xf32, #tpu.memory_space<vmem>>, vector<64x32xf32>
    %cst_46 = arith.constant 0.000000e+00 : f32
    %81 = vector.shape_cast %10 : vector<64x1xi1> to vector<64x1xi1>
    %82 = vector.broadcast %81 : vector<64x1xi1> to vector<64x32xi1>
    %83 = vector.broadcast %cst_46 : f32 to vector<64x32xf32>
    %84 = arith.select %82, %80, %83 : vector<64x32xi1>, vector<64x32xf32>
    %85 = arith.truncf %84 : vector<64x32xf32> to vector<64x32xbf16>
    %c8_47 = arith.constant 8 : index
    %c0_48 = arith.constant 0 : index
    %c0_49 = arith.constant 0 : index
    %86 = vector.load %arg2[%c8_47, %c0_48, %c0_49] : memref<9x32x64xbf16, #tpu.memory_space<vmem>>, vector<1x32x64xbf16>
    %87 = vector.shape_cast %86 : vector<1x32x64xbf16> to vector<32x64xbf16>
    %cst_50 = arith.constant dense<0.000000e+00> : vector<64x64xf32>
    %88 = tpu.matmul %85, %87, %cst_50 {dimension_numbers = #tpu.dot_dimension_numbers<[1], [0], [0], [1], [0, 0, 1, 1], [], []>} : vector<64x32xbf16>, vector<32x64xbf16>, vector<64x64xf32> -> vector<64x64xf32>
    %89 = arith.addf %79, %88 : vector<64x64xf32>
    %c0_51 = arith.constant 0 : index
    %c0_52 = arith.constant 0 : index
    %90 = vector.load %arg3[%c0_51, %c0_52] : memref<1x64xf32, #tpu.memory_space<vmem>>, vector<1x64xf32>
    %91 = vector.broadcast %90 : vector<1x64xf32> to vector<64x64xf32>
    %92 = arith.mulf %89, %91 : vector<64x64xf32>
    %c0_53 = arith.constant 0 : index
    %c0_54 = arith.constant 0 : index
    %93 = vector.load %arg4[%c0_53, %c0_54] : memref<1x64xf32, #tpu.memory_space<vmem>>, vector<1x64xf32>
    %94 = vector.broadcast %93 : vector<1x64xf32> to vector<64x64xf32>
    %95 = arith.addf %92, %94 : vector<64x64xf32>
    %cst_55 = arith.constant 0.000000e+00 : f32
    %96 = vector.broadcast %cst_55 : f32 to vector<64x64xf32>
    %97 = arith.maximumf %95, %96 : vector<64x64xf32>
    %c0_56 = arith.constant 0 : index
    %c0_57 = arith.constant 0 : index
    %98 = vector.load %arg8[%c0_56, %c0_57] : memref<73x64xf32, #tpu.memory_space<vmem>>, vector<64x64xf32>
    tpu.vector_store %arg8[%c0_56, %c0_57], %97 {strides = array<i32>} : memref<73x64xf32, #tpu.memory_space<vmem>>, vector<64x64xf32>,
    %cst_58 = arith.constant 0.000000e+00 : f32
    %99 = vector.broadcast %cst_58 : f32 to vector<9x64xf32>
    %c64 = arith.constant 64 : index
    %c0_59 = arith.constant 0 : index
    %100 = vector.load %arg8[%c64, %c0_59] : memref<73x64xf32, #tpu.memory_space<vmem>>, vector<9x64xf32>
    tpu.vector_store %arg8[%c64, %c0_59], %99 {strides = array<i32>} : memref<73x64xf32, #tpu.memory_space<vmem>>, vector<9x64xf32>,
    %c1_60 = arith.constant 1 : index
    %c0_61 = arith.constant 0 : index
    %101 = vector.load %arg8[%c1_60, %c0_61] : memref<73x64xf32, #tpu.memory_space<vmem>>, vector<64x64xf32>
    %102 = arith.maximumf %97, %101 : vector<64x64xf32>
    %c8_62 = arith.constant 8 : index
    %c0_63 = arith.constant 0 : index
    %103 = vector.load %arg8[%c8_62, %c0_63] : memref<73x64xf32, #tpu.memory_space<vmem>>, vector<64x64xf32>
    %c9_64 = arith.constant 9 : index
    %c0_65 = arith.constant 0 : index
    %104 = vector.load %arg8[%c9_64, %c0_65] : memref<73x64xf32, #tpu.memory_space<vmem>>, vector<64x64xf32>
    %105 = arith.maximumf %103, %104 : vector<64x64xf32>
    %106 = arith.maximumf %102, %105 : vector<64x64xf32>
    %c0_66 = arith.constant 0 : index
    %c0_67 = arith.constant 0 : index
    %107 = vector.load %arg5[%c0_66, %c0_67] : memref<16x64xbf16, #tpu.memory_space<vmem>>, vector<16x64xbf16>
    %108 = arith.truncf %106 : vector<64x64xf32> to vector<64x64xbf16>
    %cst_68 = arith.constant dense<0.000000e+00> : vector<16x64xf32>
    %109 = tpu.matmul %107, %108, %cst_68 {dimension_numbers = #tpu.dot_dimension_numbers<[1], [0], [0], [1], [0, 0, 1, 1], [], []>} : vector<16x64xbf16>, vector<64x64xbf16>, vector<16x64xf32> -> vector<16x64xf32>
    %110 = arith.truncf %109 : vector<16x64xf32> to vector<16x64xbf16>
    %c0_69 = arith.constant 0 : index
    %c0_70 = arith.constant 0 : index
    %c0_71 = arith.constant 0 : index
    %111 = vector.load %arg6[%c0_69, %c0_70, %c0_71] : memref<1x16x64xbf16, #tpu.memory_space<vmem>>, vector<1x16x64xbf16>
    %112 = vector.shape_cast %111 : vector<1x16x64xbf16> to vector<16x64xbf16>
    %113 = vector.shape_cast %110 : vector<16x64xbf16> to vector<1x16x64xbf16>
    tpu.vector_store %arg6[%c0_69, %c0_70, %c0_71], %113 {strides = array<i32>} : memref<1x16x64xbf16, #tpu.memory_space<vmem>>, vector<1x16x64xbf16>,
    return
  }
  func.func @transform_0(%arg0: i32) -> (i32, i32, i32) {
    %c0_i32 = arith.constant 0 : i32
    %c0_i32_0 = arith.constant 0 : i32
    %c0_i32_1 = arith.constant 0 : i32
    return %arg0, %c0_i32, %c0_i32_0 : i32, i32, i32
  }
  func.func @transform_1(%arg0: i32) -> (i32, i32, i32) {
    %c0_i32 = arith.constant 0 : i32
    %c0_i32_0 = arith.constant 0 : i32
    %c0_i32_1 = arith.constant 0 : i32
    %c0_i32_2 = arith.constant 0 : i32
    return %c0_i32, %c0_i32_0, %c0_i32_1 : i32, i32, i32
  }
  func.func @transform_2(%arg0: i32) -> (i32, i32) {
    %c0_i32 = arith.constant 0 : i32
    %c0_i32_0 = arith.constant 0 : i32
    %c0_i32_1 = arith.constant 0 : i32
    return %c0_i32, %c0_i32_0 : i32, i32
  }
  func.func @transform_3(%arg0: i32) -> (i32, i32) {
    %c0_i32 = arith.constant 0 : i32
    %c0_i32_0 = arith.constant 0 : i32
    %c0_i32_1 = arith.constant 0 : i32
    return %c0_i32, %c0_i32_0 : i32, i32
  }
  func.func @transform_4(%arg0: i32) -> (i32, i32) {
    %c0_i32 = arith.constant 0 : i32
    %c0_i32_0 = arith.constant 0 : i32
    %c0_i32_1 = arith.constant 0 : i32
    return %c0_i32, %c0_i32_0 : i32, i32
  }
  func.func @transform_5(%arg0: i32) -> (i32, i32, i32) {
    %c0_i32 = arith.constant 0 : i32
    %c0_i32_0 = arith.constant 0 : i32
    %c0_i32_1 = arith.constant 0 : i32
    return %arg0, %c0_i32, %c0_i32_0 : i32, i32, i32
  }
}

module attributes {stable_mosaic.version = 11 : i64} {
  func.func @_conv_block_kernel(%arg0: i32, %arg1: memref<1x26x64xbf16, #tpu.memory_space<vmem>>, %arg2: memref<9x64x128xbf16, #tpu.memory_space<vmem>>, %arg3: memref<1x128xf32, #tpu.memory_space<vmem>>, %arg4: memref<1x128xf32, #tpu.memory_space<vmem>>, %arg5: memref<4x16xbf16, #tpu.memory_space<vmem>>, %arg6: memref<1x4x128xbf16, #tpu.memory_space<vmem>>, %arg7: memref<26x64xf32, #tpu.memory_space<vmem>>, %arg8: memref<21x128xf32, #tpu.memory_space<vmem>>) attributes {dimension_semantics = [#tpu.dimension_semantics<parallel>], iteration_bounds = array<i64: 2>, scalar_prefetch = 0 : i64, scratch_operands = 2 : i64, tpu.core_type = #tpu.core_type<tc>, window_params = [{transform_indices = @transform_0, window_bounds = array<i64: 1, 26, 64>}, {pipeline_mode = #tpu.pipeline_mode<synchronous>, transform_indices = @transform_1, window_bounds = array<i64: 9, 64, 128>}, {pipeline_mode = #tpu.pipeline_mode<synchronous>, transform_indices = @transform_2, window_bounds = array<i64: 1, 128>}, {pipeline_mode = #tpu.pipeline_mode<synchronous>, transform_indices = @transform_3, window_bounds = array<i64: 1, 128>}, {pipeline_mode = #tpu.pipeline_mode<synchronous>, transform_indices = @transform_4, window_bounds = array<i64: 4, 16>}, {transform_indices = @transform_5, window_bounds = array<i64: 1, 4, 128>}]} {
    %c0 = arith.constant 0 : index
    %c0_0 = arith.constant 0 : index
    %c0_1 = arith.constant 0 : index
    %0 = vector.load %arg1[%c0, %c0_0, %c0_1] : memref<1x26x64xbf16, #tpu.memory_space<vmem>>, vector<1x26x64xbf16>
    %1 = vector.shape_cast %0 : vector<1x26x64xbf16> to vector<26x64xbf16>
    %2 = arith.extf %1 : vector<26x64xbf16> to vector<26x64xf32>
    %c0_2 = arith.constant 0 : index
    %c0_3 = arith.constant 0 : index
    %3 = vector.load %arg7[%c0_2, %c0_3] : memref<26x64xf32, #tpu.memory_space<vmem>>, vector<26x64xf32>
    tpu.vector_store %arg7[%c0_2, %c0_3], %2 {strides = array<i32>} : memref<26x64xf32, #tpu.memory_space<vmem>>, vector<26x64xf32>,
    %4 = tpu.iota {dimensions = array<i32: 0>} : vector<16x1xi32>
    %c3_i32 = arith.constant 3 : i32
    %5 = vector.broadcast %c3_i32 : i32 to vector<16x1xi32>
    %6 = arith.andi %4, %5 : vector<16x1xi32>
    %c1_i32 = arith.constant 1 : i32
    %7 = vector.broadcast %c1_i32 : i32 to vector<16x1xi32>
    %8 = arith.cmpi sge, %6, %7 : vector<16x1xi32>
    %c2_i32 = arith.constant 2 : i32
    %9 = vector.broadcast %c2_i32 : i32 to vector<16x1xi32>
    %10 = arith.cmpi sle, %6, %9 : vector<16x1xi32>
    %cst = arith.constant 0.000000e+00 : f32
    %11 = vector.broadcast %cst : f32 to vector<16x128xf32>
    %c0_4 = arith.constant 0 : index
    %c0_5 = arith.constant 0 : index
    %12 = vector.load %arg7[%c0_4, %c0_5] : memref<26x64xf32, #tpu.memory_space<vmem>>, vector<16x64xf32>
    %cst_6 = arith.constant 0.000000e+00 : f32
    %13 = vector.shape_cast %8 : vector<16x1xi1> to vector<16x1xi1>
    %14 = vector.broadcast %13 : vector<16x1xi1> to vector<16x64xi1>
    %15 = vector.broadcast %cst_6 : f32 to vector<16x64xf32>
    %16 = arith.select %14, %12, %15 : vector<16x64xi1>, vector<16x64xf32>
    %17 = arith.truncf %16 : vector<16x64xf32> to vector<16x64xbf16>
    %c0_7 = arith.constant 0 : index
    %c0_8 = arith.constant 0 : index
    %c0_9 = arith.constant 0 : index
    %18 = vector.load %arg2[%c0_7, %c0_8, %c0_9] : memref<9x64x128xbf16, #tpu.memory_space<vmem>>, vector<1x64x128xbf16>
    %19 = vector.shape_cast %18 : vector<1x64x128xbf16> to vector<64x128xbf16>
    %cst_10 = arith.constant dense<0.000000e+00> : vector<16x128xf32>
    %20 = tpu.matmul %17, %19, %cst_10 {dimension_numbers = #tpu.dot_dimension_numbers<[1], [0], [0], [1], [0, 0, 1, 1], [], []>} : vector<16x64xbf16>, vector<64x128xbf16>, vector<16x128xf32> -> vector<16x128xf32>
    %21 = arith.addf %11, %20 : vector<16x128xf32>
    %c1 = arith.constant 1 : index
    %c0_11 = arith.constant 0 : index
    %22 = vector.load %arg7[%c1, %c0_11] : memref<26x64xf32, #tpu.memory_space<vmem>>, vector<16x64xf32>
    %23 = arith.truncf %22 : vector<16x64xf32> to vector<16x64xbf16>
    %c1_12 = arith.constant 1 : index
    %c0_13 = arith.constant 0 : index
    %c0_14 = arith.constant 0 : index
    %24 = vector.load %arg2[%c1_12, %c0_13, %c0_14] : memref<9x64x128xbf16, #tpu.memory_space<vmem>>, vector<1x64x128xbf16>
    %25 = vector.shape_cast %24 : vector<1x64x128xbf16> to vector<64x128xbf16>
    %cst_15 = arith.constant dense<0.000000e+00> : vector<16x128xf32>
    %26 = tpu.matmul %23, %25, %cst_15 {dimension_numbers = #tpu.dot_dimension_numbers<[1], [0], [0], [1], [0, 0, 1, 1], [], []>} : vector<16x64xbf16>, vector<64x128xbf16>, vector<16x128xf32> -> vector<16x128xf32>
    %27 = arith.addf %21, %26 : vector<16x128xf32>
    %c2 = arith.constant 2 : index
    %c0_16 = arith.constant 0 : index
    %28 = vector.load %arg7[%c2, %c0_16] : memref<26x64xf32, #tpu.memory_space<vmem>>, vector<16x64xf32>
    %cst_17 = arith.constant 0.000000e+00 : f32
    %29 = vector.shape_cast %10 : vector<16x1xi1> to vector<16x1xi1>
    %30 = vector.broadcast %29 : vector<16x1xi1> to vector<16x64xi1>
    %31 = vector.broadcast %cst_17 : f32 to vector<16x64xf32>
    %32 = arith.select %30, %28, %31 : vector<16x64xi1>, vector<16x64xf32>
    %33 = arith.truncf %32 : vector<16x64xf32> to vector<16x64xbf16>
    %c2_18 = arith.constant 2 : index
    %c0_19 = arith.constant 0 : index
    %c0_20 = arith.constant 0 : index
    %34 = vector.load %arg2[%c2_18, %c0_19, %c0_20] : memref<9x64x128xbf16, #tpu.memory_space<vmem>>, vector<1x64x128xbf16>
    %35 = vector.shape_cast %34 : vector<1x64x128xbf16> to vector<64x128xbf16>
    %cst_21 = arith.constant dense<0.000000e+00> : vector<16x128xf32>
    %36 = tpu.matmul %33, %35, %cst_21 {dimension_numbers = #tpu.dot_dimension_numbers<[1], [0], [0], [1], [0, 0, 1, 1], [], []>} : vector<16x64xbf16>, vector<64x128xbf16>, vector<16x128xf32> -> vector<16x128xf32>
    %37 = arith.addf %27, %36 : vector<16x128xf32>
    %c4 = arith.constant 4 : index
    %c0_22 = arith.constant 0 : index
    %38 = vector.load %arg7[%c4, %c0_22] : memref<26x64xf32, #tpu.memory_space<vmem>>, vector<16x64xf32>
    %cst_23 = arith.constant 0.000000e+00 : f32
    %39 = vector.shape_cast %8 : vector<16x1xi1> to vector<16x1xi1>
    %40 = vector.broadcast %39 : vector<16x1xi1> to vector<16x64xi1>
    %41 = vector.broadcast %cst_23 : f32 to vector<16x64xf32>
    %42 = arith.select %40, %38, %41 : vector<16x64xi1>, vector<16x64xf32>
    %43 = arith.truncf %42 : vector<16x64xf32> to vector<16x64xbf16>
    %c3 = arith.constant 3 : index
    %c0_24 = arith.constant 0 : index
    %c0_25 = arith.constant 0 : index
    %44 = vector.load %arg2[%c3, %c0_24, %c0_25] : memref<9x64x128xbf16, #tpu.memory_space<vmem>>, vector<1x64x128xbf16>
    %45 = vector.shape_cast %44 : vector<1x64x128xbf16> to vector<64x128xbf16>
    %cst_26 = arith.constant dense<0.000000e+00> : vector<16x128xf32>
    %46 = tpu.matmul %43, %45, %cst_26 {dimension_numbers = #tpu.dot_dimension_numbers<[1], [0], [0], [1], [0, 0, 1, 1], [], []>} : vector<16x64xbf16>, vector<64x128xbf16>, vector<16x128xf32> -> vector<16x128xf32>
    %47 = arith.addf %37, %46 : vector<16x128xf32>
    %c5 = arith.constant 5 : index
    %c0_27 = arith.constant 0 : index
    %48 = vector.load %arg7[%c5, %c0_27] : memref<26x64xf32, #tpu.memory_space<vmem>>, vector<16x64xf32>
    %49 = arith.truncf %48 : vector<16x64xf32> to vector<16x64xbf16>
    %c4_28 = arith.constant 4 : index
    %c0_29 = arith.constant 0 : index
    %c0_30 = arith.constant 0 : index
    %50 = vector.load %arg2[%c4_28, %c0_29, %c0_30] : memref<9x64x128xbf16, #tpu.memory_space<vmem>>, vector<1x64x128xbf16>
    %51 = vector.shape_cast %50 : vector<1x64x128xbf16> to vector<64x128xbf16>
    %cst_31 = arith.constant dense<0.000000e+00> : vector<16x128xf32>
    %52 = tpu.matmul %49, %51, %cst_31 {dimension_numbers = #tpu.dot_dimension_numbers<[1], [0], [0], [1], [0, 0, 1, 1], [], []>} : vector<16x64xbf16>, vector<64x128xbf16>, vector<16x128xf32> -> vector<16x128xf32>
    %53 = arith.addf %47, %52 : vector<16x128xf32>
    %c6 = arith.constant 6 : index
    %c0_32 = arith.constant 0 : index
    %54 = vector.load %arg7[%c6, %c0_32] : memref<26x64xf32, #tpu.memory_space<vmem>>, vector<16x64xf32>
    %cst_33 = arith.constant 0.000000e+00 : f32
    %55 = vector.shape_cast %10 : vector<16x1xi1> to vector<16x1xi1>
    %56 = vector.broadcast %55 : vector<16x1xi1> to vector<16x64xi1>
    %57 = vector.broadcast %cst_33 : f32 to vector<16x64xf32>
    %58 = arith.select %56, %54, %57 : vector<16x64xi1>, vector<16x64xf32>
    %59 = arith.truncf %58 : vector<16x64xf32> to vector<16x64xbf16>
    %c5_34 = arith.constant 5 : index
    %c0_35 = arith.constant 0 : index
    %c0_36 = arith.constant 0 : index
    %60 = vector.load %arg2[%c5_34, %c0_35, %c0_36] : memref<9x64x128xbf16, #tpu.memory_space<vmem>>, vector<1x64x128xbf16>
    %61 = vector.shape_cast %60 : vector<1x64x128xbf16> to vector<64x128xbf16>
    %cst_37 = arith.constant dense<0.000000e+00> : vector<16x128xf32>
    %62 = tpu.matmul %59, %61, %cst_37 {dimension_numbers = #tpu.dot_dimension_numbers<[1], [0], [0], [1], [0, 0, 1, 1], [], []>} : vector<16x64xbf16>, vector<64x128xbf16>, vector<16x128xf32> -> vector<16x128xf32>
    %63 = arith.addf %53, %62 : vector<16x128xf32>
    %c8 = arith.constant 8 : index
    %c0_38 = arith.constant 0 : index
    %64 = vector.load %arg7[%c8, %c0_38] : memref<26x64xf32, #tpu.memory_space<vmem>>, vector<16x64xf32>
    %cst_39 = arith.constant 0.000000e+00 : f32
    %65 = vector.shape_cast %8 : vector<16x1xi1> to vector<16x1xi1>
    %66 = vector.broadcast %65 : vector<16x1xi1> to vector<16x64xi1>
    %67 = vector.broadcast %cst_39 : f32 to vector<16x64xf32>
    %68 = arith.select %66, %64, %67 : vector<16x64xi1>, vector<16x64xf32>
    %69 = arith.truncf %68 : vector<16x64xf32> to vector<16x64xbf16>
    %c6_40 = arith.constant 6 : index
    %c0_41 = arith.constant 0 : index
    %c0_42 = arith.constant 0 : index
    %70 = vector.load %arg2[%c6_40, %c0_41, %c0_42] : memref<9x64x128xbf16, #tpu.memory_space<vmem>>, vector<1x64x128xbf16>
    %71 = vector.shape_cast %70 : vector<1x64x128xbf16> to vector<64x128xbf16>
    %cst_43 = arith.constant dense<0.000000e+00> : vector<16x128xf32>
    %72 = tpu.matmul %69, %71, %cst_43 {dimension_numbers = #tpu.dot_dimension_numbers<[1], [0], [0], [1], [0, 0, 1, 1], [], []>} : vector<16x64xbf16>, vector<64x128xbf16>, vector<16x128xf32> -> vector<16x128xf32>
    %73 = arith.addf %63, %72 : vector<16x128xf32>
    %c9 = arith.constant 9 : index
    %c0_44 = arith.constant 0 : index
    %74 = vector.load %arg7[%c9, %c0_44] : memref<26x64xf32, #tpu.memory_space<vmem>>, vector<16x64xf32>
    %75 = arith.truncf %74 : vector<16x64xf32> to vector<16x64xbf16>
    %c7 = arith.constant 7 : index
    %c0_45 = arith.constant 0 : index
    %c0_46 = arith.constant 0 : index
    %76 = vector.load %arg2[%c7, %c0_45, %c0_46] : memref<9x64x128xbf16, #tpu.memory_space<vmem>>, vector<1x64x128xbf16>
    %77 = vector.shape_cast %76 : vector<1x64x128xbf16> to vector<64x128xbf16>
    %cst_47 = arith.constant dense<0.000000e+00> : vector<16x128xf32>
    %78 = tpu.matmul %75, %77, %cst_47 {dimension_numbers = #tpu.dot_dimension_numbers<[1], [0], [0], [1], [0, 0, 1, 1], [], []>} : vector<16x64xbf16>, vector<64x128xbf16>, vector<16x128xf32> -> vector<16x128xf32>
    %79 = arith.addf %73, %78 : vector<16x128xf32>
    %c10 = arith.constant 10 : index
    %c0_48 = arith.constant 0 : index
    %80 = vector.load %arg7[%c10, %c0_48] : memref<26x64xf32, #tpu.memory_space<vmem>>, vector<16x64xf32>
    %cst_49 = arith.constant 0.000000e+00 : f32
    %81 = vector.shape_cast %10 : vector<16x1xi1> to vector<16x1xi1>
    %82 = vector.broadcast %81 : vector<16x1xi1> to vector<16x64xi1>
    %83 = vector.broadcast %cst_49 : f32 to vector<16x64xf32>
    %84 = arith.select %82, %80, %83 : vector<16x64xi1>, vector<16x64xf32>
    %85 = arith.truncf %84 : vector<16x64xf32> to vector<16x64xbf16>
    %c8_50 = arith.constant 8 : index
    %c0_51 = arith.constant 0 : index
    %c0_52 = arith.constant 0 : index
    %86 = vector.load %arg2[%c8_50, %c0_51, %c0_52] : memref<9x64x128xbf16, #tpu.memory_space<vmem>>, vector<1x64x128xbf16>
    %87 = vector.shape_cast %86 : vector<1x64x128xbf16> to vector<64x128xbf16>
    %cst_53 = arith.constant dense<0.000000e+00> : vector<16x128xf32>
    %88 = tpu.matmul %85, %87, %cst_53 {dimension_numbers = #tpu.dot_dimension_numbers<[1], [0], [0], [1], [0, 0, 1, 1], [], []>} : vector<16x64xbf16>, vector<64x128xbf16>, vector<16x128xf32> -> vector<16x128xf32>
    %89 = arith.addf %79, %88 : vector<16x128xf32>
    %c0_54 = arith.constant 0 : index
    %c0_55 = arith.constant 0 : index
    %90 = vector.load %arg3[%c0_54, %c0_55] : memref<1x128xf32, #tpu.memory_space<vmem>>, vector<1x128xf32>
    %91 = vector.broadcast %90 : vector<1x128xf32> to vector<16x128xf32>
    %92 = arith.mulf %89, %91 : vector<16x128xf32>
    %c0_56 = arith.constant 0 : index
    %c0_57 = arith.constant 0 : index
    %93 = vector.load %arg4[%c0_56, %c0_57] : memref<1x128xf32, #tpu.memory_space<vmem>>, vector<1x128xf32>
    %94 = vector.broadcast %93 : vector<1x128xf32> to vector<16x128xf32>
    %95 = arith.addf %92, %94 : vector<16x128xf32>
    %cst_58 = arith.constant 0.000000e+00 : f32
    %96 = vector.broadcast %cst_58 : f32 to vector<16x128xf32>
    %97 = arith.maximumf %95, %96 : vector<16x128xf32>
    %c0_59 = arith.constant 0 : index
    %c0_60 = arith.constant 0 : index
    %98 = vector.load %arg8[%c0_59, %c0_60] : memref<21x128xf32, #tpu.memory_space<vmem>>, vector<16x128xf32>
    tpu.vector_store %arg8[%c0_59, %c0_60], %97 {strides = array<i32>} : memref<21x128xf32, #tpu.memory_space<vmem>>, vector<16x128xf32>,
    %cst_61 = arith.constant 0.000000e+00 : f32
    %99 = vector.broadcast %cst_61 : f32 to vector<5x128xf32>
    %c16 = arith.constant 16 : index
    %c0_62 = arith.constant 0 : index
    %100 = vector.load %arg8[%c16, %c0_62] : memref<21x128xf32, #tpu.memory_space<vmem>>, vector<5x128xf32>
    tpu.vector_store %arg8[%c16, %c0_62], %99 {strides = array<i32>} : memref<21x128xf32, #tpu.memory_space<vmem>>, vector<5x128xf32>,
    %c1_63 = arith.constant 1 : index
    %c0_64 = arith.constant 0 : index
    %101 = vector.load %arg8[%c1_63, %c0_64] : memref<21x128xf32, #tpu.memory_space<vmem>>, vector<16x128xf32>
    %102 = arith.maximumf %97, %101 : vector<16x128xf32>
    %c4_65 = arith.constant 4 : index
    %c0_66 = arith.constant 0 : index
    %103 = vector.load %arg8[%c4_65, %c0_66] : memref<21x128xf32, #tpu.memory_space<vmem>>, vector<16x128xf32>
    %c5_67 = arith.constant 5 : index
    %c0_68 = arith.constant 0 : index
    %104 = vector.load %arg8[%c5_67, %c0_68] : memref<21x128xf32, #tpu.memory_space<vmem>>, vector<16x128xf32>
    %105 = arith.maximumf %103, %104 : vector<16x128xf32>
    %106 = arith.maximumf %102, %105 : vector<16x128xf32>
    %c0_69 = arith.constant 0 : index
    %c0_70 = arith.constant 0 : index
    %107 = vector.load %arg5[%c0_69, %c0_70] : memref<4x16xbf16, #tpu.memory_space<vmem>>, vector<4x16xbf16>
    %108 = arith.truncf %106 : vector<16x128xf32> to vector<16x128xbf16>
    %cst_71 = arith.constant dense<0.000000e+00> : vector<4x128xf32>
    %109 = tpu.matmul %107, %108, %cst_71 {dimension_numbers = #tpu.dot_dimension_numbers<[1], [0], [0], [1], [0, 0, 1, 1], [], []>} : vector<4x16xbf16>, vector<16x128xbf16>, vector<4x128xf32> -> vector<4x128xf32>
    %110 = arith.truncf %109 : vector<4x128xf32> to vector<4x128xbf16>
    %c0_72 = arith.constant 0 : index
    %c0_73 = arith.constant 0 : index
    %c0_74 = arith.constant 0 : index
    %111 = vector.load %arg6[%c0_72, %c0_73, %c0_74] : memref<1x4x128xbf16, #tpu.memory_space<vmem>>, vector<1x4x128xbf16>
    %112 = vector.shape_cast %111 : vector<1x4x128xbf16> to vector<4x128xbf16>
    %113 = vector.shape_cast %110 : vector<4x128xbf16> to vector<1x4x128xbf16>
    tpu.vector_store %arg6[%c0_72, %c0_73, %c0_74], %113 {strides = array<i32>} : memref<1x4x128xbf16, #tpu.memory_space<vmem>>, vector<1x4x128xbf16>,
    return
  }
  func.func @transform_0(%arg0: i32) -> (i32, i32, i32) {
    %c0_i32 = arith.constant 0 : i32
    %c0_i32_0 = arith.constant 0 : i32
    %c0_i32_1 = arith.constant 0 : i32
    return %arg0, %c0_i32, %c0_i32_0 : i32, i32, i32
  }
  func.func @transform_1(%arg0: i32) -> (i32, i32, i32) {
    %c0_i32 = arith.constant 0 : i32
    %c0_i32_0 = arith.constant 0 : i32
    %c0_i32_1 = arith.constant 0 : i32
    %c0_i32_2 = arith.constant 0 : i32
    return %c0_i32, %c0_i32_0, %c0_i32_1 : i32, i32, i32
  }
  func.func @transform_2(%arg0: i32) -> (i32, i32) {
    %c0_i32 = arith.constant 0 : i32
    %c0_i32_0 = arith.constant 0 : i32
    %c0_i32_1 = arith.constant 0 : i32
    return %c0_i32, %c0_i32_0 : i32, i32
  }
  func.func @transform_3(%arg0: i32) -> (i32, i32) {
    %c0_i32 = arith.constant 0 : i32
    %c0_i32_0 = arith.constant 0 : i32
    %c0_i32_1 = arith.constant 0 : i32
    return %c0_i32, %c0_i32_0 : i32, i32
  }
  func.func @transform_4(%arg0: i32) -> (i32, i32) {
    %c0_i32 = arith.constant 0 : i32
    %c0_i32_0 = arith.constant 0 : i32
    %c0_i32_1 = arith.constant 0 : i32
    return %c0_i32, %c0_i32_0 : i32, i32
  }
  func.func @transform_5(%arg0: i32) -> (i32, i32, i32) {
    %c0_i32 = arith.constant 0 : i32
    %c0_i32_0 = arith.constant 0 : i32
    %c0_i32_1 = arith.constant 0 : i32
    return %arg0, %c0_i32, %c0_i32_0 : i32, i32, i32
  }
}

module attributes {stable_mosaic.version = 11 : i64} {
  func.func @_head_kernel(%arg0: memref<2x4x128xbf16, #tpu.memory_space<vmem>>, %arg1: memref<128x256xbf16, #tpu.memory_space<vmem>>, %arg2: memref<1x256xf32, #tpu.memory_space<vmem>>, %arg3: memref<256x128xbf16, #tpu.memory_space<vmem>>, %arg4: memref<1x128xf32, #tpu.memory_space<vmem>>, %arg5: memref<2x128xf32, #tpu.memory_space<vmem>>) attributes {dimension_semantics = [], scalar_prefetch = 0 : i64, scratch_operands = 0 : i64, tpu.core_type = #tpu.core_type<tc>} {
    %c0 = arith.constant 0 : index
    %c0_0 = arith.constant 0 : index
    %c0_1 = arith.constant 0 : index
    %0 = vector.load %arg0[%c0, %c0_0, %c0_1] : memref<2x4x128xbf16, #tpu.memory_space<vmem>>, vector<2x4x128xbf16>
    %1 = arith.extf %0 : vector<2x4x128xbf16> to vector<2x4x128xf32>
    %cst = arith.constant dense<0.000000e+00> : vector<2x128xf32>
    %2 = vector.multi_reduction <add>, %1, %cst [1] : vector<2x4x128xf32> to vector<2x128xf32>
    %cst_2 = arith.constant 2.500000e-01 : f32
    %3 = vector.broadcast %cst_2 : f32 to vector<2x128xf32>
    %4 = arith.mulf %2, %3 : vector<2x128xf32>
    %5 = arith.truncf %4 : vector<2x128xf32> to vector<2x128xbf16>
    %c0_3 = arith.constant 0 : index
    %c0_4 = arith.constant 0 : index
    %6 = vector.load %arg1[%c0_3, %c0_4] : memref<128x256xbf16, #tpu.memory_space<vmem>>, vector<128x256xbf16>
    %cst_5 = arith.constant dense<0.000000e+00> : vector<2x256xf32>
    %7 = tpu.matmul %5, %6, %cst_5 {dimension_numbers = #tpu.dot_dimension_numbers<[1], [0], [0], [1], [0, 0, 1, 1], [], []>} : vector<2x128xbf16>, vector<128x256xbf16>, vector<2x256xf32> -> vector<2x256xf32>
    %c0_6 = arith.constant 0 : index
    %c0_7 = arith.constant 0 : index
    %8 = vector.load %arg2[%c0_6, %c0_7] : memref<1x256xf32, #tpu.memory_space<vmem>>, vector<1x256xf32>
    %9 = vector.broadcast %8 : vector<1x256xf32> to vector<2x256xf32>
    %10 = arith.addf %7, %9 : vector<2x256xf32>
    %cst_8 = arith.constant 0.000000e+00 : f32
    %11 = vector.broadcast %cst_8 : f32 to vector<2x256xf32>
    %12 = arith.maximumf %10, %11 : vector<2x256xf32>
    %13 = arith.truncf %12 : vector<2x256xf32> to vector<2x256xbf16>
    %c0_9 = arith.constant 0 : index
    %c0_10 = arith.constant 0 : index
    %14 = vector.load %arg3[%c0_9, %c0_10] : memref<256x128xbf16, #tpu.memory_space<vmem>>, vector<256x128xbf16>
    %cst_11 = arith.constant dense<0.000000e+00> : vector<2x128xf32>
    %15 = tpu.matmul %13, %14, %cst_11 {dimension_numbers = #tpu.dot_dimension_numbers<[1], [0], [0], [1], [0, 0, 1, 1], [], []>} : vector<2x256xbf16>, vector<256x128xbf16>, vector<2x128xf32> -> vector<2x128xf32>
    %c0_12 = arith.constant 0 : index
    %c0_13 = arith.constant 0 : index
    %16 = vector.load %arg4[%c0_12, %c0_13] : memref<1x128xf32, #tpu.memory_space<vmem>>, vector<1x128xf32>
    %17 = vector.broadcast %16 : vector<1x128xf32> to vector<2x128xf32>
    %18 = arith.addf %15, %17 : vector<2x128xf32>
    %c0_14 = arith.constant 0 : index
    %c0_15 = arith.constant 0 : index
    %19 = vector.load %arg5[%c0_14, %c0_15] : memref<2x128xf32, #tpu.memory_space<vmem>>, vector<2x128xf32>
    tpu.vector_store %arg5[%c0_14, %c0_15], %18 {strides = array<i32>} : memref<2x128xf32, #tpu.memory_space<vmem>>, vector<2x128xf32>,
    return
  }
}

</mosaic_0001>

<llo_original>
// kernel: basic_cnn_forward.6
$region0: #{basic_cnn_forward.6}
  #allocation0 [shape = 'u32[]', space=smem, size = 0x4, offset = 0x4, fixed_abs, tag = 'smem constant byte address 0x4 - core index']
  #allocation1 [shape = 'u32[144,128]{1,0:T(1,128)}', space=vmem, size = 0x12000, scoped, tag = 'internal scratch']
  #allocation2 [shape = 'f32[26,64]{1,0:T(8,128)}', space=vmem, size = 0x4000, scoped, tag = 'scratch operand']
  #allocation3 [shape = 'f32[21,128]{1,0:T(8,128)}', space=vmem, size = 0x3000, scoped, tag = 'scratch operand']
  %s0 = inlined_call_operand.vmem [shape: bf16[2,26,64], index: 0, kind: input, shape index: {}]
  %s1 = inlined_call_operand.vmem [shape: bf16[9,64,128], index: 1, kind: input, shape index: {}]
  %s2 = inlined_call_operand.vmem [shape: f32[1,128], index: 2, kind: input, shape index: {}]
  %s3 = inlined_call_operand.vmem [shape: f32[1,128], index: 3, kind: input, shape index: {}]
  %s4 = inlined_call_operand.vmem [shape: bf16[4,16], index: 4, kind: input, shape index: {}]
  %s5 = inlined_call_operand.vmem [shape: bf16[2,4,128], index: 5, kind: output, shape index: {}]
  %s6 = sld [smem:[#allocation0]]
  $region53: #{basic_cnn_forward.6} parent=0
    _
  %s8 = ssub.s32 1, %s6
  %s9 = scalar_select 0, %s8, %s6
  loop: start=0, step=1, limit=4
  $region2: #{basic_cnn_forward.6} parent=0 // loop_pre_header
    _
  $region3: #{basic_cnn_forward.6} parent=0 // loop_header
    %s11 = sphi 0, %s15
    %p12 = scmp.ge.s32.totalorder %s11, 4
    %s21 = sphi 0, %s23
    %s24 = sphi 0, %s21
    %s25 = sphi 0, %s24
    %s41 = sphi 0, %s25
    %s45 = sphi 0, %s45
    %s47 = sphi 0, %s45
    %s48 = sphi 0, %s47
    %s62 = sphi 0, %s48
    %s66 = sphi 0, %s66
    %s68 = sphi 0, %s66
    %s69 = sphi 0, %s68
    %s83 = sphi 0, %s69
    %s87 = sphi 0, %s87
    %s89 = sphi 0, %s87
    %s90 = sphi 0, %s89
    %s104 = sphi 0, %s90
    %s108 = sphi 0, %s108
    %s110 = sphi 0, %s108
    %s111 = sphi 0, %s110
    %s125 = sphi 0, %s111
    %s131 = sphi 0, %s133
    %s134 = sphi 0, %s131
    %s135 = sphi 0, %s134
    %s151 = sphi 0, %s135
  $region4: #{basic_cnn_forward.6} parent=0 // loop_header_branch
    %14 = sbr.rel (%p12) target = $region8
  $region5: #{basic_cnn_forward.6} parent=0 // loop_body
    %s16 = ssub.s32 %s11, 1
    %s17 = ssub.s32 %s11, 2
    %s18 = sadd.s32 %s11, 1
    %s19 = ssub.s32 %s11, %s18
    %p20 = scmp.eq.s32.totalorder %s19, 0
    %s22 = sadd.s32 %s21, 1
    %s23 = scalar_select %p20, %s21, %s22
    %p26 = pneg %p20
    %p27 = scmp.eq.s32.totalorder %s11, 1
    %p28 = por %p26, %p27
    %p29 = scmp.ne.s32.totalorder %s21, %s24
    %p30 = scmp.eq.s32.totalorder %s11, 0
    %p31 = por %p29, %p30
    %p32 = scmp.ne.s32.totalorder %s21, %s24
    %p33 = scmp.eq.s32.totalorder %s16, 1
    %p34 = por %p32, %p33
    %p35 = scmp.ne.s32.totalorder %s24, %s25
    %p36 = scmp.eq.s32.totalorder %s16, 0
    %p37 = por %p35, %p36
    %p38 = scmp.ne.s32.totalorder %s24, %s25
    %p39 = scmp.eq.s32.totalorder %s17, 1
    %p40 = por %p38, %p39
    %p42 = scmp.ne.s32.totalorder %s25, %s41
    %p43 = scmp.eq.s32.totalorder %s17, 0
    %p44 = por %p42, %p43
    %s46 = sadd.s32 %s45, 1
    %p49 = scmp.eq.s32.totalorder %s11, 1
    %p50 = scmp.ne.s32.totalorder %s45, %s47
    %p51 = scmp.eq.s32.totalorder %s11, 0
    %p52 = por %p50, %p51
    %p53 = scmp.ne.s32.totalorder %s45, %s47
    %p54 = scmp.eq.s32.totalorder %s16, 1
    %p55 = por %p53, %p54
    %p56 = scmp.ne.s32.totalorder %s47, %s48
    %p57 = scmp.eq.s32.totalorder %s16, 0
    %p58 = por %p56, %p57
    %p59 = scmp.ne.s32.totalorder %s47, %s48
    %p60 = scmp.eq.s32.totalorder %s17, 1
    %p61 = por %p59, %p60
    %p63 = scmp.ne.s32.totalorder %s48, %s62
    %p64 = scmp.eq.s32.totalorder %s17, 0
    %p65 = por %p63, %p64
    %s67 = sadd.s32 %s66, 1
    %p70 = scmp.eq.s32.totalorder %s11, 1
    %p71 = scmp.ne.s32.totalorder %s66, %s68
    %p72 = scmp.eq.s32.totalorder %s11, 0
    %p73 = por %p71, %p72
    %p74 = scmp.ne.s32.totalorder %s66, %s68
    %p75 = scmp.eq.s32.totalorder %s16, 1
    %p76 = por %p74, %p75
    %p77 = scmp.ne.s32.totalorder %s68, %s69
    %p78 = scmp.eq.s32.totalorder %s16, 0
    %p79 = por %p77, %p78
    %p80 = scmp.ne.s32.totalorder %s68, %s69
    %p81 = scmp.eq.s32.totalorder %s17, 1
    %p82 = por %p80, %p81
    %p84 = scmp.ne.s32.totalorder %s69, %s83
    %p85 = scmp.eq.s32.totalorder %s17, 0
    %p86 = por %p84, %p85
    %s88 = sadd.s32 %s87, 1
    %p91 = scmp.eq.s32.totalorder %s11, 1
    %p92 = scmp.ne.s32.totalorder %s87, %s89
    %p93 = scmp.eq.s32.totalorder %s11, 0
    %p94 = por %p92, %p93
    %p95 = scmp.ne.s32.totalorder %s87, %s89
    %p96 = scmp.eq.s32.totalorder %s16, 1
    %p97 = por %p95, %p96
    %p98 = scmp.ne.s32.totalorder %s89, %s90
    %p99 = scmp.eq.s32.totalorder %s16, 0
    %p100 = por %p98, %p99
    %p101 = scmp.ne.s32.totalorder %s89, %s90
    %p102 = scmp.eq.s32.totalorder %s17, 1
    %p103 = por %p101, %p102
    %p105 = scmp.ne.s32.totalorder %s90, %s104
    %p106 = scmp.eq.s32.totalorder %s17, 0
    %p107 = por %p105, %p106
    %s109 = sadd.s32 %s108, 1
    %p112 = scmp.eq.s32.totalorder %s11, 1
    %p113 = scmp.ne.s32.totalorder %s108, %s110
    %p114 = scmp.eq.s32.totalorder %s11, 0
    %p115 = por %p113, %p114
    %p116 = scmp.ne.s32.totalorder %s108, %s110
    %p117 = scmp.eq.s32.totalorder %s16, 1
    %p118 = por %p116, %p117
    %p119 = scmp.ne.s32.totalorder %s110, %s111
    %p120 = scmp.eq.s32.totalorder %s16, 0
    %p121 = por %p119, %p120
    %p122 = scmp.ne.s32.totalorder %s110, %s111
    %p123 = scmp.eq.s32.totalorder %s17, 1
    %p124 = por %p122, %p123
    %p126 = scmp.ne.s32.totalorder %s111, %s125
    %p127 = scmp.eq.s32.totalorder %s17, 0
    %p128 = por %p126, %p127
    %s129 = ssub.s32 %s11, %s18
    %p130 = scmp.eq.s32.totalorder %s129, 0
    %s132 = sadd.s32 %s131, 1
    %s133 = scalar_select %p130, %s131, %s132
    %p136 = pneg %p130
    %p137 = scmp.eq.s32.totalorder %s11, 1
    %p138 = por %p136, %p137
    %p139 = scmp.ne.s32.totalorder %s131, %s134
    %p140 = scmp.eq.s32.totalorder %s11, 0
    %p141 = por %p139, %p140
    %p142 = scmp.ne.s32.totalorder %s131, %s134
    %p143 = scmp.eq.s32.totalorder %s16, 1
    %p144 = por %p142, %p143
    %p145 = scmp.ne.s32.totalorder %s134, %s135
    %p146 = scmp.eq.s32.totalorder %s16, 0
    %p147 = por %p145, %p146
    %p148 = scmp.ne.s32.totalorder %s134, %s135
    %p149 = scmp.eq.s32.totalorder %s17, 1
    %p150 = por %p148, %p149
    %p152 = scmp.ne.s32.totalorder %s135, %s151
    %p153 = scmp.eq.s32.totalorder %s17, 0
    %p154 = por %p152, %p153
    %p155 = scmp.le.s32.totalorder 1, %s11
    %p156 = scmp.lt.s32.totalorder %s11, 3
    %p157 = pnand %p155, %p156
    %p158 = pneg %p157
    // Predicated region
    $region9: #{basic_cnn_forward.6} parent=5 // pred_check
      _
    $region10: #{basic_cnn_forward.6} parent=5 // pred_check_branch
      %160 = sbr.rel (%p157) target = $region12
    $region11: #{basic_cnn_forward.6} parent=5 // pred_region
      %s161 = ssub.s32 %s11, 1
      // Predicated region
      $region13: #{basic_cnn_forward.6} parent=11 // pred_check
        %p162 = pneg %p58
      $region14: #{basic_cnn_forward.6} parent=11 // pred_check_branch
        %164 = sbr.rel (%p162) target = $region16
      $region15: #{basic_cnn_forward.6} parent=11 // pred_region
        _
      $region16: #{basic_cnn_forward.6} parent=11 // pred_fallthru
        _
      // Predicated region
      $region17: #{basic_cnn_forward.6} parent=11 // pred_check
        %p165 = pneg %p79
      $region18: #{basic_cnn_forward.6} parent=11 // pred_check_branch
        %167 = sbr.rel (%p165) target = $region20
      $region19: #{basic_cnn_forward.6} parent=11 // pred_region
        _
      $region20: #{basic_cnn_forward.6} parent=11 // pred_fallthru
        _
      // Predicated region
      $region21: #{basic_cnn_forward.6} parent=11 // pred_check
        %p168 = pneg %p100
      $region22: #{basic_cnn_forward.6} parent=11 // pred_check_branch
        %170 = sbr.rel (%p168) target = $region24
      $region23: #{basic_cnn_forward.6} parent=11 // pred_region
        _
      $region24: #{basic_cnn_forward.6} parent=11 // pred_fallthru
        _
      // Predicated region
      $region25: #{basic_cnn_forward.6} parent=11 // pred_check
        %p171 = pneg %p121
      $region26: #{basic_cnn_forward.6} parent=11 // pred_check_branch
        %173 = sbr.rel (%p171) target = $region28
      $region27: #{basic_cnn_forward.6} parent=11 // pred_region
        _
      $region28: #{basic_cnn_forward.6} parent=11 // pred_fallthru
        _
    $region12: #{basic_cnn_forward.6} parent=5 // pred_fallthru
      _
    %p174 = scmp.lt.s32.totalorder %s11, 2
    // Predicated region
    $region29: #{basic_cnn_forward.6} parent=5 // pred_check
      %p175 = pneg %p174
    $region30: #{basic_cnn_forward.6} parent=5 // pred_check_branch
      %177 = sbr.rel (%p175) target = $region32
    $region31: #{basic_cnn_forward.6} parent=5 // pred_region
      // Predicated region
      $region33: #{basic_cnn_forward.6} parent=31 // pred_check
        %p178 = pneg %p31
      $region34: #{basic_cnn_forward.6} parent=31 // pred_check_branch
        %180 = sbr.rel (%p178) target = $region36
      $region35: #{basic_cnn_forward.6} parent=31 // pred_region
        %p181 = scmp.lt.s32.totalorder %s11, 1
        %s182 = scalar_select %p181, %s11, 1
        %s183 = smul.addr %s182, 4
        %s184 = smul.addr %s183, 4
        %s185 = scalar_lea.vmem %s0, %s184
      $region36: #{basic_cnn_forward.6} parent=31 // pred_fallthru
        _
    $region32: #{basic_cnn_forward.6} parent=5 // pred_fallthru
      _
    %p186 = scmp.le.s32.totalorder 1, %s11
    %p187 = scmp.lt.s32.totalorder %s11, 3
    %p188 = pnand %p186, %p187
    %p189 = pneg %p188
    // Predicated region
    $region37: #{basic_cnn_forward.6} parent=5 // pred_check
      _
    $region38: #{basic_cnn_forward.6} parent=5 // pred_check_branch
      %191 = sbr.rel (%p188) target = $region40
    $region39: #{basic_cnn_forward.6} parent=5 // pred_region
      %s192 = ssub.s32 %s11, 1
      %p193 = scmp.lt.s32.totalorder %s16, 1
      %s194 = scalar_select %p193, %s16, 1
      %s195 = smul.addr %s194, 4
      %s196 = smul.addr %s195, 4
      %s197 = scalar_lea.vmem %s0, %s196
      %p198 = pneg %p37
      %p199 = pneg %p34
      %p200 = pneg %p58
      %p201 = pneg %p55
      %p202 = pneg %p79
      %p203 = pneg %p76
      %p204 = pneg %p100
      %p205 = pneg %p97
      %p206 = pneg %p121
      %p207 = pneg %p118
      %p208 = pneg %p147
      %p209 = pneg %p144
      %p210 = scmp.lt.s32.totalorder %s16, 1
      %s211 = scalar_select %p210, %s16, 1
      %s212 = smul.addr %s211, 2
      %s213 = scalar_lea.vmem %s5, %s212
      %p214 = scmp.lt.s32.totalorder %s16, 1
      %s215 = scalar_select %p214, %s16, 1
      %s216 = smul.addr %s215, 4
      %s217 = smul.addr %s216, 4
      %s218 = scalar_lea.vmem %s0, %s217
      %p219 = scmp.lt.s32.totalorder %s16, 1
      %s220 = scalar_select %p219, %s16, 1
      %s221 = smul.addr %s220, 2
      %s222 = scalar_lea.vmem %s5, %s221
      %v224 = vld [vmem:[%s218] sm:$0xf]
      %v225 = vld [vmem:[%s218 + $0x4] sm:$0xf]
      %v226 = vld [vmem:[%s218 + $0x8] sm:$0xf]
      %v227 = vld [vmem:[%s218 + $0xc] sm:$0x1]
      %v228 = vunpack.c.l.bf16 %v224
      %v229 = vunpack.c.l.bf16 %v225
      %v230 = vunpack.c.l.bf16 %v226
      %v231 = vunpack.c.l.bf16 %v227
      %vm232 = vcmask 523264
      %233 = vst.msk [vmem:[#allocation2] sm:$0xff] %vm232, %v228
      %234 = vst.msk [vmem:[#allocation2 + $0x8] sm:$0xff] %vm232, %v229
      %235 = vst.msk [vmem:[#allocation2 + $0x10] sm:$0xff] %vm232, %v230
      %vm236 = vcmask 517120
      %237 = vst.msk [vmem:[#allocation2 + $0x18] sm:$0x3] %vm236, %v231
      %v238 = vlaneseq
      %v239 = vshrl.u32 %v238, 7
      %v240 = vadd.s32 %v239, 8
      %v241 = vand.u32 %v239, 3
      %v242 = vand.u32 %v240, 3
      %vm243 = vcmp.ge.s32.totalorder %v241, 1
      %vm244 = vcmp.ge.s32.totalorder %v242, 1
      %vm245 = vcmp.le.s32.totalorder %v241, 2
      %vm246 = vcmp.le.s32.totalorder %v242, 2
      %v247 = vld [vmem:[#allocation2] sm:$0xff]
      %v248 = vld [vmem:[#allocation2 + $0x8] sm:$0xff]
      %v249 = vsel %vm243, 1, 0
      %v250 = vsel %vm244, 1, 0
      %vm251 = vcmp.eq.s32.totalorder %v249, 1
      %vm252 = vcmp.eq.s32.totalorder %v250, 1
      %v253 = vsel %vm251, %v247, 0.0
      %v254 = vsel %vm252, %v248, 0.0
      %v255 = vpack.c.bf16 %v254, %v253
      %v256 = vld [vmem:[%s1] sm:$0xf]
      %v257 = vld [vmem:[%s1 + $0x4] sm:$0xf]
      %v258 = vld [vmem:[%s1 + $0x8] sm:$0xf]
      %v259 = vld [vmem:[%s1 + $0xc] sm:$0xf]
      %v260 = vld [vmem:[%s1 + $0x10] sm:$0xf]
      %v261 = vld [vmem:[%s1 + $0x14] sm:$0xf]
      %v262 = vld [vmem:[%s1 + $0x18] sm:$0xf]
      %v263 = vld [vmem:[%s1 + $0x1c] sm:$0xf]
      %v264 = vld [vmem:[#allocation2 + $0x1] sm:$0xff]
      %v265 = vld [vmem:[#allocation2 + $0x9] sm:$0xff]
      %v266 = vpack.c.bf16 %v265, %v264
      %s267 = scalar_lea.vmem %s1, 32
      %v268 = vld [vmem:[%s267] sm:$0xf]
      %v269 = vld [vmem:[%s267 + $0x4] sm:$0xf]
      %v270 = vld [vmem:[%s267 + $0x8] sm:$0xf]
      %v271 = vld [vmem:[%s267 + $0xc] sm:$0xf]
      %v272 = vld [vmem:[%s267 + $0x10] sm:$0xf]
      %v273 = vld [vmem:[%s267 + $0x14] sm:$0xf]
      %v274 = vld [vmem:[%s267 + $0x18] sm:$0xf]
      %v275 = vld [vmem:[%s267 + $0x1c] sm:$0xf]
      %v284 = vunpack.c.l.b16 %v268
      %v285 = vunpack.c.l.b16 %v269
      %v286 = vunpack.c.l.b16 %v270
      %v287 = vunpack.c.l.b16 %v271
      %v288 = vunpack.c.l.b16 %v272
      %v289 = vunpack.c.l.b16 %v273
      %v290 = vunpack.c.l.b16 %v274
      %v291 = vunpack.c.l.b16 %v275
      %v292 = vpack.c.b16 %v285, %v284
      %v293 = vpack.c.b16 %v287, %v286
      %v294 = vpack.c.b16 %v289, %v288
      %v295 = vpack.c.b16 %v291, %v290
      %v301 = vsel %vm232, %v266, 0
      %303 = vmatprep.subr.bf16.mxu0 0
      %304 = vmatpush1.bf16.msra.mxu0 0
      %305 = vmatprep.subr.bf16.mxu0 0
      %306 = vmatpush1.bf16.msra.mxu0 0
      %307 = vmatprep.subr.bf16.mxu0 0
      %308 = vmatpush1.bf16.msra.mxu0 0
      %309 = vmatprep.subr.bf16.mxu0 0
      %310 = vmatpush1.bf16.msra.mxu0 0
      %311 = vmatprep.subr.bf16.mxu0 0
      %312 = vmatpush1.bf16.msra.mxu0 %v295
      %313 = vmatprep.subr.bf16.mxu0 0
      %314 = vmatpush1.bf16.msra.mxu0 %v294
      %315 = vmatprep.subr.bf16.mxu0 0
      %316 = vmatpush1.bf16.msra.mxu0 %v293
      %317 = vmatprep.subr.bf16.mxu0 0
      %318 = vmatpush1.bf16.msra.mxu0 %v292
      %319 = vmatprep.subr.bf16.mxu0 0
      %320 = vmatpush2.bf16.msra.mxu0 0
      %321 = vmatprep.subr.bf16.mxu0 0
      %322 = vmatpush2.bf16.msra.mxu0 0
      %323 = vmatprep.subr.bf16.mxu0 0
      %324 = vmatpush2.bf16.msra.mxu0 0
      %325 = vmatprep.subr.bf16.mxu0 0
      %326 = vmatpush2.bf16.msra.mxu0 0
      %327 = vmatprep.subr.bf16.mxu0 0
      %328 = vmatpush2.bf16.msra.mxu0 0
      %329 = vmatprep.subr.bf16.mxu0 0
      %330 = vmatpush2.bf16.msra.mxu0 0
      %331 = vmatprep.subr.bf16.mxu0 0
      %332 = vmatpush2.bf16.msra.mxu0 0
      %333 = vmatprep.subr.bf16.mxu0 0
      %334 = vmatpush2.bf16.msra.mxu0 0
      %335 = vmatprep.mubr.bf16.mxu0 0
      %336 = vmatmul.mubr.bf16.gmra.mxu0 %v301
      %v337 = vpop.f32.mrf.mxu0
      %v338 = vadd.f32 0.0, %v337
      %v339 = vpop.f32.mrf.mxu0
      %v340 = vpop.f32.mrf.mxu0
      %v341 = vadd.f32 0.0, %v340
      %v342 = vpop.f32.mrf.mxu0
      %343 = vdwg.mxu0
      %v352 = vunpack.c.l.b16 %v256
      %v353 = vunpack.c.l.b16 %v257
      %v354 = vunpack.c.l.b16 %v258
      %v355 = vunpack.c.l.b16 %v259
      %v356 = vunpack.c.l.b16 %v260
      %v357 = vunpack.c.l.b16 %v261
      %v358 = vunpack.c.l.b16 %v262
      %v359 = vunpack.c.l.b16 %v263
      %v360 = vpack.c.b16 %v353, %v352
      %v361 = vpack.c.b16 %v355, %v354
      %v362 = vpack.c.b16 %v357, %v356
      %v363 = vpack.c.b16 %v359, %v358
      %v369 = vsel %vm232, %v255, 0
      %371 = vmatprep.subr.bf16.mxu0 0
      %372 = vmatpush1.bf16.msra.mxu0 0
      %373 = vmatprep.subr.bf16.mxu0 0
      %374 = vmatpush1.bf16.msra.mxu0 0
      %375 = vmatprep.subr.bf16.mxu0 0
      %376 = vmatpush1.bf16.msra.mxu0 0
      %377 = vmatprep.subr.bf16.mxu0 0
      %378 = vmatpush1.bf16.msra.mxu0 0
      %379 = vmatprep.subr.bf16.mxu0 0
      %380 = vmatpush1.bf16.msra.mxu0 %v363
      %381 = vmatprep.subr.bf16.mxu0 0
      %382 = vmatpush1.bf16.msra.mxu0 %v362
      %383 = vmatprep.subr.bf16.mxu0 0
      %384 = vmatpush1.bf16.msra.mxu0 %v361
      %385 = vmatprep.subr.bf16.mxu0 0
      %386 = vmatpush1.bf16.msra.mxu0 %v360
      %387 = vmatprep.subr.bf16.mxu0 0
      %388 = vmatpush2.bf16.msra.mxu0 0
      %389 = vmatprep.subr.bf16.mxu0 0
      %390 = vmatpush2.bf16.msra.mxu0 0
      %391 = vmatprep.subr.bf16.mxu0 0
      %392 = vmatpush2.bf16.msra.mxu0 0
      %393 = vmatprep.subr.bf16.mxu0 0
      %394 = vmatpush2.bf16.msra.mxu0 0
      %395 = vmatprep.subr.bf16.mxu0 0
      %396 = vmatpush2.bf16.msra.mxu0 0
      %397 = vmatprep.subr.bf16.mxu0 0
      %398 = vmatpush2.bf16.msra.mxu0 0
      %399 = vmatprep.subr.bf16.mxu0 0
      %400 = vmatpush2.bf16.msra.mxu0 0
      %401 = vmatprep.subr.bf16.mxu0 0
      %402 = vmatpush2.bf16.msra.mxu0 0
      %403 = vmatprep.mubr.bf16.mxu0 0
      %404 = vmatmul.mubr.bf16.gmra.mxu0 %v369
      %v405 = vpop.f32.mrf.mxu0
      %v406 = vadd.f32 %v338, %v405
      %v407 = vpop.f32.mrf.mxu0
      %v408 = vpop.f32.mrf.mxu0
      %v409 = vadd.f32 %v341, %v408
      %v410 = vpop.f32.mrf.mxu0
      %411 = vdwg.mxu0
      %v412 = vld [vmem:[#allocation2 + $0x2] sm:$0xff]
      %v413 = vld [vmem:[#allocation2 + $0xa] sm:$0xff]
      %v414 = vsel %vm245, 1, 0
      %v415 = vsel %vm246, 1, 0
      %vm416 = vcmp.eq.s32.totalorder %v414, 1
      %vm417 = vcmp.eq.s32.totalorder %v415, 1
      %v418 = vsel %vm416, %v412, 0.0
      %v419 = vsel %vm417, %v413, 0.0
      %v420 = vpack.c.bf16 %v419, %v418
      %s421 = scalar_lea.vmem %s1, 64
      %v422 = vld [vmem:[%s421] sm:$0xf]
      %v423 = vld [vmem:[%s421 + $0x4] sm:$0xf]
      %v424 = vld [vmem:[%s421 + $0x8] sm:$0xf]
      %v425 = vld [vmem:[%s421 + $0xc] sm:$0xf]
      %v426 = vld [vmem:[%s421 + $0x10] sm:$0xf]
      %v427 = vld [vmem:[%s421 + $0x14] sm:$0xf]
      %v428 = vld [vmem:[%s421 + $0x18] sm:$0xf]
      %v429 = vld [vmem:[%s421 + $0x1c] sm:$0xf]
      %v438 = vunpack.c.l.b16 %v422
      %v439 = vunpack.c.l.b16 %v423
      %v440 = vunpack.c.l.b16 %v424
      %v441 = vunpack.c.l.b16 %v425
      %v442 = vunpack.c.l.b16 %v426
      %v443 = vunpack.c.l.b16 %v427
      %v444 = vunpack.c.l.b16 %v428
      %v445 = vunpack.c.l.b16 %v429
      %v446 = vpack.c.b16 %v439, %v438
      %v447 = vpack.c.b16 %v441, %v440
      %v448 = vpack.c.b16 %v443, %v442
      %v449 = vpack.c.b16 %v445, %v444
      %v455 = vsel %vm232, %v420, 0
      %457 = vmatprep.subr.bf16.mxu0 0
      %458 = vmatpush1.bf16.msra.mxu0 0
      %459 = vmatprep.subr.bf16.mxu0 0
      %460 = vmatpush1.bf16.msra.mxu0 0
      %461 = vmatprep.subr.bf16.mxu0 0
      %462 = vmatpush1.bf16.msra.mxu0 0
      %463 = vmatprep.subr.bf16.mxu0 0
      %464 = vmatpush1.bf16.msra.mxu0 0
      %465 = vmatprep.subr.bf16.mxu0 0
      %466 = vmatpush1.bf16.msra.mxu0 %v449
      %467 = vmatprep.subr.bf16.mxu0 0
      %468 = vmatpush1.bf16.msra.mxu0 %v448
      %469 = vmatprep.subr.bf16.mxu0 0
      %470 = vmatpush1.bf16.msra.mxu0 %v447
      %471 = vmatprep.subr.bf16.mxu0 0
      %472 = vmatpush1.bf16.msra.mxu0 %v446
      %473 = vmatprep.subr.bf16.mxu0 0
      %474 = vmatpush2.bf16.msra.mxu0 0
      %475 = vmatprep.subr.bf16.mxu0 0
      %476 = vmatpush2.bf16.msra.mxu0 0
      %477 = vmatprep.subr.bf16.mxu0 0
      %478 = vmatpush2.bf16.msra.mxu0 0
      %479 = vmatprep.subr.bf16.mxu0 0
      %480 = vmatpush2.bf16.msra.mxu0 0
      %481 = vmatprep.subr.bf16.mxu0 0
      %482 = vmatpush2.bf16.msra.mxu0 0
      %483 = vmatprep.subr.bf16.mxu0 0
      %484 = vmatpush2.bf16.msra.mxu0 0
      %485 = vmatprep.subr.bf16.mxu0 0
      %486 = vmatpush2.bf16.msra.mxu0 0
      %487 = vmatprep.subr.bf16.mxu0 0
      %488 = vmatpush2.bf16.msra.mxu0 0
      %489 = vmatprep.mubr.bf16.mxu0 0
      %490 = vmatmul.mubr.bf16.gmra.mxu0 %v455
      %v491 = vpop.f32.mrf.mxu0
      %v492 = vadd.f32 0.0, %v491
      %v493 = vpop.f32.mrf.mxu0
      %v494 = vpop.f32.mrf.mxu0
      %v495 = vadd.f32 0.0, %v494
      %v496 = vpop.f32.mrf.mxu0
      %497 = vdwg.mxu0
      %v498 = vadd.f32 %v406, %v492
      %v499 = vadd.f32 %v409, %v495
      %v500 = vld [vmem:[#allocation2 + $0x4] sm:$0xff]
      %v501 = vld [vmem:[#allocation2 + $0xc] sm:$0xff]
      %v502 = vsel %vm251, %v500, 0.0
      %v503 = vsel %vm252, %v501, 0.0
      %v504 = vpack.c.bf16 %v503, %v502
      %s505 = scalar_lea.vmem %s1, 96
      %v506 = vld [vmem:[%s505] sm:$0xf]
      %v507 = vld [vmem:[%s505 + $0x4] sm:$0xf]
      %v508 = vld [vmem:[%s505 + $0x8] sm:$0xf]
      %v509 = vld [vmem:[%s505 + $0xc] sm:$0xf]
      %v510 = vld [vmem:[%s505 + $0x10] sm:$0xf]
      %v511 = vld [vmem:[%s505 + $0x14] sm:$0xf]
      %v512 = vld [vmem:[%s505 + $0x18] sm:$0xf]
      %v513 = vld [vmem:[%s505 + $0x1c] sm:$0xf]
      %v522 = vunpack.c.l.b16 %v506
      %v523 = vunpack.c.l.b16 %v507
      %v524 = vunpack.c.l.b16 %v508
      %v525 = vunpack.c.l.b16 %v509
      %v526 = vunpack.c.l.b16 %v510
      %v527 = vunpack.c.l.b16 %v511
      %v528 = vunpack.c.l.b16 %v512
      %v529 = vunpack.c.l.b16 %v513
      %v530 = vpack.c.b16 %v523, %v522
      %v531 = vpack.c.b16 %v525, %v524
      %v532 = vpack.c.b16 %v527, %v526
      %v533 = vpack.c.b16 %v529, %v528
      %v539 = vsel %vm232, %v504, 0
      %541 = vmatprep.subr.bf16.mxu0 0
      %542 = vmatpush1.bf16.msra.mxu0 0
      %543 = vmatprep.subr.bf16.mxu0 0
      %544 = vmatpush1.bf16.msra.mxu0 0
      %545 = vmatprep.subr.bf16.mxu0 0
      %546 = vmatpush1.bf16.msra.mxu0 0
      %547 = vmatprep.subr.bf16.mxu0 0
      %548 = vmatpush1.bf16.msra.mxu0 0
      %549 = vmatprep.subr.bf16.mxu0 0
      %550 = vmatpush1.bf16.msra.mxu0 %v533
      %551 = vmatprep.subr.bf16.mxu0 0
      %552 = vmatpush1.bf16.msra.mxu0 %v532
      %553 = vmatprep.subr.bf16.mxu0 0
      %554 = vmatpush1.bf16.msra.mxu0 %v531
      %555 = vmatprep.subr.bf16.mxu0 0
      %556 = vmatpush1.bf16.msra.mxu0 %v530
      %557 = vmatprep.subr.bf16.mxu0 0
      %558 = vmatpush2.bf16.msra.mxu0 0
      %559 = vmatprep.subr.bf16.mxu0 0
      %560 = vmatpush2.bf16.msra.mxu0 0
      %561 = vmatprep.subr.bf16.mxu0 0
      %562 = vmatpush2.bf16.msra.mxu0 0
      %563 = vmatprep.subr.bf16.mxu0 0
      %564 = vmatpush2.bf16.msra.mxu0 0
      %565 = vmatprep.subr.bf16.mxu0 0
      %566 = vmatpush2.bf16.msra.mxu0 0
      %567 = vmatprep.subr.bf16.mxu0 0
      %568 = vmatpush2.bf16.msra.mxu0 0
      %569 = vmatprep.subr.bf16.mxu0 0
      %570 = vmatpush2.bf16.msra.mxu0 0
      %571 = vmatprep.subr.bf16.mxu0 0
      %572 = vmatpush2.bf16.msra.mxu0 0
      %573 = vmatprep.mubr.bf16.mxu0 0
      %574 = vmatmul.mubr.bf16.gmra.mxu0 %v539
      %v575 = vpop.f32.mrf.mxu0
      %v576 = vadd.f32 0.0, %v575
      %v577 = vpop.f32.mrf.mxu0
      %v578 = vpop.f32.mrf.mxu0
      %v579 = vadd.f32 0.0, %v578
      %v580 = vpop.f32.mrf.mxu0
      %581 = vdwg.mxu0
      %v582 = vadd.f32 %v498, %v576
      %v583 = vadd.f32 %v499, %v579
      %v584 = vld [vmem:[#allocation2 + $0x5] sm:$0xff]
      %v585 = vld [vmem:[#allocation2 + $0xd] sm:$0xff]
      %v586 = vpack.c.bf16 %v585, %v584
      %s587 = scalar_lea.vmem %s1, 128
      %v588 = vld [vmem:[%s587] sm:$0xf]
      %v589 = vld [vmem:[%s587 + $0x4] sm:$0xf]
      %v590 = vld [vmem:[%s587 + $0x8] sm:$0xf]
      %v591 = vld [vmem:[%s587 + $0xc] sm:$0xf]
      %v592 = vld [vmem:[%s587 + $0x10] sm:$0xf]
      %v593 = vld [vmem:[%s587 + $0x14] sm:$0xf]
      %v594 = vld [vmem:[%s587 + $0x18] sm:$0xf]
      %v595 = vld [vmem:[%s587 + $0x1c] sm:$0xf]
      %v604 = vunpack.c.l.b16 %v588
      %v605 = vunpack.c.l.b16 %v589
      %v606 = vunpack.c.l.b16 %v590
      %v607 = vunpack.c.l.b16 %v591
      %v608 = vunpack.c.l.b16 %v592
      %v609 = vunpack.c.l.b16 %v593
      %v610 = vunpack.c.l.b16 %v594
      %v611 = vunpack.c.l.b16 %v595
      %v612 = vpack.c.b16 %v605, %v604
      %v613 = vpack.c.b16 %v607, %v606
      %v614 = vpack.c.b16 %v609, %v608
      %v615 = vpack.c.b16 %v611, %v610
      %v621 = vsel %vm232, %v586, 0
      %623 = vmatprep.subr.bf16.mxu0 0
      %624 = vmatpush1.bf16.msra.mxu0 0
      %625 = vmatprep.subr.bf16.mxu0 0
      %626 = vmatpush1.bf16.msra.mxu0 0
      %627 = vmatprep.subr.bf16.mxu0 0
      %628 = vmatpush1.bf16.msra.mxu0 0
      %629 = vmatprep.subr.bf16.mxu0 0
      %630 = vmatpush1.bf16.msra.mxu0 0
      %631 = vmatprep.subr.bf16.mxu0 0
      %632 = vmatpush1.bf16.msra.mxu0 %v615
      %633 = vmatprep.subr.bf16.mxu0 0
      %634 = vmatpush1.bf16.msra.mxu0 %v614
      %635 = vmatprep.subr.bf16.mxu0 0
      %636 = vmatpush1.bf16.msra.mxu0 %v613
      %637 = vmatprep.subr.bf16.mxu0 0
      %638 = vmatpush1.bf16.msra.mxu0 %v612
      %639 = vmatprep.subr.bf16.mxu0 0
      %640 = vmatpush2.bf16.msra.mxu0 0
      %641 = vmatprep.subr.bf16.mxu0 0
      %642 = vmatpush2.bf16.msra.mxu0 0
      %643 = vmatprep.subr.bf16.mxu0 0
      %644 = vmatpush2.bf16.msra.mxu0 0
      %645 = vmatprep.subr.bf16.mxu0 0
      %646 = vmatpush2.bf16.msra.mxu0 0
      %647 = vmatprep.subr.bf16.mxu0 0
      %648 = vmatpush2.bf16.msra.mxu0 0
      %649 = vmatprep.subr.bf16.mxu0 0
      %650 = vmatpush2.bf16.msra.mxu0 0
      %651 = vmatprep.subr.bf16.mxu0 0
      %652 = vmatpush2.bf16.msra.mxu0 0
      %653 = vmatprep.subr.bf16.mxu0 0
      %654 = vmatpush2.bf16.msra.mxu0 0
      %655 = vmatprep.mubr.bf16.mxu0 0
      %656 = vmatmul.mubr.bf16.gmra.mxu0 %v621
      %v657 = vpop.f32.mrf.mxu0
      %v658 = vadd.f32 0.0, %v657
      %v659 = vpop.f32.mrf.mxu0
      %v660 = vpop.f32.mrf.mxu0
      %v661 = vadd.f32 0.0, %v660
      %v662 = vpop.f32.mrf.mxu0
      %663 = vdwg.mxu0
      %v664 = vadd.f32 %v582, %v658
      %v665 = vadd.f32 %v583, %v661
      %v666 = vld [vmem:[#allocation2 + $0x6] sm:$0xff]
      %v667 = vld [vmem:[#allocation2 + $0xe] sm:$0xff]
      %v668 = vsel %vm416, %v666, 0.0
      %v669 = vsel %vm417, %v667, 0.0
      %v670 = vpack.c.bf16 %v669, %v668
      %s671 = scalar_lea.vmem %s1, 160
      %v672 = vld [vmem:[%s671] sm:$0xf]
      %v673 = vld [vmem:[%s671 + $0x4] sm:$0xf]
      %v674 = vld [vmem:[%s671 + $0x8] sm:$0xf]
      %v675 = vld [vmem:[%s671 + $0xc] sm:$0xf]
      %v676 = vld [vmem:[%s671 + $0x10] sm:$0xf]
      %v677 = vld [vmem:[%s671 + $0x14] sm:$0xf]
      %v678 = vld [vmem:[%s671 + $0x18] sm:$0xf]
      %v679 = vld [vmem:[%s671 + $0x1c] sm:$0xf]
      %v688 = vunpack.c.l.b16 %v672
      %v689 = vunpack.c.l.b16 %v673
      %v690 = vunpack.c.l.b16 %v674
      %v691 = vunpack.c.l.b16 %v675
      %v692 = vunpack.c.l.b16 %v676
      %v693 = vunpack.c.l.b16 %v677
      %v694 = vunpack.c.l.b16 %v678
      %v695 = vunpack.c.l.b16 %v679
      %v696 = vpack.c.b16 %v689, %v688
      %v697 = vpack.c.b16 %v691, %v690
      %v698 = vpack.c.b16 %v693, %v692
      %v699 = vpack.c.b16 %v695, %v694
      %v705 = vsel %vm232, %v670, 0
      %707 = vmatprep.subr.bf16.mxu0 0
      %708 = vmatpush1.bf16.msra.mxu0 0
      %709 = vmatprep.subr.bf16.mxu0 0
      %710 = vmatpush1.bf16.msra.mxu0 0
      %711 = vmatprep.subr.bf16.mxu0 0
      %712 = vmatpush1.bf16.msra.mxu0 0
      %713 = vmatprep.subr.bf16.mxu0 0
      %714 = vmatpush1.bf16.msra.mxu0 0
      %715 = vmatprep.subr.bf16.mxu0 0
      %716 = vmatpush1.bf16.msra.mxu0 %v699
      %717 = vmatprep.subr.bf16.mxu0 0
      %718 = vmatpush1.bf16.msra.mxu0 %v698
      %719 = vmatprep.subr.bf16.mxu0 0
      %720 = vmatpush1.bf16.msra.mxu0 %v697
      %721 = vmatprep.subr.bf16.mxu0 0
      %722 = vmatpush1.bf16.msra.mxu0 %v696
      %723 = vmatprep.subr.bf16.mxu0 0
      %724 = vmatpush2.bf16.msra.mxu0 0
      %725 = vmatprep.subr.bf16.mxu0 0
      %726 = vmatpush2.bf16.msra.mxu0 0
      %727 = vmatprep.subr.bf16.mxu0 0
      %728 = vmatpush2.bf16.msra.mxu0 0
      %729 = vmatprep.subr.bf16.mxu0 0
      %730 = vmatpush2.bf16.msra.mxu0 0
      %731 = vmatprep.subr.bf16.mxu0 0
      %732 = vmatpush2.bf16.msra.mxu0 0
      %733 = vmatprep.subr.bf16.mxu0 0
      %734 = vmatpush2.bf16.msra.mxu0 0
      %735 = vmatprep.subr.bf16.mxu0 0
      %736 = vmatpush2.bf16.msra.mxu0 0
      %737 = vmatprep.subr.bf16.mxu0 0
      %738 = vmatpush2.bf16.msra.mxu0 0
      %739 = vmatprep.mubr.bf16.mxu0 0
      %740 = vmatmul.mubr.bf16.gmra.mxu0 %v705
      %v741 = vpop.f32.mrf.mxu0
      %v742 = vadd.f32 0.0, %v741
      %v743 = vpop.f32.mrf.mxu0
      %v744 = vpop.f32.mrf.mxu0
      %v745 = vadd.f32 0.0, %v744
      %v746 = vpop.f32.mrf.mxu0
      %747 = vdwg.mxu0
      %v748 = vadd.f32 %v664, %v742
      %v749 = vadd.f32 %v665, %v745
      %v750 = vld [vmem:[#allocation2 + $0x8] sm:$0xff]
      %v751 = vld [vmem:[#allocation2 + $0x10] sm:$0xff]
      %v752 = vsel %vm251, %v750, 0.0
      %v753 = vsel %vm252, %v751, 0.0
      %v754 = vpack.c.bf16 %v753, %v752
      %s755 = scalar_lea.vmem %s1, 192
      %v756 = vld [vmem:[%s755] sm:$0xf]
      %v757 = vld [vmem:[%s755 + $0x4] sm:$0xf]
      %v758 = vld [vmem:[%s755 + $0x8] sm:$0xf]
      %v759 = vld [vmem:[%s755 + $0xc] sm:$0xf]
      %v760 = vld [vmem:[%s755 + $0x10] sm:$0xf]
      %v761 = vld [vmem:[%s755 + $0x14] sm:$0xf]
      %v762 = vld [vmem:[%s755 + $0x18] sm:$0xf]
      %v763 = vld [vmem:[%s755 + $0x1c] sm:$0xf]
      %v772 = vunpack.c.l.b16 %v756
      %v773 = vunpack.c.l.b16 %v757
      %v774 = vunpack.c.l.b16 %v758
      %v775 = vunpack.c.l.b16 %v759
      %v776 = vunpack.c.l.b16 %v760
      %v777 = vunpack.c.l.b16 %v761
      %v778 = vunpack.c.l.b16 %v762
      %v779 = vunpack.c.l.b16 %v763
      %v780 = vpack.c.b16 %v773, %v772
      %v781 = vpack.c.b16 %v775, %v774
      %v782 = vpack.c.b16 %v777, %v776
      %v783 = vpack.c.b16 %v779, %v778
      %v789 = vsel %vm232, %v754, 0
      %791 = vmatprep.subr.bf16.mxu0 0
      %792 = vmatpush1.bf16.msra.mxu0 0
      %793 = vmatprep.subr.bf16.mxu0 0
      %794 = vmatpush1.bf16.msra.mxu0 0
      %795 = vmatprep.subr.bf16.mxu0 0
      %796 = vmatpush1.bf16.msra.mxu0 0
      %797 = vmatprep.subr.bf16.mxu0 0
      %798 = vmatpush1.bf16.msra.mxu0 0
      %799 = vmatprep.subr.bf16.mxu0 0
      %800 = vmatpush1.bf16.msra.mxu0 %v783
      %801 = vmatprep.subr.bf16.mxu0 0
      %802 = vmatpush1.bf16.msra.mxu0 %v782
      %803 = vmatprep.subr.bf16.mxu0 0
      %804 = vmatpush1.bf16.msra.mxu0 %v781
      %805 = vmatprep.subr.bf16.mxu0 0
      %806 = vmatpush1.bf16.msra.mxu0 %v780
      %807 = vmatprep.subr.bf16.mxu0 0
      %808 = vmatpush2.bf16.msra.mxu0 0
      %809 = vmatprep.subr.bf16.mxu0 0
      %810 = vmatpush2.bf16.msra.mxu0 0
      %811 = vmatprep.subr.bf16.mxu0 0
      %812 = vmatpush2.bf16.msra.mxu0 0
      %813 = vmatprep.subr.bf16.mxu0 0
      %814 = vmatpush2.bf16.msra.mxu0 0
      %815 = vmatprep.subr.bf16.mxu0 0
      %816 = vmatpush2.bf16.msra.mxu0 0
      %817 = vmatprep.subr.bf16.mxu0 0
      %818 = vmatpush2.bf16.msra.mxu0 0
      %819 = vmatprep.subr.bf16.mxu0 0
      %820 = vmatpush2.bf16.msra.mxu0 0
      %821 = vmatprep.subr.bf16.mxu0 0
      %822 = vmatpush2.bf16.msra.mxu0 0
      %823 = vmatprep.mubr.bf16.mxu0 0
      %824 = vmatmul.mubr.bf16.gmra.mxu0 %v789
      %v825 = vpop.f32.mrf.mxu0
      %v826 = vadd.f32 0.0, %v825
      %v827 = vpop.f32.mrf.mxu0
      %v828 = vpop.f32.mrf.mxu0
      %v829 = vadd.f32 0.0, %v828
      %v830 = vpop.f32.mrf.mxu0
      %831 = vdwg.mxu0
      %v832 = vadd.f32 %v748, %v826
      %v833 = vadd.f32 %v749, %v829
      %v834 = vld [vmem:[#allocation2 + $0x9] sm:$0xff]
      %v835 = vld [vmem:[#allocation2 + $0x11] sm:$0xff]
      %v836 = vpack.c.bf16 %v835, %v834
      %s837 = scalar_lea.vmem %s1, 224
      %v838 = vld [vmem:[%s837] sm:$0xf]
      %v839 = vld [vmem:[%s837 + $0x4] sm:$0xf]
      %v840 = vld [vmem:[%s837 + $0x8] sm:$0xf]
      %v841 = vld [vmem:[%s837 + $0xc] sm:$0xf]
      %v842 = vld [vmem:[%s837 + $0x10] sm:$0xf]
      %v843 = vld [vmem:[%s837 + $0x14] sm:$0xf]
      %v844 = vld [vmem:[%s837 + $0x18] sm:$0xf]
      %v845 = vld [vmem:[%s837 + $0x1c] sm:$0xf]
      %v854 = vunpack.c.l.b16 %v838
      %v855 = vunpack.c.l.b16 %v839
      %v856 = vunpack.c.l.b16 %v840
      %v857 = vunpack.c.l.b16 %v841
      %v858 = vunpack.c.l.b16 %v842
      %v859 = vunpack.c.l.b16 %v843
      %v860 = vunpack.c.l.b16 %v844
      %v861 = vunpack.c.l.b16 %v845
      %v862 = vpack.c.b16 %v855, %v854
      %v863 = vpack.c.b16 %v857, %v856
      %v864 = vpack.c.b16 %v859, %v858
      %v865 = vpack.c.b16 %v861, %v860
      %v871 = vsel %vm232, %v836, 0
      %873 = vmatprep.subr.bf16.mxu0 0
      %874 = vmatpush1.bf16.msra.mxu0 0
      %875 = vmatprep.subr.bf16.mxu0 0
      %876 = vmatpush1.bf16.msra.mxu0 0
      %877 = vmatprep.subr.bf16.mxu0 0
      %878 = vmatpush1.bf16.msra.mxu0 0
      %879 = vmatprep.subr.bf16.mxu0 0
      %880 = vmatpush1.bf16.msra.mxu0 0
      %881 = vmatprep.subr.bf16.mxu0 0
      %882 = vmatpush1.bf16.msra.mxu0 %v865
      %883 = vmatprep.subr.bf16.mxu0 0
      %884 = vmatpush1.bf16.msra.mxu0 %v864
      %885 = vmatprep.subr.bf16.mxu0 0
      %886 = vmatpush1.bf16.msra.mxu0 %v863
      %887 = vmatprep.subr.bf16.mxu0 0
      %888 = vmatpush1.bf16.msra.mxu0 %v862
      %889 = vmatprep.subr.bf16.mxu0 0
      %890 = vmatpush2.bf16.msra.mxu0 0
      %891 = vmatprep.subr.bf16.mxu0 0
      %892 = vmatpush2.bf16.msra.mxu0 0
      %893 = vmatprep.subr.bf16.mxu0 0
      %894 = vmatpush2.bf16.msra.mxu0 0
      %895 = vmatprep.subr.bf16.mxu0 0
      %896 = vmatpush2.bf16.msra.mxu0 0
      %897 = vmatprep.subr.bf16.mxu0 0
      %898 = vmatpush2.bf16.msra.mxu0 0
      %899 = vmatprep.subr.bf16.mxu0 0
      %900 = vmatpush2.bf16.msra.mxu0 0
      %901 = vmatprep.subr.bf16.mxu0 0
      %902 = vmatpush2.bf16.msra.mxu0 0
      %903 = vmatprep.subr.bf16.mxu0 0
      %904 = vmatpush2.bf16.msra.mxu0 0
      %905 = vmatprep.mubr.bf16.mxu0 0
      %906 = vmatmul.mubr.bf16.gmra.mxu0 %v871
      %v907 = vpop.f32.mrf.mxu0
      %v908 = vadd.f32 0.0, %v907
      %v909 = vpop.f32.mrf.mxu0
      %v910 = vpop.f32.mrf.mxu0
      %v911 = vadd.f32 0.0, %v910
      %v912 = vpop.f32.mrf.mxu0
      %913 = vdwg.mxu0
      %v914 = vadd.f32 %v832, %v908
      %v915 = vadd.f32 %v833, %v911
      %v916 = vld [vmem:[#allocation2 + $0xa] sm:$0xff]
      %v917 = vld [vmem:[#allocation2 + $0x12] sm:$0xff]
      %v918 = vsel %vm416, %v916, 0.0
      %v919 = vsel %vm417, %v917, 0.0
      %v920 = vpack.c.bf16 %v919, %v918
      %s921 = scalar_lea.vmem %s1, 256
      %v922 = vld [vmem:[%s921] sm:$0xf]
      %v923 = vld [vmem:[%s921 + $0x4] sm:$0xf]
      %v924 = vld [vmem:[%s921 + $0x8] sm:$0xf]
      %v925 = vld [vmem:[%s921 + $0xc] sm:$0xf]
      %v926 = vld [vmem:[%s921 + $0x10] sm:$0xf]
      %v927 = vld [vmem:[%s921 + $0x14] sm:$0xf]
      %v928 = vld [vmem:[%s921 + $0x18] sm:$0xf]
      %v929 = vld [vmem:[%s921 + $0x1c] sm:$0xf]
      %v938 = vunpack.c.l.b16 %v922
      %v939 = vunpack.c.l.b16 %v923
      %v940 = vunpack.c.l.b16 %v924
      %v941 = vunpack.c.l.b16 %v925
      %v942 = vunpack.c.l.b16 %v926
      %v943 = vunpack.c.l.b16 %v927
      %v944 = vunpack.c.l.b16 %v928
      %v945 = vunpack.c.l.b16 %v929
      %v946 = vpack.c.b16 %v939, %v938
      %v947 = vpack.c.b16 %v941, %v940
      %v948 = vpack.c.b16 %v943, %v942
      %v949 = vpack.c.b16 %v945, %v944
      %v955 = vsel %vm232, %v920, 0
      %957 = vmatprep.subr.bf16.mxu0 0
      %958 = vmatpush1.bf16.msra.mxu0 0
      %959 = vmatprep.subr.bf16.mxu0 0
      %960 = vmatpush1.bf16.msra.mxu0 0
      %961 = vmatprep.subr.bf16.mxu0 0
      %962 = vmatpush1.bf16.msra.mxu0 0
      %963 = vmatprep.subr.bf16.mxu0 0
      %964 = vmatpush1.bf16.msra.mxu0 0
      %965 = vmatprep.subr.bf16.mxu0 0
      %966 = vmatpush1.bf16.msra.mxu0 %v949
      %967 = vmatprep.subr.bf16.mxu0 0
      %968 = vmatpush1.bf16.msra.mxu0 %v948
      %969 = vmatprep.subr.bf16.mxu0 0
      %970 = vmatpush1.bf16.msra.mxu0 %v947
      %971 = vmatprep.subr.bf16.mxu0 0
      %972 = vmatpush1.bf16.msra.mxu0 %v946
      %973 = vmatprep.subr.bf16.mxu0 0
      %974 = vmatpush2.bf16.msra.mxu0 0
      %975 = vmatprep.subr.bf16.mxu0 0
      %976 = vmatpush2.bf16.msra.mxu0 0
      %977 = vmatprep.subr.bf16.mxu0 0
      %978 = vmatpush2.bf16.msra.mxu0 0
      %979 = vmatprep.subr.bf16.mxu0 0
      %980 = vmatpush2.bf16.msra.mxu0 0
      %981 = vmatprep.subr.bf16.mxu0 0
      %982 = vmatpush2.bf16.msra.mxu0 0
      %983 = vmatprep.subr.bf16.mxu0 0
      %984 = vmatpush2.bf16.msra.mxu0 0
      %985 = vmatprep.subr.bf16.mxu0 0
      %986 = vmatpush2.bf16.msra.mxu0 0
      %987 = vmatprep.subr.bf16.mxu0 0
      %988 = vmatpush2.bf16.msra.mxu0 0
      %989 = vmatprep.mubr.bf16.mxu0 0
      %990 = vmatmul.mubr.bf16.gmra.mxu0 %v955
      %v991 = vpop.f32.mrf.mxu0
      %v992 = vadd.f32 0.0, %v991
      %v993 = vpop.f32.mrf.mxu0
      %v994 = vpop.f32.mrf.mxu0
      %v995 = vadd.f32 0.0, %v994
      %v996 = vpop.f32.mrf.mxu0
      %997 = vdwg.mxu0
      %v998 = vadd.f32 %v914, %v992
      %v999 = vadd.f32 %v915, %v995
      %v1000 = vld [vmem:[%s2] sm:$0x1]
      %v1002 = vlaneseq
      %v1003 = vshrl.u32 %v1002, 7
      %v1004 = vsub.s32 0, %v1003
      %v1005 = vrot.slane %v1000, %v1004
      %v1007 = vmul.f32 %v998, %v1005
      %v1008 = vmul.f32 %v999, %v1005
      %v1009 = vld [vmem:[%s3] sm:$0x1]
      %v1011 = vlaneseq
      %v1012 = vshrl.u32 %v1011, 7
      %v1013 = vsub.s32 0, %v1012
      %v1014 = vrot.slane %v1009, %v1013
      %v1016 = vadd.f32 %v1007, %v1014
      %v1017 = vadd.f32 %v1008, %v1014
      %v1018 = vmax.f32 %v1016, 0.0
      %v1019 = vmax.f32 %v1017, 0.0
      %1020 = vst [vmem:[#allocation3] sm:$0xff] %v1018
      %1021 = vst [vmem:[#allocation3 + $0x8] sm:$0xff] %v1019
      %1022 = vst [vmem:[#allocation3 + $0x10] sm:$0x1f] 0.0
      %v1023 = vld [vmem:[#allocation3 + $0x1] sm:$0xff]
      %v1024 = vld [vmem:[#allocation3 + $0x9] sm:$0xff]
      %v1025 = vmax.f32 %v1018, %v1023
      %v1026 = vmax.f32 %v1019, %v1024
      %v1027 = vld [vmem:[#allocation3 + $0x4] sm:$0xff]
      %v1028 = vld [vmem:[#allocation3 + $0xc] sm:$0xff]
      %v1029 = vld [vmem:[#allocation3 + $0x5] sm:$0xff]
      %v1030 = vld [vmem:[#allocation3 + $0xd] sm:$0xff]
      %v1031 = vmax.f32 %v1027, %v1029
      %v1032 = vmax.f32 %v1028, %v1030
      %v1033 = vmax.f32 %v1025, %v1031
      %v1034 = vmax.f32 %v1026, %v1032
      %v1035 = vld [vmem:[%s4] sm:$0x3]
      %v1036 = vpack.c.bf16 %v1034, %v1033
      %vm1037 = vcmask 130048
      %v1039 = vsel %vm1037, %v1035, 0
      %1041 = vmatprep.subr.bf16.mxu0 0
      %1042 = vmatpush1.bf16.msra.mxu0 0
      %1043 = vmatprep.subr.bf16.mxu0 0
      %1044 = vmatpush1.bf16.msra.mxu0 0
      %1045 = vmatprep.subr.bf16.mxu0 0
      %1046 = vmatpush1.bf16.msra.mxu0 0
      %1047 = vmatprep.subr.bf16.mxu0 0
      %1048 = vmatpush1.bf16.msra.mxu0 0
      %1049 = vmatprep.subr.bf16.mxu0 0
      %1050 = vmatpush1.bf16.msra.mxu0 0
      %1051 = vmatprep.subr.bf16.mxu0 0
      %1052 = vmatpush1.bf16.msra.mxu0 0
      %1053 = vmatprep.subr.bf16.mxu0 0
      %1054 = vmatpush1.bf16.msra.mxu0 0
      %1055 = vmatprep.subr.bf16.mxu0 0
      %1056 = vmatpush1.bf16.msra.mxu0 %v1036
      %1057 = vmatprep.subr.bf16.mxu0 0
      %1058 = vmatpush2.bf16.msra.mxu0 0
      %1059 = vmatprep.subr.bf16.mxu0 0
      %1060 = vmatpush2.bf16.msra.mxu0 0
      %1061 = vmatprep.subr.bf16.mxu0 0
      %1062 = vmatpush2.bf16.msra.mxu0 0
      %1063 = vmatprep.subr.bf16.mxu0 0
      %1064 = vmatpush2.bf16.msra.mxu0 0
      %1065 = vmatprep.subr.bf16.mxu0 0
      %1066 = vmatpush2.bf16.msra.mxu0 0
      %1067 = vmatprep.subr.bf16.mxu0 0
      %1068 = vmatpush2.bf16.msra.mxu0 0
      %1069 = vmatprep.subr.bf16.mxu0 0
      %1070 = vmatpush2.bf16.msra.mxu0 0
      %1071 = vmatprep.subr.bf16.mxu0 0
      %1072 = vmatpush2.bf16.msra.mxu0 0
      %1073 = vmatprep.mubr.bf16.mxu0 0
      %1074 = vmatmul.mubr.bf16.gmra.mxu0 %v1039
      %v1075 = vpop.f32.mrf.mxu0
      %v1076 = vadd.f32 0.0, %v1075
      %v1077 = vpop.f32.mrf.mxu0
      %v1078 = vpop.f32.mrf.mxu0
      %v1079 = vpop.f32.mrf.mxu0
      %1080 = vdwg.mxu0
      %v1081 = vpack.c.bf16 %v1076, %v1076
      %1082 = vst [vmem:[%s222] sm:$0x3] %v1081
      %p1083 = scmp.lt.s32.totalorder %s16, 1
      %s1084 = scalar_select %p1083, %s16, 1
      %s1085 = smul.addr %s1084, 2
      %s1086 = scalar_lea.vmem %s5, %s1085
      // Predicated region
      $region41: #{basic_cnn_forward.6} parent=39 // pred_check
        %p1087 = pneg %p144
      $region42: #{basic_cnn_forward.6} parent=39 // pred_check_branch
        %1089 = sbr.rel (%p1087) target = $region44
      $region43: #{basic_cnn_forward.6} parent=39 // pred_region
        _
      $region44: #{basic_cnn_forward.6} parent=39 // pred_fallthru
        _
    $region40: #{basic_cnn_forward.6} parent=5 // pred_fallthru
      _
    %p1090 = scmp.le.s32.totalorder 2, %s11
    // Predicated region
    $region45: #{basic_cnn_forward.6} parent=5 // pred_check
      %p1091 = pneg %p1090
    $region46: #{basic_cnn_forward.6} parent=5 // pred_check_branch
      %1093 = sbr.rel (%p1091) target = $region48
    $region47: #{basic_cnn_forward.6} parent=5 // pred_region
      %s1094 = ssub.s32 %s11, 2
      // Predicated region
      $region49: #{basic_cnn_forward.6} parent=47 // pred_check
        %p1095 = pneg %p150
      $region50: #{basic_cnn_forward.6} parent=47 // pred_check_branch
        %1097 = sbr.rel (%p1095) target = $region52
      $region51: #{basic_cnn_forward.6} parent=47 // pred_region
        %p1098 = scmp.lt.s32.totalorder %s17, 1
        %s1099 = scalar_select %p1098, %s17, 1
        %s1100 = smul.addr %s1099, 2
        %s1101 = scalar_lea.vmem %s5, %s1100
      $region52: #{basic_cnn_forward.6} parent=47 // pred_fallthru
        _
    $region48: #{basic_cnn_forward.6} parent=5 // pred_fallthru
      _
  $region6: #{basic_cnn_forward.6} parent=0 // loop_footer
    %s15 = sadd.s32 1, %s11
  $region7: #{basic_cnn_forward.6} parent=0 // loop_footer_branch
    %10 = sbr.rel target = $region3
  $region8: #{basic_cnn_forward.6} parent=0 // loop_exit
    _

// kernel: basic_cnn_forward.5
$region0: #{basic_cnn_forward.5}
  #allocation0 [shape = 'u32[]', space=smem, size = 0x4, offset = 0x4, fixed_abs, tag = 'smem constant byte address 0x4 - core index']
  #allocation1 [shape = 'u32[144,128]{1,0:T(1,128)}', space=vmem, size = 0x12000, scoped, tag = 'internal scratch']
  #allocation2 [shape = 'f32[82,32]{1,0:T(8,128)}', space=vmem, size = 0xb000, scoped, tag = 'scratch operand']
  #allocation3 [shape = 'f32[73,64]{1,0:T(8,128)}', space=vmem, size = 0xa000, scoped, tag = 'scratch operand']
  %s0 = inlined_call_operand.vmem [shape: bf16[2,82,32], index: 0, kind: input, shape index: {}]
  %s1 = inlined_call_operand.vmem [shape: bf16[9,32,64], index: 1, kind: input, shape index: {}]
  %s2 = inlined_call_operand.vmem [shape: f32[1,64], index: 2, kind: input, shape index: {}]
  %s3 = inlined_call_operand.vmem [shape: f32[1,64], index: 3, kind: input, shape index: {}]
  %s4 = inlined_call_operand.vmem [shape: bf16[16,64], index: 4, kind: input, shape index: {}]
  %s5 = inlined_call_operand.vmem [shape: bf16[2,16,64], index: 5, kind: output, shape index: {}]
  %s6 = sld [smem:[#allocation0]]
  $region53: #{basic_cnn_forward.5} parent=0
    _
  %s8 = ssub.s32 1, %s6
  %s9 = scalar_select 0, %s8, %s6
  loop: start=0, step=1, limit=4
  $region2: #{basic_cnn_forward.5} parent=0 // loop_pre_header
    _
  $region3: #{basic_cnn_forward.5} parent=0 // loop_header
    %s11 = sphi 0, %s15
    %p12 = scmp.ge.s32.totalorder %s11, 4
    %s21 = sphi 0, %s23
    %s24 = sphi 0, %s21
    %s25 = sphi 0, %s24
    %s41 = sphi 0, %s25
    %s45 = sphi 0, %s45
    %s47 = sphi 0, %s45
    %s48 = sphi 0, %s47
    %s62 = sphi 0, %s48
    %s66 = sphi 0, %s66
    %s68 = sphi 0, %s66
    %s69 = sphi 0, %s68
    %s83 = sphi 0, %s69
    %s87 = sphi 0, %s87
    %s89 = sphi 0, %s87
    %s90 = sphi 0, %s89
    %s104 = sphi 0, %s90
    %s108 = sphi 0, %s108
    %s110 = sphi 0, %s108
    %s111 = sphi 0, %s110
    %s125 = sphi 0, %s111
    %s131 = sphi 0, %s133
    %s134 = sphi 0, %s131
    %s135 = sphi 0, %s134
    %s151 = sphi 0, %s135
  $region4: #{basic_cnn_forward.5} parent=0 // loop_header_branch
    %14 = sbr.rel (%p12) target = $region8
  $region5: #{basic_cnn_forward.5} parent=0 // loop_body
    %s16 = ssub.s32 %s11, 1
    %s17 = ssub.s32 %s11, 2
    %s18 = sadd.s32 %s11, 1
    %s19 = ssub.s32 %s11, %s18
    %p20 = scmp.eq.s32.totalorder %s19, 0
    %s22 = sadd.s32 %s21, 1
    %s23 = scalar_select %p20, %s21, %s22
    %p26 = pneg %p20
    %p27 = scmp.eq.s32.totalorder %s11, 1
    %p28 = por %p26, %p27
    %p29 = scmp.ne.s32.totalorder %s21, %s24
    %p30 = scmp.eq.s32.totalorder %s11, 0
    %p31 = por %p29, %p30
    %p32 = scmp.ne.s32.totalorder %s21, %s24
    %p33 = scmp.eq.s32.totalorder %s16, 1
    %p34 = por %p32, %p33
    %p35 = scmp.ne.s32.totalorder %s24, %s25
    %p36 = scmp.eq.s32.totalorder %s16, 0
    %p37 = por %p35, %p36
    %p38 = scmp.ne.s32.totalorder %s24, %s25
    %p39 = scmp.eq.s32.totalorder %s17, 1
    %p40 = por %p38, %p39
    %p42 = scmp.ne.s32.totalorder %s25, %s41
    %p43 = scmp.eq.s32.totalorder %s17, 0
    %p44 = por %p42, %p43
    %s46 = sadd.s32 %s45, 1
    %p49 = scmp.eq.s32.totalorder %s11, 1
    %p50 = scmp.ne.s32.totalorder %s45, %s47
    %p51 = scmp.eq.s32.totalorder %s11, 0
    %p52 = por %p50, %p51
    %p53 = scmp.ne.s32.totalorder %s45, %s47
    %p54 = scmp.eq.s32.totalorder %s16, 1
    %p55 = por %p53, %p54
    %p56 = scmp.ne.s32.totalorder %s47, %s48
    %p57 = scmp.eq.s32.totalorder %s16, 0
    %p58 = por %p56, %p57
    %p59 = scmp.ne.s32.totalorder %s47, %s48
    %p60 = scmp.eq.s32.totalorder %s17, 1
    %p61 = por %p59, %p60
    %p63 = scmp.ne.s32.totalorder %s48, %s62
    %p64 = scmp.eq.s32.totalorder %s17, 0
    %p65 = por %p63, %p64
    %s67 = sadd.s32 %s66, 1
    %p70 = scmp.eq.s32.totalorder %s11, 1
    %p71 = scmp.ne.s32.totalorder %s66, %s68
    %p72 = scmp.eq.s32.totalorder %s11, 0
    %p73 = por %p71, %p72
    %p74 = scmp.ne.s32.totalorder %s66, %s68
    %p75 = scmp.eq.s32.totalorder %s16, 1
    %p76 = por %p74, %p75
    %p77 = scmp.ne.s32.totalorder %s68, %s69
    %p78 = scmp.eq.s32.totalorder %s16, 0
    %p79 = por %p77, %p78
    %p80 = scmp.ne.s32.totalorder %s68, %s69
    %p81 = scmp.eq.s32.totalorder %s17, 1
    %p82 = por %p80, %p81
    %p84 = scmp.ne.s32.totalorder %s69, %s83
    %p85 = scmp.eq.s32.totalorder %s17, 0
    %p86 = por %p84, %p85
    %s88 = sadd.s32 %s87, 1
    %p91 = scmp.eq.s32.totalorder %s11, 1
    %p92 = scmp.ne.s32.totalorder %s87, %s89
    %p93 = scmp.eq.s32.totalorder %s11, 0
    %p94 = por %p92, %p93
    %p95 = scmp.ne.s32.totalorder %s87, %s89
    %p96 = scmp.eq.s32.totalorder %s16, 1
    %p97 = por %p95, %p96
    %p98 = scmp.ne.s32.totalorder %s89, %s90
    %p99 = scmp.eq.s32.totalorder %s16, 0
    %p100 = por %p98, %p99
    %p101 = scmp.ne.s32.totalorder %s89, %s90
    %p102 = scmp.eq.s32.totalorder %s17, 1
    %p103 = por %p101, %p102
    %p105 = scmp.ne.s32.totalorder %s90, %s104
    %p106 = scmp.eq.s32.totalorder %s17, 0
    %p107 = por %p105, %p106
    %s109 = sadd.s32 %s108, 1
    %p112 = scmp.eq.s32.totalorder %s11, 1
    %p113 = scmp.ne.s32.totalorder %s108, %s110
    %p114 = scmp.eq.s32.totalorder %s11, 0
    %p115 = por %p113, %p114
    %p116 = scmp.ne.s32.totalorder %s108, %s110
    %p117 = scmp.eq.s32.totalorder %s16, 1
    %p118 = por %p116, %p117
    %p119 = scmp.ne.s32.totalorder %s110, %s111
    %p120 = scmp.eq.s32.totalorder %s16, 0
    %p121 = por %p119, %p120
    %p122 = scmp.ne.s32.totalorder %s110, %s111
    %p123 = scmp.eq.s32.totalorder %s17, 1
    %p124 = por %p122, %p123
    %p126 = scmp.ne.s32.totalorder %s111, %s125
    %p127 = scmp.eq.s32.totalorder %s17, 0
    %p128 = por %p126, %p127
    %s129 = ssub.s32 %s11, %s18
    %p130 = scmp.eq.s32.totalorder %s129, 0
    %s132 = sadd.s32 %s131, 1
    %s133 = scalar_select %p130, %s131, %s132
    %p136 = pneg %p130
    %p137 = scmp.eq.s32.totalorder %s11, 1
    %p138 = por %p136, %p137
    %p139 = scmp.ne.s32.totalorder %s131, %s134
    %p140 = scmp.eq.s32.totalorder %s11, 0
    %p141 = por %p139, %p140
    %p142 = scmp.ne.s32.totalorder %s131, %s134
    %p143 = scmp.eq.s32.totalorder %s16, 1
    %p144 = por %p142, %p143
    %p145 = scmp.ne.s32.totalorder %s134, %s135
    %p146 = scmp.eq.s32.totalorder %s16, 0
    %p147 = por %p145, %p146
    %p148 = scmp.ne.s32.totalorder %s134, %s135
    %p149 = scmp.eq.s32.totalorder %s17, 1
    %p150 = por %p148, %p149
    %p152 = scmp.ne.s32.totalorder %s135, %s151
    %p153 = scmp.eq.s32.totalorder %s17, 0
    %p154 = por %p152, %p153
    %p155 = scmp.le.s32.totalorder 1, %s11
    %p156 = scmp.lt.s32.totalorder %s11, 3
    %p157 = pnand %p155, %p156
    %p158 = pneg %p157
    // Predicated region
    $region9: #{basic_cnn_forward.5} parent=5 // pred_check
      _
    $region10: #{basic_cnn_forward.5} parent=5 // pred_check_branch
      %160 = sbr.rel (%p157) target = $region12
    $region11: #{basic_cnn_forward.5} parent=5 // pred_region
      %s161 = ssub.s32 %s11, 1
      // Predicated region
      $region13: #{basic_cnn_forward.5} parent=11 // pred_check
        %p162 = pneg %p58
      $region14: #{basic_cnn_forward.5} parent=11 // pred_check_branch
        %164 = sbr.rel (%p162) target = $region16
      $region15: #{basic_cnn_forward.5} parent=11 // pred_region
        _
      $region16: #{basic_cnn_forward.5} parent=11 // pred_fallthru
        _
      // Predicated region
      $region17: #{basic_cnn_forward.5} parent=11 // pred_check
        %p165 = pneg %p79
      $region18: #{basic_cnn_forward.5} parent=11 // pred_check_branch
        %167 = sbr.rel (%p165) target = $region20
      $region19: #{basic_cnn_forward.5} parent=11 // pred_region
        _
      $region20: #{basic_cnn_forward.5} parent=11 // pred_fallthru
        _
      // Predicated region
      $region21: #{basic_cnn_forward.5} parent=11 // pred_check
        %p168 = pneg %p100
      $region22: #{basic_cnn_forward.5} parent=11 // pred_check_branch
        %170 = sbr.rel (%p168) target = $region24
      $region23: #{basic_cnn_forward.5} parent=11 // pred_region
        _
      $region24: #{basic_cnn_forward.5} parent=11 // pred_fallthru
        _
      // Predicated region
      $region25: #{basic_cnn_forward.5} parent=11 // pred_check
        %p171 = pneg %p121
      $region26: #{basic_cnn_forward.5} parent=11 // pred_check_branch
        %173 = sbr.rel (%p171) target = $region28
      $region27: #{basic_cnn_forward.5} parent=11 // pred_region
        _
      $region28: #{basic_cnn_forward.5} parent=11 // pred_fallthru
        _
    $region12: #{basic_cnn_forward.5} parent=5 // pred_fallthru
      _
    %p174 = scmp.lt.s32.totalorder %s11, 2
    // Predicated region
    $region29: #{basic_cnn_forward.5} parent=5 // pred_check
      %p175 = pneg %p174
    $region30: #{basic_cnn_forward.5} parent=5 // pred_check_branch
      %177 = sbr.rel (%p175) target = $region32
    $region31: #{basic_cnn_forward.5} parent=5 // pred_region
      // Predicated region
      $region33: #{basic_cnn_forward.5} parent=31 // pred_check
        %p178 = pneg %p31
      $region34: #{basic_cnn_forward.5} parent=31 // pred_check_branch
        %180 = sbr.rel (%p178) target = $region36
      $region35: #{basic_cnn_forward.5} parent=31 // pred_region
        %p181 = scmp.lt.s32.totalorder %s11, 1
        %s182 = scalar_select %p181, %s11, 1
        %s183 = smul.addr %s182, 11
        %s184 = smul.addr %s183, 4
        %s185 = scalar_lea.vmem %s0, %s184
      $region36: #{basic_cnn_forward.5} parent=31 // pred_fallthru
        _
    $region32: #{basic_cnn_forward.5} parent=5 // pred_fallthru
      _
    %p186 = scmp.le.s32.totalorder 1, %s11
    %p187 = scmp.lt.s32.totalorder %s11, 3
    %p188 = pnand %p186, %p187
    %p189 = pneg %p188
    // Predicated region
    $region37: #{basic_cnn_forward.5} parent=5 // pred_check
      _
    $region38: #{basic_cnn_forward.5} parent=5 // pred_check_branch
      %191 = sbr.rel (%p188) target = $region40
    $region39: #{basic_cnn_forward.5} parent=5 // pred_region
      %s192 = ssub.s32 %s11, 1
      %p193 = scmp.lt.s32.totalorder %s16, 1
      %s194 = scalar_select %p193, %s16, 1
      %s195 = smul.addr %s194, 11
      %s196 = smul.addr %s195, 4
      %s197 = scalar_lea.vmem %s0, %s196
      %p198 = pneg %p37
      %p199 = pneg %p34
      %p200 = pneg %p58
      %p201 = pneg %p55
      %p202 = pneg %p79
      %p203 = pneg %p76
      %p204 = pneg %p100
      %p205 = pneg %p97
      %p206 = pneg %p121
      %p207 = pneg %p118
      %p208 = pneg %p147
      %p209 = pneg %p144
      %p210 = scmp.lt.s32.totalorder %s16, 1
      %s211 = scalar_select %p210, %s16, 1
      %s212 = smul.addr %s211, 2
      %s213 = smul.addr %s212, 4
      %s214 = scalar_lea.vmem %s5, %s213
      %p215 = scmp.lt.s32.totalorder %s16, 1
      %s216 = scalar_select %p215, %s16, 1
      %s217 = smul.addr %s216, 11
      %s218 = smul.addr %s217, 4
      %s219 = scalar_lea.vmem %s0, %s218
      %p220 = scmp.lt.s32.totalorder %s16, 1
      %s221 = scalar_select %p220, %s16, 1
      %s222 = smul.addr %s221, 2
      %s223 = smul.addr %s222, 4
      %s224 = scalar_lea.vmem %s5, %s223
      %v226 = vld [vmem:[%s219] sm:$0xf]
      %v227 = vld [vmem:[%s219 + $0x4] sm:$0xf]
      %v228 = vld [vmem:[%s219 + $0x8] sm:$0xf]
      %v229 = vld [vmem:[%s219 + $0xc] sm:$0xf]
      %v230 = vld [vmem:[%s219 + $0x10] sm:$0xf]
      %v231 = vld [vmem:[%s219 + $0x14] sm:$0xf]
      %v232 = vld [vmem:[%s219 + $0x18] sm:$0xf]
      %v233 = vld [vmem:[%s219 + $0x1c] sm:$0xf]
      %v234 = vld [vmem:[%s219 + $0x20] sm:$0xf]
      %v235 = vld [vmem:[%s219 + $0x24] sm:$0xf]
      %v236 = vld [vmem:[%s219 + $0x28] sm:$0x1]
      %v237 = vunpack.c.l.bf16 %v226
      %v238 = vunpack.c.l.bf16 %v227
      %v239 = vunpack.c.l.bf16 %v228
      %v240 = vunpack.c.l.bf16 %v229
      %v241 = vunpack.c.l.bf16 %v230
      %v242 = vunpack.c.l.bf16 %v231
      %v243 = vunpack.c.l.bf16 %v232
      %v244 = vunpack.c.l.bf16 %v233
      %v245 = vunpack.c.l.bf16 %v234
      %v246 = vunpack.c.l.bf16 %v235
      %v247 = vunpack.c.l.bf16 %v236
      %vm248 = vcmask 261120
      %249 = vst.msk [vmem:[#allocation2] sm:$0xff] %vm248, %v237
      %250 = vst.msk [vmem:[#allocation2 + $0x8] sm:$0xff] %vm248, %v238
      %251 = vst.msk [vmem:[#allocation2 + $0x10] sm:$0xff] %vm248, %v239
      %252 = vst.msk [vmem:[#allocation2 + $0x18] sm:$0xff] %vm248, %v240
      %253 = vst.msk [vmem:[#allocation2 + $0x20] sm:$0xff] %vm248, %v241
      %254 = vst.msk [vmem:[#allocation2 + $0x28] sm:$0xff] %vm248, %v242
      %255 = vst.msk [vmem:[#allocation2 + $0x30] sm:$0xff] %vm248, %v243
      %256 = vst.msk [vmem:[#allocation2 + $0x38] sm:$0xff] %vm248, %v244
      %257 = vst.msk [vmem:[#allocation2 + $0x40] sm:$0xff] %vm248, %v245
      %258 = vst.msk [vmem:[#allocation2 + $0x48] sm:$0xff] %vm248, %v246
      %vm259 = vcmask 254976
      %260 = vst.msk [vmem:[#allocation2 + $0x50] sm:$0x3] %vm259, %v247
      %v261 = vlaneseq
      %v262 = vshrl.u32 %v261, 7
      %v263 = vadd.s32 %v262, 8
      %v264 = vadd.s32 %v262, 16
      %v265 = vadd.s32 %v262, 24
      %v266 = vadd.s32 %v262, 32
      %v267 = vadd.s32 %v262, 40
      %v268 = vadd.s32 %v262, 48
      %v269 = vadd.s32 %v262, 56
      %v270 = vand.u32 %v262, 7
      %v271 = vand.u32 %v263, 7
      %v272 = vand.u32 %v264, 7
      %v273 = vand.u32 %v265, 7
      %v274 = vand.u32 %v266, 7
      %v275 = vand.u32 %v267, 7
      %v276 = vand.u32 %v268, 7
      %v277 = vand.u32 %v269, 7
      %vm278 = vcmp.ge.s32.totalorder %v270, 1
      %vm279 = vcmp.ge.s32.totalorder %v271, 1
      %vm280 = vcmp.ge.s32.totalorder %v272, 1
      %vm281 = vcmp.ge.s32.totalorder %v273, 1
      %vm282 = vcmp.ge.s32.totalorder %v274, 1
      %vm283 = vcmp.ge.s32.totalorder %v275, 1
      %vm284 = vcmp.ge.s32.totalorder %v276, 1
      %vm285 = vcmp.ge.s32.totalorder %v277, 1
      %vm286 = vcmp.le.s32.totalorder %v270, 6
      %vm287 = vcmp.le.s32.totalorder %v271, 6
      %vm288 = vcmp.le.s32.totalorder %v272, 6
      %vm289 = vcmp.le.s32.totalorder %v273, 6
      %vm290 = vcmp.le.s32.totalorder %v274, 6
      %vm291 = vcmp.le.s32.totalorder %v275, 6
      %vm292 = vcmp.le.s32.totalorder %v276, 6
      %vm293 = vcmp.le.s32.totalorder %v277, 6
      %v294 = vld [vmem:[#allocation2] sm:$0xff]
      %v295 = vld [vmem:[#allocation2 + $0x8] sm:$0xff]
      %v296 = vld [vmem:[#allocation2 + $0x10] sm:$0xff]
      %v297 = vld [vmem:[#allocation2 + $0x18] sm:$0xff]
      %v298 = vld [vmem:[#allocation2 + $0x20] sm:$0xff]
      %v299 = vld [vmem:[#allocation2 + $0x28] sm:$0xff]
      %v300 = vld [vmem:[#allocation2 + $0x30] sm:$0xff]
      %v301 = vld [vmem:[#allocation2 + $0x38] sm:$0xff]
      %v302 = vsel %vm278, 1, 0
      %v303 = vsel %vm279, 1, 0
      %v304 = vsel %vm280, 1, 0
      %v305 = vsel %vm281, 1, 0
      %v306 = vsel %vm282, 1, 0
      %v307 = vsel %vm283, 1, 0
      %v308 = vsel %vm284, 1, 0
      %v309 = vsel %vm285, 1, 0
      %vm310 = vcmp.eq.s32.totalorder %v302, 1
      %vm311 = vcmp.eq.s32.totalorder %v303, 1
      %vm312 = vcmp.eq.s32.totalorder %v304, 1
      %vm313 = vcmp.eq.s32.totalorder %v305, 1
      %vm314 = vcmp.eq.s32.totalorder %v306, 1
      %vm315 = vcmp.eq.s32.totalorder %v307, 1
      %vm316 = vcmp.eq.s32.totalorder %v308, 1
      %vm317 = vcmp.eq.s32.totalorder %v309, 1
      %v318 = vsel %vm310, %v294, 0.0
      %v319 = vsel %vm311, %v295, 0.0
      %v320 = vsel %vm312, %v296, 0.0
      %v321 = vsel %vm313, %v297, 0.0
      %v322 = vsel %vm314, %v298, 0.0
      %v323 = vsel %vm315, %v299, 0.0
      %v324 = vsel %vm316, %v300, 0.0
      %v325 = vsel %vm317, %v301, 0.0
      %v326 = vpack.c.bf16 %v319, %v318
      %v327 = vpack.c.bf16 %v321, %v320
      %v328 = vpack.c.bf16 %v323, %v322
      %v329 = vpack.c.bf16 %v325, %v324
      %v330 = vld [vmem:[%s1] sm:$0xf]
      %v331 = vld [vmem:[%s1 + $0x4] sm:$0xf]
      %v332 = vld [vmem:[%s1 + $0x8] sm:$0xf]
      %v333 = vld [vmem:[%s1 + $0xc] sm:$0xf]
      %v334 = vld [vmem:[#allocation2 + $0x1] sm:$0xff]
      %v335 = vld [vmem:[#allocation2 + $0x9] sm:$0xff]
      %v336 = vld [vmem:[#allocation2 + $0x11] sm:$0xff]
      %v337 = vld [vmem:[#allocation2 + $0x19] sm:$0xff]
      %v338 = vld [vmem:[#allocation2 + $0x21] sm:$0xff]
      %v339 = vld [vmem:[#allocation2 + $0x29] sm:$0xff]
      %v340 = vld [vmem:[#allocation2 + $0x31] sm:$0xff]
      %v341 = vld [vmem:[#allocation2 + $0x39] sm:$0xff]
      %v342 = vpack.c.bf16 %v335, %v334
      %v343 = vpack.c.bf16 %v337, %v336
      %v344 = vpack.c.bf16 %v339, %v338
      %v345 = vpack.c.bf16 %v341, %v340
      %s346 = scalar_lea.vmem %s1, 16
      %v347 = vld [vmem:[%s346] sm:$0xf]
      %v348 = vld [vmem:[%s346 + $0x4] sm:$0xf]
      %v349 = vld [vmem:[%s346 + $0x8] sm:$0xf]
      %v350 = vld [vmem:[%s346 + $0xc] sm:$0xf]
      %v355 = vunpack.c.l.b16 %v347
      %v356 = vunpack.c.l.b16 %v348
      %v357 = vunpack.c.l.b16 %v349
      %v358 = vunpack.c.l.b16 %v350
      %v359 = vpack.c.b16 %v356, %v355
      %v360 = vpack.c.b16 %v358, %v357
      %v364 = vsel %vm248, %v342, 0
      %v367 = vsel %vm248, %v343, 0
      %v370 = vsel %vm248, %v344, 0
      %v373 = vsel %vm248, %v345, 0
      %375 = vmatprep.subr.bf16.mxu0 0
      %376 = vmatpush1.bf16.msra.mxu0 0
      %377 = vmatprep.subr.bf16.mxu0 0
      %378 = vmatpush1.bf16.msra.mxu0 0
      %379 = vmatprep.subr.bf16.mxu0 0
      %380 = vmatpush1.bf16.msra.mxu0 0
      %381 = vmatprep.subr.bf16.mxu0 0
      %382 = vmatpush1.bf16.msra.mxu0 0
      %383 = vmatprep.subr.bf16.mxu0 0
      %384 = vmatpush1.bf16.msra.mxu0 0
      %385 = vmatprep.subr.bf16.mxu0 0
      %386 = vmatpush1.bf16.msra.mxu0 0
      %387 = vmatprep.subr.bf16.mxu0 0
      %388 = vmatpush1.bf16.msra.mxu0 %v360
      %389 = vmatprep.subr.bf16.mxu0 0
      %390 = vmatpush1.bf16.msra.mxu0 %v359
      %391 = vmatprep.subr.bf16.mxu0 0
      %392 = vmatpush2.bf16.msra.mxu0 0
      %393 = vmatprep.subr.bf16.mxu0 0
      %394 = vmatpush2.bf16.msra.mxu0 0
      %395 = vmatprep.subr.bf16.mxu0 0
      %396 = vmatpush2.bf16.msra.mxu0 0
      %397 = vmatprep.subr.bf16.mxu0 0
      %398 = vmatpush2.bf16.msra.mxu0 0
      %399 = vmatprep.subr.bf16.mxu0 0
      %400 = vmatpush2.bf16.msra.mxu0 0
      %401 = vmatprep.subr.bf16.mxu0 0
      %402 = vmatpush2.bf16.msra.mxu0 0
      %403 = vmatprep.subr.bf16.mxu0 0
      %404 = vmatpush2.bf16.msra.mxu0 0
      %405 = vmatprep.subr.bf16.mxu0 0
      %406 = vmatpush2.bf16.msra.mxu0 0
      %407 = vmatprep.mubr.bf16.mxu0 0
      %408 = vmatmul.mubr.bf16.gmra.mxu0 %v364
      %v409 = vpop.f32.mrf.mxu0
      %v410 = vadd.f32 0.0, %v409
      %v411 = vpop.f32.mrf.mxu0
      %v412 = vpop.f32.mrf.mxu0
      %v413 = vadd.f32 0.0, %v412
      %v414 = vpop.f32.mrf.mxu0
      %415 = vmatprep.mubr.bf16.mxu0 0
      %416 = vmatmul.mubr.bf16.gmra.mxu0 %v367
      %v417 = vpop.f32.mrf.mxu0
      %v418 = vadd.f32 0.0, %v417
      %v419 = vpop.f32.mrf.mxu0
      %v420 = vpop.f32.mrf.mxu0
      %v421 = vadd.f32 0.0, %v420
      %v422 = vpop.f32.mrf.mxu0
      %423 = vmatprep.mubr.bf16.mxu0 0
      %424 = vmatmul.mubr.bf16.gmra.mxu0 %v370
      %v425 = vpop.f32.mrf.mxu0
      %v426 = vadd.f32 0.0, %v425
      %v427 = vpop.f32.mrf.mxu0
      %v428 = vpop.f32.mrf.mxu0
      %v429 = vadd.f32 0.0, %v428
      %v430 = vpop.f32.mrf.mxu0
      %431 = vmatprep.mubr.bf16.mxu0 0
      %432 = vmatmul.mubr.bf16.gmra.mxu0 %v373
      %v433 = vpop.f32.mrf.mxu0
      %v434 = vadd.f32 0.0, %v433
      %v435 = vpop.f32.mrf.mxu0
      %v436 = vpop.f32.mrf.mxu0
      %v437 = vadd.f32 0.0, %v436
      %v438 = vpop.f32.mrf.mxu0
      %439 = vdwg.mxu0
      %v444 = vunpack.c.l.b16 %v330
      %v445 = vunpack.c.l.b16 %v331
      %v446 = vunpack.c.l.b16 %v332
      %v447 = vunpack.c.l.b16 %v333
      %v448 = vpack.c.b16 %v445, %v444
      %v449 = vpack.c.b16 %v447, %v446
      %v453 = vsel %vm248, %v326, 0
      %v456 = vsel %vm248, %v327, 0
      %v459 = vsel %vm248, %v328, 0
      %v462 = vsel %vm248, %v329, 0
      %464 = vmatprep.subr.bf16.mxu0 0
      %465 = vmatpush1.bf16.msra.mxu0 0
      %466 = vmatprep.subr.bf16.mxu0 0
      %467 = vmatpush1.bf16.msra.mxu0 0
      %468 = vmatprep.subr.bf16.mxu0 0
      %469 = vmatpush1.bf16.msra.mxu0 0
      %470 = vmatprep.subr.bf16.mxu0 0
      %471 = vmatpush1.bf16.msra.mxu0 0
      %472 = vmatprep.subr.bf16.mxu0 0
      %473 = vmatpush1.bf16.msra.mxu0 0
      %474 = vmatprep.subr.bf16.mxu0 0
      %475 = vmatpush1.bf16.msra.mxu0 0
      %476 = vmatprep.subr.bf16.mxu0 0
      %477 = vmatpush1.bf16.msra.mxu0 %v449
      %478 = vmatprep.subr.bf16.mxu0 0
      %479 = vmatpush1.bf16.msra.mxu0 %v448
      %480 = vmatprep.subr.bf16.mxu0 0
      %481 = vmatpush2.bf16.msra.mxu0 0
      %482 = vmatprep.subr.bf16.mxu0 0
      %483 = vmatpush2.bf16.msra.mxu0 0
      %484 = vmatprep.subr.bf16.mxu0 0
      %485 = vmatpush2.bf16.msra.mxu0 0
      %486 = vmatprep.subr.bf16.mxu0 0
      %487 = vmatpush2.bf16.msra.mxu0 0
      %488 = vmatprep.subr.bf16.mxu0 0
      %489 = vmatpush2.bf16.msra.mxu0 0
      %490 = vmatprep.subr.bf16.mxu0 0
      %491 = vmatpush2.bf16.msra.mxu0 0
      %492 = vmatprep.subr.bf16.mxu0 0
      %493 = vmatpush2.bf16.msra.mxu0 0
      %494 = vmatprep.subr.bf16.mxu0 0
      %495 = vmatpush2.bf16.msra.mxu0 0
      %496 = vmatprep.mubr.bf16.mxu0 0
      %497 = vmatmul.mubr.bf16.gmra.mxu0 %v453
      %v498 = vpop.f32.mrf.mxu0
      %v499 = vadd.f32 %v410, %v498
      %v500 = vpop.f32.mrf.mxu0
      %v501 = vpop.f32.mrf.mxu0
      %v502 = vadd.f32 %v413, %v501
      %v503 = vpop.f32.mrf.mxu0
      %504 = vmatprep.mubr.bf16.mxu0 0
      %505 = vmatmul.mubr.bf16.gmra.mxu0 %v456
      %v506 = vpop.f32.mrf.mxu0
      %v507 = vadd.f32 %v418, %v506
      %v508 = vpop.f32.mrf.mxu0
      %v509 = vpop.f32.mrf.mxu0
      %v510 = vadd.f32 %v421, %v509
      %v511 = vpop.f32.mrf.mxu0
      %512 = vmatprep.mubr.bf16.mxu0 0
      %513 = vmatmul.mubr.bf16.gmra.mxu0 %v459
      %v514 = vpop.f32.mrf.mxu0
      %v515 = vadd.f32 %v426, %v514
      %v516 = vpop.f32.mrf.mxu0
      %v517 = vpop.f32.mrf.mxu0
      %v518 = vadd.f32 %v429, %v517
      %v519 = vpop.f32.mrf.mxu0
      %520 = vmatprep.mubr.bf16.mxu0 0
      %521 = vmatmul.mubr.bf16.gmra.mxu0 %v462
      %v522 = vpop.f32.mrf.mxu0
      %v523 = vadd.f32 %v434, %v522
      %v524 = vpop.f32.mrf.mxu0
      %v525 = vpop.f32.mrf.mxu0
      %v526 = vadd.f32 %v437, %v525
      %v527 = vpop.f32.mrf.mxu0
      %528 = vdwg.mxu0
      %v529 = vld [vmem:[#allocation2 + $0x2] sm:$0xff]
      %v530 = vld [vmem:[#allocation2 + $0xa] sm:$0xff]
      %v531 = vld [vmem:[#allocation2 + $0x12] sm:$0xff]
      %v532 = vld [vmem:[#allocation2 + $0x1a] sm:$0xff]
      %v533 = vld [vmem:[#allocation2 + $0x22] sm:$0xff]
      %v534 = vld [vmem:[#allocation2 + $0x2a] sm:$0xff]
      %v535 = vld [vmem:[#allocation2 + $0x32] sm:$0xff]
      %v536 = vld [vmem:[#allocation2 + $0x3a] sm:$0xff]
      %v537 = vsel %vm286, 1, 0
      %v538 = vsel %vm287, 1, 0
      %v539 = vsel %vm288, 1, 0
      %v540 = vsel %vm289, 1, 0
      %v541 = vsel %vm290, 1, 0
      %v542 = vsel %vm291, 1, 0
      %v543 = vsel %vm292, 1, 0
      %v544 = vsel %vm293, 1, 0
      %vm545 = vcmp.eq.s32.totalorder %v537, 1
      %vm546 = vcmp.eq.s32.totalorder %v538, 1
      %vm547 = vcmp.eq.s32.totalorder %v539, 1
      %vm548 = vcmp.eq.s32.totalorder %v540, 1
      %vm549 = vcmp.eq.s32.totalorder %v541, 1
      %vm550 = vcmp.eq.s32.totalorder %v542, 1
      %vm551 = vcmp.eq.s32.totalorder %v543, 1
      %vm552 = vcmp.eq.s32.totalorder %v544, 1
      %v553 = vsel %vm545, %v529, 0.0
      %v554 = vsel %vm546, %v530, 0.0
      %v555 = vsel %vm547, %v531, 0.0
      %v556 = vsel %vm548, %v532, 0.0
      %v557 = vsel %vm549, %v533, 0.0
      %v558 = vsel %vm550, %v534, 0.0
      %v559 = vsel %vm551, %v535, 0.0
      %v560 = vsel %vm552, %v536, 0.0
      %v561 = vpack.c.bf16 %v554, %v553
      %v562 = vpack.c.bf16 %v556, %v555
      %v563 = vpack.c.bf16 %v558, %v557
      %v564 = vpack.c.bf16 %v560, %v559
      %s565 = scalar_lea.vmem %s1, 32
      %v566 = vld [vmem:[%s565] sm:$0xf]
      %v567 = vld [vmem:[%s565 + $0x4] sm:$0xf]
      %v568 = vld [vmem:[%s565 + $0x8] sm:$0xf]
      %v569 = vld [vmem:[%s565 + $0xc] sm:$0xf]
      %v574 = vunpack.c.l.b16 %v566
      %v575 = vunpack.c.l.b16 %v567
      %v576 = vunpack.c.l.b16 %v568
      %v577 = vunpack.c.l.b16 %v569
      %v578 = vpack.c.b16 %v575, %v574
      %v579 = vpack.c.b16 %v577, %v576
      %v583 = vsel %vm248, %v561, 0
      %v586 = vsel %vm248, %v562, 0
      %v589 = vsel %vm248, %v563, 0
      %v592 = vsel %vm248, %v564, 0
      %594 = vmatprep.subr.bf16.mxu0 0
      %595 = vmatpush1.bf16.msra.mxu0 0
      %596 = vmatprep.subr.bf16.mxu0 0
      %597 = vmatpush1.bf16.msra.mxu0 0
      %598 = vmatprep.subr.bf16.mxu0 0
      %599 = vmatpush1.bf16.msra.mxu0 0
      %600 = vmatprep.subr.bf16.mxu0 0
      %601 = vmatpush1.bf16.msra.mxu0 0
      %602 = vmatprep.subr.bf16.mxu0 0
      %603 = vmatpush1.bf16.msra.mxu0 0
      %604 = vmatprep.subr.bf16.mxu0 0
      %605 = vmatpush1.bf16.msra.mxu0 0
      %606 = vmatprep.subr.bf16.mxu0 0
      %607 = vmatpush1.bf16.msra.mxu0 %v579
      %608 = vmatprep.subr.bf16.mxu0 0
      %609 = vmatpush1.bf16.msra.mxu0 %v578
      %610 = vmatprep.subr.bf16.mxu0 0
      %611 = vmatpush2.bf16.msra.mxu0 0
      %612 = vmatprep.subr.bf16.mxu0 0
      %613 = vmatpush2.bf16.msra.mxu0 0
      %614 = vmatprep.subr.bf16.mxu0 0
      %615 = vmatpush2.bf16.msra.mxu0 0
      %616 = vmatprep.subr.bf16.mxu0 0
      %617 = vmatpush2.bf16.msra.mxu0 0
      %618 = vmatprep.subr.bf16.mxu0 0
      %619 = vmatpush2.bf16.msra.mxu0 0
      %620 = vmatprep.subr.bf16.mxu0 0
      %621 = vmatpush2.bf16.msra.mxu0 0
      %622 = vmatprep.subr.bf16.mxu0 0
      %623 = vmatpush2.bf16.msra.mxu0 0
      %624 = vmatprep.subr.bf16.mxu0 0
      %625 = vmatpush2.bf16.msra.mxu0 0
      %626 = vmatprep.mubr.bf16.mxu0 0
      %627 = vmatmul.mubr.bf16.gmra.mxu0 %v583
      %v628 = vpop.f32.mrf.mxu0
      %v629 = vadd.f32 0.0, %v628
      %v630 = vpop.f32.mrf.mxu0
      %v631 = vpop.f32.mrf.mxu0
      %v632 = vadd.f32 0.0, %v631
      %v633 = vpop.f32.mrf.mxu0
      %634 = vmatprep.mubr.bf16.mxu0 0
      %635 = vmatmul.mubr.bf16.gmra.mxu0 %v586
      %v636 = vpop.f32.mrf.mxu0
      %v637 = vadd.f32 0.0, %v636
      %v638 = vpop.f32.mrf.mxu0
      %v639 = vpop.f32.mrf.mxu0
      %v640 = vadd.f32 0.0, %v639
      %v641 = vpop.f32.mrf.mxu0
      %642 = vmatprep.mubr.bf16.mxu0 0
      %643 = vmatmul.mubr.bf16.gmra.mxu0 %v589
      %v644 = vpop.f32.mrf.mxu0
      %v645 = vadd.f32 0.0, %v644
      %v646 = vpop.f32.mrf.mxu0
      %v647 = vpop.f32.mrf.mxu0
      %v648 = vadd.f32 0.0, %v647
      %v649 = vpop.f32.mrf.mxu0
      %650 = vmatprep.mubr.bf16.mxu0 0
      %651 = vmatmul.mubr.bf16.gmra.mxu0 %v592
      %v652 = vpop.f32.mrf.mxu0
      %v653 = vadd.f32 0.0, %v652
      %v654 = vpop.f32.mrf.mxu0
      %v655 = vpop.f32.mrf.mxu0
      %v656 = vadd.f32 0.0, %v655
      %v657 = vpop.f32.mrf.mxu0
      %658 = vdwg.mxu0
      %v659 = vadd.f32 %v499, %v629
      %v660 = vadd.f32 %v502, %v632
      %v661 = vadd.f32 %v507, %v637
      %v662 = vadd.f32 %v510, %v640
      %v663 = vadd.f32 %v515, %v645
      %v664 = vadd.f32 %v518, %v648
      %v665 = vadd.f32 %v523, %v653
      %v666 = vadd.f32 %v526, %v656
      %v667 = vld [vmem:[#allocation2 + $0x8] sm:$0xff]
      %v668 = vld [vmem:[#allocation2 + $0x10] sm:$0xff]
      %v669 = vld [vmem:[#allocation2 + $0x18] sm:$0xff]
      %v670 = vld [vmem:[#allocation2 + $0x20] sm:$0xff]
      %v671 = vld [vmem:[#allocation2 + $0x28] sm:$0xff]
      %v672 = vld [vmem:[#allocation2 + $0x30] sm:$0xff]
      %v673 = vld [vmem:[#allocation2 + $0x38] sm:$0xff]
      %v674 = vld [vmem:[#allocation2 + $0x40] sm:$0xff]
      %v675 = vsel %vm310, %v667, 0.0
      %v676 = vsel %vm311, %v668, 0.0
      %v677 = vsel %vm312, %v669, 0.0
      %v678 = vsel %vm313, %v670, 0.0
      %v679 = vsel %vm314, %v671, 0.0
      %v680 = vsel %vm315, %v672, 0.0
      %v681 = vsel %vm316, %v673, 0.0
      %v682 = vsel %vm317, %v674, 0.0
      %v683 = vpack.c.bf16 %v676, %v675
      %v684 = vpack.c.bf16 %v678, %v677
      %v685 = vpack.c.bf16 %v680, %v679
      %v686 = vpack.c.bf16 %v682, %v681
      %s687 = scalar_lea.vmem %s1, 48
      %v688 = vld [vmem:[%s687] sm:$0xf]
      %v689 = vld [vmem:[%s687 + $0x4] sm:$0xf]
      %v690 = vld [vmem:[%s687 + $0x8] sm:$0xf]
      %v691 = vld [vmem:[%s687 + $0xc] sm:$0xf]
      %v696 = vunpack.c.l.b16 %v688
      %v697 = vunpack.c.l.b16 %v689
      %v698 = vunpack.c.l.b16 %v690
      %v699 = vunpack.c.l.b16 %v691
      %v700 = vpack.c.b16 %v697, %v696
      %v701 = vpack.c.b16 %v699, %v698
      %v705 = vsel %vm248, %v683, 0
      %v708 = vsel %vm248, %v684, 0
      %v711 = vsel %vm248, %v685, 0
      %v714 = vsel %vm248, %v686, 0
      %716 = vmatprep.subr.bf16.mxu0 0
      %717 = vmatpush1.bf16.msra.mxu0 0
      %718 = vmatprep.subr.bf16.mxu0 0
      %719 = vmatpush1.bf16.msra.mxu0 0
      %720 = vmatprep.subr.bf16.mxu0 0
      %721 = vmatpush1.bf16.msra.mxu0 0
      %722 = vmatprep.subr.bf16.mxu0 0
      %723 = vmatpush1.bf16.msra.mxu0 0
      %724 = vmatprep.subr.bf16.mxu0 0
      %725 = vmatpush1.bf16.msra.mxu0 0
      %726 = vmatprep.subr.bf16.mxu0 0
      %727 = vmatpush1.bf16.msra.mxu0 0
      %728 = vmatprep.subr.bf16.mxu0 0
      %729 = vmatpush1.bf16.msra.mxu0 %v701
      %730 = vmatprep.subr.bf16.mxu0 0
      %731 = vmatpush1.bf16.msra.mxu0 %v700
      %732 = vmatprep.subr.bf16.mxu0 0
      %733 = vmatpush2.bf16.msra.mxu0 0
      %734 = vmatprep.subr.bf16.mxu0 0
      %735 = vmatpush2.bf16.msra.mxu0 0
      %736 = vmatprep.subr.bf16.mxu0 0
      %737 = vmatpush2.bf16.msra.mxu0 0
      %738 = vmatprep.subr.bf16.mxu0 0
      %739 = vmatpush2.bf16.msra.mxu0 0
      %740 = vmatprep.subr.bf16.mxu0 0
      %741 = vmatpush2.bf16.msra.mxu0 0
      %742 = vmatprep.subr.bf16.mxu0 0
      %743 = vmatpush2.bf16.msra.mxu0 0
      %744 = vmatprep.subr.bf16.mxu0 0
      %745 = vmatpush2.bf16.msra.mxu0 0
      %746 = vmatprep.subr.bf16.mxu0 0
      %747 = vmatpush2.bf16.msra.mxu0 0
      %748 = vmatprep.mubr.bf16.mxu0 0
      %749 = vmatmul.mubr.bf16.gmra.mxu0 %v705
      %v750 = vpop.f32.mrf.mxu0
      %v751 = vadd.f32 0.0, %v750
      %v752 = vpop.f32.mrf.mxu0
      %v753 = vpop.f32.mrf.mxu0
      %v754 = vadd.f32 0.0, %v753
      %v755 = vpop.f32.mrf.mxu0
      %756 = vmatprep.mubr.bf16.mxu0 0
      %757 = vmatmul.mubr.bf16.gmra.mxu0 %v708
      %v758 = vpop.f32.mrf.mxu0
      %v759 = vadd.f32 0.0, %v758
      %v760 = vpop.f32.mrf.mxu0
      %v761 = vpop.f32.mrf.mxu0
      %v762 = vadd.f32 0.0, %v761
      %v763 = vpop.f32.mrf.mxu0
      %764 = vmatprep.mubr.bf16.mxu0 0
      %765 = vmatmul.mubr.bf16.gmra.mxu0 %v711
      %v766 = vpop.f32.mrf.mxu0
      %v767 = vadd.f32 0.0, %v766
      %v768 = vpop.f32.mrf.mxu0
      %v769 = vpop.f32.mrf.mxu0
      %v770 = vadd.f32 0.0, %v769
      %v771 = vpop.f32.mrf.mxu0
      %772 = vmatprep.mubr.bf16.mxu0 0
      %773 = vmatmul.mubr.bf16.gmra.mxu0 %v714
      %v774 = vpop.f32.mrf.mxu0
      %v775 = vadd.f32 0.0, %v774
      %v776 = vpop.f32.mrf.mxu0
      %v777 = vpop.f32.mrf.mxu0
      %v778 = vadd.f32 0.0, %v777
      %v779 = vpop.f32.mrf.mxu0
      %780 = vdwg.mxu0
      %v781 = vadd.f32 %v659, %v751
      %v782 = vadd.f32 %v660, %v754
      %v783 = vadd.f32 %v661, %v759
      %v784 = vadd.f32 %v662, %v762
      %v785 = vadd.f32 %v663, %v767
      %v786 = vadd.f32 %v664, %v770
      %v787 = vadd.f32 %v665, %v775
      %v788 = vadd.f32 %v666, %v778
      %v789 = vld [vmem:[#allocation2 + $0x9] sm:$0xff]
      %v790 = vld [vmem:[#allocation2 + $0x11] sm:$0xff]
      %v791 = vld [vmem:[#allocation2 + $0x19] sm:$0xff]
      %v792 = vld [vmem:[#allocation2 + $0x21] sm:$0xff]
      %v793 = vld [vmem:[#allocation2 + $0x29] sm:$0xff]
      %v794 = vld [vmem:[#allocation2 + $0x31] sm:$0xff]
      %v795 = vld [vmem:[#allocation2 + $0x39] sm:$0xff]
      %v796 = vld [vmem:[#allocation2 + $0x41] sm:$0xff]
      %v797 = vpack.c.bf16 %v790, %v789
      %v798 = vpack.c.bf16 %v792, %v791
      %v799 = vpack.c.bf16 %v794, %v793
      %v800 = vpack.c.bf16 %v796, %v795
      %s801 = scalar_lea.vmem %s1, 64
      %v802 = vld [vmem:[%s801] sm:$0xf]
      %v803 = vld [vmem:[%s801 + $0x4] sm:$0xf]
      %v804 = vld [vmem:[%s801 + $0x8] sm:$0xf]
      %v805 = vld [vmem:[%s801 + $0xc] sm:$0xf]
      %v810 = vunpack.c.l.b16 %v802
      %v811 = vunpack.c.l.b16 %v803
      %v812 = vunpack.c.l.b16 %v804
      %v813 = vunpack.c.l.b16 %v805
      %v814 = vpack.c.b16 %v811, %v810
      %v815 = vpack.c.b16 %v813, %v812
      %v819 = vsel %vm248, %v797, 0
      %v822 = vsel %vm248, %v798, 0
      %v825 = vsel %vm248, %v799, 0
      %v828 = vsel %vm248, %v800, 0
      %830 = vmatprep.subr.bf16.mxu0 0
      %831 = vmatpush1.bf16.msra.mxu0 0
      %832 = vmatprep.subr.bf16.mxu0 0
      %833 = vmatpush1.bf16.msra.mxu0 0
      %834 = vmatprep.subr.bf16.mxu0 0
      %835 = vmatpush1.bf16.msra.mxu0 0
      %836 = vmatprep.subr.bf16.mxu0 0
      %837 = vmatpush1.bf16.msra.mxu0 0
      %838 = vmatprep.subr.bf16.mxu0 0
      %839 = vmatpush1.bf16.msra.mxu0 0
      %840 = vmatprep.subr.bf16.mxu0 0
      %841 = vmatpush1.bf16.msra.mxu0 0
      %842 = vmatprep.subr.bf16.mxu0 0
      %843 = vmatpush1.bf16.msra.mxu0 %v815
      %844 = vmatprep.subr.bf16.mxu0 0
      %845 = vmatpush1.bf16.msra.mxu0 %v814
      %846 = vmatprep.subr.bf16.mxu0 0
      %847 = vmatpush2.bf16.msra.mxu0 0
      %848 = vmatprep.subr.bf16.mxu0 0
      %849 = vmatpush2.bf16.msra.mxu0 0
      %850 = vmatprep.subr.bf16.mxu0 0
      %851 = vmatpush2.bf16.msra.mxu0 0
      %852 = vmatprep.subr.bf16.mxu0 0
      %853 = vmatpush2.bf16.msra.mxu0 0
      %854 = vmatprep.subr.bf16.mxu0 0
      %855 = vmatpush2.bf16.msra.mxu0 0
      %856 = vmatprep.subr.bf16.mxu0 0
      %857 = vmatpush2.bf16.msra.mxu0 0
      %858 = vmatprep.subr.bf16.mxu0 0
      %859 = vmatpush2.bf16.msra.mxu0 0
      %860 = vmatprep.subr.bf16.mxu0 0
      %861 = vmatpush2.bf16.msra.mxu0 0
      %862 = vmatprep.mubr.bf16.mxu0 0
      %863 = vmatmul.mubr.bf16.gmra.mxu0 %v819
      %v864 = vpop.f32.mrf.mxu0
      %v865 = vadd.f32 0.0, %v864
      %v866 = vpop.f32.mrf.mxu0
      %v867 = vpop.f32.mrf.mxu0
      %v868 = vadd.f32 0.0, %v867
      %v869 = vpop.f32.mrf.mxu0
      %870 = vmatprep.mubr.bf16.mxu0 0
      %871 = vmatmul.mubr.bf16.gmra.mxu0 %v822
      %v872 = vpop.f32.mrf.mxu0
      %v873 = vadd.f32 0.0, %v872
      %v874 = vpop.f32.mrf.mxu0
      %v875 = vpop.f32.mrf.mxu0
      %v876 = vadd.f32 0.0, %v875
      %v877 = vpop.f32.mrf.mxu0
      %878 = vmatprep.mubr.bf16.mxu0 0
      %879 = vmatmul.mubr.bf16.gmra.mxu0 %v825
      %v880 = vpop.f32.mrf.mxu0
      %v881 = vadd.f32 0.0, %v880
      %v882 = vpop.f32.mrf.mxu0
      %v883 = vpop.f32.mrf.mxu0
      %v884 = vadd.f32 0.0, %v883
      %v885 = vpop.f32.mrf.mxu0
      %886 = vmatprep.mubr.bf16.mxu0 0
      %887 = vmatmul.mubr.bf16.gmra.mxu0 %v828
      %v888 = vpop.f32.mrf.mxu0
      %v889 = vadd.f32 0.0, %v888
      %v890 = vpop.f32.mrf.mxu0
      %v891 = vpop.f32.mrf.mxu0
      %v892 = vadd.f32 0.0, %v891
      %v893 = vpop.f32.mrf.mxu0
      %894 = vdwg.mxu0
      %v895 = vadd.f32 %v781, %v865
      %v896 = vadd.f32 %v782, %v868
      %v897 = vadd.f32 %v783, %v873
      %v898 = vadd.f32 %v784, %v876
      %v899 = vadd.f32 %v785, %v881
      %v900 = vadd.f32 %v786, %v884
      %v901 = vadd.f32 %v787, %v889
      %v902 = vadd.f32 %v788, %v892
      %v903 = vld [vmem:[#allocation2 + $0xa] sm:$0xff]
      %v904 = vld [vmem:[#allocation2 + $0x12] sm:$0xff]
      %v905 = vld [vmem:[#allocation2 + $0x1a] sm:$0xff]
      %v906 = vld [vmem:[#allocation2 + $0x22] sm:$0xff]
      %v907 = vld [vmem:[#allocation2 + $0x2a] sm:$0xff]
      %v908 = vld [vmem:[#allocation2 + $0x32] sm:$0xff]
      %v909 = vld [vmem:[#allocation2 + $0x3a] sm:$0xff]
      %v910 = vld [vmem:[#allocation2 + $0x42] sm:$0xff]
      %v911 = vsel %vm545, %v903, 0.0
      %v912 = vsel %vm546, %v904, 0.0
      %v913 = vsel %vm547, %v905, 0.0
      %v914 = vsel %vm548, %v906, 0.0
      %v915 = vsel %vm549, %v907, 0.0
      %v916 = vsel %vm550, %v908, 0.0
      %v917 = vsel %vm551, %v909, 0.0
      %v918 = vsel %vm552, %v910, 0.0
      %v919 = vpack.c.bf16 %v912, %v911
      %v920 = vpack.c.bf16 %v914, %v913
      %v921 = vpack.c.bf16 %v916, %v915
      %v922 = vpack.c.bf16 %v918, %v917
      %s923 = scalar_lea.vmem %s1, 80
      %v924 = vld [vmem:[%s923] sm:$0xf]
      %v925 = vld [vmem:[%s923 + $0x4] sm:$0xf]
      %v926 = vld [vmem:[%s923 + $0x8] sm:$0xf]
      %v927 = vld [vmem:[%s923 + $0xc] sm:$0xf]
      %v932 = vunpack.c.l.b16 %v924
      %v933 = vunpack.c.l.b16 %v925
      %v934 = vunpack.c.l.b16 %v926
      %v935 = vunpack.c.l.b16 %v927
      %v936 = vpack.c.b16 %v933, %v932
      %v937 = vpack.c.b16 %v935, %v934
      %v941 = vsel %vm248, %v919, 0
      %v944 = vsel %vm248, %v920, 0
      %v947 = vsel %vm248, %v921, 0
      %v950 = vsel %vm248, %v922, 0
      %952 = vmatprep.subr.bf16.mxu0 0
      %953 = vmatpush1.bf16.msra.mxu0 0
      %954 = vmatprep.subr.bf16.mxu0 0
      %955 = vmatpush1.bf16.msra.mxu0 0
      %956 = vmatprep.subr.bf16.mxu0 0
      %957 = vmatpush1.bf16.msra.mxu0 0
      %958 = vmatprep.subr.bf16.mxu0 0
      %959 = vmatpush1.bf16.msra.mxu0 0
      %960 = vmatprep.subr.bf16.mxu0 0
      %961 = vmatpush1.bf16.msra.mxu0 0
      %962 = vmatprep.subr.bf16.mxu0 0
      %963 = vmatpush1.bf16.msra.mxu0 0
      %964 = vmatprep.subr.bf16.mxu0 0
      %965 = vmatpush1.bf16.msra.mxu0 %v937
      %966 = vmatprep.subr.bf16.mxu0 0
      %967 = vmatpush1.bf16.msra.mxu0 %v936
      %968 = vmatprep.subr.bf16.mxu0 0
      %969 = vmatpush2.bf16.msra.mxu0 0
      %970 = vmatprep.subr.bf16.mxu0 0
      %971 = vmatpush2.bf16.msra.mxu0 0
      %972 = vmatprep.subr.bf16.mxu0 0
      %973 = vmatpush2.bf16.msra.mxu0 0
      %974 = vmatprep.subr.bf16.mxu0 0
      %975 = vmatpush2.bf16.msra.mxu0 0
      %976 = vmatprep.subr.bf16.mxu0 0
      %977 = vmatpush2.bf16.msra.mxu0 0
      %978 = vmatprep.subr.bf16.mxu0 0
      %979 = vmatpush2.bf16.msra.mxu0 0
      %980 = vmatprep.subr.bf16.mxu0 0
      %981 = vmatpush2.bf16.msra.mxu0 0
      %982 = vmatprep.subr.bf16.mxu0 0
      %983 = vmatpush2.bf16.msra.mxu0 0
      %984 = vmatprep.mubr.bf16.mxu0 0
      %985 = vmatmul.mubr.bf16.gmra.mxu0 %v941
      %v986 = vpop.f32.mrf.mxu0
      %v987 = vadd.f32 0.0, %v986
      %v988 = vpop.f32.mrf.mxu0
      %v989 = vpop.f32.mrf.mxu0
      %v990 = vadd.f32 0.0, %v989
      %v991 = vpop.f32.mrf.mxu0
      %992 = vmatprep.mubr.bf16.mxu0 0
      %993 = vmatmul.mubr.bf16.gmra.mxu0 %v944
      %v994 = vpop.f32.mrf.mxu0
      %v995 = vadd.f32 0.0, %v994
      %v996 = vpop.f32.mrf.mxu0
      %v997 = vpop.f32.mrf.mxu0
      %v998 = vadd.f32 0.0, %v997
      %v999 = vpop.f32.mrf.mxu0
      %1000 = vmatprep.mubr.bf16.mxu0 0
      %1001 = vmatmul.mubr.bf16.gmra.mxu0 %v947
      %v1002 = vpop.f32.mrf.mxu0
      %v1003 = vadd.f32 0.0, %v1002
      %v1004 = vpop.f32.mrf.mxu0
      %v1005 = vpop.f32.mrf.mxu0
      %v1006 = vadd.f32 0.0, %v1005
      %v1007 = vpop.f32.mrf.mxu0
      %1008 = vmatprep.mubr.bf16.mxu0 0
      %1009 = vmatmul.mubr.bf16.gmra.mxu0 %v950
      %v1010 = vpop.f32.mrf.mxu0
      %v1011 = vadd.f32 0.0, %v1010
      %v1012 = vpop.f32.mrf.mxu0
      %v1013 = vpop.f32.mrf.mxu0
      %v1014 = vadd.f32 0.0, %v1013
      %v1015 = vpop.f32.mrf.mxu0
      %1016 = vdwg.mxu0
      %v1017 = vadd.f32 %v895, %v987
      %v1018 = vadd.f32 %v896, %v990
      %v1019 = vadd.f32 %v897, %v995
      %v1020 = vadd.f32 %v898, %v998
      %v1021 = vadd.f32 %v899, %v1003
      %v1022 = vadd.f32 %v900, %v1006
      %v1023 = vadd.f32 %v901, %v1011
      %v1024 = vadd.f32 %v902, %v1014
      %v1025 = vld [vmem:[#allocation2 + $0x10] sm:$0xff]
      %v1026 = vld [vmem:[#allocation2 + $0x18] sm:$0xff]
      %v1027 = vld [vmem:[#allocation2 + $0x20] sm:$0xff]
      %v1028 = vld [vmem:[#allocation2 + $0x28] sm:$0xff]
      %v1029 = vld [vmem:[#allocation2 + $0x30] sm:$0xff]
      %v1030 = vld [vmem:[#allocation2 + $0x38] sm:$0xff]
      %v1031 = vld [vmem:[#allocation2 + $0x40] sm:$0xff]
      %v1032 = vld [vmem:[#allocation2 + $0x48] sm:$0xff]
      %v1033 = vsel %vm310, %v1025, 0.0
      %v1034 = vsel %vm311, %v1026, 0.0
      %v1035 = vsel %vm312, %v1027, 0.0
      %v1036 = vsel %vm313, %v1028, 0.0
      %v1037 = vsel %vm314, %v1029, 0.0
      %v1038 = vsel %vm315, %v1030, 0.0
      %v1039 = vsel %vm316, %v1031, 0.0
      %v1040 = vsel %vm317, %v1032, 0.0
      %v1041 = vpack.c.bf16 %v1034, %v1033
      %v1042 = vpack.c.bf16 %v1036, %v1035
      %v1043 = vpack.c.bf16 %v1038, %v1037
      %v1044 = vpack.c.bf16 %v1040, %v1039
      %s1045 = scalar_lea.vmem %s1, 96
      %v1046 = vld [vmem:[%s1045] sm:$0xf]
      %v1047 = vld [vmem:[%s1045 + $0x4] sm:$0xf]
      %v1048 = vld [vmem:[%s1045 + $0x8] sm:$0xf]
      %v1049 = vld [vmem:[%s1045 + $0xc] sm:$0xf]
      %v1054 = vunpack.c.l.b16 %v1046
      %v1055 = vunpack.c.l.b16 %v1047
      %v1056 = vunpack.c.l.b16 %v1048
      %v1057 = vunpack.c.l.b16 %v1049
      %v1058 = vpack.c.b16 %v1055, %v1054
      %v1059 = vpack.c.b16 %v1057, %v1056
      %v1063 = vsel %vm248, %v1041, 0
      %v1066 = vsel %vm248, %v1042, 0
      %v1069 = vsel %vm248, %v1043, 0
      %v1072 = vsel %vm248, %v1044, 0
      %1074 = vmatprep.subr.bf16.mxu0 0
      %1075 = vmatpush1.bf16.msra.mxu0 0
      %1076 = vmatprep.subr.bf16.mxu0 0
      %1077 = vmatpush1.bf16.msra.mxu0 0
      %1078 = vmatprep.subr.bf16.mxu0 0
      %1079 = vmatpush1.bf16.msra.mxu0 0
      %1080 = vmatprep.subr.bf16.mxu0 0
      %1081 = vmatpush1.bf16.msra.mxu0 0
      %1082 = vmatprep.subr.bf16.mxu0 0
      %1083 = vmatpush1.bf16.msra.mxu0 0
      %1084 = vmatprep.subr.bf16.mxu0 0
      %1085 = vmatpush1.bf16.msra.mxu0 0
      %1086 = vmatprep.subr.bf16.mxu0 0
      %1087 = vmatpush1.bf16.msra.mxu0 %v1059
      %1088 = vmatprep.subr.bf16.mxu0 0
      %1089 = vmatpush1.bf16.msra.mxu0 %v1058
      %1090 = vmatprep.subr.bf16.mxu0 0
      %1091 = vmatpush2.bf16.msra.mxu0 0
      %1092 = vmatprep.subr.bf16.mxu0 0
      %1093 = vmatpush2.bf16.msra.mxu0 0
      %1094 = vmatprep.subr.bf16.mxu0 0
      %1095 = vmatpush2.bf16.msra.mxu0 0
      %1096 = vmatprep.subr.bf16.mxu0 0
      %1097 = vmatpush2.bf16.msra.mxu0 0
      %1098 = vmatprep.subr.bf16.mxu0 0
      %1099 = vmatpush2.bf16.msra.mxu0 0
      %1100 = vmatprep.subr.bf16.mxu0 0
      %1101 = vmatpush2.bf16.msra.mxu0 0
      %1102 = vmatprep.subr.bf16.mxu0 0
      %1103 = vmatpush2.bf16.msra.mxu0 0
      %1104 = vmatprep.subr.bf16.mxu0 0
      %1105 = vmatpush2.bf16.msra.mxu0 0
      %1106 = vmatprep.mubr.bf16.mxu0 0
      %1107 = vmatmul.mubr.bf16.gmra.mxu0 %v1063
      %v1108 = vpop.f32.mrf.mxu0
      %v1109 = vadd.f32 0.0, %v1108
      %v1110 = vpop.f32.mrf.mxu0
      %v1111 = vpop.f32.mrf.mxu0
      %v1112 = vadd.f32 0.0, %v1111
      %v1113 = vpop.f32.mrf.mxu0
      %1114 = vmatprep.mubr.bf16.mxu0 0
      %1115 = vmatmul.mubr.bf16.gmra.mxu0 %v1066
      %v1116 = vpop.f32.mrf.mxu0
      %v1117 = vadd.f32 0.0, %v1116
      %v1118 = vpop.f32.mrf.mxu0
      %v1119 = vpop.f32.mrf.mxu0
      %v1120 = vadd.f32 0.0, %v1119
      %v1121 = vpop.f32.mrf.mxu0
      %1122 = vmatprep.mubr.bf16.mxu0 0
      %1123 = vmatmul.mubr.bf16.gmra.mxu0 %v1069
      %v1124 = vpop.f32.mrf.mxu0
      %v1125 = vadd.f32 0.0, %v1124
      %v1126 = vpop.f32.mrf.mxu0
      %v1127 = vpop.f32.mrf.mxu0
      %v1128 = vadd.f32 0.0, %v1127
      %v1129 = vpop.f32.mrf.mxu0
      %1130 = vmatprep.mubr.bf16.mxu0 0
      %1131 = vmatmul.mubr.bf16.gmra.mxu0 %v1072
      %v1132 = vpop.f32.mrf.mxu0
      %v1133 = vadd.f32 0.0, %v1132
      %v1134 = vpop.f32.mrf.mxu0
      %v1135 = vpop.f32.mrf.mxu0
      %v1136 = vadd.f32 0.0, %v1135
      %v1137 = vpop.f32.mrf.mxu0
      %1138 = vdwg.mxu0
      %v1139 = vadd.f32 %v1017, %v1109
      %v1140 = vadd.f32 %v1018, %v1112
      %v1141 = vadd.f32 %v1019, %v1117
      %v1142 = vadd.f32 %v1020, %v1120
      %v1143 = vadd.f32 %v1021, %v1125
      %v1144 = vadd.f32 %v1022, %v1128
      %v1145 = vadd.f32 %v1023, %v1133
      %v1146 = vadd.f32 %v1024, %v1136
      %v1147 = vld [vmem:[#allocation2 + $0x11] sm:$0xff]
      %v1148 = vld [vmem:[#allocation2 + $0x19] sm:$0xff]
      %v1149 = vld [vmem:[#allocation2 + $0x21] sm:$0xff]
      %v1150 = vld [vmem:[#allocation2 + $0x29] sm:$0xff]
      %v1151 = vld [vmem:[#allocation2 + $0x31] sm:$0xff]
      %v1152 = vld [vmem:[#allocation2 + $0x39] sm:$0xff]
      %v1153 = vld [vmem:[#allocation2 + $0x41] sm:$0xff]
      %v1154 = vld [vmem:[#allocation2 + $0x49] sm:$0xff]
      %v1155 = vpack.c.bf16 %v1148, %v1147
      %v1156 = vpack.c.bf16 %v1150, %v1149
      %v1157 = vpack.c.bf16 %v1152, %v1151
      %v1158 = vpack.c.bf16 %v1154, %v1153
      %s1159 = scalar_lea.vmem %s1, 112
      %v1160 = vld [vmem:[%s1159] sm:$0xf]
      %v1161 = vld [vmem:[%s1159 + $0x4] sm:$0xf]
      %v1162 = vld [vmem:[%s1159 + $0x8] sm:$0xf]
      %v1163 = vld [vmem:[%s1159 + $0xc] sm:$0xf]
      %v1168 = vunpack.c.l.b16 %v1160
      %v1169 = vunpack.c.l.b16 %v1161
      %v1170 = vunpack.c.l.b16 %v1162
      %v1171 = vunpack.c.l.b16 %v1163
      %v1172 = vpack.c.b16 %v1169, %v1168
      %v1173 = vpack.c.b16 %v1171, %v1170
      %v1177 = vsel %vm248, %v1155, 0
      %v1180 = vsel %vm248, %v1156, 0
      %v1183 = vsel %vm248, %v1157, 0
      %v1186 = vsel %vm248, %v1158, 0
      %1188 = vmatprep.subr.bf16.mxu0 0
      %1189 = vmatpush1.bf16.msra.mxu0 0
      %1190 = vmatprep.subr.bf16.mxu0 0
      %1191 = vmatpush1.bf16.msra.mxu0 0
      %1192 = vmatprep.subr.bf16.mxu0 0
      %1193 = vmatpush1.bf16.msra.mxu0 0
      %1194 = vmatprep.subr.bf16.mxu0 0
      %1195 = vmatpush1.bf16.msra.mxu0 0
      %1196 = vmatprep.subr.bf16.mxu0 0
      %1197 = vmatpush1.bf16.msra.mxu0 0
      %1198 = vmatprep.subr.bf16.mxu0 0
      %1199 = vmatpush1.bf16.msra.mxu0 0
      %1200 = vmatprep.subr.bf16.mxu0 0
      %1201 = vmatpush1.bf16.msra.mxu0 %v1173
      %1202 = vmatprep.subr.bf16.mxu0 0
      %1203 = vmatpush1.bf16.msra.mxu0 %v1172
      %1204 = vmatprep.subr.bf16.mxu0 0
      %1205 = vmatpush2.bf16.msra.mxu0 0
      %1206 = vmatprep.subr.bf16.mxu0 0
      %1207 = vmatpush2.bf16.msra.mxu0 0
      %1208 = vmatprep.subr.bf16.mxu0 0
      %1209 = vmatpush2.bf16.msra.mxu0 0
      %1210 = vmatprep.subr.bf16.mxu0 0
      %1211 = vmatpush2.bf16.msra.mxu0 0
      %1212 = vmatprep.subr.bf16.mxu0 0
      %1213 = vmatpush2.bf16.msra.mxu0 0
      %1214 = vmatprep.subr.bf16.mxu0 0
      %1215 = vmatpush2.bf16.msra.mxu0 0
      %1216 = vmatprep.subr.bf16.mxu0 0
      %1217 = vmatpush2.bf16.msra.mxu0 0
      %1218 = vmatprep.subr.bf16.mxu0 0
      %1219 = vmatpush2.bf16.msra.mxu0 0
      %1220 = vmatprep.mubr.bf16.mxu0 0
      %1221 = vmatmul.mubr.bf16.gmra.mxu0 %v1177
      %v1222 = vpop.f32.mrf.mxu0
      %v1223 = vadd.f32 0.0, %v1222
      %v1224 = vpop.f32.mrf.mxu0
      %v1225 = vpop.f32.mrf.mxu0
      %v1226 = vadd.f32 0.0, %v1225
      %v1227 = vpop.f32.mrf.mxu0
      %1228 = vmatprep.mubr.bf16.mxu0 0
      %1229 = vmatmul.mubr.bf16.gmra.mxu0 %v1180
      %v1230 = vpop.f32.mrf.mxu0
      %v1231 = vadd.f32 0.0, %v1230
      %v1232 = vpop.f32.mrf.mxu0
      %v1233 = vpop.f32.mrf.mxu0
      %v1234 = vadd.f32 0.0, %v1233
      %v1235 = vpop.f32.mrf.mxu0
      %1236 = vmatprep.mubr.bf16.mxu0 0
      %1237 = vmatmul.mubr.bf16.gmra.mxu0 %v1183
      %v1238 = vpop.f32.mrf.mxu0
      %v1239 = vadd.f32 0.0, %v1238
      %v1240 = vpop.f32.mrf.mxu0
      %v1241 = vpop.f32.mrf.mxu0
      %v1242 = vadd.f32 0.0, %v1241
      %v1243 = vpop.f32.mrf.mxu0
      %1244 = vmatprep.mubr.bf16.mxu0 0
      %1245 = vmatmul.mubr.bf16.gmra.mxu0 %v1186
      %v1246 = vpop.f32.mrf.mxu0
      %v1247 = vadd.f32 0.0, %v1246
      %v1248 = vpop.f32.mrf.mxu0
      %v1249 = vpop.f32.mrf.mxu0
      %v1250 = vadd.f32 0.0, %v1249
      %v1251 = vpop.f32.mrf.mxu0
      %1252 = vdwg.mxu0
      %v1253 = vadd.f32 %v1139, %v1223
      %v1254 = vadd.f32 %v1140, %v1226
      %v1255 = vadd.f32 %v1141, %v1231
      %v1256 = vadd.f32 %v1142, %v1234
      %v1257 = vadd.f32 %v1143, %v1239
      %v1258 = vadd.f32 %v1144, %v1242
      %v1259 = vadd.f32 %v1145, %v1247
      %v1260 = vadd.f32 %v1146, %v1250
      %v1261 = vld [vmem:[#allocation2 + $0x12] sm:$0xff]
      %v1262 = vld [vmem:[#allocation2 + $0x1a] sm:$0xff]
      %v1263 = vld [vmem:[#allocation2 + $0x22] sm:$0xff]
      %v1264 = vld [vmem:[#allocation2 + $0x2a] sm:$0xff]
      %v1265 = vld [vmem:[#allocation2 + $0x32] sm:$0xff]
      %v1266 = vld [vmem:[#allocation2 + $0x3a] sm:$0xff]
      %v1267 = vld [vmem:[#allocation2 + $0x42] sm:$0xff]
      %v1268 = vld [vmem:[#allocation2 + $0x4a] sm:$0xff]
      %v1269 = vsel %vm545, %v1261, 0.0
      %v1270 = vsel %vm546, %v1262, 0.0
      %v1271 = vsel %vm547, %v1263, 0.0
      %v1272 = vsel %vm548, %v1264, 0.0
      %v1273 = vsel %vm549, %v1265, 0.0
      %v1274 = vsel %vm550, %v1266, 0.0
      %v1275 = vsel %vm551, %v1267, 0.0
      %v1276 = vsel %vm552, %v1268, 0.0
      %v1277 = vpack.c.bf16 %v1270, %v1269
      %v1278 = vpack.c.bf16 %v1272, %v1271
      %v1279 = vpack.c.bf16 %v1274, %v1273
      %v1280 = vpack.c.bf16 %v1276, %v1275
      %s1281 = scalar_lea.vmem %s1, 128
      %v1282 = vld [vmem:[%s1281] sm:$0xf]
      %v1283 = vld [vmem:[%s1281 + $0x4] sm:$0xf]
      %v1284 = vld [vmem:[%s1281 + $0x8] sm:$0xf]
      %v1285 = vld [vmem:[%s1281 + $0xc] sm:$0xf]
      %v1290 = vunpack.c.l.b16 %v1282
      %v1291 = vunpack.c.l.b16 %v1283
      %v1292 = vunpack.c.l.b16 %v1284
      %v1293 = vunpack.c.l.b16 %v1285
      %v1294 = vpack.c.b16 %v1291, %v1290
      %v1295 = vpack.c.b16 %v1293, %v1292
      %v1299 = vsel %vm248, %v1277, 0
      %v1302 = vsel %vm248, %v1278, 0
      %v1305 = vsel %vm248, %v1279, 0
      %v1308 = vsel %vm248, %v1280, 0
      %1310 = vmatprep.subr.bf16.mxu0 0
      %1311 = vmatpush1.bf16.msra.mxu0 0
      %1312 = vmatprep.subr.bf16.mxu0 0
      %1313 = vmatpush1.bf16.msra.mxu0 0
      %1314 = vmatprep.subr.bf16.mxu0 0
      %1315 = vmatpush1.bf16.msra.mxu0 0
      %1316 = vmatprep.subr.bf16.mxu0 0
      %1317 = vmatpush1.bf16.msra.mxu0 0
      %1318 = vmatprep.subr.bf16.mxu0 0
      %1319 = vmatpush1.bf16.msra.mxu0 0
      %1320 = vmatprep.subr.bf16.mxu0 0
      %1321 = vmatpush1.bf16.msra.mxu0 0
      %1322 = vmatprep.subr.bf16.mxu0 0
      %1323 = vmatpush1.bf16.msra.mxu0 %v1295
      %1324 = vmatprep.subr.bf16.mxu0 0
      %1325 = vmatpush1.bf16.msra.mxu0 %v1294
      %1326 = vmatprep.subr.bf16.mxu0 0
      %1327 = vmatpush2.bf16.msra.mxu0 0
      %1328 = vmatprep.subr.bf16.mxu0 0
      %1329 = vmatpush2.bf16.msra.mxu0 0
      %1330 = vmatprep.subr.bf16.mxu0 0
      %1331 = vmatpush2.bf16.msra.mxu0 0
      %1332 = vmatprep.subr.bf16.mxu0 0
      %1333 = vmatpush2.bf16.msra.mxu0 0
      %1334 = vmatprep.subr.bf16.mxu0 0
      %1335 = vmatpush2.bf16.msra.mxu0 0
      %1336 = vmatprep.subr.bf16.mxu0 0
      %1337 = vmatpush2.bf16.msra.mxu0 0
      %1338 = vmatprep.subr.bf16.mxu0 0
      %1339 = vmatpush2.bf16.msra.mxu0 0
      %1340 = vmatprep.subr.bf16.mxu0 0
      %1341 = vmatpush2.bf16.msra.mxu0 0
      %1342 = vmatprep.mubr.bf16.mxu0 0
      %1343 = vmatmul.mubr.bf16.gmra.mxu0 %v1299
      %v1344 = vpop.f32.mrf.mxu0
      %v1345 = vadd.f32 0.0, %v1344
      %v1346 = vpop.f32.mrf.mxu0
      %v1347 = vpop.f32.mrf.mxu0
      %v1348 = vadd.f32 0.0, %v1347
      %v1349 = vpop.f32.mrf.mxu0
      %1350 = vmatprep.mubr.bf16.mxu0 0
      %1351 = vmatmul.mubr.bf16.gmra.mxu0 %v1302
      %v1352 = vpop.f32.mrf.mxu0
      %v1353 = vadd.f32 0.0, %v1352
      %v1354 = vpop.f32.mrf.mxu0
      %v1355 = vpop.f32.mrf.mxu0
      %v1356 = vadd.f32 0.0, %v1355
      %v1357 = vpop.f32.mrf.mxu0
      %1358 = vmatprep.mubr.bf16.mxu0 0
      %1359 = vmatmul.mubr.bf16.gmra.mxu0 %v1305
      %v1360 = vpop.f32.mrf.mxu0
      %v1361 = vadd.f32 0.0, %v1360
      %v1362 = vpop.f32.mrf.mxu0
      %v1363 = vpop.f32.mrf.mxu0
      %v1364 = vadd.f32 0.0, %v1363
      %v1365 = vpop.f32.mrf.mxu0
      %1366 = vmatprep.mubr.bf16.mxu0 0
      %1367 = vmatmul.mubr.bf16.gmra.mxu0 %v1308
      %v1368 = vpop.f32.mrf.mxu0
      %v1369 = vadd.f32 0.0, %v1368
      %v1370 = vpop.f32.mrf.mxu0
      %v1371 = vpop.f32.mrf.mxu0
      %v1372 = vadd.f32 0.0, %v1371
      %v1373 = vpop.f32.mrf.mxu0
      %1374 = vdwg.mxu0
      %v1375 = vadd.f32 %v1253, %v1345
      %v1376 = vadd.f32 %v1254, %v1348
      %v1377 = vadd.f32 %v1255, %v1353
      %v1378 = vadd.f32 %v1256, %v1356
      %v1379 = vadd.f32 %v1257, %v1361
      %v1380 = vadd.f32 %v1258, %v1364
      %v1381 = vadd.f32 %v1259, %v1369
      %v1382 = vadd.f32 %v1260, %v1372
      %v1383 = vld [vmem:[%s2] sm:$0x1]
      %v1385 = vlaneseq
      %v1386 = vshrl.u32 %v1385, 7
      %v1387 = vsub.s32 0, %v1386
      %v1388 = vrot.slane %v1383, %v1387
      %v1390 = vmul.f32 %v1375, %v1388
      %v1391 = vmul.f32 %v1376, %v1388
      %v1392 = vmul.f32 %v1377, %v1388
      %v1393 = vmul.f32 %v1378, %v1388
      %v1394 = vmul.f32 %v1379, %v1388
      %v1395 = vmul.f32 %v1380, %v1388
      %v1396 = vmul.f32 %v1381, %v1388
      %v1397 = vmul.f32 %v1382, %v1388
      %v1398 = vld [vmem:[%s3] sm:$0x1]
      %v1400 = vlaneseq
      %v1401 = vshrl.u32 %v1400, 7
      %v1402 = vsub.s32 0, %v1401
      %v1403 = vrot.slane %v1398, %v1402
      %v1405 = vadd.f32 %v1390, %v1403
      %v1406 = vadd.f32 %v1391, %v1403
      %v1407 = vadd.f32 %v1392, %v1403
      %v1408 = vadd.f32 %v1393, %v1403
      %v1409 = vadd.f32 %v1394, %v1403
      %v1410 = vadd.f32 %v1395, %v1403
      %v1411 = vadd.f32 %v1396, %v1403
      %v1412 = vadd.f32 %v1397, %v1403
      %v1413 = vmax.f32 %v1405, 0.0
      %v1414 = vmax.f32 %v1406, 0.0
      %v1415 = vmax.f32 %v1407, 0.0
      %v1416 = vmax.f32 %v1408, 0.0
      %v1417 = vmax.f32 %v1409, 0.0
      %v1418 = vmax.f32 %v1410, 0.0
      %v1419 = vmax.f32 %v1411, 0.0
      %v1420 = vmax.f32 %v1412, 0.0
      %vm1421 = vcmask 523264
      %1422 = vst.msk [vmem:[#allocation3] sm:$0xff] %vm1421, %v1413
      %1423 = vst.msk [vmem:[#allocation3 + $0x8] sm:$0xff] %vm1421, %v1414
      %1424 = vst.msk [vmem:[#allocation3 + $0x10] sm:$0xff] %vm1421, %v1415
      %1425 = vst.msk [vmem:[#allocation3 + $0x18] sm:$0xff] %vm1421, %v1416
      %1426 = vst.msk [vmem:[#allocation3 + $0x20] sm:$0xff] %vm1421, %v1417
      %1427 = vst.msk [vmem:[#allocation3 + $0x28] sm:$0xff] %vm1421, %v1418
      %1428 = vst.msk [vmem:[#allocation3 + $0x30] sm:$0xff] %vm1421, %v1419
      %1429 = vst.msk [vmem:[#allocation3 + $0x38] sm:$0xff] %vm1421, %v1420
      %1430 = vst.msk [vmem:[#allocation3 + $0x40] sm:$0xff] %vm1421, 0.0
      %vm1431 = vcmask 516096
      %1432 = vst.msk [vmem:[#allocation3 + $0x48] sm:$0x1] %vm1431, 0.0
      %v1433 = vld [vmem:[#allocation3 + $0x1] sm:$0xff]
      %v1434 = vld [vmem:[#allocation3 + $0x9] sm:$0xff]
      %v1435 = vld [vmem:[#allocation3 + $0x11] sm:$0xff]
      %v1436 = vld [vmem:[#allocation3 + $0x19] sm:$0xff]
      %v1437 = vld [vmem:[#allocation3 + $0x21] sm:$0xff]
      %v1438 = vld [vmem:[#allocation3 + $0x29] sm:$0xff]
      %v1439 = vld [vmem:[#allocation3 + $0x31] sm:$0xff]
      %v1440 = vld [vmem:[#allocation3 + $0x39] sm:$0xff]
      %v1441 = vmax.f32 %v1413, %v1433
      %v1442 = vmax.f32 %v1414, %v1434
      %v1443 = vmax.f32 %v1415, %v1435
      %v1444 = vmax.f32 %v1416, %v1436
      %v1445 = vmax.f32 %v1417, %v1437
      %v1446 = vmax.f32 %v1418, %v1438
      %v1447 = vmax.f32 %v1419, %v1439
      %v1448 = vmax.f32 %v1420, %v1440
      %v1449 = vld [vmem:[#allocation3 + $0x8] sm:$0xff]
      %v1450 = vld [vmem:[#allocation3 + $0x10] sm:$0xff]
      %v1451 = vld [vmem:[#allocation3 + $0x18] sm:$0xff]
      %v1452 = vld [vmem:[#allocation3 + $0x20] sm:$0xff]
      %v1453 = vld [vmem:[#allocation3 + $0x28] sm:$0xff]
      %v1454 = vld [vmem:[#allocation3 + $0x30] sm:$0xff]
      %v1455 = vld [vmem:[#allocation3 + $0x38] sm:$0xff]
      %v1456 = vld [vmem:[#allocation3 + $0x40] sm:$0xff]
      %v1457 = vld [vmem:[#allocation3 + $0x41] sm:$0xff]
      %v1458 = vmax.f32 %v1449, %v1434
      %v1459 = vmax.f32 %v1450, %v1435
      %v1460 = vmax.f32 %v1451, %v1436
      %v1461 = vmax.f32 %v1452, %v1437
      %v1462 = vmax.f32 %v1453, %v1438
      %v1463 = vmax.f32 %v1454, %v1439
      %v1464 = vmax.f32 %v1455, %v1440
      %v1465 = vmax.f32 %v1456, %v1457
      %v1466 = vmax.f32 %v1441, %v1458
      %v1467 = vmax.f32 %v1442, %v1459
      %v1468 = vmax.f32 %v1443, %v1460
      %v1469 = vmax.f32 %v1444, %v1461
      %v1470 = vmax.f32 %v1445, %v1462
      %v1471 = vmax.f32 %v1446, %v1463
      %v1472 = vmax.f32 %v1447, %v1464
      %v1473 = vmax.f32 %v1448, %v1465
      %v1474 = vld [vmem:[%s4] sm:$0xf]
      %v1475 = vld [vmem:[%s4 + $0x4] sm:$0xf]
      %v1476 = vpack.c.bf16 %v1467, %v1466
      %v1477 = vpack.c.bf16 %v1469, %v1468
      %v1478 = vpack.c.bf16 %v1471, %v1470
      %v1479 = vpack.c.bf16 %v1473, %v1472
      %v1482 = vunpack.c.l.b16 %v1474
      %v1483 = vunpack.c.l.b16 %v1475
      %v1484 = vpack.c.b16 %v1483, %v1482
      %v1486 = vsel %vm1421, %v1484, 0
      %1488 = vmatprep.subr.bf16.mxu0 0
      %1489 = vmatpush1.bf16.msra.mxu0 0
      %1490 = vmatprep.subr.bf16.mxu0 0
      %1491 = vmatpush1.bf16.msra.mxu0 0
      %1492 = vmatprep.subr.bf16.mxu0 0
      %1493 = vmatpush1.bf16.msra.mxu0 0
      %1494 = vmatprep.subr.bf16.mxu0 0
      %1495 = vmatpush1.bf16.msra.mxu0 0
      %1496 = vmatprep.subr.bf16.mxu0 0
      %1497 = vmatpush1.bf16.msra.mxu0 %v1479
      %1498 = vmatprep.subr.bf16.mxu0 0
      %1499 = vmatpush1.bf16.msra.mxu0 %v1478
      %1500 = vmatprep.subr.bf16.mxu0 0
      %1501 = vmatpush1.bf16.msra.mxu0 %v1477
      %1502 = vmatprep.subr.bf16.mxu0 0
      %1503 = vmatpush1.bf16.msra.mxu0 %v1476
      %1504 = vmatprep.subr.bf16.mxu0 0
      %1505 = vmatpush2.bf16.msra.mxu0 0
      %1506 = vmatprep.subr.bf16.mxu0 0
      %1507 = vmatpush2.bf16.msra.mxu0 0
      %1508 = vmatprep.subr.bf16.mxu0 0
      %1509 = vmatpush2.bf16.msra.mxu0 0
      %1510 = vmatprep.subr.bf16.mxu0 0
      %1511 = vmatpush2.bf16.msra.mxu0 0
      %1512 = vmatprep.subr.bf16.mxu0 0
      %1513 = vmatpush2.bf16.msra.mxu0 0
      %1514 = vmatprep.subr.bf16.mxu0 0
      %1515 = vmatpush2.bf16.msra.mxu0 0
      %1516 = vmatprep.subr.bf16.mxu0 0
      %1517 = vmatpush2.bf16.msra.mxu0 0
      %1518 = vmatprep.subr.bf16.mxu0 0
      %1519 = vmatpush2.bf16.msra.mxu0 0
      %1520 = vmatprep.mubr.bf16.mxu0 0
      %1521 = vmatmul.mubr.bf16.gmra.mxu0 %v1486
      %v1522 = vpop.f32.mrf.mxu0
      %v1523 = vadd.f32 0.0, %v1522
      %v1524 = vpop.f32.mrf.mxu0
      %v1525 = vpop.f32.mrf.mxu0
      %v1526 = vadd.f32 0.0, %v1525
      %v1527 = vpop.f32.mrf.mxu0
      %1528 = vdwg.mxu0
      %v1529 = vpack.c.bf16 %v1526, %v1523
      %v1531 = vunpack.c.l.b16 %v1529
      %v1532 = vunpack.c.h.b16 %v1529
      %v1533 = vpack.c.b16 %v1531, %v1531
      %v1534 = vpack.c.b16 %v1532, %v1532
      %vm1537 = vcmask 519168
      %1538 = vst.msk [vmem:[%s224] sm:$0xf] %vm1537, %v1533
      %1539 = vst.msk [vmem:[%s224 + $0x4] sm:$0xf] %vm1537, %v1534
      %p1540 = scmp.lt.s32.totalorder %s16, 1
      %s1541 = scalar_select %p1540, %s16, 1
      %s1542 = smul.addr %s1541, 2
      %s1543 = smul.addr %s1542, 4
      %s1544 = scalar_lea.vmem %s5, %s1543
      // Predicated region
      $region41: #{basic_cnn_forward.5} parent=39 // pred_check
        %p1545 = pneg %p144
      $region42: #{basic_cnn_forward.5} parent=39 // pred_check_branch
        %1547 = sbr.rel (%p1545) target = $region44
      $region43: #{basic_cnn_forward.5} parent=39 // pred_region
        _
      $region44: #{basic_cnn_forward.5} parent=39 // pred_fallthru
        _
    $region40: #{basic_cnn_forward.5} parent=5 // pred_fallthru
      _
    %p1548 = scmp.le.s32.totalorder 2, %s11
    // Predicated region
    $region45: #{basic_cnn_forward.5} parent=5 // pred_check
      %p1549 = pneg %p1548
    $region46: #{basic_cnn_forward.5} parent=5 // pred_check_branch
      %1551 = sbr.rel (%p1549) target = $region48
    $region47: #{basic_cnn_forward.5} parent=5 // pred_region
      %s1552 = ssub.s32 %s11, 2
      // Predicated region
      $region49: #{basic_cnn_forward.5} parent=47 // pred_check
        %p1553 = pneg %p150
      $region50: #{basic_cnn_forward.5} parent=47 // pred_check_branch
        %1555 = sbr.rel (%p1553) target = $region52
      $region51: #{basic_cnn_forward.5} parent=47 // pred_region
        %p1556 = scmp.lt.s32.totalorder %s17, 1
        %s1557 = scalar_select %p1556, %s17, 1
        %s1558 = smul.addr %s1557, 2
        %s1559 = smul.addr %s1558, 4
        %s1560 = scalar_lea.vmem %s5, %s1559
      $region52: #{basic_cnn_forward.5} parent=47 // pred_fallthru
        _
    $region48: #{basic_cnn_forward.5} parent=5 // pred_fallthru
      _
  $region6: #{basic_cnn_forward.5} parent=0 // loop_footer
    %s15 = sadd.s32 1, %s11
  $region7: #{basic_cnn_forward.5} parent=0 // loop_footer_branch
    %10 = sbr.rel target = $region3
  $region8: #{basic_cnn_forward.5} parent=0 // loop_exit
    _

// kernel: basic_cnn_forward.7
$region0: #{basic_cnn_forward.7}
  #allocation0 [shape = 'u32[]', space=smem, size = 0x4, offset = 0x4, fixed_abs, tag = 'smem constant byte address 0x4 - core index']
  #allocation1 [shape = 'u32[144,128]{1,0:T(1,128)}', space=vmem, size = 0x12000, scoped, tag = 'internal scratch']
  %s0 = inlined_call_operand.vmem [shape: bf16[2,4,128], index: 0, kind: input, shape index: {}]
  %s1 = inlined_call_operand.vmem [shape: bf16[128,256], index: 1, kind: input, shape index: {}]
  %s2 = inlined_call_operand.vmem [shape: f32[1,256], index: 2, kind: input, shape index: {}]
  %s3 = inlined_call_operand.vmem [shape: bf16[256,128], index: 3, kind: input, shape index: {}]
  %s4 = inlined_call_operand.vmem [shape: f32[1,128], index: 4, kind: input, shape index: {}]
  %s5 = inlined_call_operand.hbm [shape: f32[2,128], index: 5, kind: output, shape index: {}]
  %s6 = sld [smem:[#allocation0]]
  $region30: #{basic_cnn_forward.7} parent=0
    _
  %s8 = ssub.s32 1, %s6
  %s9 = scalar_select 0, %s8, %s6
  $region1: #{basic_cnn_forward.7} parent=0
    #allocation2 [shape = 'u8[1024]{0}', space=vmem, size = 0x400, scoped, tag = 'output window, operand 0, single buffered']
    #allocation3 [shape = 's32[1]{0}', space=sflag, size = 0x4, scoped, tag = 'scoped memory for basic_cnn_forward.7']
    %10 = vsyncpa [#allocation3], 0
    // Predicated region
    $region2: #{basic_cnn_forward.7} parent=1 // pred_check
      _
    $region3: #{basic_cnn_forward.7} parent=1 // pred_check_branch
      %12 = sbr.rel (0) target = $region5
    $region4: #{basic_cnn_forward.7} parent=1 // pred_region
      _
    $region5: #{basic_cnn_forward.7} parent=1 // pred_fallthru
      _
    // Predicated region
    $region6: #{basic_cnn_forward.7} parent=1 // pred_check
      _
    $region7: #{basic_cnn_forward.7} parent=1 // pred_check_branch
      %14 = sbr.rel (0) target = $region9
    $region8: #{basic_cnn_forward.7} parent=1 // pred_region
      _
    $region9: #{basic_cnn_forward.7} parent=1 // pred_fallthru
      _
    // Predicated region
    $region10: #{basic_cnn_forward.7} parent=1 // pred_check
      _
    $region11: #{basic_cnn_forward.7} parent=1 // pred_check_branch
      %16 = sbr.rel (0) target = $region13
    $region12: #{basic_cnn_forward.7} parent=1 // pred_region
      _
    $region13: #{basic_cnn_forward.7} parent=1 // pred_fallthru
      _
    // Predicated region
    $region14: #{basic_cnn_forward.7} parent=1 // pred_check
      _
    $region15: #{basic_cnn_forward.7} parent=1 // pred_check_branch
      %18 = sbr.rel (0) target = $region17
    $region16: #{basic_cnn_forward.7} parent=1 // pred_region
      _
    $region17: #{basic_cnn_forward.7} parent=1 // pred_fallthru
      _
    // Predicated region
    $region18: #{basic_cnn_forward.7} parent=1 // pred_check
      _
    $region19: #{basic_cnn_forward.7} parent=1 // pred_check_branch
      %20 = sbr.rel (0) target = $region21
    $region20: #{basic_cnn_forward.7} parent=1 // pred_region
      _
    $region21: #{basic_cnn_forward.7} parent=1 // pred_fallthru
      _
    %v22 = vld [vmem:[%s0] sm:$0x3]
    %v23 = vld [vmem:[%s0 + $0x2] sm:$0x3]
    %v24 = vunpack.c.l.bf16 %v22
    %v25 = vunpack.c.l.bf16 %v23
    %vm26 = vcmask 1043456
    %v27 = vsel %vm26, %v24, 0.0
    %v28 = vrot.slane %v27, 4
    %v29 = vadd.f32 %v27, %v28
    %v30 = vrot.slane %v29, 2
    %v31 = vadd.f32 %v29, %v30
    %v32 = vrot.slane %v31, 1
    %v33 = vadd.f32 %v31, %v32
    %v34 = vsel %vm26, %v25, 0.0
    %v35 = vrot.slane %v34, 4
    %v36 = vadd.f32 %v34, %v35
    %v37 = vrot.slane %v36, 2
    %v38 = vadd.f32 %v36, %v37
    %v39 = vrot.slane %v38, 1
    %v40 = vadd.f32 %v38, %v39
    %v41 = vmul.f32 %v33, 0.25
    %v42 = vmul.f32 %v40, 0.25
    %v43 = vpack.c.bf16 %v41, %v41
    %v44 = vpack.c.bf16 %v42, %v42
    %v45 = vld [vmem:[%s1] sm:$0xff]
    %v46 = vld [vmem:[%s1 + $0x8] sm:$0xff]
    %v47 = vld [vmem:[%s1 + $0x10] sm:$0xff]
    %v48 = vld [vmem:[%s1 + $0x18] sm:$0xff]
    %v49 = vld [vmem:[%s1 + $0x20] sm:$0xff]
    %v50 = vld [vmem:[%s1 + $0x28] sm:$0xff]
    %v51 = vld [vmem:[%s1 + $0x30] sm:$0xff]
    %v52 = vld [vmem:[%s1 + $0x38] sm:$0xff]
    %v53 = vld [vmem:[%s1 + $0x40] sm:$0xff]
    %v54 = vld [vmem:[%s1 + $0x48] sm:$0xff]
    %v55 = vld [vmem:[%s1 + $0x50] sm:$0xff]
    %v56 = vld [vmem:[%s1 + $0x58] sm:$0xff]
    %v57 = vld [vmem:[%s1 + $0x60] sm:$0xff]
    %v58 = vld [vmem:[%s1 + $0x68] sm:$0xff]
    %v59 = vld [vmem:[%s1 + $0x70] sm:$0xff]
    %v60 = vld [vmem:[%s1 + $0x78] sm:$0xff]
    %v61 = vld [vmem:[%s2] sm:$0x3]
    %v63 = vlaneseq
    %v64 = vshrl.u32 %v63, 7
    %v65 = vsub.s32 0, %v64
    %v66 = vrot.slane %v61, %v65
    %v67 = vlaneseq
    %v68 = vshrl.u32 %v67, 7
    %v69 = vsub.s32 1, %v68
    %v70 = vrot.slane %v61, %v69
    %v75 = vunpack.c.l.b16 %v43
    %v76 = vunpack.c.l.b16 %v44
    %vm77 = vcmask 1041409
    %v78 = vsel %vm77, %v76, %v75
    %v79 = vpack.c.b16 %v78, %v78
    %v97 = vunpack.c.l.b16 %v45
    %v98 = vunpack.c.h.b16 %v45
    %v99 = vunpack.c.l.b16 %v46
    %v100 = vunpack.c.h.b16 %v46
    %v101 = vunpack.c.l.b16 %v47
    %v102 = vunpack.c.h.b16 %v47
    %v103 = vunpack.c.l.b16 %v48
    %v104 = vunpack.c.h.b16 %v48
    %v105 = vunpack.c.l.b16 %v49
    %v106 = vunpack.c.h.b16 %v49
    %v107 = vunpack.c.l.b16 %v50
    %v108 = vunpack.c.h.b16 %v50
    %v109 = vunpack.c.l.b16 %v51
    %v110 = vunpack.c.h.b16 %v51
    %v111 = vunpack.c.l.b16 %v52
    %v112 = vunpack.c.h.b16 %v52
    %v113 = vunpack.c.l.b16 %v53
    %v114 = vunpack.c.h.b16 %v53
    %v115 = vunpack.c.l.b16 %v54
    %v116 = vunpack.c.h.b16 %v54
    %v117 = vunpack.c.l.b16 %v55
    %v118 = vunpack.c.h.b16 %v55
    %v119 = vunpack.c.l.b16 %v56
    %v120 = vunpack.c.h.b16 %v56
    %v121 = vunpack.c.l.b16 %v57
    %v122 = vunpack.c.h.b16 %v57
    %v123 = vunpack.c.l.b16 %v58
    %v124 = vunpack.c.h.b16 %v58
    %v125 = vunpack.c.l.b16 %v59
    %v126 = vunpack.c.h.b16 %v59
    %v127 = vunpack.c.l.b16 %v60
    %v128 = vunpack.c.h.b16 %v60
    %v129 = vpack.c.b16 %v99, %v97
    %v130 = vpack.c.b16 %v100, %v98
    %v131 = vpack.c.b16 %v103, %v101
    %v132 = vpack.c.b16 %v104, %v102
    %v133 = vpack.c.b16 %v107, %v105
    %v134 = vpack.c.b16 %v108, %v106
    %v135 = vpack.c.b16 %v111, %v109
    %v136 = vpack.c.b16 %v112, %v110
    %v137 = vpack.c.b16 %v115, %v113
    %v138 = vpack.c.b16 %v116, %v114
    %v139 = vpack.c.b16 %v119, %v117
    %v140 = vpack.c.b16 %v120, %v118
    %v141 = vpack.c.b16 %v123, %v121
    %v142 = vpack.c.b16 %v124, %v122
    %v143 = vpack.c.b16 %v127, %v125
    %v144 = vpack.c.b16 %v128, %v126
    %161 = vmatprep.subr.bf16.mxu0 %v144
    %162 = vmatpush1.bf16.msra.mxu0 %v143
    %163 = vmatprep.subr.bf16.mxu0 %v142
    %164 = vmatpush1.bf16.msra.mxu0 %v141
    %165 = vmatprep.subr.bf16.mxu0 %v140
    %166 = vmatpush1.bf16.msra.mxu0 %v139
    %167 = vmatprep.subr.bf16.mxu0 %v138
    %168 = vmatpush1.bf16.msra.mxu0 %v137
    %169 = vmatprep.subr.bf16.mxu0 %v136
    %170 = vmatpush1.bf16.msra.mxu0 %v135
    %171 = vmatprep.subr.bf16.mxu0 %v134
    %172 = vmatpush1.bf16.msra.mxu0 %v133
    %173 = vmatprep.subr.bf16.mxu0 %v132
    %174 = vmatpush1.bf16.msra.mxu0 %v131
    %175 = vmatprep.subr.bf16.mxu0 %v130
    %176 = vmatpush1.bf16.msra.mxu0 %v129
    %177 = vmatprep.subr.bf16.mxu0 0
    %178 = vmatpush2.bf16.msra.mxu0 0
    %179 = vmatprep.subr.bf16.mxu0 0
    %180 = vmatpush2.bf16.msra.mxu0 0
    %181 = vmatprep.subr.bf16.mxu0 0
    %182 = vmatpush2.bf16.msra.mxu0 0
    %183 = vmatprep.subr.bf16.mxu0 0
    %184 = vmatpush2.bf16.msra.mxu0 0
    %185 = vmatprep.subr.bf16.mxu0 0
    %186 = vmatpush2.bf16.msra.mxu0 0
    %187 = vmatprep.subr.bf16.mxu0 0
    %188 = vmatpush2.bf16.msra.mxu0 0
    %189 = vmatprep.subr.bf16.mxu0 0
    %190 = vmatpush2.bf16.msra.mxu0 0
    %191 = vmatprep.subr.bf16.mxu0 0
    %192 = vmatpush2.bf16.msra.mxu0 0
    %193 = vmatprep.mubr.bf16.mxu0 0
    %194 = vmatmul.mubr.bf16.gmra.mxu0 %v79
    %v195 = vpop.f32.mrf.mxu0
    %v196 = vadd.f32 %v66, %v195
    %v197 = vpop.f32.mrf.mxu0
    %v198 = vadd.f32 %v70, %v197
    %v199 = vpop.f32.mrf.mxu0
    %v200 = vpop.f32.mrf.mxu0
    %201 = vdwg.mxu0
    %v202 = vmax.f32 %v196, 0.0
    %v203 = vmax.f32 %v198, 0.0
    %v204 = vpack.c.bf16 %v202, %v202
    %v205 = vpack.c.bf16 %v203, %v203
    %v206 = vld [vmem:[%s3] sm:$0xf]
    %v207 = vld [vmem:[%s3 + $0x4] sm:$0xf]
    %v208 = vld [vmem:[%s3 + $0x8] sm:$0xf]
    %v209 = vld [vmem:[%s3 + $0xc] sm:$0xf]
    %v210 = vld [vmem:[%s3 + $0x10] sm:$0xf]
    %v211 = vld [vmem:[%s3 + $0x14] sm:$0xf]
    %v212 = vld [vmem:[%s3 + $0x18] sm:$0xf]
    %v213 = vld [vmem:[%s3 + $0x1c] sm:$0xf]
    %v214 = vld [vmem:[%s3 + $0x20] sm:$0xf]
    %v215 = vld [vmem:[%s3 + $0x24] sm:$0xf]
    %v216 = vld [vmem:[%s3 + $0x28] sm:$0xf]
    %v217 = vld [vmem:[%s3 + $0x2c] sm:$0xf]
    %v218 = vld [vmem:[%s3 + $0x30] sm:$0xf]
    %v219 = vld [vmem:[%s3 + $0x34] sm:$0xf]
    %v220 = vld [vmem:[%s3 + $0x38] sm:$0xf]
    %v221 = vld [vmem:[%s3 + $0x3c] sm:$0xf]
    %v222 = vld [vmem:[%s3 + $0x40] sm:$0xf]
    %v223 = vld [vmem:[%s3 + $0x44] sm:$0xf]
    %v224 = vld [vmem:[%s3 + $0x48] sm:$0xf]
    %v225 = vld [vmem:[%s3 + $0x4c] sm:$0xf]
    %v226 = vld [vmem:[%s3 + $0x50] sm:$0xf]
    %v227 = vld [vmem:[%s3 + $0x54] sm:$0xf]
    %v228 = vld [vmem:[%s3 + $0x58] sm:$0xf]
    %v229 = vld [vmem:[%s3 + $0x5c] sm:$0xf]
    %v230 = vld [vmem:[%s3 + $0x60] sm:$0xf]
    %v231 = vld [vmem:[%s3 + $0x64] sm:$0xf]
    %v232 = vld [vmem:[%s3 + $0x68] sm:$0xf]
    %v233 = vld [vmem:[%s3 + $0x6c] sm:$0xf]
    %v234 = vld [vmem:[%s3 + $0x70] sm:$0xf]
    %v235 = vld [vmem:[%s3 + $0x74] sm:$0xf]
    %v236 = vld [vmem:[%s3 + $0x78] sm:$0xf]
    %v237 = vld [vmem:[%s3 + $0x7c] sm:$0xf]
    %v238 = vld [vmem:[%s4] sm:$0x1]
    %v240 = vlaneseq
    %v241 = vshrl.u32 %v240, 7
    %v242 = vsub.s32 0, %v241
    %v243 = vrot.slane %v238, %v242
    %v277 = vunpack.c.l.b16 %v206
    %v278 = vunpack.c.l.b16 %v207
    %v279 = vunpack.c.l.b16 %v208
    %v280 = vunpack.c.l.b16 %v209
    %v281 = vunpack.c.l.b16 %v210
    %v282 = vunpack.c.l.b16 %v211
    %v283 = vunpack.c.l.b16 %v212
    %v284 = vunpack.c.l.b16 %v213
    %v285 = vunpack.c.l.b16 %v214
    %v286 = vunpack.c.l.b16 %v215
    %v287 = vunpack.c.l.b16 %v216
    %v288 = vunpack.c.l.b16 %v217
    %v289 = vunpack.c.l.b16 %v218
    %v290 = vunpack.c.l.b16 %v219
    %v291 = vunpack.c.l.b16 %v220
    %v292 = vunpack.c.l.b16 %v221
    %v293 = vunpack.c.l.b16 %v222
    %v294 = vunpack.c.l.b16 %v223
    %v295 = vunpack.c.l.b16 %v224
    %v296 = vunpack.c.l.b16 %v225
    %v297 = vunpack.c.l.b16 %v226
    %v298 = vunpack.c.l.b16 %v227
    %v299 = vunpack.c.l.b16 %v228
    %v300 = vunpack.c.l.b16 %v229
    %v301 = vunpack.c.l.b16 %v230
    %v302 = vunpack.c.l.b16 %v231
    %v303 = vunpack.c.l.b16 %v232
    %v304 = vunpack.c.l.b16 %v233
    %v305 = vunpack.c.l.b16 %v234
    %v306 = vunpack.c.l.b16 %v235
    %v307 = vunpack.c.l.b16 %v236
    %v308 = vunpack.c.l.b16 %v237
    %v309 = vpack.c.b16 %v278, %v277
    %v310 = vpack.c.b16 %v280, %v279
    %v311 = vpack.c.b16 %v282, %v281
    %v312 = vpack.c.b16 %v284, %v283
    %v313 = vpack.c.b16 %v286, %v285
    %v314 = vpack.c.b16 %v288, %v287
    %v315 = vpack.c.b16 %v290, %v289
    %v316 = vpack.c.b16 %v292, %v291
    %v317 = vpack.c.b16 %v294, %v293
    %v318 = vpack.c.b16 %v296, %v295
    %v319 = vpack.c.b16 %v298, %v297
    %v320 = vpack.c.b16 %v300, %v299
    %v321 = vpack.c.b16 %v302, %v301
    %v322 = vpack.c.b16 %v304, %v303
    %v323 = vpack.c.b16 %v306, %v305
    %v324 = vpack.c.b16 %v308, %v307
    %341 = vmatprep.subr.bf16.mxu0 0
    %342 = vmatpush1.bf16.msra.mxu0 %v316
    %343 = vmatprep.subr.bf16.mxu0 0
    %344 = vmatpush1.bf16.msra.mxu0 %v315
    %345 = vmatprep.subr.bf16.mxu0 0
    %346 = vmatpush1.bf16.msra.mxu0 %v314
    %347 = vmatprep.subr.bf16.mxu0 0
    %348 = vmatpush1.bf16.msra.mxu0 %v313
    %349 = vmatprep.subr.bf16.mxu0 0
    %350 = vmatpush1.bf16.msra.mxu0 %v312
    %351 = vmatprep.subr.bf16.mxu0 0
    %352 = vmatpush1.bf16.msra.mxu0 %v311
    %353 = vmatprep.subr.bf16.mxu0 0
    %354 = vmatpush1.bf16.msra.mxu0 %v310
    %355 = vmatprep.subr.bf16.mxu0 0
    %356 = vmatpush1.bf16.msra.mxu0 %v309
    %357 = vmatprep.subr.bf16.mxu0 0
    %358 = vmatpush2.bf16.msra.mxu0 %v324
    %359 = vmatprep.subr.bf16.mxu0 0
    %360 = vmatpush2.bf16.msra.mxu0 %v323
    %361 = vmatprep.subr.bf16.mxu0 0
    %362 = vmatpush2.bf16.msra.mxu0 %v322
    %363 = vmatprep.subr.bf16.mxu0 0
    %364 = vmatpush2.bf16.msra.mxu0 %v321
    %365 = vmatprep.subr.bf16.mxu0 0
    %366 = vmatpush2.bf16.msra.mxu0 %v320
    %367 = vmatprep.subr.bf16.mxu0 0
    %368 = vmatpush2.bf16.msra.mxu0 %v319
    %369 = vmatprep.subr.bf16.mxu0 0
    %370 = vmatpush2.bf16.msra.mxu0 %v318
    %371 = vmatprep.subr.bf16.mxu0 0
    %372 = vmatpush2.bf16.msra.mxu0 %v317
    %373 = vmatprep.mubr.bf16.mxu0 %v205
    %374 = vmatmul.mubr.bf16.gmra.mxu0 %v204
    %v375 = vpop.f32.mrf.mxu0
    %v376 = vadd.f32 %v243, %v375
    %v377 = vpop.f32.mrf.mxu0
    %v378 = vpop.f32.mrf.mxu0
    %v379 = vpop.f32.mrf.mxu0
    %380 = vdwg.mxu0
    %381 = vst [vmem:[#allocation2] sm:$0x3] %v376
    // Predicated region
    $region22: #{basic_cnn_forward.7} parent=1 // pred_check
      _
    $region23: #{basic_cnn_forward.7} parent=1 // pred_check_branch
      %383 = sbr.rel (0) target = $region25
    $region24: #{basic_cnn_forward.7} parent=1 // pred_region
      %s385 = ssub.s32 32, 32
      %386 = vsyncadd [#allocation3], %s385
      %s388 = sshll.u32 [#allocation2], 4
      %s389 = int_to_ptr.vmem [resolvable:$true] %s388
      %391 = dma.vmem_to_hbm [thread:$0]  %s389, 32, %s5, [#allocation3]
    $region25: #{basic_cnn_forward.7} parent=1 // pred_fallthru
      _
    // Predicated region
    $region26: #{basic_cnn_forward.7} parent=1 // pred_check
      _
    $region27: #{basic_cnn_forward.7} parent=1 // pred_check_branch
      %393 = sbr.rel (0) target = $region29
    $region28: #{basic_cnn_forward.7} parent=1 // pred_region
      %394 = dma.done [#allocation3], 32
    $region29: #{basic_cnn_forward.7} parent=1 // pred_fallthru
      _
    %395 = vsyncpa [#allocation3], 1

// kernel: basic_cnn_forward.4
$region0: #{basic_cnn_forward.4}
  #allocation0 [shape = 'u32[]', space=smem, size = 0x4, offset = 0x4, fixed_abs, tag = 'smem constant byte address 0x4 - core index']
  #allocation1 [shape = 'u32[144,128]{1,0:T(1,128)}', space=vmem, size = 0x12000, scoped, tag = 'internal scratch']
  #allocation2 [shape = 'f32[290,3]{1,0:T(8,128)}', space=vmem, size = 0x25000, scoped, tag = 'scratch operand']
  #allocation3 [shape = 'f32[273,32]{1,0:T(8,128)}', space=vmem, size = 0x23000, scoped, tag = 'scratch operand']
  %s0 = inlined_call_operand.vmem [shape: bf16[2,290,3], index: 0, kind: input, shape index: {}]
  %s1 = inlined_call_operand.vmem [shape: bf16[9,3,32], index: 1, kind: input, shape index: {}]
  %s2 = inlined_call_operand.vmem [shape: f32[1,32], index: 2, kind: input, shape index: {}]
  %s3 = inlined_call_operand.vmem [shape: f32[1,32], index: 3, kind: input, shape index: {}]
  %s4 = inlined_call_operand.vmem [shape: bf16[64,256], index: 4, kind: input, shape index: {}]
  %s5 = inlined_call_operand.vmem [shape: bf16[2,64,32], index: 5, kind: output, shape index: {}]
  %s6 = sld [smem:[#allocation0]]
  $region53: #{basic_cnn_forward.4} parent=0
    _
  %s8 = ssub.s32 1, %s6
  %s9 = scalar_select 0, %s8, %s6
  loop: start=0, step=1, limit=4
  $region2: #{basic_cnn_forward.4} parent=0 // loop_pre_header
    _
  $region3: #{basic_cnn_forward.4} parent=0 // loop_header
    %s11 = sphi 0, %s15
    %p12 = scmp.ge.s32.totalorder %s11, 4
    %s21 = sphi 0, %s23
    %s24 = sphi 0, %s21
    %s25 = sphi 0, %s24
    %s41 = sphi 0, %s25
    %s45 = sphi 0, %s45
    %s47 = sphi 0, %s45
    %s48 = sphi 0, %s47
    %s62 = sphi 0, %s48
    %s66 = sphi 0, %s66
    %s68 = sphi 0, %s66
    %s69 = sphi 0, %s68
    %s83 = sphi 0, %s69
    %s87 = sphi 0, %s87
    %s89 = sphi 0, %s87
    %s90 = sphi 0, %s89
    %s104 = sphi 0, %s90
    %s108 = sphi 0, %s108
    %s110 = sphi 0, %s108
    %s111 = sphi 0, %s110
    %s125 = sphi 0, %s111
    %s131 = sphi 0, %s133
    %s134 = sphi 0, %s131
    %s135 = sphi 0, %s134
    %s151 = sphi 0, %s135
  $region4: #{basic_cnn_forward.4} parent=0 // loop_header_branch
    %14 = sbr.rel (%p12) target = $region8
  $region5: #{basic_cnn_forward.4} parent=0 // loop_body
    %s16 = ssub.s32 %s11, 1
    %s17 = ssub.s32 %s11, 2
    %s18 = sadd.s32 %s11, 1
    %s19 = ssub.s32 %s11, %s18
    %p20 = scmp.eq.s32.totalorder %s19, 0
    %s22 = sadd.s32 %s21, 1
    %s23 = scalar_select %p20, %s21, %s22
    %p26 = pneg %p20
    %p27 = scmp.eq.s32.totalorder %s11, 1
    %p28 = por %p26, %p27
    %p29 = scmp.ne.s32.totalorder %s21, %s24
    %p30 = scmp.eq.s32.totalorder %s11, 0
    %p31 = por %p29, %p30
    %p32 = scmp.ne.s32.totalorder %s21, %s24
    %p33 = scmp.eq.s32.totalorder %s16, 1
    %p34 = por %p32, %p33
    %p35 = scmp.ne.s32.totalorder %s24, %s25
    %p36 = scmp.eq.s32.totalorder %s16, 0
    %p37 = por %p35, %p36
    %p38 = scmp.ne.s32.totalorder %s24, %s25
    %p39 = scmp.eq.s32.totalorder %s17, 1
    %p40 = por %p38, %p39
    %p42 = scmp.ne.s32.totalorder %s25, %s41
    %p43 = scmp.eq.s32.totalorder %s17, 0
    %p44 = por %p42, %p43
    %s46 = sadd.s32 %s45, 1
    %p49 = scmp.eq.s32.totalorder %s11, 1
    %p50 = scmp.ne.s32.totalorder %s45, %s47
    %p51 = scmp.eq.s32.totalorder %s11, 0
    %p52 = por %p50, %p51
    %p53 = scmp.ne.s32.totalorder %s45, %s47
    %p54 = scmp.eq.s32.totalorder %s16, 1
    %p55 = por %p53, %p54
    %p56 = scmp.ne.s32.totalorder %s47, %s48
    %p57 = scmp.eq.s32.totalorder %s16, 0
    %p58 = por %p56, %p57
    %p59 = scmp.ne.s32.totalorder %s47, %s48
    %p60 = scmp.eq.s32.totalorder %s17, 1
    %p61 = por %p59, %p60
    %p63 = scmp.ne.s32.totalorder %s48, %s62
    %p64 = scmp.eq.s32.totalorder %s17, 0
    %p65 = por %p63, %p64
    %s67 = sadd.s32 %s66, 1
    %p70 = scmp.eq.s32.totalorder %s11, 1
    %p71 = scmp.ne.s32.totalorder %s66, %s68
    %p72 = scmp.eq.s32.totalorder %s11, 0
    %p73 = por %p71, %p72
    %p74 = scmp.ne.s32.totalorder %s66, %s68
    %p75 = scmp.eq.s32.totalorder %s16, 1
    %p76 = por %p74, %p75
    %p77 = scmp.ne.s32.totalorder %s68, %s69
    %p78 = scmp.eq.s32.totalorder %s16, 0
    %p79 = por %p77, %p78
    %p80 = scmp.ne.s32.totalorder %s68, %s69
    %p81 = scmp.eq.s32.totalorder %s17, 1
    %p82 = por %p80, %p81
    %p84 = scmp.ne.s32.totalorder %s69, %s83
    %p85 = scmp.eq.s32.totalorder %s17, 0
    %p86 = por %p84, %p85
    %s88 = sadd.s32 %s87, 1
    %p91 = scmp.eq.s32.totalorder %s11, 1
    %p92 = scmp.ne.s32.totalorder %s87, %s89
    %p93 = scmp.eq.s32.totalorder %s11, 0
    %p94 = por %p92, %p93
    %p95 = scmp.ne.s32.totalorder %s87, %s89
    %p96 = scmp.eq.s32.totalorder %s16, 1
    %p97 = por %p95, %p96
    %p98 = scmp.ne.s32.totalorder %s89, %s90
    %p99 = scmp.eq.s32.totalorder %s16, 0
    %p100 = por %p98, %p99
    %p101 = scmp.ne.s32.totalorder %s89, %s90
    %p102 = scmp.eq.s32.totalorder %s17, 1
    %p103 = por %p101, %p102
    %p105 = scmp.ne.s32.totalorder %s90, %s104
    %p106 = scmp.eq.s32.totalorder %s17, 0
    %p107 = por %p105, %p106
    %s109 = sadd.s32 %s108, 1
    %p112 = scmp.eq.s32.totalorder %s11, 1
    %p113 = scmp.ne.s32.totalorder %s108, %s110
    %p114 = scmp.eq.s32.totalorder %s11, 0
    %p115 = por %p113, %p114
    %p116 = scmp.ne.s32.totalorder %s108, %s110
    %p117 = scmp.eq.s32.totalorder %s16, 1
    %p118 = por %p116, %p117
    %p119 = scmp.ne.s32.totalorder %s110, %s111
    %p120 = scmp.eq.s32.totalorder %s16, 0
    %p121 = por %p119, %p120
    %p122 = scmp.ne.s32.totalorder %s110, %s111
    %p123 = scmp.eq.s32.totalorder %s17, 1
    %p124 = por %p122, %p123
    %p126 = scmp.ne.s32.totalorder %s111, %s125
    %p127 = scmp.eq.s32.totalorder %s17, 0
    %p128 = por %p126, %p127
    %s129 = ssub.s32 %s11, %s18
    %p130 = scmp.eq.s32.totalorder %s129, 0
    %s132 = sadd.s32 %s131, 1
    %s133 = scalar_select %p130, %s131, %s132
    %p136 = pneg %p130
    %p137 = scmp.eq.s32.totalorder %s11, 1
    %p138 = por %p136, %p137
    %p139 = scmp.ne.s32.totalorder %s131, %s134
    %p140 = scmp.eq.s32.totalorder %s11, 0
    %p141 = por %p139, %p140
    %p142 = scmp.ne.s32.totalorder %s131, %s134
    %p143 = scmp.eq.s32.totalorder %s16, 1
    %p144 = por %p142, %p143
    %p145 = scmp.ne.s32.totalorder %s134, %s135
    %p146 = scmp.eq.s32.totalorder %s16, 0
    %p147 = por %p145, %p146
    %p148 = scmp.ne.s32.totalorder %s134, %s135
    %p149 = scmp.eq.s32.totalorder %s17, 1
    %p150 = por %p148, %p149
    %p152 = scmp.ne.s32.totalorder %s135, %s151
    %p153 = scmp.eq.s32.totalorder %s17, 0
    %p154 = por %p152, %p153
    %p155 = scmp.le.s32.totalorder 1, %s11
    %p156 = scmp.lt.s32.totalorder %s11, 3
    %p157 = pnand %p155, %p156
    %p158 = pneg %p157
    // Predicated region
    $region9: #{basic_cnn_forward.4} parent=5 // pred_check
      _
    $region10: #{basic_cnn_forward.4} parent=5 // pred_check_branch
      %160 = sbr.rel (%p157) target = $region12
    $region11: #{basic_cnn_forward.4} parent=5 // pred_region
      %s161 = ssub.s32 %s11, 1
      // Predicated region
      $region13: #{basic_cnn_forward.4} parent=11 // pred_check
        %p162 = pneg %p58
      $region14: #{basic_cnn_forward.4} parent=11 // pred_check_branch
        %164 = sbr.rel (%p162) target = $region16
      $region15: #{basic_cnn_forward.4} parent=11 // pred_region
        _
      $region16: #{basic_cnn_forward.4} parent=11 // pred_fallthru
        _
      // Predicated region
      $region17: #{basic_cnn_forward.4} parent=11 // pred_check
        %p165 = pneg %p79
      $region18: #{basic_cnn_forward.4} parent=11 // pred_check_branch
        %167 = sbr.rel (%p165) target = $region20
      $region19: #{basic_cnn_forward.4} parent=11 // pred_region
        _
      $region20: #{basic_cnn_forward.4} parent=11 // pred_fallthru
        _
      // Predicated region
      $region21: #{basic_cnn_forward.4} parent=11 // pred_check
        %p168 = pneg %p100
      $region22: #{basic_cnn_forward.4} parent=11 // pred_check_branch
        %170 = sbr.rel (%p168) target = $region24
      $region23: #{basic_cnn_forward.4} parent=11 // pred_region
        _
      $region24: #{basic_cnn_forward.4} parent=11 // pred_fallthru
        _
      // Predicated region
      $region25: #{basic_cnn_forward.4} parent=11 // pred_check
        %p171 = pneg %p121
      $region26: #{basic_cnn_forward.4} parent=11 // pred_check_branch
        %173 = sbr.rel (%p171) target = $region28
      $region27: #{basic_cnn_forward.4} parent=11 // pred_region
        _
      $region28: #{basic_cnn_forward.4} parent=11 // pred_fallthru
        _
    $region12: #{basic_cnn_forward.4} parent=5 // pred_fallthru
      _
    %p174 = scmp.lt.s32.totalorder %s11, 2
    // Predicated region
    $region29: #{basic_cnn_forward.4} parent=5 // pred_check
      %p175 = pneg %p174
    $region30: #{basic_cnn_forward.4} parent=5 // pred_check_branch
      %177 = sbr.rel (%p175) target = $region32
    $region31: #{basic_cnn_forward.4} parent=5 // pred_region
      // Predicated region
      $region33: #{basic_cnn_forward.4} parent=31 // pred_check
        %p178 = pneg %p31
      $region34: #{basic_cnn_forward.4} parent=31 // pred_check_branch
        %180 = sbr.rel (%p178) target = $region36
      $region35: #{basic_cnn_forward.4} parent=31 // pred_region
        %p181 = scmp.lt.s32.totalorder %s11, 1
        %s182 = scalar_select %p181, %s11, 1
        %s183 = smul.addr %s182, 37
        %s184 = smul.addr %s183, 4
        %s185 = scalar_lea.vmem %s0, %s184
      $region36: #{basic_cnn_forward.4} parent=31 // pred_fallthru
        _
    $region32: #{basic_cnn_forward.4} parent=5 // pred_fallthru
      _
    %p186 = scmp.le.s32.totalorder 1, %s11
    %p187 = scmp.lt.s32.totalorder %s11, 3
    %p188 = pnand %p186, %p187
    %p189 = pneg %p188
    // Predicated region
    $region37: #{basic_cnn_forward.4} parent=5 // pred_check
      _
    $region38: #{basic_cnn_forward.4} parent=5 // pred_check_branch
      %191 = sbr.rel (%p188) target = $region40
    $region39: #{basic_cnn_forward.4} parent=5 // pred_region
      %s192 = ssub.s32 %s11, 1
      %p193 = scmp.lt.s32.totalorder %s16, 1
      %s194 = scalar_select %p193, %s16, 1
      %s195 = smul.addr %s194, 37
      %s196 = smul.addr %s195, 4
      %s197 = scalar_lea.vmem %s0, %s196
      %p198 = pneg %p37
      %p199 = pneg %p34
      %p200 = pneg %p58
      %p201 = pneg %p55
      %p202 = pneg %p79
      %p203 = pneg %p76
      %p204 = pneg %p100
      %p205 = pneg %p97
      %p206 = pneg %p121
      %p207 = pneg %p118
      %p208 = pneg %p147
      %p209 = pneg %p144
      %p210 = scmp.lt.s32.totalorder %s16, 1
      %s211 = scalar_select %p210, %s16, 1
      %s212 = smul.addr %s211, 8
      %s213 = smul.addr %s212, 4
      %s214 = scalar_lea.vmem %s5, %s213
      %p215 = scmp.lt.s32.totalorder %s16, 1
      %s216 = scalar_select %p215, %s16, 1
      %s217 = smul.addr %s216, 37
      %s218 = smul.addr %s217, 4
      %s219 = scalar_lea.vmem %s0, %s218
      %p220 = scmp.lt.s32.totalorder %s16, 1
      %s221 = scalar_select %p220, %s16, 1
      %s222 = smul.addr %s221, 8
      %s223 = smul.addr %s222, 4
      %s224 = scalar_lea.vmem %s5, %s223
      %v226 = vld [vmem:[%s219] sm:$0xf]
      %v227 = vld [vmem:[%s219 + $0x4] sm:$0xf]
      %v228 = vld [vmem:[%s219 + $0x8] sm:$0xf]
      %v229 = vld [vmem:[%s219 + $0xc] sm:$0xf]
      %v230 = vld [vmem:[%s219 + $0x10] sm:$0xf]
      %v231 = vld [vmem:[%s219 + $0x14] sm:$0xf]
      %v232 = vld [vmem:[%s219 + $0x18] sm:$0xf]
      %v233 = vld [vmem:[%s219 + $0x1c] sm:$0xf]
      %v234 = vld [vmem:[%s219 + $0x20] sm:$0xf]
      %v235 = vld [vmem:[%s219 + $0x24] sm:$0xf]
      %v236 = vld [vmem:[%s219 + $0x28] sm:$0xf]
      %v237 = vld [vmem:[%s219 + $0x2c] sm:$0xf]
      %v238 = vld [vmem:[%s219 + $0x30] sm:$0xf]
      %v239 = vld [vmem:[%s219 + $0x34] sm:$0xf]
      %v240 = vld [vmem:[%s219 + $0x38] sm:$0xf]
      %v241 = vld [vmem:[%s219 + $0x3c] sm:$0xf]
      %v242 = vld [vmem:[%s219 + $0x40] sm:$0xf]
      %v243 = vld [vmem:[%s219 + $0x44] sm:$0xf]
      %v244 = vld [vmem:[%s219 + $0x48] sm:$0xf]
      %v245 = vld [vmem:[%s219 + $0x4c] sm:$0xf]
      %v246 = vld [vmem:[%s219 + $0x50] sm:$0xf]
      %v247 = vld [vmem:[%s219 + $0x54] sm:$0xf]
      %v248 = vld [vmem:[%s219 + $0x58] sm:$0xf]
      %v249 = vld [vmem:[%s219 + $0x5c] sm:$0xf]
      %v250 = vld [vmem:[%s219 + $0x60] sm:$0xf]
      %v251 = vld [vmem:[%s219 + $0x64] sm:$0xf]
      %v252 = vld [vmem:[%s219 + $0x68] sm:$0xf]
      %v253 = vld [vmem:[%s219 + $0x6c] sm:$0xf]
      %v254 = vld [vmem:[%s219 + $0x70] sm:$0xf]
      %v255 = vld [vmem:[%s219 + $0x74] sm:$0xf]
      %v256 = vld [vmem:[%s219 + $0x78] sm:$0xf]
      %v257 = vld [vmem:[%s219 + $0x7c] sm:$0xf]
      %v258 = vld [vmem:[%s219 + $0x80] sm:$0xf]
      %v259 = vld [vmem:[%s219 + $0x84] sm:$0xf]
      %v260 = vld [vmem:[%s219 + $0x88] sm:$0xf]
      %v261 = vld [vmem:[%s219 + $0x8c] sm:$0xf]
      %v262 = vld [vmem:[%s219 + $0x90] sm:$0x1]
      %v263 = vunpack.c.l.bf16 %v226
      %v264 = vunpack.c.l.bf16 %v227
      %v265 = vunpack.c.l.bf16 %v228
      %v266 = vunpack.c.l.bf16 %v229
      %v267 = vunpack.c.l.bf16 %v230
      %v268 = vunpack.c.l.bf16 %v231
      %v269 = vunpack.c.l.bf16 %v232
      %v270 = vunpack.c.l.bf16 %v233
      %v271 = vunpack.c.l.bf16 %v234
      %v272 = vunpack.c.l.bf16 %v235
      %v273 = vunpack.c.l.bf16 %v236
      %v274 = vunpack.c.l.bf16 %v237
      %v275 = vunpack.c.l.bf16 %v238
      %v276 = vunpack.c.l.bf16 %v239
      %v277 = vunpack.c.l.bf16 %v240
      %v278 = vunpack.c.l.bf16 %v241
      %v279 = vunpack.c.l.bf16 %v242
      %v280 = vunpack.c.l.bf16 %v243
      %v281 = vunpack.c.l.bf16 %v244
      %v282 = vunpack.c.l.bf16 %v245
      %v283 = vunpack.c.l.bf16 %v246
      %v284 = vunpack.c.l.bf16 %v247
      %v285 = vunpack.c.l.bf16 %v248
      %v286 = vunpack.c.l.bf16 %v249
      %v287 = vunpack.c.l.bf16 %v250
      %v288 = vunpack.c.l.bf16 %v251
      %v289 = vunpack.c.l.bf16 %v252
      %v290 = vunpack.c.l.bf16 %v253
      %v291 = vunpack.c.l.bf16 %v254
      %v292 = vunpack.c.l.bf16 %v255
      %v293 = vunpack.c.l.bf16 %v256
      %v294 = vunpack.c.l.bf16 %v257
      %v295 = vunpack.c.l.bf16 %v258
      %v296 = vunpack.c.l.bf16 %v259
      %v297 = vunpack.c.l.bf16 %v260
      %v298 = vunpack.c.l.bf16 %v261
      %v299 = vunpack.c.l.bf16 %v262
      %vm300 = vcmask 23552
      %301 = vst.msk [vmem:[#allocation2] sm:$0xff] %vm300, %v263
      %302 = vst.msk [vmem:[#allocation2 + $0x8] sm:$0xff] %vm300, %v264
      %303 = vst.msk [vmem:[#allocation2 + $0x10] sm:$0xff] %vm300, %v265
      %304 = vst.msk [vmem:[#allocation2 + $0x18] sm:$0xff] %vm300, %v266
      %305 = vst.msk [vmem:[#allocation2 + $0x20] sm:$0xff] %vm300, %v267
      %306 = vst.msk [vmem:[#allocation2 + $0x28] sm:$0xff] %vm300, %v268
      %307 = vst.msk [vmem:[#allocation2 + $0x30] sm:$0xff] %vm300, %v269
      %308 = vst.msk [vmem:[#allocation2 + $0x38] sm:$0xff] %vm300, %v270
      %309 = vst.msk [vmem:[#allocation2 + $0x40] sm:$0xff] %vm300, %v271
      %310 = vst.msk [vmem:[#allocation2 + $0x48] sm:$0xff] %vm300, %v272
      %311 = vst.msk [vmem:[#allocation2 + $0x50] sm:$0xff] %vm300, %v273
      %312 = vst.msk [vmem:[#allocation2 + $0x58] sm:$0xff] %vm300, %v274
      %313 = vst.msk [vmem:[#allocation2 + $0x60] sm:$0xff] %vm300, %v275
      %314 = vst.msk [vmem:[#allocation2 + $0x68] sm:$0xff] %vm300, %v276
      %315 = vst.msk [vmem:[#allocation2 + $0x70] sm:$0xff] %vm300, %v277
      %316 = vst.msk [vmem:[#allocation2 + $0x78] sm:$0xff] %vm300, %v278
      %317 = vst.msk [vmem:[#allocation2 + $0x80] sm:$0xff] %vm300, %v279
      %318 = vst.msk [vmem:[#allocation2 + $0x88] sm:$0xff] %vm300, %v280
      %319 = vst.msk [vmem:[#allocation2 + $0x90] sm:$0xff] %vm300, %v281
      %320 = vst.msk [vmem:[#allocation2 + $0x98] sm:$0xff] %vm300, %v282
      %321 = vst.msk [vmem:[#allocation2 + $0xa0] sm:$0xff] %vm300, %v283
      %322 = vst.msk [vmem:[#allocation2 + $0xa8] sm:$0xff] %vm300, %v284
      %323 = vst.msk [vmem:[#allocation2 + $0xb0] sm:$0xff] %vm300, %v285
      %324 = vst.msk [vmem:[#allocation2 + $0xb8] sm:$0xff] %vm300, %v286
      %325 = vst.msk [vmem:[#allocation2 + $0xc0] sm:$0xff] %vm300, %v287
      %326 = vst.msk [vmem:[#allocation2 + $0xc8] sm:$0xff] %vm300, %v288
      %327 = vst.msk [vmem:[#allocation2 + $0xd0] sm:$0xff] %vm300, %v289
      %328 = vst.msk [vmem:[#allocation2 + $0xd8] sm:$0xff] %vm300, %v290
      %329 = vst.msk [vmem:[#allocation2 + $0xe0] sm:$0xff] %vm300, %v291
      %330 = vst.msk [vmem:[#allocation2 + $0xe8] sm:$0xff] %vm300, %v292
      %331 = vst.msk [vmem:[#allocation2 + $0xf0] sm:$0xff] %vm300, %v293
      %332 = vst.msk [vmem:[#allocation2 + $0xf8] sm:$0xff] %vm300, %v294
      %333 = vst.msk [vmem:[#allocation2 + $0x100] sm:$0xff] %vm300, %v295
      %334 = vst.msk [vmem:[#allocation2 + $0x108] sm:$0xff] %vm300, %v296
      %335 = vst.msk [vmem:[#allocation2 + $0x110] sm:$0xff] %vm300, %v297
      %336 = vst.msk [vmem:[#allocation2 + $0x118] sm:$0xff] %vm300, %v298
      %vm337 = vcmask 17408
      %338 = vst.msk [vmem:[#allocation2 + $0x120] sm:$0x3] %vm337, %v299
      %v339 = vlaneseq
      %v340 = vshrl.u32 %v339, 7
      %v341 = vadd.s32 %v340, 8
      %v342 = vadd.s32 %v340, 16
      %v343 = vadd.s32 %v340, 24
      %v344 = vadd.s32 %v340, 32
      %v345 = vadd.s32 %v340, 40
      %v346 = vadd.s32 %v340, 48
      %v347 = vadd.s32 %v340, 56
      %v348 = vadd.s32 %v340, 64
      %v349 = vadd.s32 %v340, 72
      %v350 = vadd.s32 %v340, 80
      %v351 = vadd.s32 %v340, 88
      %v352 = vadd.s32 %v340, 96
      %v353 = vadd.s32 %v340, 104
      %v354 = vadd.s32 %v340, 112
      %v355 = vadd.s32 %v340, 120
      %v356 = vadd.s32 %v340, 128
      %v357 = vadd.s32 %v340, 136
      %v358 = vadd.s32 %v340, 144
      %v359 = vadd.s32 %v340, 152
      %v360 = vadd.s32 %v340, 160
      %v361 = vadd.s32 %v340, 168
      %v362 = vadd.s32 %v340, 176
      %v363 = vadd.s32 %v340, 184
      %v364 = vadd.s32 %v340, 192
      %v365 = vadd.s32 %v340, 200
      %v366 = vadd.s32 %v340, 208
      %v367 = vadd.s32 %v340, 216
      %v368 = vadd.s32 %v340, 224
      %v369 = vadd.s32 %v340, 232
      %v370 = vadd.s32 %v340, 240
      %v371 = vadd.s32 %v340, 248
      %v372 = vand.u32 %v340, 15
      %v373 = vand.u32 %v341, 15
      %v374 = vand.u32 %v342, 15
      %v375 = vand.u32 %v343, 15
      %v376 = vand.u32 %v344, 15
      %v377 = vand.u32 %v345, 15
      %v378 = vand.u32 %v346, 15
      %v379 = vand.u32 %v347, 15
      %v380 = vand.u32 %v348, 15
      %v381 = vand.u32 %v349, 15
      %v382 = vand.u32 %v350, 15
      %v383 = vand.u32 %v351, 15
      %v384 = vand.u32 %v352, 15
      %v385 = vand.u32 %v353, 15
      %v386 = vand.u32 %v354, 15
      %v387 = vand.u32 %v355, 15
      %v388 = vand.u32 %v356, 15
      %v389 = vand.u32 %v357, 15
      %v390 = vand.u32 %v358, 15
      %v391 = vand.u32 %v359, 15
      %v392 = vand.u32 %v360, 15
      %v393 = vand.u32 %v361, 15
      %v394 = vand.u32 %v362, 15
      %v395 = vand.u32 %v363, 15
      %v396 = vand.u32 %v364, 15
      %v397 = vand.u32 %v365, 15
      %v398 = vand.u32 %v366, 15
      %v399 = vand.u32 %v367, 15
      %v400 = vand.u32 %v368, 15
      %v401 = vand.u32 %v369, 15
      %v402 = vand.u32 %v370, 15
      %v403 = vand.u32 %v371, 15
      %vm404 = vcmp.ge.s32.totalorder %v372, 1
      %vm405 = vcmp.ge.s32.totalorder %v373, 1
      %vm406 = vcmp.ge.s32.totalorder %v374, 1
      %vm407 = vcmp.ge.s32.totalorder %v375, 1
      %vm408 = vcmp.ge.s32.totalorder %v376, 1
      %vm409 = vcmp.ge.s32.totalorder %v377, 1
      %vm410 = vcmp.ge.s32.totalorder %v378, 1
      %vm411 = vcmp.ge.s32.totalorder %v379, 1
      %vm412 = vcmp.ge.s32.totalorder %v380, 1
      %vm413 = vcmp.ge.s32.totalorder %v381, 1
      %vm414 = vcmp.ge.s32.totalorder %v382, 1
      %vm415 = vcmp.ge.s32.totalorder %v383, 1
      %vm416 = vcmp.ge.s32.totalorder %v384, 1
      %vm417 = vcmp.ge.s32.totalorder %v385, 1
      %vm418 = vcmp.ge.s32.totalorder %v386, 1
      %vm419 = vcmp.ge.s32.totalorder %v387, 1
      %vm420 = vcmp.ge.s32.totalorder %v388, 1
      %vm421 = vcmp.ge.s32.totalorder %v389, 1
      %vm422 = vcmp.ge.s32.totalorder %v390, 1
      %vm423 = vcmp.ge.s32.totalorder %v391, 1
      %vm424 = vcmp.ge.s32.totalorder %v392, 1
      %vm425 = vcmp.ge.s32.totalorder %v393, 1
      %vm426 = vcmp.ge.s32.totalorder %v394, 1
      %vm427 = vcmp.ge.s32.totalorder %v395, 1
      %vm428 = vcmp.ge.s32.totalorder %v396, 1
      %vm429 = vcmp.ge.s32.totalorder %v397, 1
      %vm430 = vcmp.ge.s32.totalorder %v398, 1
      %vm431 = vcmp.ge.s32.totalorder %v399, 1
      %vm432 = vcmp.ge.s32.totalorder %v400, 1
      %vm433 = vcmp.ge.s32.totalorder %v401, 1
      %vm434 = vcmp.ge.s32.totalorder %v402, 1
      %vm435 = vcmp.ge.s32.totalorder %v403, 1
      %vm436 = vcmp.le.s32.totalorder %v372, 14
      %vm437 = vcmp.le.s32.totalorder %v373, 14
      %vm438 = vcmp.le.s32.totalorder %v374, 14
      %vm439 = vcmp.le.s32.totalorder %v375, 14
      %vm440 = vcmp.le.s32.totalorder %v376, 14
      %vm441 = vcmp.le.s32.totalorder %v377, 14
      %vm442 = vcmp.le.s32.totalorder %v378, 14
      %vm443 = vcmp.le.s32.totalorder %v379, 14
      %vm444 = vcmp.le.s32.totalorder %v380, 14
      %vm445 = vcmp.le.s32.totalorder %v381, 14
      %vm446 = vcmp.le.s32.totalorder %v382, 14
      %vm447 = vcmp.le.s32.totalorder %v383, 14
      %vm448 = vcmp.le.s32.totalorder %v384, 14
      %vm449 = vcmp.le.s32.totalorder %v385, 14
      %vm450 = vcmp.le.s32.totalorder %v386, 14
      %vm451 = vcmp.le.s32.totalorder %v387, 14
      %vm452 = vcmp.le.s32.totalorder %v388, 14
      %vm453 = vcmp.le.s32.totalorder %v389, 14
      %vm454 = vcmp.le.s32.totalorder %v390, 14
      %vm455 = vcmp.le.s32.totalorder %v391, 14
      %vm456 = vcmp.le.s32.totalorder %v392, 14
      %vm457 = vcmp.le.s32.totalorder %v393, 14
      %vm458 = vcmp.le.s32.totalorder %v394, 14
      %vm459 = vcmp.le.s32.totalorder %v395, 14
      %vm460 = vcmp.le.s32.totalorder %v396, 14
      %vm461 = vcmp.le.s32.totalorder %v397, 14
      %vm462 = vcmp.le.s32.totalorder %v398, 14
      %vm463 = vcmp.le.s32.totalorder %v399, 14
      %vm464 = vcmp.le.s32.totalorder %v400, 14
      %vm465 = vcmp.le.s32.totalorder %v401, 14
      %vm466 = vcmp.le.s32.totalorder %v402, 14
      %vm467 = vcmp.le.s32.totalorder %v403, 14
      %v468 = vld [vmem:[#allocation2] sm:$0xff]
      %v469 = vld [vmem:[#allocation2 + $0x8] sm:$0xff]
      %v470 = vld [vmem:[#allocation2 + $0x10] sm:$0xff]
      %v471 = vld [vmem:[#allocation2 + $0x18] sm:$0xff]
      %v472 = vld [vmem:[#allocation2 + $0x20] sm:$0xff]
      %v473 = vld [vmem:[#allocation2 + $0x28] sm:$0xff]
      %v474 = vld [vmem:[#allocation2 + $0x30] sm:$0xff]
      %v475 = vld [vmem:[#allocation2 + $0x38] sm:$0xff]
      %v476 = vld [vmem:[#allocation2 + $0x40] sm:$0xff]
      %v477 = vld [vmem:[#allocation2 + $0x48] sm:$0xff]
      %v478 = vld [vmem:[#allocation2 + $0x50] sm:$0xff]
      %v479 = vld [vmem:[#allocation2 + $0x58] sm:$0xff]
      %v480 = vld [vmem:[#allocation2 + $0x60] sm:$0xff]
      %v481 = vld [vmem:[#allocation2 + $0x68] sm:$0xff]
      %v482 = vld [vmem:[#allocation2 + $0x70] sm:$0xff]
      %v483 = vld [vmem:[#allocation2 + $0x78] sm:$0xff]
      %v484 = vld [vmem:[#allocation2 + $0x80] sm:$0xff]
      %v485 = vld [vmem:[#allocation2 + $0x88] sm:$0xff]
      %v486 = vld [vmem:[#allocation2 + $0x90] sm:$0xff]
      %v487 = vld [vmem:[#allocation2 + $0x98] sm:$0xff]
      %v488 = vld [vmem:[#allocation2 + $0xa0] sm:$0xff]
      %v489 = vld [vmem:[#allocation2 + $0xa8] sm:$0xff]
      %v490 = vld [vmem:[#allocation2 + $0xb0] sm:$0xff]
      %v491 = vld [vmem:[#allocation2 + $0xb8] sm:$0xff]
      %v492 = vld [vmem:[#allocation2 + $0xc0] sm:$0xff]
      %v493 = vld [vmem:[#allocation2 + $0xc8] sm:$0xff]
      %v494 = vld [vmem:[#allocation2 + $0xd0] sm:$0xff]
      %v495 = vld [vmem:[#allocation2 + $0xd8] sm:$0xff]
      %v496 = vld [vmem:[#allocation2 + $0xe0] sm:$0xff]
      %v497 = vld [vmem:[#allocation2 + $0xe8] sm:$0xff]
      %v498 = vld [vmem:[#allocation2 + $0xf0] sm:$0xff]
      %v499 = vld [vmem:[#allocation2 + $0xf8] sm:$0xff]
      %v500 = vsel %vm404, 1, 0
      %v501 = vsel %vm405, 1, 0
      %v502 = vsel %vm406, 1, 0
      %v503 = vsel %vm407, 1, 0
      %v504 = vsel %vm408, 1, 0
      %v505 = vsel %vm409, 1, 0
      %v506 = vsel %vm410, 1, 0
      %v507 = vsel %vm411, 1, 0
      %v508 = vsel %vm412, 1, 0
      %v509 = vsel %vm413, 1, 0
      %v510 = vsel %vm414, 1, 0
      %v511 = vsel %vm415, 1, 0
      %v512 = vsel %vm416, 1, 0
      %v513 = vsel %vm417, 1, 0
      %v514 = vsel %vm418, 1, 0
      %v515 = vsel %vm419, 1, 0
      %v516 = vsel %vm420, 1, 0
      %v517 = vsel %vm421, 1, 0
      %v518 = vsel %vm422, 1, 0
      %v519 = vsel %vm423, 1, 0
      %v520 = vsel %vm424, 1, 0
      %v521 = vsel %vm425, 1, 0
      %v522 = vsel %vm426, 1, 0
      %v523 = vsel %vm427, 1, 0
      %v524 = vsel %vm428, 1, 0
      %v525 = vsel %vm429, 1, 0
      %v526 = vsel %vm430, 1, 0
      %v527 = vsel %vm431, 1, 0
      %v528 = vsel %vm432, 1, 0
      %v529 = vsel %vm433, 1, 0
      %v530 = vsel %vm434, 1, 0
      %v531 = vsel %vm435, 1, 0
      %vm532 = vcmp.eq.s32.totalorder %v500, 1
      %vm533 = vcmp.eq.s32.totalorder %v501, 1
      %vm534 = vcmp.eq.s32.totalorder %v502, 1
      %vm535 = vcmp.eq.s32.totalorder %v503, 1
      %vm536 = vcmp.eq.s32.totalorder %v504, 1
      %vm537 = vcmp.eq.s32.totalorder %v505, 1
      %vm538 = vcmp.eq.s32.totalorder %v506, 1
      %vm539 = vcmp.eq.s32.totalorder %v507, 1
      %vm540 = vcmp.eq.s32.totalorder %v508, 1
      %vm541 = vcmp.eq.s32.totalorder %v509, 1
      %vm542 = vcmp.eq.s32.totalorder %v510, 1
      %vm543 = vcmp.eq.s32.totalorder %v511, 1
      %vm544 = vcmp.eq.s32.totalorder %v512, 1
      %vm545 = vcmp.eq.s32.totalorder %v513, 1
      %vm546 = vcmp.eq.s32.totalorder %v514, 1
      %vm547 = vcmp.eq.s32.totalorder %v515, 1
      %vm548 = vcmp.eq.s32.totalorder %v516, 1
      %vm549 = vcmp.eq.s32.totalorder %v517, 1
      %vm550 = vcmp.eq.s32.totalorder %v518, 1
      %vm551 = vcmp.eq.s32.totalorder %v519, 1
      %vm552 = vcmp.eq.s32.totalorder %v520, 1
      %vm553 = vcmp.eq.s32.totalorder %v521, 1
      %vm554 = vcmp.eq.s32.totalorder %v522, 1
      %vm555 = vcmp.eq.s32.totalorder %v523, 1
      %vm556 = vcmp.eq.s32.totalorder %v524, 1
      %vm557 = vcmp.eq.s32.totalorder %v525, 1
      %vm558 = vcmp.eq.s32.totalorder %v526, 1
      %vm559 = vcmp.eq.s32.totalorder %v527, 1
      %vm560 = vcmp.eq.s32.totalorder %v528, 1
      %vm561 = vcmp.eq.s32.totalorder %v529, 1
      %vm562 = vcmp.eq.s32.totalorder %v530, 1
      %vm563 = vcmp.eq.s32.totalorder %v531, 1
      %v564 = vsel %vm532, %v468, 0.0
      %v565 = vsel %vm533, %v469, 0.0
      %v566 = vsel %vm534, %v470, 0.0
      %v567 = vsel %vm535, %v471, 0.0
      %v568 = vsel %vm536, %v472, 0.0
      %v569 = vsel %vm537, %v473, 0.0
      %v570 = vsel %vm538, %v474, 0.0
      %v571 = vsel %vm539, %v475, 0.0
      %v572 = vsel %vm540, %v476, 0.0
      %v573 = vsel %vm541, %v477, 0.0
      %v574 = vsel %vm542, %v478, 0.0
      %v575 = vsel %vm543, %v479, 0.0
      %v576 = vsel %vm544, %v480, 0.0
      %v577 = vsel %vm545, %v481, 0.0
      %v578 = vsel %vm546, %v482, 0.0
      %v579 = vsel %vm547, %v483, 0.0
      %v580 = vsel %vm548, %v484, 0.0
      %v581 = vsel %vm549, %v485, 0.0
      %v582 = vsel %vm550, %v486, 0.0
      %v583 = vsel %vm551, %v487, 0.0
      %v584 = vsel %vm552, %v488, 0.0
      %v585 = vsel %vm553, %v489, 0.0
      %v586 = vsel %vm554, %v490, 0.0
      %v587 = vsel %vm555, %v491, 0.0
      %v588 = vsel %vm556, %v492, 0.0
      %v589 = vsel %vm557, %v493, 0.0
      %v590 = vsel %vm558, %v494, 0.0
      %v591 = vsel %vm559, %v495, 0.0
      %v592 = vsel %vm560, %v496, 0.0
      %v593 = vsel %vm561, %v497, 0.0
      %v594 = vsel %vm562, %v498, 0.0
      %v595 = vsel %vm563, %v499, 0.0
      %v596 = vpack.c.bf16 %v565, %v564
      %v597 = vpack.c.bf16 %v567, %v566
      %v598 = vpack.c.bf16 %v569, %v568
      %v599 = vpack.c.bf16 %v571, %v570
      %v600 = vpack.c.bf16 %v573, %v572
      %v601 = vpack.c.bf16 %v575, %v574
      %v602 = vpack.c.bf16 %v577, %v576
      %v603 = vpack.c.bf16 %v579, %v578
      %v604 = vpack.c.bf16 %v581, %v580
      %v605 = vpack.c.bf16 %v583, %v582
      %v606 = vpack.c.bf16 %v585, %v584
      %v607 = vpack.c.bf16 %v587, %v586
      %v608 = vpack.c.bf16 %v589, %v588
      %v609 = vpack.c.bf16 %v591, %v590
      %v610 = vpack.c.bf16 %v593, %v592
      %v611 = vpack.c.bf16 %v595, %v594
      %v612 = vld [vmem:[%s1] sm:$0x3]
      %v613 = vld [vmem:[#allocation2 + $0x1] sm:$0xff]
      %v614 = vld [vmem:[#allocation2 + $0x9] sm:$0xff]
      %v615 = vld [vmem:[#allocation2 + $0x11] sm:$0xff]
      %v616 = vld [vmem:[#allocation2 + $0x19] sm:$0xff]
      %v617 = vld [vmem:[#allocation2 + $0x21] sm:$0xff]
      %v618 = vld [vmem:[#allocation2 + $0x29] sm:$0xff]
      %v619 = vld [vmem:[#allocation2 + $0x31] sm:$0xff]
      %v620 = vld [vmem:[#allocation2 + $0x39] sm:$0xff]
      %v621 = vld [vmem:[#allocation2 + $0x41] sm:$0xff]
      %v622 = vld [vmem:[#allocation2 + $0x49] sm:$0xff]
      %v623 = vld [vmem:[#allocation2 + $0x51] sm:$0xff]
      %v624 = vld [vmem:[#allocation2 + $0x59] sm:$0xff]
      %v625 = vld [vmem:[#allocation2 + $0x61] sm:$0xff]
      %v626 = vld [vmem:[#allocation2 + $0x69] sm:$0xff]
      %v627 = vld [vmem:[#allocation2 + $0x71] sm:$0xff]
      %v628 = vld [vmem:[#allocation2 + $0x79] sm:$0xff]
      %v629 = vld [vmem:[#allocation2 + $0x81] sm:$0xff]
      %v630 = vld [vmem:[#allocation2 + $0x89] sm:$0xff]
      %v631 = vld [vmem:[#allocation2 + $0x91] sm:$0xff]
      %v632 = vld [vmem:[#allocation2 + $0x99] sm:$0xff]
      %v633 = vld [vmem:[#allocation2 + $0xa1] sm:$0xff]
      %v634 = vld [vmem:[#allocation2 + $0xa9] sm:$0xff]
      %v635 = vld [vmem:[#allocation2 + $0xb1] sm:$0xff]
      %v636 = vld [vmem:[#allocation2 + $0xb9] sm:$0xff]
      %v637 = vld [vmem:[#allocation2 + $0xc1] sm:$0xff]
      %v638 = vld [vmem:[#allocation2 + $0xc9] sm:$0xff]
      %v639 = vld [vmem:[#allocation2 + $0xd1] sm:$0xff]
      %v640 = vld [vmem:[#allocation2 + $0xd9] sm:$0xff]
      %v641 = vld [vmem:[#allocation2 + $0xe1] sm:$0xff]
      %v642 = vld [vmem:[#allocation2 + $0xe9] sm:$0xff]
      %v643 = vld [vmem:[#allocation2 + $0xf1] sm:$0xff]
      %v644 = vld [vmem:[#allocation2 + $0xf9] sm:$0xff]
      %v645 = vpack.c.bf16 %v614, %v613
      %v646 = vpack.c.bf16 %v616, %v615
      %v647 = vpack.c.bf16 %v618, %v617
      %v648 = vpack.c.bf16 %v620, %v619
      %v649 = vpack.c.bf16 %v622, %v621
      %v650 = vpack.c.bf16 %v624, %v623
      %v651 = vpack.c.bf16 %v626, %v625
      %v652 = vpack.c.bf16 %v628, %v627
      %v653 = vpack.c.bf16 %v630, %v629
      %v654 = vpack.c.bf16 %v632, %v631
      %v655 = vpack.c.bf16 %v634, %v633
      %v656 = vpack.c.bf16 %v636, %v635
      %v657 = vpack.c.bf16 %v638, %v637
      %v658 = vpack.c.bf16 %v640, %v639
      %v659 = vpack.c.bf16 %v642, %v641
      %v660 = vpack.c.bf16 %v644, %v643
      %s661 = scalar_lea.vmem %s1, 2
      %v662 = vld [vmem:[%s661] sm:$0x3]
      %v664 = vsel %vm300, %v645, 0
      %v667 = vsel %vm300, %v646, 0
      %v670 = vsel %vm300, %v647, 0
      %v673 = vsel %vm300, %v648, 0
      %v676 = vsel %vm300, %v649, 0
      %v679 = vsel %vm300, %v650, 0
      %v682 = vsel %vm300, %v651, 0
      %v685 = vsel %vm300, %v652, 0
      %v688 = vsel %vm300, %v653, 0
      %v691 = vsel %vm300, %v654, 0
      %v694 = vsel %vm300, %v655, 0
      %v697 = vsel %vm300, %v656, 0
      %v700 = vsel %vm300, %v657, 0
      %v703 = vsel %vm300, %v658, 0
      %v706 = vsel %vm300, %v659, 0
      %v709 = vsel %vm300, %v660, 0
      %vm711 = vcmask 1040384
      %vm712 = vcmask 1041408
      %v713 = vsel %vm711, 4294967295, 65535
      %v714 = vsel %vm712, %v713, 0
      %v716 = vand.u32 %v662, %v714
      %718 = vmatprep.subr.bf16.mxu0 0
      %719 = vmatpush1.bf16.msra.mxu0 0
      %720 = vmatprep.subr.bf16.mxu0 0
      %721 = vmatpush1.bf16.msra.mxu0 0
      %722 = vmatprep.subr.bf16.mxu0 0
      %723 = vmatpush1.bf16.msra.mxu0 0
      %724 = vmatprep.subr.bf16.mxu0 0
      %725 = vmatpush1.bf16.msra.mxu0 0
      %726 = vmatprep.subr.bf16.mxu0 0
      %727 = vmatpush1.bf16.msra.mxu0 0
      %728 = vmatprep.subr.bf16.mxu0 0
      %729 = vmatpush1.bf16.msra.mxu0 0
      %730 = vmatprep.subr.bf16.mxu0 0
      %731 = vmatpush1.bf16.msra.mxu0 0
      %732 = vmatprep.subr.bf16.mxu0 0
      %733 = vmatpush1.bf16.msra.mxu0 %v716
      %734 = vmatprep.subr.bf16.mxu0 0
      %735 = vmatpush2.bf16.msra.mxu0 0
      %736 = vmatprep.subr.bf16.mxu0 0
      %737 = vmatpush2.bf16.msra.mxu0 0
      %738 = vmatprep.subr.bf16.mxu0 0
      %739 = vmatpush2.bf16.msra.mxu0 0
      %740 = vmatprep.subr.bf16.mxu0 0
      %741 = vmatpush2.bf16.msra.mxu0 0
      %742 = vmatprep.subr.bf16.mxu0 0
      %743 = vmatpush2.bf16.msra.mxu0 0
      %744 = vmatprep.subr.bf16.mxu0 0
      %745 = vmatpush2.bf16.msra.mxu0 0
      %746 = vmatprep.subr.bf16.mxu0 0
      %747 = vmatpush2.bf16.msra.mxu0 0
      %748 = vmatprep.subr.bf16.mxu0 0
      %749 = vmatpush2.bf16.msra.mxu0 0
      %750 = vmatprep.mubr.bf16.mxu0 0
      %751 = vmatmul.mubr.bf16.gmra.mxu0 %v664
      %v752 = vpop.f32.mrf.mxu0
      %v753 = vadd.f32 0.0, %v752
      %v754 = vpop.f32.mrf.mxu0
      %v755 = vpop.f32.mrf.mxu0
      %v756 = vadd.f32 0.0, %v755
      %v757 = vpop.f32.mrf.mxu0
      %758 = vmatprep.mubr.bf16.mxu0 0
      %759 = vmatmul.mubr.bf16.gmra.mxu0 %v667
      %v760 = vpop.f32.mrf.mxu0
      %v761 = vadd.f32 0.0, %v760
      %v762 = vpop.f32.mrf.mxu0
      %v763 = vpop.f32.mrf.mxu0
      %v764 = vadd.f32 0.0, %v763
      %v765 = vpop.f32.mrf.mxu0
      %766 = vmatprep.mubr.bf16.mxu0 0
      %767 = vmatmul.mubr.bf16.gmra.mxu0 %v670
      %v768 = vpop.f32.mrf.mxu0
      %v769 = vadd.f32 0.0, %v768
      %v770 = vpop.f32.mrf.mxu0
      %v771 = vpop.f32.mrf.mxu0
      %v772 = vadd.f32 0.0, %v771
      %v773 = vpop.f32.mrf.mxu0
      %774 = vmatprep.mubr.bf16.mxu0 0
      %775 = vmatmul.mubr.bf16.gmra.mxu0 %v673
      %v776 = vpop.f32.mrf.mxu0
      %v777 = vadd.f32 0.0, %v776
      %v778 = vpop.f32.mrf.mxu0
      %v779 = vpop.f32.mrf.mxu0
      %v780 = vadd.f32 0.0, %v779
      %v781 = vpop.f32.mrf.mxu0
      %782 = vmatprep.mubr.bf16.mxu0 0
      %783 = vmatmul.mubr.bf16.gmra.mxu0 %v676
      %v784 = vpop.f32.mrf.mxu0
      %v785 = vadd.f32 0.0, %v784
      %v786 = vpop.f32.mrf.mxu0
      %v787 = vpop.f32.mrf.mxu0
      %v788 = vadd.f32 0.0, %v787
      %v789 = vpop.f32.mrf.mxu0
      %790 = vmatprep.mubr.bf16.mxu0 0
      %791 = vmatmul.mubr.bf16.gmra.mxu0 %v679
      %v792 = vpop.f32.mrf.mxu0
      %v793 = vadd.f32 0.0, %v792
      %v794 = vpop.f32.mrf.mxu0
      %v795 = vpop.f32.mrf.mxu0
      %v796 = vadd.f32 0.0, %v795
      %v797 = vpop.f32.mrf.mxu0
      %798 = vmatprep.mubr.bf16.mxu0 0
      %799 = vmatmul.mubr.bf16.gmra.mxu0 %v682
      %v800 = vpop.f32.mrf.mxu0
      %v801 = vadd.f32 0.0, %v800
      %v802 = vpop.f32.mrf.mxu0
      %v803 = vpop.f32.mrf.mxu0
      %v804 = vadd.f32 0.0, %v803
      %v805 = vpop.f32.mrf.mxu0
      %806 = vmatprep.mubr.bf16.mxu0 0
      %807 = vmatmul.mubr.bf16.gmra.mxu0 %v685
      %v808 = vpop.f32.mrf.mxu0
      %v809 = vadd.f32 0.0, %v808
      %v810 = vpop.f32.mrf.mxu0
      %v811 = vpop.f32.mrf.mxu0
      %v812 = vadd.f32 0.0, %v811
      %v813 = vpop.f32.mrf.mxu0
      %814 = vmatprep.mubr.bf16.mxu0 0
      %815 = vmatmul.mubr.bf16.gmra.mxu0 %v688
      %v816 = vpop.f32.mrf.mxu0
      %v817 = vadd.f32 0.0, %v816
      %v818 = vpop.f32.mrf.mxu0
      %v819 = vpop.f32.mrf.mxu0
      %v820 = vadd.f32 0.0, %v819
      %v821 = vpop.f32.mrf.mxu0
      %822 = vmatprep.mubr.bf16.mxu0 0
      %823 = vmatmul.mubr.bf16.gmra.mxu0 %v691
      %v824 = vpop.f32.mrf.mxu0
      %v825 = vadd.f32 0.0, %v824
      %v826 = vpop.f32.mrf.mxu0
      %v827 = vpop.f32.mrf.mxu0
      %v828 = vadd.f32 0.0, %v827
      %v829 = vpop.f32.mrf.mxu0
      %830 = vmatprep.mubr.bf16.mxu0 0
      %831 = vmatmul.mubr.bf16.gmra.mxu0 %v694
      %v832 = vpop.f32.mrf.mxu0
      %v833 = vadd.f32 0.0, %v832
      %v834 = vpop.f32.mrf.mxu0
      %v835 = vpop.f32.mrf.mxu0
      %v836 = vadd.f32 0.0, %v835
      %v837 = vpop.f32.mrf.mxu0
      %838 = vmatprep.mubr.bf16.mxu0 0
      %839 = vmatmul.mubr.bf16.gmra.mxu0 %v697
      %v840 = vpop.f32.mrf.mxu0
      %v841 = vadd.f32 0.0, %v840
      %v842 = vpop.f32.mrf.mxu0
      %v843 = vpop.f32.mrf.mxu0
      %v844 = vadd.f32 0.0, %v843
      %v845 = vpop.f32.mrf.mxu0
      %846 = vmatprep.mubr.bf16.mxu0 0
      %847 = vmatmul.mubr.bf16.gmra.mxu0 %v700
      %v848 = vpop.f32.mrf.mxu0
      %v849 = vadd.f32 0.0, %v848
      %v850 = vpop.f32.mrf.mxu0
      %v851 = vpop.f32.mrf.mxu0
      %v852 = vadd.f32 0.0, %v851
      %v853 = vpop.f32.mrf.mxu0
      %854 = vmatprep.mubr.bf16.mxu0 0
      %855 = vmatmul.mubr.bf16.gmra.mxu0 %v703
      %v856 = vpop.f32.mrf.mxu0
      %v857 = vadd.f32 0.0, %v856
      %v858 = vpop.f32.mrf.mxu0
      %v859 = vpop.f32.mrf.mxu0
      %v860 = vadd.f32 0.0, %v859
      %v861 = vpop.f32.mrf.mxu0
      %862 = vmatprep.mubr.bf16.mxu0 0
      %863 = vmatmul.mubr.bf16.gmra.mxu0 %v706
      %v864 = vpop.f32.mrf.mxu0
      %v865 = vadd.f32 0.0, %v864
      %v866 = vpop.f32.mrf.mxu0
      %v867 = vpop.f32.mrf.mxu0
      %v868 = vadd.f32 0.0, %v867
      %v869 = vpop.f32.mrf.mxu0
      %870 = vmatprep.mubr.bf16.mxu0 0
      %871 = vmatmul.mubr.bf16.gmra.mxu0 %v709
      %v872 = vpop.f32.mrf.mxu0
      %v873 = vadd.f32 0.0, %v872
      %v874 = vpop.f32.mrf.mxu0
      %v875 = vpop.f32.mrf.mxu0
      %v876 = vadd.f32 0.0, %v875
      %v877 = vpop.f32.mrf.mxu0
      %878 = vdwg.mxu0
      %v880 = vsel %vm300, %v596, 0
      %v883 = vsel %vm300, %v597, 0
      %v886 = vsel %vm300, %v598, 0
      %v889 = vsel %vm300, %v599, 0
      %v892 = vsel %vm300, %v600, 0
      %v895 = vsel %vm300, %v601, 0
      %v898 = vsel %vm300, %v602, 0
      %v901 = vsel %vm300, %v603, 0
      %v904 = vsel %vm300, %v604, 0
      %v907 = vsel %vm300, %v605, 0
      %v910 = vsel %vm300, %v606, 0
      %v913 = vsel %vm300, %v607, 0
      %v916 = vsel %vm300, %v608, 0
      %v919 = vsel %vm300, %v609, 0
      %v922 = vsel %vm300, %v610, 0
      %v925 = vsel %vm300, %v611, 0
      %v928 = vand.u32 %v612, %v714
      %930 = vmatprep.subr.bf16.mxu0 0
      %931 = vmatpush1.bf16.msra.mxu0 0
      %932 = vmatprep.subr.bf16.mxu0 0
      %933 = vmatpush1.bf16.msra.mxu0 0
      %934 = vmatprep.subr.bf16.mxu0 0
      %935 = vmatpush1.bf16.msra.mxu0 0
      %936 = vmatprep.subr.bf16.mxu0 0
      %937 = vmatpush1.bf16.msra.mxu0 0
      %938 = vmatprep.subr.bf16.mxu0 0
      %939 = vmatpush1.bf16.msra.mxu0 0
      %940 = vmatprep.subr.bf16.mxu0 0
      %941 = vmatpush1.bf16.msra.mxu0 0
      %942 = vmatprep.subr.bf16.mxu0 0
      %943 = vmatpush1.bf16.msra.mxu0 0
      %944 = vmatprep.subr.bf16.mxu0 0
      %945 = vmatpush1.bf16.msra.mxu0 %v928
      %946 = vmatprep.subr.bf16.mxu0 0
      %947 = vmatpush2.bf16.msra.mxu0 0
      %948 = vmatprep.subr.bf16.mxu0 0
      %949 = vmatpush2.bf16.msra.mxu0 0
      %950 = vmatprep.subr.bf16.mxu0 0
      %951 = vmatpush2.bf16.msra.mxu0 0
      %952 = vmatprep.subr.bf16.mxu0 0
      %953 = vmatpush2.bf16.msra.mxu0 0
      %954 = vmatprep.subr.bf16.mxu0 0
      %955 = vmatpush2.bf16.msra.mxu0 0
      %956 = vmatprep.subr.bf16.mxu0 0
      %957 = vmatpush2.bf16.msra.mxu0 0
      %958 = vmatprep.subr.bf16.mxu0 0
      %959 = vmatpush2.bf16.msra.mxu0 0
      %960 = vmatprep.subr.bf16.mxu0 0
      %961 = vmatpush2.bf16.msra.mxu0 0
      %962 = vmatprep.mubr.bf16.mxu0 0
      %963 = vmatmul.mubr.bf16.gmra.mxu0 %v880
      %v964 = vpop.f32.mrf.mxu0
      %v965 = vadd.f32 %v753, %v964
      %v966 = vpop.f32.mrf.mxu0
      %v967 = vpop.f32.mrf.mxu0
      %v968 = vadd.f32 %v756, %v967
      %v969 = vpop.f32.mrf.mxu0
      %970 = vmatprep.mubr.bf16.mxu0 0
      %971 = vmatmul.mubr.bf16.gmra.mxu0 %v883
      %v972 = vpop.f32.mrf.mxu0
      %v973 = vadd.f32 %v761, %v972
      %v974 = vpop.f32.mrf.mxu0
      %v975 = vpop.f32.mrf.mxu0
      %v976 = vadd.f32 %v764, %v975
      %v977 = vpop.f32.mrf.mxu0
      %978 = vmatprep.mubr.bf16.mxu0 0
      %979 = vmatmul.mubr.bf16.gmra.mxu0 %v886
      %v980 = vpop.f32.mrf.mxu0
      %v981 = vadd.f32 %v769, %v980
      %v982 = vpop.f32.mrf.mxu0
      %v983 = vpop.f32.mrf.mxu0
      %v984 = vadd.f32 %v772, %v983
      %v985 = vpop.f32.mrf.mxu0
      %986 = vmatprep.mubr.bf16.mxu0 0
      %987 = vmatmul.mubr.bf16.gmra.mxu0 %v889
      %v988 = vpop.f32.mrf.mxu0
      %v989 = vadd.f32 %v777, %v988
      %v990 = vpop.f32.mrf.mxu0
      %v991 = vpop.f32.mrf.mxu0
      %v992 = vadd.f32 %v780, %v991
      %v993 = vpop.f32.mrf.mxu0
      %994 = vmatprep.mubr.bf16.mxu0 0
      %995 = vmatmul.mubr.bf16.gmra.mxu0 %v892
      %v996 = vpop.f32.mrf.mxu0
      %v997 = vadd.f32 %v785, %v996
      %v998 = vpop.f32.mrf.mxu0
      %v999 = vpop.f32.mrf.mxu0
      %v1000 = vadd.f32 %v788, %v999
      %v1001 = vpop.f32.mrf.mxu0
      %1002 = vmatprep.mubr.bf16.mxu0 0
      %1003 = vmatmul.mubr.bf16.gmra.mxu0 %v895
      %v1004 = vpop.f32.mrf.mxu0
      %v1005 = vadd.f32 %v793, %v1004
      %v1006 = vpop.f32.mrf.mxu0
      %v1007 = vpop.f32.mrf.mxu0
      %v1008 = vadd.f32 %v796, %v1007
      %v1009 = vpop.f32.mrf.mxu0
      %1010 = vmatprep.mubr.bf16.mxu0 0
      %1011 = vmatmul.mubr.bf16.gmra.mxu0 %v898
      %v1012 = vpop.f32.mrf.mxu0
      %v1013 = vadd.f32 %v801, %v1012
      %v1014 = vpop.f32.mrf.mxu0
      %v1015 = vpop.f32.mrf.mxu0
      %v1016 = vadd.f32 %v804, %v1015
      %v1017 = vpop.f32.mrf.mxu0
      %1018 = vmatprep.mubr.bf16.mxu0 0
      %1019 = vmatmul.mubr.bf16.gmra.mxu0 %v901
      %v1020 = vpop.f32.mrf.mxu0
      %v1021 = vadd.f32 %v809, %v1020
      %v1022 = vpop.f32.mrf.mxu0
      %v1023 = vpop.f32.mrf.mxu0
      %v1024 = vadd.f32 %v812, %v1023
      %v1025 = vpop.f32.mrf.mxu0
      %1026 = vmatprep.mubr.bf16.mxu0 0
      %1027 = vmatmul.mubr.bf16.gmra.mxu0 %v904
      %v1028 = vpop.f32.mrf.mxu0
      %v1029 = vadd.f32 %v817, %v1028
      %v1030 = vpop.f32.mrf.mxu0
      %v1031 = vpop.f32.mrf.mxu0
      %v1032 = vadd.f32 %v820, %v1031
      %v1033 = vpop.f32.mrf.mxu0
      %1034 = vmatprep.mubr.bf16.mxu0 0
      %1035 = vmatmul.mubr.bf16.gmra.mxu0 %v907
      %v1036 = vpop.f32.mrf.mxu0
      %v1037 = vadd.f32 %v825, %v1036
      %v1038 = vpop.f32.mrf.mxu0
      %v1039 = vpop.f32.mrf.mxu0
      %v1040 = vadd.f32 %v828, %v1039
      %v1041 = vpop.f32.mrf.mxu0
      %1042 = vmatprep.mubr.bf16.mxu0 0
      %1043 = vmatmul.mubr.bf16.gmra.mxu0 %v910
      %v1044 = vpop.f32.mrf.mxu0
      %v1045 = vadd.f32 %v833, %v1044
      %v1046 = vpop.f32.mrf.mxu0
      %v1047 = vpop.f32.mrf.mxu0
      %v1048 = vadd.f32 %v836, %v1047
      %v1049 = vpop.f32.mrf.mxu0
      %1050 = vmatprep.mubr.bf16.mxu0 0
      %1051 = vmatmul.mubr.bf16.gmra.mxu0 %v913
      %v1052 = vpop.f32.mrf.mxu0
      %v1053 = vadd.f32 %v841, %v1052
      %v1054 = vpop.f32.mrf.mxu0
      %v1055 = vpop.f32.mrf.mxu0
      %v1056 = vadd.f32 %v844, %v1055
      %v1057 = vpop.f32.mrf.mxu0
      %1058 = vmatprep.mubr.bf16.mxu0 0
      %1059 = vmatmul.mubr.bf16.gmra.mxu0 %v916
      %v1060 = vpop.f32.mrf.mxu0
      %v1061 = vadd.f32 %v849, %v1060
      %v1062 = vpop.f32.mrf.mxu0
      %v1063 = vpop.f32.mrf.mxu0
      %v1064 = vadd.f32 %v852, %v1063
      %v1065 = vpop.f32.mrf.mxu0
      %1066 = vmatprep.mubr.bf16.mxu0 0
      %1067 = vmatmul.mubr.bf16.gmra.mxu0 %v919
      %v1068 = vpop.f32.mrf.mxu0
      %v1069 = vadd.f32 %v857, %v1068
      %v1070 = vpop.f32.mrf.mxu0
      %v1071 = vpop.f32.mrf.mxu0
      %v1072 = vadd.f32 %v860, %v1071
      %v1073 = vpop.f32.mrf.mxu0
      %1074 = vmatprep.mubr.bf16.mxu0 0
      %1075 = vmatmul.mubr.bf16.gmra.mxu0 %v922
      %v1076 = vpop.f32.mrf.mxu0
      %v1077 = vadd.f32 %v865, %v1076
      %v1078 = vpop.f32.mrf.mxu0
      %v1079 = vpop.f32.mrf.mxu0
      %v1080 = vadd.f32 %v868, %v1079
      %v1081 = vpop.f32.mrf.mxu0
      %1082 = vmatprep.mubr.bf16.mxu0 0
      %1083 = vmatmul.mubr.bf16.gmra.mxu0 %v925
      %v1084 = vpop.f32.mrf.mxu0
      %v1085 = vadd.f32 %v873, %v1084
      %v1086 = vpop.f32.mrf.mxu0
      %v1087 = vpop.f32.mrf.mxu0
      %v1088 = vadd.f32 %v876, %v1087
      %v1089 = vpop.f32.mrf.mxu0
      %1090 = vdwg.mxu0
      %v1091 = vld [vmem:[#allocation2 + $0x2] sm:$0xff]
      %v1092 = vld [vmem:[#allocation2 + $0xa] sm:$0xff]
      %v1093 = vld [vmem:[#allocation2 + $0x12] sm:$0xff]
      %v1094 = vld [vmem:[#allocation2 + $0x1a] sm:$0xff]
      %v1095 = vld [vmem:[#allocation2 + $0x22] sm:$0xff]
      %v1096 = vld [vmem:[#allocation2 + $0x2a] sm:$0xff]
      %v1097 = vld [vmem:[#allocation2 + $0x32] sm:$0xff]
      %v1098 = vld [vmem:[#allocation2 + $0x3a] sm:$0xff]
      %v1099 = vld [vmem:[#allocation2 + $0x42] sm:$0xff]
      %v1100 = vld [vmem:[#allocation2 + $0x4a] sm:$0xff]
      %v1101 = vld [vmem:[#allocation2 + $0x52] sm:$0xff]
      %v1102 = vld [vmem:[#allocation2 + $0x5a] sm:$0xff]
      %v1103 = vld [vmem:[#allocation2 + $0x62] sm:$0xff]
      %v1104 = vld [vmem:[#allocation2 + $0x6a] sm:$0xff]
      %v1105 = vld [vmem:[#allocation2 + $0x72] sm:$0xff]
      %v1106 = vld [vmem:[#allocation2 + $0x7a] sm:$0xff]
      %v1107 = vld [vmem:[#allocation2 + $0x82] sm:$0xff]
      %v1108 = vld [vmem:[#allocation2 + $0x8a] sm:$0xff]
      %v1109 = vld [vmem:[#allocation2 + $0x92] sm:$0xff]
      %v1110 = vld [vmem:[#allocation2 + $0x9a] sm:$0xff]
      %v1111 = vld [vmem:[#allocation2 + $0xa2] sm:$0xff]
      %v1112 = vld [vmem:[#allocation2 + $0xaa] sm:$0xff]
      %v1113 = vld [vmem:[#allocation2 + $0xb2] sm:$0xff]
      %v1114 = vld [vmem:[#allocation2 + $0xba] sm:$0xff]
      %v1115 = vld [vmem:[#allocation2 + $0xc2] sm:$0xff]
      %v1116 = vld [vmem:[#allocation2 + $0xca] sm:$0xff]
      %v1117 = vld [vmem:[#allocation2 + $0xd2] sm:$0xff]
      %v1118 = vld [vmem:[#allocation2 + $0xda] sm:$0xff]
      %v1119 = vld [vmem:[#allocation2 + $0xe2] sm:$0xff]
      %v1120 = vld [vmem:[#allocation2 + $0xea] sm:$0xff]
      %v1121 = vld [vmem:[#allocation2 + $0xf2] sm:$0xff]
      %v1122 = vld [vmem:[#allocation2 + $0xfa] sm:$0xff]
      %v1123 = vsel %vm436, 1, 0
      %v1124 = vsel %vm437, 1, 0
      %v1125 = vsel %vm438, 1, 0
      %v1126 = vsel %vm439, 1, 0
      %v1127 = vsel %vm440, 1, 0
      %v1128 = vsel %vm441, 1, 0
      %v1129 = vsel %vm442, 1, 0
      %v1130 = vsel %vm443, 1, 0
      %v1131 = vsel %vm444, 1, 0
      %v1132 = vsel %vm445, 1, 0
      %v1133 = vsel %vm446, 1, 0
      %v1134 = vsel %vm447, 1, 0
      %v1135 = vsel %vm448, 1, 0
      %v1136 = vsel %vm449, 1, 0
      %v1137 = vsel %vm450, 1, 0
      %v1138 = vsel %vm451, 1, 0
      %v1139 = vsel %vm452, 1, 0
      %v1140 = vsel %vm453, 1, 0
      %v1141 = vsel %vm454, 1, 0
      %v1142 = vsel %vm455, 1, 0
      %v1143 = vsel %vm456, 1, 0
      %v1144 = vsel %vm457, 1, 0
      %v1145 = vsel %vm458, 1, 0
      %v1146 = vsel %vm459, 1, 0
      %v1147 = vsel %vm460, 1, 0
      %v1148 = vsel %vm461, 1, 0
      %v1149 = vsel %vm462, 1, 0
      %v1150 = vsel %vm463, 1, 0
      %v1151 = vsel %vm464, 1, 0
      %v1152 = vsel %vm465, 1, 0
      %v1153 = vsel %vm466, 1, 0
      %v1154 = vsel %vm467, 1, 0
      %vm1155 = vcmp.eq.s32.totalorder %v1123, 1
      %vm1156 = vcmp.eq.s32.totalorder %v1124, 1
      %vm1157 = vcmp.eq.s32.totalorder %v1125, 1
      %vm1158 = vcmp.eq.s32.totalorder %v1126, 1
      %vm1159 = vcmp.eq.s32.totalorder %v1127, 1
      %vm1160 = vcmp.eq.s32.totalorder %v1128, 1
      %vm1161 = vcmp.eq.s32.totalorder %v1129, 1
      %vm1162 = vcmp.eq.s32.totalorder %v1130, 1
      %vm1163 = vcmp.eq.s32.totalorder %v1131, 1
      %vm1164 = vcmp.eq.s32.totalorder %v1132, 1
      %vm1165 = vcmp.eq.s32.totalorder %v1133, 1
      %vm1166 = vcmp.eq.s32.totalorder %v1134, 1
      %vm1167 = vcmp.eq.s32.totalorder %v1135, 1
      %vm1168 = vcmp.eq.s32.totalorder %v1136, 1
      %vm1169 = vcmp.eq.s32.totalorder %v1137, 1
      %vm1170 = vcmp.eq.s32.totalorder %v1138, 1
      %vm1171 = vcmp.eq.s32.totalorder %v1139, 1
      %vm1172 = vcmp.eq.s32.totalorder %v1140, 1
      %vm1173 = vcmp.eq.s32.totalorder %v1141, 1
      %vm1174 = vcmp.eq.s32.totalorder %v1142, 1
      %vm1175 = vcmp.eq.s32.totalorder %v1143, 1
      %vm1176 = vcmp.eq.s32.totalorder %v1144, 1
      %vm1177 = vcmp.eq.s32.totalorder %v1145, 1
      %vm1178 = vcmp.eq.s32.totalorder %v1146, 1
      %vm1179 = vcmp.eq.s32.totalorder %v1147, 1
      %vm1180 = vcmp.eq.s32.totalorder %v1148, 1
      %vm1181 = vcmp.eq.s32.totalorder %v1149, 1
      %vm1182 = vcmp.eq.s32.totalorder %v1150, 1
      %vm1183 = vcmp.eq.s32.totalorder %v1151, 1
      %vm1184 = vcmp.eq.s32.totalorder %v1152, 1
      %vm1185 = vcmp.eq.s32.totalorder %v1153, 1
      %vm1186 = vcmp.eq.s32.totalorder %v1154, 1
      %v1187 = vsel %vm1155, %v1091, 0.0
      %v1188 = vsel %vm1156, %v1092, 0.0
      %v1189 = vsel %vm1157, %v1093, 0.0
      %v1190 = vsel %vm1158, %v1094, 0.0
      %v1191 = vsel %vm1159, %v1095, 0.0
      %v1192 = vsel %vm1160, %v1096, 0.0
      %v1193 = vsel %vm1161, %v1097, 0.0
      %v1194 = vsel %vm1162, %v1098, 0.0
      %v1195 = vsel %vm1163, %v1099, 0.0
      %v1196 = vsel %vm1164, %v1100, 0.0
      %v1197 = vsel %vm1165, %v1101, 0.0
      %v1198 = vsel %vm1166, %v1102, 0.0
      %v1199 = vsel %vm1167, %v1103, 0.0
      %v1200 = vsel %vm1168, %v1104, 0.0
      %v1201 = vsel %vm1169, %v1105, 0.0
      %v1202 = vsel %vm1170, %v1106, 0.0
      %v1203 = vsel %vm1171, %v1107, 0.0
      %v1204 = vsel %vm1172, %v1108, 0.0
      %v1205 = vsel %vm1173, %v1109, 0.0
      %v1206 = vsel %vm1174, %v1110, 0.0
      %v1207 = vsel %vm1175, %v1111, 0.0
      %v1208 = vsel %vm1176, %v1112, 0.0
      %v1209 = vsel %vm1177, %v1113, 0.0
      %v1210 = vsel %vm1178, %v1114, 0.0
      %v1211 = vsel %vm1179, %v1115, 0.0
      %v1212 = vsel %vm1180, %v1116, 0.0
      %v1213 = vsel %vm1181, %v1117, 0.0
      %v1214 = vsel %vm1182, %v1118, 0.0
      %v1215 = vsel %vm1183, %v1119, 0.0
      %v1216 = vsel %vm1184, %v1120, 0.0
      %v1217 = vsel %vm1185, %v1121, 0.0
      %v1218 = vsel %vm1186, %v1122, 0.0
      %v1219 = vpack.c.bf16 %v1188, %v1187
      %v1220 = vpack.c.bf16 %v1190, %v1189
      %v1221 = vpack.c.bf16 %v1192, %v1191
      %v1222 = vpack.c.bf16 %v1194, %v1193
      %v1223 = vpack.c.bf16 %v1196, %v1195
      %v1224 = vpack.c.bf16 %v1198, %v1197
      %v1225 = vpack.c.bf16 %v1200, %v1199
      %v1226 = vpack.c.bf16 %v1202, %v1201
      %v1227 = vpack.c.bf16 %v1204, %v1203
      %v1228 = vpack.c.bf16 %v1206, %v1205
      %v1229 = vpack.c.bf16 %v1208, %v1207
      %v1230 = vpack.c.bf16 %v1210, %v1209
      %v1231 = vpack.c.bf16 %v1212, %v1211
      %v1232 = vpack.c.bf16 %v1214, %v1213
      %v1233 = vpack.c.bf16 %v1216, %v1215
      %v1234 = vpack.c.bf16 %v1218, %v1217
      %s1235 = scalar_lea.vmem %s1, 4
      %v1236 = vld [vmem:[%s1235] sm:$0x3]
      %v1238 = vsel %vm300, %v1219, 0
      %v1241 = vsel %vm300, %v1220, 0
      %v1244 = vsel %vm300, %v1221, 0
      %v1247 = vsel %vm300, %v1222, 0
      %v1250 = vsel %vm300, %v1223, 0
      %v1253 = vsel %vm300, %v1224, 0
      %v1256 = vsel %vm300, %v1225, 0
      %v1259 = vsel %vm300, %v1226, 0
      %v1262 = vsel %vm300, %v1227, 0
      %v1265 = vsel %vm300, %v1228, 0
      %v1268 = vsel %vm300, %v1229, 0
      %v1271 = vsel %vm300, %v1230, 0
      %v1274 = vsel %vm300, %v1231, 0
      %v1277 = vsel %vm300, %v1232, 0
      %v1280 = vsel %vm300, %v1233, 0
      %v1283 = vsel %vm300, %v1234, 0
      %v1286 = vand.u32 %v1236, %v714
      %1288 = vmatprep.subr.bf16.mxu0 0
      %1289 = vmatpush1.bf16.msra.mxu0 0
      %1290 = vmatprep.subr.bf16.mxu0 0
      %1291 = vmatpush1.bf16.msra.mxu0 0
      %1292 = vmatprep.subr.bf16.mxu0 0
      %1293 = vmatpush1.bf16.msra.mxu0 0
      %1294 = vmatprep.subr.bf16.mxu0 0
      %1295 = vmatpush1.bf16.msra.mxu0 0
      %1296 = vmatprep.subr.bf16.mxu0 0
      %1297 = vmatpush1.bf16.msra.mxu0 0
      %1298 = vmatprep.subr.bf16.mxu0 0
      %1299 = vmatpush1.bf16.msra.mxu0 0
      %1300 = vmatprep.subr.bf16.mxu0 0
      %1301 = vmatpush1.bf16.msra.mxu0 0
      %1302 = vmatprep.subr.bf16.mxu0 0
      %1303 = vmatpush1.bf16.msra.mxu0 %v1286
      %1304 = vmatprep.subr.bf16.mxu0 0
      %1305 = vmatpush2.bf16.msra.mxu0 0
      %1306 = vmatprep.subr.bf16.mxu0 0
      %1307 = vmatpush2.bf16.msra.mxu0 0
      %1308 = vmatprep.subr.bf16.mxu0 0
      %1309 = vmatpush2.bf16.msra.mxu0 0
      %1310 = vmatprep.subr.bf16.mxu0 0
      %1311 = vmatpush2.bf16.msra.mxu0 0
      %1312 = vmatprep.subr.bf16.mxu0 0
      %1313 = vmatpush2.bf16.msra.mxu0 0
      %1314 = vmatprep.subr.bf16.mxu0 0
      %1315 = vmatpush2.bf16.msra.mxu0 0
      %1316 = vmatprep.subr.bf16.mxu0 0
      %1317 = vmatpush2.bf16.msra.mxu0 0
      %1318 = vmatprep.subr.bf16.mxu0 0
      %1319 = vmatpush2.bf16.msra.mxu0 0
      %1320 = vmatprep.mubr.bf16.mxu0 0
      %1321 = vmatmul.mubr.bf16.gmra.mxu0 %v1238
      %v1322 = vpop.f32.mrf.mxu0
      %v1323 = vadd.f32 0.0, %v1322
      %v1324 = vpop.f32.mrf.mxu0
      %v1325 = vpop.f32.mrf.mxu0
      %v1326 = vadd.f32 0.0, %v1325
      %v1327 = vpop.f32.mrf.mxu0
      %1328 = vmatprep.mubr.bf16.mxu0 0
      %1329 = vmatmul.mubr.bf16.gmra.mxu0 %v1241
      %v1330 = vpop.f32.mrf.mxu0
      %v1331 = vadd.f32 0.0, %v1330
      %v1332 = vpop.f32.mrf.mxu0
      %v1333 = vpop.f32.mrf.mxu0
      %v1334 = vadd.f32 0.0, %v1333
      %v1335 = vpop.f32.mrf.mxu0
      %1336 = vmatprep.mubr.bf16.mxu0 0
      %1337 = vmatmul.mubr.bf16.gmra.mxu0 %v1244
      %v1338 = vpop.f32.mrf.mxu0
      %v1339 = vadd.f32 0.0, %v1338
      %v1340 = vpop.f32.mrf.mxu0
      %v1341 = vpop.f32.mrf.mxu0
      %v1342 = vadd.f32 0.0, %v1341
      %v1343 = vpop.f32.mrf.mxu0
      %1344 = vmatprep.mubr.bf16.mxu0 0
      %1345 = vmatmul.mubr.bf16.gmra.mxu0 %v1247
      %v1346 = vpop.f32.mrf.mxu0
      %v1347 = vadd.f32 0.0, %v1346
      %v1348 = vpop.f32.mrf.mxu0
      %v1349 = vpop.f32.mrf.mxu0
      %v1350 = vadd.f32 0.0, %v1349
      %v1351 = vpop.f32.mrf.mxu0
      %1352 = vmatprep.mubr.bf16.mxu0 0
      %1353 = vmatmul.mubr.bf16.gmra.mxu0 %v1250
      %v1354 = vpop.f32.mrf.mxu0
      %v1355 = vadd.f32 0.0, %v1354
      %v1356 = vpop.f32.mrf.mxu0
      %v1357 = vpop.f32.mrf.mxu0
      %v1358 = vadd.f32 0.0, %v1357
      %v1359 = vpop.f32.mrf.mxu0
      %1360 = vmatprep.mubr.bf16.mxu0 0
      %1361 = vmatmul.mubr.bf16.gmra.mxu0 %v1253
      %v1362 = vpop.f32.mrf.mxu0
      %v1363 = vadd.f32 0.0, %v1362
      %v1364 = vpop.f32.mrf.mxu0
      %v1365 = vpop.f32.mrf.mxu0
      %v1366 = vadd.f32 0.0, %v1365
      %v1367 = vpop.f32.mrf.mxu0
      %1368 = vmatprep.mubr.bf16.mxu0 0
      %1369 = vmatmul.mubr.bf16.gmra.mxu0 %v1256
      %v1370 = vpop.f32.mrf.mxu0
      %v1371 = vadd.f32 0.0, %v1370
      %v1372 = vpop.f32.mrf.mxu0
      %v1373 = vpop.f32.mrf.mxu0
      %v1374 = vadd.f32 0.0, %v1373
      %v1375 = vpop.f32.mrf.mxu0
      %1376 = vmatprep.mubr.bf16.mxu0 0
      %1377 = vmatmul.mubr.bf16.gmra.mxu0 %v1259
      %v1378 = vpop.f32.mrf.mxu0
      %v1379 = vadd.f32 0.0, %v1378
      %v1380 = vpop.f32.mrf.mxu0
      %v1381 = vpop.f32.mrf.mxu0
      %v1382 = vadd.f32 0.0, %v1381
      %v1383 = vpop.f32.mrf.mxu0
      %1384 = vmatprep.mubr.bf16.mxu0 0
      %1385 = vmatmul.mubr.bf16.gmra.mxu0 %v1262
      %v1386 = vpop.f32.mrf.mxu0
      %v1387 = vadd.f32 0.0, %v1386
      %v1388 = vpop.f32.mrf.mxu0
      %v1389 = vpop.f32.mrf.mxu0
      %v1390 = vadd.f32 0.0, %v1389
      %v1391 = vpop.f32.mrf.mxu0
      %1392 = vmatprep.mubr.bf16.mxu0 0
      %1393 = vmatmul.mubr.bf16.gmra.mxu0 %v1265
      %v1394 = vpop.f32.mrf.mxu0
      %v1395 = vadd.f32 0.0, %v1394
      %v1396 = vpop.f32.mrf.mxu0
      %v1397 = vpop.f32.mrf.mxu0
      %v1398 = vadd.f32 0.0, %v1397
      %v1399 = vpop.f32.mrf.mxu0
      %1400 = vmatprep.mubr.bf16.mxu0 0
      %1401 = vmatmul.mubr.bf16.gmra.mxu0 %v1268
      %v1402 = vpop.f32.mrf.mxu0
      %v1403 = vadd.f32 0.0, %v1402
      %v1404 = vpop.f32.mrf.mxu0
      %v1405 = vpop.f32.mrf.mxu0
      %v1406 = vadd.f32 0.0, %v1405
      %v1407 = vpop.f32.mrf.mxu0
      %1408 = vmatprep.mubr.bf16.mxu0 0
      %1409 = vmatmul.mubr.bf16.gmra.mxu0 %v1271
      %v1410 = vpop.f32.mrf.mxu0
      %v1411 = vadd.f32 0.0, %v1410
      %v1412 = vpop.f32.mrf.mxu0
      %v1413 = vpop.f32.mrf.mxu0
      %v1414 = vadd.f32 0.0, %v1413
      %v1415 = vpop.f32.mrf.mxu0
      %1416 = vmatprep.mubr.bf16.mxu0 0
      %1417 = vmatmul.mubr.bf16.gmra.mxu0 %v1274
      %v1418 = vpop.f32.mrf.mxu0
      %v1419 = vadd.f32 0.0, %v1418
      %v1420 = vpop.f32.mrf.mxu0
      %v1421 = vpop.f32.mrf.mxu0
      %v1422 = vadd.f32 0.0, %v1421
      %v1423 = vpop.f32.mrf.mxu0
      %1424 = vmatprep.mubr.bf16.mxu0 0
      %1425 = vmatmul.mubr.bf16.gmra.mxu0 %v1277
      %v1426 = vpop.f32.mrf.mxu0
      %v1427 = vadd.f32 0.0, %v1426
      %v1428 = vpop.f32.mrf.mxu0
      %v1429 = vpop.f32.mrf.mxu0
      %v1430 = vadd.f32 0.0, %v1429
      %v1431 = vpop.f32.mrf.mxu0
      %1432 = vmatprep.mubr.bf16.mxu0 0
      %1433 = vmatmul.mubr.bf16.gmra.mxu0 %v1280
      %v1434 = vpop.f32.mrf.mxu0
      %v1435 = vadd.f32 0.0, %v1434
      %v1436 = vpop.f32.mrf.mxu0
      %v1437 = vpop.f32.mrf.mxu0
      %v1438 = vadd.f32 0.0, %v1437
      %v1439 = vpop.f32.mrf.mxu0
      %1440 = vmatprep.mubr.bf16.mxu0 0
      %1441 = vmatmul.mubr.bf16.gmra.mxu0 %v1283
      %v1442 = vpop.f32.mrf.mxu0
      %v1443 = vadd.f32 0.0, %v1442
      %v1444 = vpop.f32.mrf.mxu0
      %v1445 = vpop.f32.mrf.mxu0
      %v1446 = vadd.f32 0.0, %v1445
      %v1447 = vpop.f32.mrf.mxu0
      %1448 = vdwg.mxu0
      %v1449 = vadd.f32 %v965, %v1323
      %v1450 = vadd.f32 %v968, %v1326
      %v1451 = vadd.f32 %v973, %v1331
      %v1452 = vadd.f32 %v976, %v1334
      %v1453 = vadd.f32 %v981, %v1339
      %v1454 = vadd.f32 %v984, %v1342
      %v1455 = vadd.f32 %v989, %v1347
      %v1456 = vadd.f32 %v992, %v1350
      %v1457 = vadd.f32 %v997, %v1355
      %v1458 = vadd.f32 %v1000, %v1358
      %v1459 = vadd.f32 %v1005, %v1363
      %v1460 = vadd.f32 %v1008, %v1366
      %v1461 = vadd.f32 %v1013, %v1371
      %v1462 = vadd.f32 %v1016, %v1374
      %v1463 = vadd.f32 %v1021, %v1379
      %v1464 = vadd.f32 %v1024, %v1382
      %v1465 = vadd.f32 %v1029, %v1387
      %v1466 = vadd.f32 %v1032, %v1390
      %v1467 = vadd.f32 %v1037, %v1395
      %v1468 = vadd.f32 %v1040, %v1398
      %v1469 = vadd.f32 %v1045, %v1403
      %v1470 = vadd.f32 %v1048, %v1406
      %v1471 = vadd.f32 %v1053, %v1411
      %v1472 = vadd.f32 %v1056, %v1414
      %v1473 = vadd.f32 %v1061, %v1419
      %v1474 = vadd.f32 %v1064, %v1422
      %v1475 = vadd.f32 %v1069, %v1427
      %v1476 = vadd.f32 %v1072, %v1430
      %v1477 = vadd.f32 %v1077, %v1435
      %v1478 = vadd.f32 %v1080, %v1438
      %v1479 = vadd.f32 %v1085, %v1443
      %v1480 = vadd.f32 %v1088, %v1446
      %v1481 = vld [vmem:[#allocation2 + $0x10] sm:$0xff]
      %v1482 = vld [vmem:[#allocation2 + $0x18] sm:$0xff]
      %v1483 = vld [vmem:[#allocation2 + $0x20] sm:$0xff]
      %v1484 = vld [vmem:[#allocation2 + $0x28] sm:$0xff]
      %v1485 = vld [vmem:[#allocation2 + $0x30] sm:$0xff]
      %v1486 = vld [vmem:[#allocation2 + $0x38] sm:$0xff]
      %v1487 = vld [vmem:[#allocation2 + $0x40] sm:$0xff]
      %v1488 = vld [vmem:[#allocation2 + $0x48] sm:$0xff]
      %v1489 = vld [vmem:[#allocation2 + $0x50] sm:$0xff]
      %v1490 = vld [vmem:[#allocation2 + $0x58] sm:$0xff]
      %v1491 = vld [vmem:[#allocation2 + $0x60] sm:$0xff]
      %v1492 = vld [vmem:[#allocation2 + $0x68] sm:$0xff]
      %v1493 = vld [vmem:[#allocation2 + $0x70] sm:$0xff]
      %v1494 = vld [vmem:[#allocation2 + $0x78] sm:$0xff]
      %v1495 = vld [vmem:[#allocation2 + $0x80] sm:$0xff]
      %v1496 = vld [vmem:[#allocation2 + $0x88] sm:$0xff]
      %v1497 = vld [vmem:[#allocation2 + $0x90] sm:$0xff]
      %v1498 = vld [vmem:[#allocation2 + $0x98] sm:$0xff]
      %v1499 = vld [vmem:[#allocation2 + $0xa0] sm:$0xff]
      %v1500 = vld [vmem:[#allocation2 + $0xa8] sm:$0xff]
      %v1501 = vld [vmem:[#allocation2 + $0xb0] sm:$0xff]
      %v1502 = vld [vmem:[#allocation2 + $0xb8] sm:$0xff]
      %v1503 = vld [vmem:[#allocation2 + $0xc0] sm:$0xff]
      %v1504 = vld [vmem:[#allocation2 + $0xc8] sm:$0xff]
      %v1505 = vld [vmem:[#allocation2 + $0xd0] sm:$0xff]
      %v1506 = vld [vmem:[#allocation2 + $0xd8] sm:$0xff]
      %v1507 = vld [vmem:[#allocation2 + $0xe0] sm:$0xff]
      %v1508 = vld [vmem:[#allocation2 + $0xe8] sm:$0xff]
      %v1509 = vld [vmem:[#allocation2 + $0xf0] sm:$0xff]
      %v1510 = vld [vmem:[#allocation2 + $0xf8] sm:$0xff]
      %v1511 = vld [vmem:[#allocation2 + $0x100] sm:$0xff]
      %v1512 = vld [vmem:[#allocation2 + $0x108] sm:$0xff]
      %v1513 = vsel %vm532, %v1481, 0.0
      %v1514 = vsel %vm533, %v1482, 0.0
      %v1515 = vsel %vm534, %v1483, 0.0
      %v1516 = vsel %vm535, %v1484, 0.0
      %v1517 = vsel %vm536, %v1485, 0.0
      %v1518 = vsel %vm537, %v1486, 0.0
      %v1519 = vsel %vm538, %v1487, 0.0
      %v1520 = vsel %vm539, %v1488, 0.0
      %v1521 = vsel %vm540, %v1489, 0.0
      %v1522 = vsel %vm541, %v1490, 0.0
      %v1523 = vsel %vm542, %v1491, 0.0
      %v1524 = vsel %vm543, %v1492, 0.0
      %v1525 = vsel %vm544, %v1493, 0.0
      %v1526 = vsel %vm545, %v1494, 0.0
      %v1527 = vsel %vm546, %v1495, 0.0
      %v1528 = vsel %vm547, %v1496, 0.0
      %v1529 = vsel %vm548, %v1497, 0.0
      %v1530 = vsel %vm549, %v1498, 0.0
      %v1531 = vsel %vm550, %v1499, 0.0
      %v1532 = vsel %vm551, %v1500, 0.0
      %v1533 = vsel %vm552, %v1501, 0.0
      %v1534 = vsel %vm553, %v1502, 0.0
      %v1535 = vsel %vm554, %v1503, 0.0
      %v1536 = vsel %vm555, %v1504, 0.0
      %v1537 = vsel %vm556, %v1505, 0.0
      %v1538 = vsel %vm557, %v1506, 0.0
      %v1539 = vsel %vm558, %v1507, 0.0
      %v1540 = vsel %vm559, %v1508, 0.0
      %v1541 = vsel %vm560, %v1509, 0.0
      %v1542 = vsel %vm561, %v1510, 0.0
      %v1543 = vsel %vm562, %v1511, 0.0
      %v1544 = vsel %vm563, %v1512, 0.0
      %v1545 = vpack.c.bf16 %v1514, %v1513
      %v1546 = vpack.c.bf16 %v1516, %v1515
      %v1547 = vpack.c.bf16 %v1518, %v1517
      %v1548 = vpack.c.bf16 %v1520, %v1519
      %v1549 = vpack.c.bf16 %v1522, %v1521
      %v1550 = vpack.c.bf16 %v1524, %v1523
      %v1551 = vpack.c.bf16 %v1526, %v1525
      %v1552 = vpack.c.bf16 %v1528, %v1527
      %v1553 = vpack.c.bf16 %v1530, %v1529
      %v1554 = vpack.c.bf16 %v1532, %v1531
      %v1555 = vpack.c.bf16 %v1534, %v1533
      %v1556 = vpack.c.bf16 %v1536, %v1535
      %v1557 = vpack.c.bf16 %v1538, %v1537
      %v1558 = vpack.c.bf16 %v1540, %v1539
      %v1559 = vpack.c.bf16 %v1542, %v1541
      %v1560 = vpack.c.bf16 %v1544, %v1543
      %s1561 = scalar_lea.vmem %s1, 6
      %v1562 = vld [vmem:[%s1561] sm:$0x3]
      %v1564 = vsel %vm300, %v1545, 0
      %v1567 = vsel %vm300, %v1546, 0
      %v1570 = vsel %vm300, %v1547, 0
      %v1573 = vsel %vm300, %v1548, 0
      %v1576 = vsel %vm300, %v1549, 0
      %v1579 = vsel %vm300, %v1550, 0
      %v1582 = vsel %vm300, %v1551, 0
      %v1585 = vsel %vm300, %v1552, 0
      %v1588 = vsel %vm300, %v1553, 0
      %v1591 = vsel %vm300, %v1554, 0
      %v1594 = vsel %vm300, %v1555, 0
      %v1597 = vsel %vm300, %v1556, 0
      %v1600 = vsel %vm300, %v1557, 0
      %v1603 = vsel %vm300, %v1558, 0
      %v1606 = vsel %vm300, %v1559, 0
      %v1609 = vsel %vm300, %v1560, 0
      %v1612 = vand.u32 %v1562, %v714
      %1614 = vmatprep.subr.bf16.mxu0 0
      %1615 = vmatpush1.bf16.msra.mxu0 0
      %1616 = vmatprep.subr.bf16.mxu0 0
      %1617 = vmatpush1.bf16.msra.mxu0 0
      %1618 = vmatprep.subr.bf16.mxu0 0
      %1619 = vmatpush1.bf16.msra.mxu0 0
      %1620 = vmatprep.subr.bf16.mxu0 0
      %1621 = vmatpush1.bf16.msra.mxu0 0
      %1622 = vmatprep.subr.bf16.mxu0 0
      %1623 = vmatpush1.bf16.msra.mxu0 0
      %1624 = vmatprep.subr.bf16.mxu0 0
      %1625 = vmatpush1.bf16.msra.mxu0 0
      %1626 = vmatprep.subr.bf16.mxu0 0
      %1627 = vmatpush1.bf16.msra.mxu0 0
      %1628 = vmatprep.subr.bf16.mxu0 0
      %1629 = vmatpush1.bf16.msra.mxu0 %v1612
      %1630 = vmatprep.subr.bf16.mxu0 0
      %1631 = vmatpush2.bf16.msra.mxu0 0
      %1632 = vmatprep.subr.bf16.mxu0 0
      %1633 = vmatpush2.bf16.msra.mxu0 0
      %1634 = vmatprep.subr.bf16.mxu0 0
      %1635 = vmatpush2.bf16.msra.mxu0 0
      %1636 = vmatprep.subr.bf16.mxu0 0
      %1637 = vmatpush2.bf16.msra.mxu0 0
      %1638 = vmatprep.subr.bf16.mxu0 0
      %1639 = vmatpush2.bf16.msra.mxu0 0
      %1640 = vmatprep.subr.bf16.mxu0 0
      %1641 = vmatpush2.bf16.msra.mxu0 0
      %1642 = vmatprep.subr.bf16.mxu0 0
      %1643 = vmatpush2.bf16.msra.mxu0 0
      %1644 = vmatprep.subr.bf16.mxu0 0
      %1645 = vmatpush2.bf16.msra.mxu0 0
      %1646 = vmatprep.mubr.bf16.mxu0 0
      %1647 = vmatmul.mubr.bf16.gmra.mxu0 %v1564
      %v1648 = vpop.f32.mrf.mxu0
      %v1649 = vadd.f32 0.0, %v1648
      %v1650 = vpop.f32.mrf.mxu0
      %v1651 = vpop.f32.mrf.mxu0
      %v1652 = vadd.f32 0.0, %v1651
      %v1653 = vpop.f32.mrf.mxu0
      %1654 = vmatprep.mubr.bf16.mxu0 0
      %1655 = vmatmul.mubr.bf16.gmra.mxu0 %v1567
      %v1656 = vpop.f32.mrf.mxu0
      %v1657 = vadd.f32 0.0, %v1656
      %v1658 = vpop.f32.mrf.mxu0
      %v1659 = vpop.f32.mrf.mxu0
      %v1660 = vadd.f32 0.0, %v1659
      %v1661 = vpop.f32.mrf.mxu0
      %1662 = vmatprep.mubr.bf16.mxu0 0
      %1663 = vmatmul.mubr.bf16.gmra.mxu0 %v1570
      %v1664 = vpop.f32.mrf.mxu0
      %v1665 = vadd.f32 0.0, %v1664
      %v1666 = vpop.f32.mrf.mxu0
      %v1667 = vpop.f32.mrf.mxu0
      %v1668 = vadd.f32 0.0, %v1667
      %v1669 = vpop.f32.mrf.mxu0
      %1670 = vmatprep.mubr.bf16.mxu0 0
      %1671 = vmatmul.mubr.bf16.gmra.mxu0 %v1573
      %v1672 = vpop.f32.mrf.mxu0
      %v1673 = vadd.f32 0.0, %v1672
      %v1674 = vpop.f32.mrf.mxu0
      %v1675 = vpop.f32.mrf.mxu0
      %v1676 = vadd.f32 0.0, %v1675
      %v1677 = vpop.f32.mrf.mxu0
      %1678 = vmatprep.mubr.bf16.mxu0 0
      %1679 = vmatmul.mubr.bf16.gmra.mxu0 %v1576
      %v1680 = vpop.f32.mrf.mxu0
      %v1681 = vadd.f32 0.0, %v1680
      %v1682 = vpop.f32.mrf.mxu0
      %v1683 = vpop.f32.mrf.mxu0
      %v1684 = vadd.f32 0.0, %v1683
      %v1685 = vpop.f32.mrf.mxu0
      %1686 = vmatprep.mubr.bf16.mxu0 0
      %1687 = vmatmul.mubr.bf16.gmra.mxu0 %v1579
      %v1688 = vpop.f32.mrf.mxu0
      %v1689 = vadd.f32 0.0, %v1688
      %v1690 = vpop.f32.mrf.mxu0
      %v1691 = vpop.f32.mrf.mxu0
      %v1692 = vadd.f32 0.0, %v1691
      %v1693 = vpop.f32.mrf.mxu0
      %1694 = vmatprep.mubr.bf16.mxu0 0
      %1695 = vmatmul.mubr.bf16.gmra.mxu0 %v1582
      %v1696 = vpop.f32.mrf.mxu0
      %v1697 = vadd.f32 0.0, %v1696
      %v1698 = vpop.f32.mrf.mxu0
      %v1699 = vpop.f32.mrf.mxu0
      %v1700 = vadd.f32 0.0, %v1699
      %v1701 = vpop.f32.mrf.mxu0
      %1702 = vmatprep.mubr.bf16.mxu0 0
      %1703 = vmatmul.mubr.bf16.gmra.mxu0 %v1585
      %v1704 = vpop.f32.mrf.mxu0
      %v1705 = vadd.f32 0.0, %v1704
      %v1706 = vpop.f32.mrf.mxu0
      %v1707 = vpop.f32.mrf.mxu0
      %v1708 = vadd.f32 0.0, %v1707
      %v1709 = vpop.f32.mrf.mxu0
      %1710 = vmatprep.mubr.bf16.mxu0 0
      %1711 = vmatmul.mubr.bf16.gmra.mxu0 %v1588
      %v1712 = vpop.f32.mrf.mxu0
      %v1713 = vadd.f32 0.0, %v1712
      %v1714 = vpop.f32.mrf.mxu0
      %v1715 = vpop.f32.mrf.mxu0
      %v1716 = vadd.f32 0.0, %v1715
      %v1717 = vpop.f32.mrf.mxu0
      %1718 = vmatprep.mubr.bf16.mxu0 0
      %1719 = vmatmul.mubr.bf16.gmra.mxu0 %v1591
      %v1720 = vpop.f32.mrf.mxu0
      %v1721 = vadd.f32 0.0, %v1720
      %v1722 = vpop.f32.mrf.mxu0
      %v1723 = vpop.f32.mrf.mxu0
      %v1724 = vadd.f32 0.0, %v1723
      %v1725 = vpop.f32.mrf.mxu0
      %1726 = vmatprep.mubr.bf16.mxu0 0
      %1727 = vmatmul.mubr.bf16.gmra.mxu0 %v1594
      %v1728 = vpop.f32.mrf.mxu0
      %v1729 = vadd.f32 0.0, %v1728
      %v1730 = vpop.f32.mrf.mxu0
      %v1731 = vpop.f32.mrf.mxu0
      %v1732 = vadd.f32 0.0, %v1731
      %v1733 = vpop.f32.mrf.mxu0
      %1734 = vmatprep.mubr.bf16.mxu0 0
      %1735 = vmatmul.mubr.bf16.gmra.mxu0 %v1597
      %v1736 = vpop.f32.mrf.mxu0
      %v1737 = vadd.f32 0.0, %v1736
      %v1738 = vpop.f32.mrf.mxu0
      %v1739 = vpop.f32.mrf.mxu0
      %v1740 = vadd.f32 0.0, %v1739
      %v1741 = vpop.f32.mrf.mxu0
      %1742 = vmatprep.mubr.bf16.mxu0 0
      %1743 = vmatmul.mubr.bf16.gmra.mxu0 %v1600
      %v1744 = vpop.f32.mrf.mxu0
      %v1745 = vadd.f32 0.0, %v1744
      %v1746 = vpop.f32.mrf.mxu0
      %v1747 = vpop.f32.mrf.mxu0
      %v1748 = vadd.f32 0.0, %v1747
      %v1749 = vpop.f32.mrf.mxu0
      %1750 = vmatprep.mubr.bf16.mxu0 0
      %1751 = vmatmul.mubr.bf16.gmra.mxu0 %v1603
      %v1752 = vpop.f32.mrf.mxu0
      %v1753 = vadd.f32 0.0, %v1752
      %v1754 = vpop.f32.mrf.mxu0
      %v1755 = vpop.f32.mrf.mxu0
      %v1756 = vadd.f32 0.0, %v1755
      %v1757 = vpop.f32.mrf.mxu0
      %1758 = vmatprep.mubr.bf16.mxu0 0
      %1759 = vmatmul.mubr.bf16.gmra.mxu0 %v1606
      %v1760 = vpop.f32.mrf.mxu0
      %v1761 = vadd.f32 0.0, %v1760
      %v1762 = vpop.f32.mrf.mxu0
      %v1763 = vpop.f32.mrf.mxu0
      %v1764 = vadd.f32 0.0, %v1763
      %v1765 = vpop.f32.mrf.mxu0
      %1766 = vmatprep.mubr.bf16.mxu0 0
      %1767 = vmatmul.mubr.bf16.gmra.mxu0 %v1609
      %v1768 = vpop.f32.mrf.mxu0
      %v1769 = vadd.f32 0.0, %v1768
      %v1770 = vpop.f32.mrf.mxu0
      %v1771 = vpop.f32.mrf.mxu0
      %v1772 = vadd.f32 0.0, %v1771
      %v1773 = vpop.f32.mrf.mxu0
      %1774 = vdwg.mxu0
      %v1775 = vadd.f32 %v1449, %v1649
      %v1776 = vadd.f32 %v1450, %v1652
      %v1777 = vadd.f32 %v1451, %v1657
      %v1778 = vadd.f32 %v1452, %v1660
      %v1779 = vadd.f32 %v1453, %v1665
      %v1780 = vadd.f32 %v1454, %v1668
      %v1781 = vadd.f32 %v1455, %v1673
      %v1782 = vadd.f32 %v1456, %v1676
      %v1783 = vadd.f32 %v1457, %v1681
      %v1784 = vadd.f32 %v1458, %v1684
      %v1785 = vadd.f32 %v1459, %v1689
      %v1786 = vadd.f32 %v1460, %v1692
      %v1787 = vadd.f32 %v1461, %v1697
      %v1788 = vadd.f32 %v1462, %v1700
      %v1789 = vadd.f32 %v1463, %v1705
      %v1790 = vadd.f32 %v1464, %v1708
      %v1791 = vadd.f32 %v1465, %v1713
      %v1792 = vadd.f32 %v1466, %v1716
      %v1793 = vadd.f32 %v1467, %v1721
      %v1794 = vadd.f32 %v1468, %v1724
      %v1795 = vadd.f32 %v1469, %v1729
      %v1796 = vadd.f32 %v1470, %v1732
      %v1797 = vadd.f32 %v1471, %v1737
      %v1798 = vadd.f32 %v1472, %v1740
      %v1799 = vadd.f32 %v1473, %v1745
      %v1800 = vadd.f32 %v1474, %v1748
      %v1801 = vadd.f32 %v1475, %v1753
      %v1802 = vadd.f32 %v1476, %v1756
      %v1803 = vadd.f32 %v1477, %v1761
      %v1804 = vadd.f32 %v1478, %v1764
      %v1805 = vadd.f32 %v1479, %v1769
      %v1806 = vadd.f32 %v1480, %v1772
      %v1807 = vld [vmem:[#allocation2 + $0x11] sm:$0xff]
      %v1808 = vld [vmem:[#allocation2 + $0x19] sm:$0xff]
      %v1809 = vld [vmem:[#allocation2 + $0x21] sm:$0xff]
      %v1810 = vld [vmem:[#allocation2 + $0x29] sm:$0xff]
      %v1811 = vld [vmem:[#allocation2 + $0x31] sm:$0xff]
      %v1812 = vld [vmem:[#allocation2 + $0x39] sm:$0xff]
      %v1813 = vld [vmem:[#allocation2 + $0x41] sm:$0xff]
      %v1814 = vld [vmem:[#allocation2 + $0x49] sm:$0xff]
      %v1815 = vld [vmem:[#allocation2 + $0x51] sm:$0xff]
      %v1816 = vld [vmem:[#allocation2 + $0x59] sm:$0xff]
      %v1817 = vld [vmem:[#allocation2 + $0x61] sm:$0xff]
      %v1818 = vld [vmem:[#allocation2 + $0x69] sm:$0xff]
      %v1819 = vld [vmem:[#allocation2 + $0x71] sm:$0xff]
      %v1820 = vld [vmem:[#allocation2 + $0x79] sm:$0xff]
      %v1821 = vld [vmem:[#allocation2 + $0x81] sm:$0xff]
      %v1822 = vld [vmem:[#allocation2 + $0x89] sm:$0xff]
      %v1823 = vld [vmem:[#allocation2 + $0x91] sm:$0xff]
      %v1824 = vld [vmem:[#allocation2 + $0x99] sm:$0xff]
      %v1825 = vld [vmem:[#allocation2 + $0xa1] sm:$0xff]
      %v1826 = vld [vmem:[#allocation2 + $0xa9] sm:$0xff]
      %v1827 = vld [vmem:[#allocation2 + $0xb1] sm:$0xff]
      %v1828 = vld [vmem:[#allocation2 + $0xb9] sm:$0xff]
      %v1829 = vld [vmem:[#allocation2 + $0xc1] sm:$0xff]
      %v1830 = vld [vmem:[#allocation2 + $0xc9] sm:$0xff]
      %v1831 = vld [vmem:[#allocation2 + $0xd1] sm:$0xff]
      %v1832 = vld [vmem:[#allocation2 + $0xd9] sm:$0xff]
      %v1833 = vld [vmem:[#allocation2 + $0xe1] sm:$0xff]
      %v1834 = vld [vmem:[#allocation2 + $0xe9] sm:$0xff]
      %v1835 = vld [vmem:[#allocation2 + $0xf1] sm:$0xff]
      %v1836 = vld [vmem:[#allocation2 + $0xf9] sm:$0xff]
      %v1837 = vld [vmem:[#allocation2 + $0x101] sm:$0xff]
      %v1838 = vld [vmem:[#allocation2 + $0x109] sm:$0xff]
      %v1839 = vpack.c.bf16 %v1808, %v1807
      %v1840 = vpack.c.bf16 %v1810, %v1809
      %v1841 = vpack.c.bf16 %v1812, %v1811
      %v1842 = vpack.c.bf16 %v1814, %v1813
      %v1843 = vpack.c.bf16 %v1816, %v1815
      %v1844 = vpack.c.bf16 %v1818, %v1817
      %v1845 = vpack.c.bf16 %v1820, %v1819
      %v1846 = vpack.c.bf16 %v1822, %v1821
      %v1847 = vpack.c.bf16 %v1824, %v1823
      %v1848 = vpack.c.bf16 %v1826, %v1825
      %v1849 = vpack.c.bf16 %v1828, %v1827
      %v1850 = vpack.c.bf16 %v1830, %v1829
      %v1851 = vpack.c.bf16 %v1832, %v1831
      %v1852 = vpack.c.bf16 %v1834, %v1833
      %v1853 = vpack.c.bf16 %v1836, %v1835
      %v1854 = vpack.c.bf16 %v1838, %v1837
      %s1855 = scalar_lea.vmem %s1, 8
      %v1856 = vld [vmem:[%s1855] sm:$0x3]
      %v1858 = vsel %vm300, %v1839, 0
      %v1861 = vsel %vm300, %v1840, 0
      %v1864 = vsel %vm300, %v1841, 0
      %v1867 = vsel %vm300, %v1842, 0
      %v1870 = vsel %vm300, %v1843, 0
      %v1873 = vsel %vm300, %v1844, 0
      %v1876 = vsel %vm300, %v1845, 0
      %v1879 = vsel %vm300, %v1846, 0
      %v1882 = vsel %vm300, %v1847, 0
      %v1885 = vsel %vm300, %v1848, 0
      %v1888 = vsel %vm300, %v1849, 0
      %v1891 = vsel %vm300, %v1850, 0
      %v1894 = vsel %vm300, %v1851, 0
      %v1897 = vsel %vm300, %v1852, 0
      %v1900 = vsel %vm300, %v1853, 0
      %v1903 = vsel %vm300, %v1854, 0
      %v1906 = vand.u32 %v1856, %v714
      %1908 = vmatprep.subr.bf16.mxu0 0
      %1909 = vmatpush1.bf16.msra.mxu0 0
      %1910 = vmatprep.subr.bf16.mxu0 0
      %1911 = vmatpush1.bf16.msra.mxu0 0
      %1912 = vmatprep.subr.bf16.mxu0 0
      %1913 = vmatpush1.bf16.msra.mxu0 0
      %1914 = vmatprep.subr.bf16.mxu0 0
      %1915 = vmatpush1.bf16.msra.mxu0 0
      %1916 = vmatprep.subr.bf16.mxu0 0
      %1917 = vmatpush1.bf16.msra.mxu0 0
      %1918 = vmatprep.subr.bf16.mxu0 0
      %1919 = vmatpush1.bf16.msra.mxu0 0
      %1920 = vmatprep.subr.bf16.mxu0 0
      %1921 = vmatpush1.bf16.msra.mxu0 0
      %1922 = vmatprep.subr.bf16.mxu0 0
      %1923 = vmatpush1.bf16.msra.mxu0 %v1906
      %1924 = vmatprep.subr.bf16.mxu0 0
      %1925 = vmatpush2.bf16.msra.mxu0 0
      %1926 = vmatprep.subr.bf16.mxu0 0
      %1927 = vmatpush2.bf16.msra.mxu0 0
      %1928 = vmatprep.subr.bf16.mxu0 0
      %1929 = vmatpush2.bf16.msra.mxu0 0
      %1930 = vmatprep.subr.bf16.mxu0 0
      %1931 = vmatpush2.bf16.msra.mxu0 0
      %1932 = vmatprep.subr.bf16.mxu0 0
      %1933 = vmatpush2.bf16.msra.mxu0 0
      %1934 = vmatprep.subr.bf16.mxu0 0
      %1935 = vmatpush2.bf16.msra.mxu0 0
      %1936 = vmatprep.subr.bf16.mxu0 0
      %1937 = vmatpush2.bf16.msra.mxu0 0
      %1938 = vmatprep.subr.bf16.mxu0 0
      %1939 = vmatpush2.bf16.msra.mxu0 0
      %1940 = vmatprep.mubr.bf16.mxu0 0
      %1941 = vmatmul.mubr.bf16.gmra.mxu0 %v1858
      %v1942 = vpop.f32.mrf.mxu0
      %v1943 = vadd.f32 0.0, %v1942
      %v1944 = vpop.f32.mrf.mxu0
      %v1945 = vpop.f32.mrf.mxu0
      %v1946 = vadd.f32 0.0, %v1945
      %v1947 = vpop.f32.mrf.mxu0
      %1948 = vmatprep.mubr.bf16.mxu0 0
      %1949 = vmatmul.mubr.bf16.gmra.mxu0 %v1861
      %v1950 = vpop.f32.mrf.mxu0
      %v1951 = vadd.f32 0.0, %v1950
      %v1952 = vpop.f32.mrf.mxu0
      %v1953 = vpop.f32.mrf.mxu0
      %v1954 = vadd.f32 0.0, %v1953
      %v1955 = vpop.f32.mrf.mxu0
      %1956 = vmatprep.mubr.bf16.mxu0 0
      %1957 = vmatmul.mubr.bf16.gmra.mxu0 %v1864
      %v1958 = vpop.f32.mrf.mxu0
      %v1959 = vadd.f32 0.0, %v1958
      %v1960 = vpop.f32.mrf.mxu0
      %v1961 = vpop.f32.mrf.mxu0
      %v1962 = vadd.f32 0.0, %v1961
      %v1963 = vpop.f32.mrf.mxu0
      %1964 = vmatprep.mubr.bf16.mxu0 0
      %1965 = vmatmul.mubr.bf16.gmra.mxu0 %v1867
      %v1966 = vpop.f32.mrf.mxu0
      %v1967 = vadd.f32 0.0, %v1966
      %v1968 = vpop.f32.mrf.mxu0
      %v1969 = vpop.f32.mrf.mxu0
      %v1970 = vadd.f32 0.0, %v1969
      %v1971 = vpop.f32.mrf.mxu0
      %1972 = vmatprep.mubr.bf16.mxu0 0
      %1973 = vmatmul.mubr.bf16.gmra.mxu0 %v1870
      %v1974 = vpop.f32.mrf.mxu0
      %v1975 = vadd.f32 0.0, %v1974
      %v1976 = vpop.f32.mrf.mxu0
      %v1977 = vpop.f32.mrf.mxu0
      %v1978 = vadd.f32 0.0, %v1977
      %v1979 = vpop.f32.mrf.mxu0
      %1980 = vmatprep.mubr.bf16.mxu0 0
      %1981 = vmatmul.mubr.bf16.gmra.mxu0 %v1873
      %v1982 = vpop.f32.mrf.mxu0
      %v1983 = vadd.f32 0.0, %v1982
      %v1984 = vpop.f32.mrf.mxu0
      %v1985 = vpop.f32.mrf.mxu0
      %v1986 = vadd.f32 0.0, %v1985
      %v1987 = vpop.f32.mrf.mxu0
      %1988 = vmatprep.mubr.bf16.mxu0 0
      %1989 = vmatmul.mubr.bf16.gmra.mxu0 %v1876
      %v1990 = vpop.f32.mrf.mxu0
      %v1991 = vadd.f32 0.0, %v1990
      %v1992 = vpop.f32.mrf.mxu0
      %v1993 = vpop.f32.mrf.mxu0
      %v1994 = vadd.f32 0.0, %v1993
      %v1995 = vpop.f32.mrf.mxu0
      %1996 = vmatprep.mubr.bf16.mxu0 0
      %1997 = vmatmul.mubr.bf16.gmra.mxu0 %v1879
      %v1998 = vpop.f32.mrf.mxu0
      %v1999 = vadd.f32 0.0, %v1998
      %v2000 = vpop.f32.mrf.mxu0
      %v2001 = vpop.f32.mrf.mxu0
      %v2002 = vadd.f32 0.0, %v2001
      %v2003 = vpop.f32.mrf.mxu0
      %2004 = vmatprep.mubr.bf16.mxu0 0
      %2005 = vmatmul.mubr.bf16.gmra.mxu0 %v1882
      %v2006 = vpop.f32.mrf.mxu0
      %v2007 = vadd.f32 0.0, %v2006
      %v2008 = vpop.f32.mrf.mxu0
      %v2009 = vpop.f32.mrf.mxu0
      %v2010 = vadd.f32 0.0, %v2009
      %v2011 = vpop.f32.mrf.mxu0
      %2012 = vmatprep.mubr.bf16.mxu0 0
      %2013 = vmatmul.mubr.bf16.gmra.mxu0 %v1885
      %v2014 = vpop.f32.mrf.mxu0
      %v2015 = vadd.f32 0.0, %v2014
      %v2016 = vpop.f32.mrf.mxu0
      %v2017 = vpop.f32.mrf.mxu0
      %v2018 = vadd.f32 0.0, %v2017
      %v2019 = vpop.f32.mrf.mxu0
      %2020 = vmatprep.mubr.bf16.mxu0 0
      %2021 = vmatmul.mubr.bf16.gmra.mxu0 %v1888
      %v2022 = vpop.f32.mrf.mxu0
      %v2023 = vadd.f32 0.0, %v2022
      %v2024 = vpop.f32.mrf.mxu0
      %v2025 = vpop.f32.mrf.mxu0
      %v2026 = vadd.f32 0.0, %v2025
      %v2027 = vpop.f32.mrf.mxu0
      %2028 = vmatprep.mubr.bf16.mxu0 0
      %2029 = vmatmul.mubr.bf16.gmra.mxu0 %v1891
      %v2030 = vpop.f32.mrf.mxu0
      %v2031 = vadd.f32 0.0, %v2030
      %v2032 = vpop.f32.mrf.mxu0
      %v2033 = vpop.f32.mrf.mxu0
      %v2034 = vadd.f32 0.0, %v2033
      %v2035 = vpop.f32.mrf.mxu0
      %2036 = vmatprep.mubr.bf16.mxu0 0
      %2037 = vmatmul.mubr.bf16.gmra.mxu0 %v1894
      %v2038 = vpop.f32.mrf.mxu0
      %v2039 = vadd.f32 0.0, %v2038
      %v2040 = vpop.f32.mrf.mxu0
      %v2041 = vpop.f32.mrf.mxu0
      %v2042 = vadd.f32 0.0, %v2041
      %v2043 = vpop.f32.mrf.mxu0
      %2044 = vmatprep.mubr.bf16.mxu0 0
      %2045 = vmatmul.mubr.bf16.gmra.mxu0 %v1897
      %v2046 = vpop.f32.mrf.mxu0
      %v2047 = vadd.f32 0.0, %v2046
      %v2048 = vpop.f32.mrf.mxu0
      %v2049 = vpop.f32.mrf.mxu0
      %v2050 = vadd.f32 0.0, %v2049
      %v2051 = vpop.f32.mrf.mxu0
      %2052 = vmatprep.mubr.bf16.mxu0 0
      %2053 = vmatmul.mubr.bf16.gmra.mxu0 %v1900
      %v2054 = vpop.f32.mrf.mxu0
      %v2055 = vadd.f32 0.0, %v2054
      %v2056 = vpop.f32.mrf.mxu0
      %v2057 = vpop.f32.mrf.mxu0
      %v2058 = vadd.f32 0.0, %v2057
      %v2059 = vpop.f32.mrf.mxu0
      %2060 = vmatprep.mubr.bf16.mxu0 0
      %2061 = vmatmul.mubr.bf16.gmra.mxu0 %v1903
      %v2062 = vpop.f32.mrf.mxu0
      %v2063 = vadd.f32 0.0, %v2062
      %v2064 = vpop.f32.mrf.mxu0
      %v2065 = vpop.f32.mrf.mxu0
      %v2066 = vadd.f32 0.0, %v2065
      %v2067 = vpop.f32.mrf.mxu0
      %2068 = vdwg.mxu0
      %v2069 = vadd.f32 %v1775, %v1943
      %v2070 = vadd.f32 %v1776, %v1946
      %v2071 = vadd.f32 %v1777, %v1951
      %v2072 = vadd.f32 %v1778, %v1954
      %v2073 = vadd.f32 %v1779, %v1959
      %v2074 = vadd.f32 %v1780, %v1962
      %v2075 = vadd.f32 %v1781, %v1967
      %v2076 = vadd.f32 %v1782, %v1970
      %v2077 = vadd.f32 %v1783, %v1975
      %v2078 = vadd.f32 %v1784, %v1978
      %v2079 = vadd.f32 %v1785, %v1983
      %v2080 = vadd.f32 %v1786, %v1986
      %v2081 = vadd.f32 %v1787, %v1991
      %v2082 = vadd.f32 %v1788, %v1994
      %v2083 = vadd.f32 %v1789, %v1999
      %v2084 = vadd.f32 %v1790, %v2002
      %v2085 = vadd.f32 %v1791, %v2007
      %v2086 = vadd.f32 %v1792, %v2010
      %v2087 = vadd.f32 %v1793, %v2015
      %v2088 = vadd.f32 %v1794, %v2018
      %v2089 = vadd.f32 %v1795, %v2023
      %v2090 = vadd.f32 %v1796, %v2026
      %v2091 = vadd.f32 %v1797, %v2031
      %v2092 = vadd.f32 %v1798, %v2034
      %v2093 = vadd.f32 %v1799, %v2039
      %v2094 = vadd.f32 %v1800, %v2042
      %v2095 = vadd.f32 %v1801, %v2047
      %v2096 = vadd.f32 %v1802, %v2050
      %v2097 = vadd.f32 %v1803, %v2055
      %v2098 = vadd.f32 %v1804, %v2058
      %v2099 = vadd.f32 %v1805, %v2063
      %v2100 = vadd.f32 %v1806, %v2066
      %v2101 = vld [vmem:[#allocation2 + $0x12] sm:$0xff]
      %v2102 = vld [vmem:[#allocation2 + $0x1a] sm:$0xff]
      %v2103 = vld [vmem:[#allocation2 + $0x22] sm:$0xff]
      %v2104 = vld [vmem:[#allocation2 + $0x2a] sm:$0xff]
      %v2105 = vld [vmem:[#allocation2 + $0x32] sm:$0xff]
      %v2106 = vld [vmem:[#allocation2 + $0x3a] sm:$0xff]
      %v2107 = vld [vmem:[#allocation2 + $0x42] sm:$0xff]
      %v2108 = vld [vmem:[#allocation2 + $0x4a] sm:$0xff]
      %v2109 = vld [vmem:[#allocation2 + $0x52] sm:$0xff]
      %v2110 = vld [vmem:[#allocation2 + $0x5a] sm:$0xff]
      %v2111 = vld [vmem:[#allocation2 + $0x62] sm:$0xff]
      %v2112 = vld [vmem:[#allocation2 + $0x6a] sm:$0xff]
      %v2113 = vld [vmem:[#allocation2 + $0x72] sm:$0xff]
      %v2114 = vld [vmem:[#allocation2 + $0x7a] sm:$0xff]
      %v2115 = vld [vmem:[#allocation2 + $0x82] sm:$0xff]
      %v2116 = vld [vmem:[#allocation2 + $0x8a] sm:$0xff]
      %v2117 = vld [vmem:[#allocation2 + $0x92] sm:$0xff]
      %v2118 = vld [vmem:[#allocation2 + $0x9a] sm:$0xff]
      %v2119 = vld [vmem:[#allocation2 + $0xa2] sm:$0xff]
      %v2120 = vld [vmem:[#allocation2 + $0xaa] sm:$0xff]
      %v2121 = vld [vmem:[#allocation2 + $0xb2] sm:$0xff]
      %v2122 = vld [vmem:[#allocation2 + $0xba] sm:$0xff]
      %v2123 = vld [vmem:[#allocation2 + $0xc2] sm:$0xff]
      %v2124 = vld [vmem:[#allocation2 + $0xca] sm:$0xff]
      %v2125 = vld [vmem:[#allocation2 + $0xd2] sm:$0xff]
      %v2126 = vld [vmem:[#allocation2 + $0xda] sm:$0xff]
      %v2127 = vld [vmem:[#allocation2 + $0xe2] sm:$0xff]
      %v2128 = vld [vmem:[#allocation2 + $0xea] sm:$0xff]
      %v2129 = vld [vmem:[#allocation2 + $0xf2] sm:$0xff]
      %v2130 = vld [vmem:[#allocation2 + $0xfa] sm:$0xff]
      %v2131 = vld [vmem:[#allocation2 + $0x102] sm:$0xff]
      %v2132 = vld [vmem:[#allocation2 + $0x10a] sm:$0xff]
      %v2133 = vsel %vm1155, %v2101, 0.0
      %v2134 = vsel %vm1156, %v2102, 0.0
      %v2135 = vsel %vm1157, %v2103, 0.0
      %v2136 = vsel %vm1158, %v2104, 0.0
      %v2137 = vsel %vm1159, %v2105, 0.0
      %v2138 = vsel %vm1160, %v2106, 0.0
      %v2139 = vsel %vm1161, %v2107, 0.0
      %v2140 = vsel %vm1162, %v2108, 0.0
      %v2141 = vsel %vm1163, %v2109, 0.0
      %v2142 = vsel %vm1164, %v2110, 0.0
      %v2143 = vsel %vm1165, %v2111, 0.0
      %v2144 = vsel %vm1166, %v2112, 0.0
      %v2145 = vsel %vm1167, %v2113, 0.0
      %v2146 = vsel %vm1168, %v2114, 0.0
      %v2147 = vsel %vm1169, %v2115, 0.0
      %v2148 = vsel %vm1170, %v2116, 0.0
      %v2149 = vsel %vm1171, %v2117, 0.0
      %v2150 = vsel %vm1172, %v2118, 0.0
      %v2151 = vsel %vm1173, %v2119, 0.0
      %v2152 = vsel %vm1174, %v2120, 0.0
      %v2153 = vsel %vm1175, %v2121, 0.0
      %v2154 = vsel %vm1176, %v2122, 0.0
      %v2155 = vsel %vm1177, %v2123, 0.0
      %v2156 = vsel %vm1178, %v2124, 0.0
      %v2157 = vsel %vm1179, %v2125, 0.0
      %v2158 = vsel %vm1180, %v2126, 0.0
      %v2159 = vsel %vm1181, %v2127, 0.0
      %v2160 = vsel %vm1182, %v2128, 0.0
      %v2161 = vsel %vm1183, %v2129, 0.0
      %v2162 = vsel %vm1184, %v2130, 0.0
      %v2163 = vsel %vm1185, %v2131, 0.0
      %v2164 = vsel %vm1186, %v2132, 0.0
      %v2165 = vpack.c.bf16 %v2134, %v2133
      %v2166 = vpack.c.bf16 %v2136, %v2135
      %v2167 = vpack.c.bf16 %v2138, %v2137
      %v2168 = vpack.c.bf16 %v2140, %v2139
      %v2169 = vpack.c.bf16 %v2142, %v2141
      %v2170 = vpack.c.bf16 %v2144, %v2143
      %v2171 = vpack.c.bf16 %v2146, %v2145
      %v2172 = vpack.c.bf16 %v2148, %v2147
      %v2173 = vpack.c.bf16 %v2150, %v2149
      %v2174 = vpack.c.bf16 %v2152, %v2151
      %v2175 = vpack.c.bf16 %v2154, %v2153
      %v2176 = vpack.c.bf16 %v2156, %v2155
      %v2177 = vpack.c.bf16 %v2158, %v2157
      %v2178 = vpack.c.bf16 %v2160, %v2159
      %v2179 = vpack.c.bf16 %v2162, %v2161
      %v2180 = vpack.c.bf16 %v2164, %v2163
      %s2181 = scalar_lea.vmem %s1, 10
      %v2182 = vld [vmem:[%s2181] sm:$0x3]
      %v2184 = vsel %vm300, %v2165, 0
      %v2187 = vsel %vm300, %v2166, 0
      %v2190 = vsel %vm300, %v2167, 0
      %v2193 = vsel %vm300, %v2168, 0
      %v2196 = vsel %vm300, %v2169, 0
      %v2199 = vsel %vm300, %v2170, 0
      %v2202 = vsel %vm300, %v2171, 0
      %v2205 = vsel %vm300, %v2172, 0
      %v2208 = vsel %vm300, %v2173, 0
      %v2211 = vsel %vm300, %v2174, 0
      %v2214 = vsel %vm300, %v2175, 0
      %v2217 = vsel %vm300, %v2176, 0
      %v2220 = vsel %vm300, %v2177, 0
      %v2223 = vsel %vm300, %v2178, 0
      %v2226 = vsel %vm300, %v2179, 0
      %v2229 = vsel %vm300, %v2180, 0
      %v2232 = vand.u32 %v2182, %v714
      %2234 = vmatprep.subr.bf16.mxu0 0
      %2235 = vmatpush1.bf16.msra.mxu0 0
      %2236 = vmatprep.subr.bf16.mxu0 0
      %2237 = vmatpush1.bf16.msra.mxu0 0
      %2238 = vmatprep.subr.bf16.mxu0 0
      %2239 = vmatpush1.bf16.msra.mxu0 0
      %2240 = vmatprep.subr.bf16.mxu0 0
      %2241 = vmatpush1.bf16.msra.mxu0 0
      %2242 = vmatprep.subr.bf16.mxu0 0
      %2243 = vmatpush1.bf16.msra.mxu0 0
      %2244 = vmatprep.subr.bf16.mxu0 0
      %2245 = vmatpush1.bf16.msra.mxu0 0
      %2246 = vmatprep.subr.bf16.mxu0 0
      %2247 = vmatpush1.bf16.msra.mxu0 0
      %2248 = vmatprep.subr.bf16.mxu0 0
      %2249 = vmatpush1.bf16.msra.mxu0 %v2232
      %2250 = vmatprep.subr.bf16.mxu0 0
      %2251 = vmatpush2.bf16.msra.mxu0 0
      %2252 = vmatprep.subr.bf16.mxu0 0
      %2253 = vmatpush2.bf16.msra.mxu0 0
      %2254 = vmatprep.subr.bf16.mxu0 0
      %2255 = vmatpush2.bf16.msra.mxu0 0
      %2256 = vmatprep.subr.bf16.mxu0 0
      %2257 = vmatpush2.bf16.msra.mxu0 0
      %2258 = vmatprep.subr.bf16.mxu0 0
      %2259 = vmatpush2.bf16.msra.mxu0 0
      %2260 = vmatprep.subr.bf16.mxu0 0
      %2261 = vmatpush2.bf16.msra.mxu0 0
      %2262 = vmatprep.subr.bf16.mxu0 0
      %2263 = vmatpush2.bf16.msra.mxu0 0
      %2264 = vmatprep.subr.bf16.mxu0 0
      %2265 = vmatpush2.bf16.msra.mxu0 0
      %2266 = vmatprep.mubr.bf16.mxu0 0
      %2267 = vmatmul.mubr.bf16.gmra.mxu0 %v2184
      %v2268 = vpop.f32.mrf.mxu0
      %v2269 = vadd.f32 0.0, %v2268
      %v2270 = vpop.f32.mrf.mxu0
      %v2271 = vpop.f32.mrf.mxu0
      %v2272 = vadd.f32 0.0, %v2271
      %v2273 = vpop.f32.mrf.mxu0
      %2274 = vmatprep.mubr.bf16.mxu0 0
      %2275 = vmatmul.mubr.bf16.gmra.mxu0 %v2187
      %v2276 = vpop.f32.mrf.mxu0
      %v2277 = vadd.f32 0.0, %v2276
      %v2278 = vpop.f32.mrf.mxu0
      %v2279 = vpop.f32.mrf.mxu0
      %v2280 = vadd.f32 0.0, %v2279
      %v2281 = vpop.f32.mrf.mxu0
      %2282 = vmatprep.mubr.bf16.mxu0 0
      %2283 = vmatmul.mubr.bf16.gmra.mxu0 %v2190
      %v2284 = vpop.f32.mrf.mxu0
      %v2285 = vadd.f32 0.0, %v2284
      %v2286 = vpop.f32.mrf.mxu0
      %v2287 = vpop.f32.mrf.mxu0
      %v2288 = vadd.f32 0.0, %v2287
      %v2289 = vpop.f32.mrf.mxu0
      %2290 = vmatprep.mubr.bf16.mxu0 0
      %2291 = vmatmul.mubr.bf16.gmra.mxu0 %v2193
      %v2292 = vpop.f32.mrf.mxu0
      %v2293 = vadd.f32 0.0, %v2292
      %v2294 = vpop.f32.mrf.mxu0
      %v2295 = vpop.f32.mrf.mxu0
      %v2296 = vadd.f32 0.0, %v2295
      %v2297 = vpop.f32.mrf.mxu0
      %2298 = vmatprep.mubr.bf16.mxu0 0
      %2299 = vmatmul.mubr.bf16.gmra.mxu0 %v2196
      %v2300 = vpop.f32.mrf.mxu0
      %v2301 = vadd.f32 0.0, %v2300
      %v2302 = vpop.f32.mrf.mxu0
      %v2303 = vpop.f32.mrf.mxu0
      %v2304 = vadd.f32 0.0, %v2303
      %v2305 = vpop.f32.mrf.mxu0
      %2306 = vmatprep.mubr.bf16.mxu0 0
      %2307 = vmatmul.mubr.bf16.gmra.mxu0 %v2199
      %v2308 = vpop.f32.mrf.mxu0
      %v2309 = vadd.f32 0.0, %v2308
      %v2310 = vpop.f32.mrf.mxu0
      %v2311 = vpop.f32.mrf.mxu0
      %v2312 = vadd.f32 0.0, %v2311
      %v2313 = vpop.f32.mrf.mxu0
      %2314 = vmatprep.mubr.bf16.mxu0 0
      %2315 = vmatmul.mubr.bf16.gmra.mxu0 %v2202
      %v2316 = vpop.f32.mrf.mxu0
      %v2317 = vadd.f32 0.0, %v2316
      %v2318 = vpop.f32.mrf.mxu0
      %v2319 = vpop.f32.mrf.mxu0
      %v2320 = vadd.f32 0.0, %v2319
      %v2321 = vpop.f32.mrf.mxu0
      %2322 = vmatprep.mubr.bf16.mxu0 0
      %2323 = vmatmul.mubr.bf16.gmra.mxu0 %v2205
      %v2324 = vpop.f32.mrf.mxu0
      %v2325 = vadd.f32 0.0, %v2324
      %v2326 = vpop.f32.mrf.mxu0
      %v2327 = vpop.f32.mrf.mxu0
      %v2328 = vadd.f32 0.0, %v2327
      %v2329 = vpop.f32.mrf.mxu0
      %2330 = vmatprep.mubr.bf16.mxu0 0
      %2331 = vmatmul.mubr.bf16.gmra.mxu0 %v2208
      %v2332 = vpop.f32.mrf.mxu0
      %v2333 = vadd.f32 0.0, %v2332
      %v2334 = vpop.f32.mrf.mxu0
      %v2335 = vpop.f32.mrf.mxu0
      %v2336 = vadd.f32 0.0, %v2335
      %v2337 = vpop.f32.mrf.mxu0
      %2338 = vmatprep.mubr.bf16.mxu0 0
      %2339 = vmatmul.mubr.bf16.gmra.mxu0 %v2211
      %v2340 = vpop.f32.mrf.mxu0
      %v2341 = vadd.f32 0.0, %v2340
      %v2342 = vpop.f32.mrf.mxu0
      %v2343 = vpop.f32.mrf.mxu0
      %v2344 = vadd.f32 0.0, %v2343
      %v2345 = vpop.f32.mrf.mxu0
      %2346 = vmatprep.mubr.bf16.mxu0 0
      %2347 = vmatmul.mubr.bf16.gmra.mxu0 %v2214
      %v2348 = vpop.f32.mrf.mxu0
      %v2349 = vadd.f32 0.0, %v2348
      %v2350 = vpop.f32.mrf.mxu0
      %v2351 = vpop.f32.mrf.mxu0
      %v2352 = vadd.f32 0.0, %v2351
      %v2353 = vpop.f32.mrf.mxu0
      %2354 = vmatprep.mubr.bf16.mxu0 0
      %2355 = vmatmul.mubr.bf16.gmra.mxu0 %v2217
      %v2356 = vpop.f32.mrf.mxu0
      %v2357 = vadd.f32 0.0, %v2356
      %v2358 = vpop.f32.mrf.mxu0
      %v2359 = vpop.f32.mrf.mxu0
      %v2360 = vadd.f32 0.0, %v2359
      %v2361 = vpop.f32.mrf.mxu0
      %2362 = vmatprep.mubr.bf16.mxu0 0
      %2363 = vmatmul.mubr.bf16.gmra.mxu0 %v2220
      %v2364 = vpop.f32.mrf.mxu0
      %v2365 = vadd.f32 0.0, %v2364
      %v2366 = vpop.f32.mrf.mxu0
      %v2367 = vpop.f32.mrf.mxu0
      %v2368 = vadd.f32 0.0, %v2367
      %v2369 = vpop.f32.mrf.mxu0
      %2370 = vmatprep.mubr.bf16.mxu0 0
      %2371 = vmatmul.mubr.bf16.gmra.mxu0 %v2223
      %v2372 = vpop.f32.mrf.mxu0
      %v2373 = vadd.f32 0.0, %v2372
      %v2374 = vpop.f32.mrf.mxu0
      %v2375 = vpop.f32.mrf.mxu0
      %v2376 = vadd.f32 0.0, %v2375
      %v2377 = vpop.f32.mrf.mxu0
      %2378 = vmatprep.mubr.bf16.mxu0 0
      %2379 = vmatmul.mubr.bf16.gmra.mxu0 %v2226
      %v2380 = vpop.f32.mrf.mxu0
      %v2381 = vadd.f32 0.0, %v2380
      %v2382 = vpop.f32.mrf.mxu0
      %v2383 = vpop.f32.mrf.mxu0
      %v2384 = vadd.f32 0.0, %v2383
      %v2385 = vpop.f32.mrf.mxu0
      %2386 = vmatprep.mubr.bf16.mxu0 0
      %2387 = vmatmul.mubr.bf16.gmra.mxu0 %v2229
      %v2388 = vpop.f32.mrf.mxu0
      %v2389 = vadd.f32 0.0, %v2388
      %v2390 = vpop.f32.mrf.mxu0
      %v2391 = vpop.f32.mrf.mxu0
      %v2392 = vadd.f32 0.0, %v2391
      %v2393 = vpop.f32.mrf.mxu0
      %2394 = vdwg.mxu0
      %v2395 = vadd.f32 %v2069, %v2269
      %v2396 = vadd.f32 %v2070, %v2272
      %v2397 = vadd.f32 %v2071, %v2277
      %v2398 = vadd.f32 %v2072, %v2280
      %v2399 = vadd.f32 %v2073, %v2285
      %v2400 = vadd.f32 %v2074, %v2288
      %v2401 = vadd.f32 %v2075, %v2293
      %v2402 = vadd.f32 %v2076, %v2296
      %v2403 = vadd.f32 %v2077, %v2301
      %v2404 = vadd.f32 %v2078, %v2304
      %v2405 = vadd.f32 %v2079, %v2309
      %v2406 = vadd.f32 %v2080, %v2312
      %v2407 = vadd.f32 %v2081, %v2317
      %v2408 = vadd.f32 %v2082, %v2320
      %v2409 = vadd.f32 %v2083, %v2325
      %v2410 = vadd.f32 %v2084, %v2328
      %v2411 = vadd.f32 %v2085, %v2333
      %v2412 = vadd.f32 %v2086, %v2336
      %v2413 = vadd.f32 %v2087, %v2341
      %v2414 = vadd.f32 %v2088, %v2344
      %v2415 = vadd.f32 %v2089, %v2349
      %v2416 = vadd.f32 %v2090, %v2352
      %v2417 = vadd.f32 %v2091, %v2357
      %v2418 = vadd.f32 %v2092, %v2360
      %v2419 = vadd.f32 %v2093, %v2365
      %v2420 = vadd.f32 %v2094, %v2368
      %v2421 = vadd.f32 %v2095, %v2373
      %v2422 = vadd.f32 %v2096, %v2376
      %v2423 = vadd.f32 %v2097, %v2381
      %v2424 = vadd.f32 %v2098, %v2384
      %v2425 = vadd.f32 %v2099, %v2389
      %v2426 = vadd.f32 %v2100, %v2392
      %v2427 = vld [vmem:[#allocation2 + $0x20] sm:$0xff]
      %v2428 = vld [vmem:[#allocation2 + $0x28] sm:$0xff]
      %v2429 = vld [vmem:[#allocation2 + $0x30] sm:$0xff]
      %v2430 = vld [vmem:[#allocation2 + $0x38] sm:$0xff]
      %v2431 = vld [vmem:[#allocation2 + $0x40] sm:$0xff]
      %v2432 = vld [vmem:[#allocation2 + $0x48] sm:$0xff]
      %v2433 = vld [vmem:[#allocation2 + $0x50] sm:$0xff]
      %v2434 = vld [vmem:[#allocation2 + $0x58] sm:$0xff]
      %v2435 = vld [vmem:[#allocation2 + $0x60] sm:$0xff]
      %v2436 = vld [vmem:[#allocation2 + $0x68] sm:$0xff]
      %v2437 = vld [vmem:[#allocation2 + $0x70] sm:$0xff]
      %v2438 = vld [vmem:[#allocation2 + $0x78] sm:$0xff]
      %v2439 = vld [vmem:[#allocation2 + $0x80] sm:$0xff]
      %v2440 = vld [vmem:[#allocation2 + $0x88] sm:$0xff]
      %v2441 = vld [vmem:[#allocation2 + $0x90] sm:$0xff]
      %v2442 = vld [vmem:[#allocation2 + $0x98] sm:$0xff]
      %v2443 = vld [vmem:[#allocation2 + $0xa0] sm:$0xff]
      %v2444 = vld [vmem:[#allocation2 + $0xa8] sm:$0xff]
      %v2445 = vld [vmem:[#allocation2 + $0xb0] sm:$0xff]
      %v2446 = vld [vmem:[#allocation2 + $0xb8] sm:$0xff]
      %v2447 = vld [vmem:[#allocation2 + $0xc0] sm:$0xff]
      %v2448 = vld [vmem:[#allocation2 + $0xc8] sm:$0xff]
      %v2449 = vld [vmem:[#allocation2 + $0xd0] sm:$0xff]
      %v2450 = vld [vmem:[#allocation2 + $0xd8] sm:$0xff]
      %v2451 = vld [vmem:[#allocation2 + $0xe0] sm:$0xff]
      %v2452 = vld [vmem:[#allocation2 + $0xe8] sm:$0xff]
      %v2453 = vld [vmem:[#allocation2 + $0xf0] sm:$0xff]
      %v2454 = vld [vmem:[#allocation2 + $0xf8] sm:$0xff]
      %v2455 = vld [vmem:[#allocation2 + $0x100] sm:$0xff]
      %v2456 = vld [vmem:[#allocation2 + $0x108] sm:$0xff]
      %v2457 = vld [vmem:[#allocation2 + $0x110] sm:$0xff]
      %v2458 = vld [vmem:[#allocation2 + $0x118] sm:$0xff]
      %v2459 = vsel %vm532, %v2427, 0.0
      %v2460 = vsel %vm533, %v2428, 0.0
      %v2461 = vsel %vm534, %v2429, 0.0
      %v2462 = vsel %vm535, %v2430, 0.0
      %v2463 = vsel %vm536, %v2431, 0.0
      %v2464 = vsel %vm537, %v2432, 0.0
      %v2465 = vsel %vm538, %v2433, 0.0
      %v2466 = vsel %vm539, %v2434, 0.0
      %v2467 = vsel %vm540, %v2435, 0.0
      %v2468 = vsel %vm541, %v2436, 0.0
      %v2469 = vsel %vm542, %v2437, 0.0
      %v2470 = vsel %vm543, %v2438, 0.0
      %v2471 = vsel %vm544, %v2439, 0.0
      %v2472 = vsel %vm545, %v2440, 0.0
      %v2473 = vsel %vm546, %v2441, 0.0
      %v2474 = vsel %vm547, %v2442, 0.0
      %v2475 = vsel %vm548, %v2443, 0.0
      %v2476 = vsel %vm549, %v2444, 0.0
      %v2477 = vsel %vm550, %v2445, 0.0
      %v2478 = vsel %vm551, %v2446, 0.0
      %v2479 = vsel %vm552, %v2447, 0.0
      %v2480 = vsel %vm553, %v2448, 0.0
      %v2481 = vsel %vm554, %v2449, 0.0
      %v2482 = vsel %vm555, %v2450, 0.0
      %v2483 = vsel %vm556, %v2451, 0.0
      %v2484 = vsel %vm557, %v2452, 0.0
      %v2485 = vsel %vm558, %v2453, 0.0
      %v2486 = vsel %vm559, %v2454, 0.0
      %v2487 = vsel %vm560, %v2455, 0.0
      %v2488 = vsel %vm561, %v2456, 0.0
      %v2489 = vsel %vm562, %v2457, 0.0
      %v2490 = vsel %vm563, %v2458, 0.0
      %v2491 = vpack.c.bf16 %v2460, %v2459
      %v2492 = vpack.c.bf16 %v2462, %v2461
      %v2493 = vpack.c.bf16 %v2464, %v2463
      %v2494 = vpack.c.bf16 %v2466, %v2465
      %v2495 = vpack.c.bf16 %v2468, %v2467
      %v2496 = vpack.c.bf16 %v2470, %v2469
      %v2497 = vpack.c.bf16 %v2472, %v2471
      %v2498 = vpack.c.bf16 %v2474, %v2473
      %v2499 = vpack.c.bf16 %v2476, %v2475
      %v2500 = vpack.c.bf16 %v2478, %v2477
      %v2501 = vpack.c.bf16 %v2480, %v2479
      %v2502 = vpack.c.bf16 %v2482, %v2481
      %v2503 = vpack.c.bf16 %v2484, %v2483
      %v2504 = vpack.c.bf16 %v2486, %v2485
      %v2505 = vpack.c.bf16 %v2488, %v2487
      %v2506 = vpack.c.bf16 %v2490, %v2489
      %s2507 = scalar_lea.vmem %s1, 12
      %v2508 = vld [vmem:[%s2507] sm:$0x3]
      %v2510 = vsel %vm300, %v2491, 0
      %v2513 = vsel %vm300, %v2492, 0
      %v2516 = vsel %vm300, %v2493, 0
      %v2519 = vsel %vm300, %v2494, 0
      %v2522 = vsel %vm300, %v2495, 0
      %v2525 = vsel %vm300, %v2496, 0
      %v2528 = vsel %vm300, %v2497, 0
      %v2531 = vsel %vm300, %v2498, 0
      %v2534 = vsel %vm300, %v2499, 0
      %v2537 = vsel %vm300, %v2500, 0
      %v2540 = vsel %vm300, %v2501, 0
      %v2543 = vsel %vm300, %v2502, 0
      %v2546 = vsel %vm300, %v2503, 0
      %v2549 = vsel %vm300, %v2504, 0
      %v2552 = vsel %vm300, %v2505, 0
      %v2555 = vsel %vm300, %v2506, 0
      %v2558 = vand.u32 %v2508, %v714
      %2560 = vmatprep.subr.bf16.mxu0 0
      %2561 = vmatpush1.bf16.msra.mxu0 0
      %2562 = vmatprep.subr.bf16.mxu0 0
      %2563 = vmatpush1.bf16.msra.mxu0 0
      %2564 = vmatprep.subr.bf16.mxu0 0
      %2565 = vmatpush1.bf16.msra.mxu0 0
      %2566 = vmatprep.subr.bf16.mxu0 0
      %2567 = vmatpush1.bf16.msra.mxu0 0
      %2568 = vmatprep.subr.bf16.mxu0 0
      %2569 = vmatpush1.bf16.msra.mxu0 0
      %2570 = vmatprep.subr.bf16.mxu0 0
      %2571 = vmatpush1.bf16.msra.mxu0 0
      %2572 = vmatprep.subr.bf16.mxu0 0
      %2573 = vmatpush1.bf16.msra.mxu0 0
      %2574 = vmatprep.subr.bf16.mxu0 0
      %2575 = vmatpush1.bf16.msra.mxu0 %v2558
      %2576 = vmatprep.subr.bf16.mxu0 0
      %2577 = vmatpush2.bf16.msra.mxu0 0
      %2578 = vmatprep.subr.bf16.mxu0 0
      %2579 = vmatpush2.bf16.msra.mxu0 0
      %2580 = vmatprep.subr.bf16.mxu0 0
      %2581 = vmatpush2.bf16.msra.mxu0 0
      %2582 = vmatprep.subr.bf16.mxu0 0
      %2583 = vmatpush2.bf16.msra.mxu0 0
      %2584 = vmatprep.subr.bf16.mxu0 0
      %2585 = vmatpush2.bf16.msra.mxu0 0
      %2586 = vmatprep.subr.bf16.mxu0 0
      %2587 = vmatpush2.bf16.msra.mxu0 0
      %2588 = vmatprep.subr.bf16.mxu0 0
      %2589 = vmatpush2.bf16.msra.mxu0 0
      %2590 = vmatprep.subr.bf16.mxu0 0
      %2591 = vmatpush2.bf16.msra.mxu0 0
      %2592 = vmatprep.mubr.bf16.mxu0 0
      %2593 = vmatmul.mubr.bf16.gmra.mxu0 %v2510
      %v2594 = vpop.f32.mrf.mxu0
      %v2595 = vadd.f32 0.0, %v2594
      %v2596 = vpop.f32.mrf.mxu0
      %v2597 = vpop.f32.mrf.mxu0
      %v2598 = vadd.f32 0.0, %v2597
      %v2599 = vpop.f32.mrf.mxu0
      %2600 = vmatprep.mubr.bf16.mxu0 0
      %2601 = vmatmul.mubr.bf16.gmra.mxu0 %v2513
      %v2602 = vpop.f32.mrf.mxu0
      %v2603 = vadd.f32 0.0, %v2602
      %v2604 = vpop.f32.mrf.mxu0
      %v2605 = vpop.f32.mrf.mxu0
      %v2606 = vadd.f32 0.0, %v2605
      %v2607 = vpop.f32.mrf.mxu0
      %2608 = vmatprep.mubr.bf16.mxu0 0
      %2609 = vmatmul.mubr.bf16.gmra.mxu0 %v2516
      %v2610 = vpop.f32.mrf.mxu0
      %v2611 = vadd.f32 0.0, %v2610
      %v2612 = vpop.f32.mrf.mxu0
      %v2613 = vpop.f32.mrf.mxu0
      %v2614 = vadd.f32 0.0, %v2613
      %v2615 = vpop.f32.mrf.mxu0
      %2616 = vmatprep.mubr.bf16.mxu0 0
      %2617 = vmatmul.mubr.bf16.gmra.mxu0 %v2519
      %v2618 = vpop.f32.mrf.mxu0
      %v2619 = vadd.f32 0.0, %v2618
      %v2620 = vpop.f32.mrf.mxu0
      %v2621 = vpop.f32.mrf.mxu0
      %v2622 = vadd.f32 0.0, %v2621
      %v2623 = vpop.f32.mrf.mxu0
      %2624 = vmatprep.mubr.bf16.mxu0 0
      %2625 = vmatmul.mubr.bf16.gmra.mxu0 %v2522
      %v2626 = vpop.f32.mrf.mxu0
      %v2627 = vadd.f32 0.0, %v2626
      %v2628 = vpop.f32.mrf.mxu0
      %v2629 = vpop.f32.mrf.mxu0
      %v2630 = vadd.f32 0.0, %v2629
      %v2631 = vpop.f32.mrf.mxu0
      %2632 = vmatprep.mubr.bf16.mxu0 0
      %2633 = vmatmul.mubr.bf16.gmra.mxu0 %v2525
      %v2634 = vpop.f32.mrf.mxu0
      %v2635 = vadd.f32 0.0, %v2634
      %v2636 = vpop.f32.mrf.mxu0
      %v2637 = vpop.f32.mrf.mxu0
      %v2638 = vadd.f32 0.0, %v2637
      %v2639 = vpop.f32.mrf.mxu0
      %2640 = vmatprep.mubr.bf16.mxu0 0
      %2641 = vmatmul.mubr.bf16.gmra.mxu0 %v2528
      %v2642 = vpop.f32.mrf.mxu0
      %v2643 = vadd.f32 0.0, %v2642
      %v2644 = vpop.f32.mrf.mxu0
      %v2645 = vpop.f32.mrf.mxu0
      %v2646 = vadd.f32 0.0, %v2645
      %v2647 = vpop.f32.mrf.mxu0
      %2648 = vmatprep.mubr.bf16.mxu0 0
      %2649 = vmatmul.mubr.bf16.gmra.mxu0 %v2531
      %v2650 = vpop.f32.mrf.mxu0
      %v2651 = vadd.f32 0.0, %v2650
      %v2652 = vpop.f32.mrf.mxu0
      %v2653 = vpop.f32.mrf.mxu0
      %v2654 = vadd.f32 0.0, %v2653
      %v2655 = vpop.f32.mrf.mxu0
      %2656 = vmatprep.mubr.bf16.mxu0 0
      %2657 = vmatmul.mubr.bf16.gmra.mxu0 %v2534
      %v2658 = vpop.f32.mrf.mxu0
      %v2659 = vadd.f32 0.0, %v2658
      %v2660 = vpop.f32.mrf.mxu0
      %v2661 = vpop.f32.mrf.mxu0
      %v2662 = vadd.f32 0.0, %v2661
      %v2663 = vpop.f32.mrf.mxu0
      %2664 = vmatprep.mubr.bf16.mxu0 0
      %2665 = vmatmul.mubr.bf16.gmra.mxu0 %v2537
      %v2666 = vpop.f32.mrf.mxu0
      %v2667 = vadd.f32 0.0, %v2666
      %v2668 = vpop.f32.mrf.mxu0
      %v2669 = vpop.f32.mrf.mxu0
      %v2670 = vadd.f32 0.0, %v2669
      %v2671 = vpop.f32.mrf.mxu0
      %2672 = vmatprep.mubr.bf16.mxu0 0
      %2673 = vmatmul.mubr.bf16.gmra.mxu0 %v2540
      %v2674 = vpop.f32.mrf.mxu0
      %v2675 = vadd.f32 0.0, %v2674
      %v2676 = vpop.f32.mrf.mxu0
      %v2677 = vpop.f32.mrf.mxu0
      %v2678 = vadd.f32 0.0, %v2677
      %v2679 = vpop.f32.mrf.mxu0
      %2680 = vmatprep.mubr.bf16.mxu0 0
      %2681 = vmatmul.mubr.bf16.gmra.mxu0 %v2543
      %v2682 = vpop.f32.mrf.mxu0
      %v2683 = vadd.f32 0.0, %v2682
      %v2684 = vpop.f32.mrf.mxu0
      %v2685 = vpop.f32.mrf.mxu0
      %v2686 = vadd.f32 0.0, %v2685
      %v2687 = vpop.f32.mrf.mxu0
      %2688 = vmatprep.mubr.bf16.mxu0 0
      %2689 = vmatmul.mubr.bf16.gmra.mxu0 %v2546
      %v2690 = vpop.f32.mrf.mxu0
      %v2691 = vadd.f32 0.0, %v2690
      %v2692 = vpop.f32.mrf.mxu0
      %v2693 = vpop.f32.mrf.mxu0
      %v2694 = vadd.f32 0.0, %v2693
      %v2695 = vpop.f32.mrf.mxu0
      %2696 = vmatprep.mubr.bf16.mxu0 0
      %2697 = vmatmul.mubr.bf16.gmra.mxu0 %v2549
      %v2698 = vpop.f32.mrf.mxu0
      %v2699 = vadd.f32 0.0, %v2698
      %v2700 = vpop.f32.mrf.mxu0
      %v2701 = vpop.f32.mrf.mxu0
      %v2702 = vadd.f32 0.0, %v2701
      %v2703 = vpop.f32.mrf.mxu0
      %2704 = vmatprep.mubr.bf16.mxu0 0
      %2705 = vmatmul.mubr.bf16.gmra.mxu0 %v2552
      %v2706 = vpop.f32.mrf.mxu0
      %v2707 = vadd.f32 0.0, %v2706
      %v2708 = vpop.f32.mrf.mxu0
      %v2709 = vpop.f32.mrf.mxu0
      %v2710 = vadd.f32 0.0, %v2709
      %v2711 = vpop.f32.mrf.mxu0
      %2712 = vmatprep.mubr.bf16.mxu0 0
      %2713 = vmatmul.mubr.bf16.gmra.mxu0 %v2555
      %v2714 = vpop.f32.mrf.mxu0
      %v2715 = vadd.f32 0.0, %v2714
      %v2716 = vpop.f32.mrf.mxu0
      %v2717 = vpop.f32.mrf.mxu0
      %v2718 = vadd.f32 0.0, %v2717
      %v2719 = vpop.f32.mrf.mxu0
      %2720 = vdwg.mxu0
      %v2721 = vadd.f32 %v2395, %v2595
      %v2722 = vadd.f32 %v2396, %v2598
      %v2723 = vadd.f32 %v2397, %v2603
      %v2724 = vadd.f32 %v2398, %v2606
      %v2725 = vadd.f32 %v2399, %v2611
      %v2726 = vadd.f32 %v2400, %v2614
      %v2727 = vadd.f32 %v2401, %v2619
      %v2728 = vadd.f32 %v2402, %v2622
      %v2729 = vadd.f32 %v2403, %v2627
      %v2730 = vadd.f32 %v2404, %v2630
      %v2731 = vadd.f32 %v2405, %v2635
      %v2732 = vadd.f32 %v2406, %v2638
      %v2733 = vadd.f32 %v2407, %v2643
      %v2734 = vadd.f32 %v2408, %v2646
      %v2735 = vadd.f32 %v2409, %v2651
      %v2736 = vadd.f32 %v2410, %v2654
      %v2737 = vadd.f32 %v2411, %v2659
      %v2738 = vadd.f32 %v2412, %v2662
      %v2739 = vadd.f32 %v2413, %v2667
      %v2740 = vadd.f32 %v2414, %v2670
      %v2741 = vadd.f32 %v2415, %v2675
      %v2742 = vadd.f32 %v2416, %v2678
      %v2743 = vadd.f32 %v2417, %v2683
      %v2744 = vadd.f32 %v2418, %v2686
      %v2745 = vadd.f32 %v2419, %v2691
      %v2746 = vadd.f32 %v2420, %v2694
      %v2747 = vadd.f32 %v2421, %v2699
      %v2748 = vadd.f32 %v2422, %v2702
      %v2749 = vadd.f32 %v2423, %v2707
      %v2750 = vadd.f32 %v2424, %v2710
      %v2751 = vadd.f32 %v2425, %v2715
      %v2752 = vadd.f32 %v2426, %v2718
      %v2753 = vld [vmem:[#allocation2 + $0x21] sm:$0xff]
      %v2754 = vld [vmem:[#allocation2 + $0x29] sm:$0xff]
      %v2755 = vld [vmem:[#allocation2 + $0x31] sm:$0xff]
      %v2756 = vld [vmem:[#allocation2 + $0x39] sm:$0xff]
      %v2757 = vld [vmem:[#allocation2 + $0x41] sm:$0xff]
      %v2758 = vld [vmem:[#allocation2 + $0x49] sm:$0xff]
      %v2759 = vld [vmem:[#allocation2 + $0x51] sm:$0xff]
      %v2760 = vld [vmem:[#allocation2 + $0x59] sm:$0xff]
      %v2761 = vld [vmem:[#allocation2 + $0x61] sm:$0xff]
      %v2762 = vld [vmem:[#allocation2 + $0x69] sm:$0xff]
      %v2763 = vld [vmem:[#allocation2 + $0x71] sm:$0xff]
      %v2764 = vld [vmem:[#allocation2 + $0x79] sm:$0xff]
      %v2765 = vld [vmem:[#allocation2 + $0x81] sm:$0xff]
      %v2766 = vld [vmem:[#allocation2 + $0x89] sm:$0xff]
      %v2767 = vld [vmem:[#allocation2 + $0x91] sm:$0xff]
      %v2768 = vld [vmem:[#allocation2 + $0x99] sm:$0xff]
      %v2769 = vld [vmem:[#allocation2 + $0xa1] sm:$0xff]
      %v2770 = vld [vmem:[#allocation2 + $0xa9] sm:$0xff]
      %v2771 = vld [vmem:[#allocation2 + $0xb1] sm:$0xff]
      %v2772 = vld [vmem:[#allocation2 + $0xb9] sm:$0xff]
      %v2773 = vld [vmem:[#allocation2 + $0xc1] sm:$0xff]
      %v2774 = vld [vmem:[#allocation2 + $0xc9] sm:$0xff]
      %v2775 = vld [vmem:[#allocation2 + $0xd1] sm:$0xff]
      %v2776 = vld [vmem:[#allocation2 + $0xd9] sm:$0xff]
      %v2777 = vld [vmem:[#allocation2 + $0xe1] sm:$0xff]
      %v2778 = vld [vmem:[#allocation2 + $0xe9] sm:$0xff]
      %v2779 = vld [vmem:[#allocation2 + $0xf1] sm:$0xff]
      %v2780 = vld [vmem:[#allocation2 + $0xf9] sm:$0xff]
      %v2781 = vld [vmem:[#allocation2 + $0x101] sm:$0xff]
      %v2782 = vld [vmem:[#allocation2 + $0x109] sm:$0xff]
      %v2783 = vld [vmem:[#allocation2 + $0x111] sm:$0xff]
      %v2784 = vld [vmem:[#allocation2 + $0x119] sm:$0xff]
      %v2785 = vpack.c.bf16 %v2754, %v2753
      %v2786 = vpack.c.bf16 %v2756, %v2755
      %v2787 = vpack.c.bf16 %v2758, %v2757
      %v2788 = vpack.c.bf16 %v2760, %v2759
      %v2789 = vpack.c.bf16 %v2762, %v2761
      %v2790 = vpack.c.bf16 %v2764, %v2763
      %v2791 = vpack.c.bf16 %v2766, %v2765
      %v2792 = vpack.c.bf16 %v2768, %v2767
      %v2793 = vpack.c.bf16 %v2770, %v2769
      %v2794 = vpack.c.bf16 %v2772, %v2771
      %v2795 = vpack.c.bf16 %v2774, %v2773
      %v2796 = vpack.c.bf16 %v2776, %v2775
      %v2797 = vpack.c.bf16 %v2778, %v2777
      %v2798 = vpack.c.bf16 %v2780, %v2779
      %v2799 = vpack.c.bf16 %v2782, %v2781
      %v2800 = vpack.c.bf16 %v2784, %v2783
      %s2801 = scalar_lea.vmem %s1, 14
      %v2802 = vld [vmem:[%s2801] sm:$0x3]
      %v2804 = vsel %vm300, %v2785, 0
      %v2807 = vsel %vm300, %v2786, 0
      %v2810 = vsel %vm300, %v2787, 0
      %v2813 = vsel %vm300, %v2788, 0
      %v2816 = vsel %vm300, %v2789, 0
      %v2819 = vsel %vm300, %v2790, 0
      %v2822 = vsel %vm300, %v2791, 0
      %v2825 = vsel %vm300, %v2792, 0
      %v2828 = vsel %vm300, %v2793, 0
      %v2831 = vsel %vm300, %v2794, 0
      %v2834 = vsel %vm300, %v2795, 0
      %v2837 = vsel %vm300, %v2796, 0
      %v2840 = vsel %vm300, %v2797, 0
      %v2843 = vsel %vm300, %v2798, 0
      %v2846 = vsel %vm300, %v2799, 0
      %v2849 = vsel %vm300, %v2800, 0
      %v2852 = vand.u32 %v2802, %v714
      %2854 = vmatprep.subr.bf16.mxu0 0
      %2855 = vmatpush1.bf16.msra.mxu0 0
      %2856 = vmatprep.subr.bf16.mxu0 0
      %2857 = vmatpush1.bf16.msra.mxu0 0
      %2858 = vmatprep.subr.bf16.mxu0 0
      %2859 = vmatpush1.bf16.msra.mxu0 0
      %2860 = vmatprep.subr.bf16.mxu0 0
      %2861 = vmatpush1.bf16.msra.mxu0 0
      %2862 = vmatprep.subr.bf16.mxu0 0
      %2863 = vmatpush1.bf16.msra.mxu0 0
      %2864 = vmatprep.subr.bf16.mxu0 0
      %2865 = vmatpush1.bf16.msra.mxu0 0
      %2866 = vmatprep.subr.bf16.mxu0 0
      %2867 = vmatpush1.bf16.msra.mxu0 0
      %2868 = vmatprep.subr.bf16.mxu0 0
      %2869 = vmatpush1.bf16.msra.mxu0 %v2852
      %2870 = vmatprep.subr.bf16.mxu0 0
      %2871 = vmatpush2.bf16.msra.mxu0 0
      %2872 = vmatprep.subr.bf16.mxu0 0
      %2873 = vmatpush2.bf16.msra.mxu0 0
      %2874 = vmatprep.subr.bf16.mxu0 0
      %2875 = vmatpush2.bf16.msra.mxu0 0
      %2876 = vmatprep.subr.bf16.mxu0 0
      %2877 = vmatpush2.bf16.msra.mxu0 0
      %2878 = vmatprep.subr.bf16.mxu0 0
      %2879 = vmatpush2.bf16.msra.mxu0 0
      %2880 = vmatprep.subr.bf16.mxu0 0
      %2881 = vmatpush2.bf16.msra.mxu0 0
      %2882 = vmatprep.subr.bf16.mxu0 0
      %2883 = vmatpush2.bf16.msra.mxu0 0
      %2884 = vmatprep.subr.bf16.mxu0 0
      %2885 = vmatpush2.bf16.msra.mxu0 0
      %2886 = vmatprep.mubr.bf16.mxu0 0
      %2887 = vmatmul.mubr.bf16.gmra.mxu0 %v2804
      %v2888 = vpop.f32.mrf.mxu0
      %v2889 = vadd.f32 0.0, %v2888
      %v2890 = vpop.f32.mrf.mxu0
      %v2891 = vpop.f32.mrf.mxu0
      %v2892 = vadd.f32 0.0, %v2891
      %v2893 = vpop.f32.mrf.mxu0
      %2894 = vmatprep.mubr.bf16.mxu0 0
      %2895 = vmatmul.mubr.bf16.gmra.mxu0 %v2807
      %v2896 = vpop.f32.mrf.mxu0
      %v2897 = vadd.f32 0.0, %v2896
      %v2898 = vpop.f32.mrf.mxu0
      %v2899 = vpop.f32.mrf.mxu0
      %v2900 = vadd.f32 0.0, %v2899
      %v2901 = vpop.f32.mrf.mxu0
      %2902 = vmatprep.mubr.bf16.mxu0 0
      %2903 = vmatmul.mubr.bf16.gmra.mxu0 %v2810
      %v2904 = vpop.f32.mrf.mxu0
      %v2905 = vadd.f32 0.0, %v2904
      %v2906 = vpop.f32.mrf.mxu0
      %v2907 = vpop.f32.mrf.mxu0
      %v2908 = vadd.f32 0.0, %v2907
      %v2909 = vpop.f32.mrf.mxu0
      %2910 = vmatprep.mubr.bf16.mxu0 0
      %2911 = vmatmul.mubr.bf16.gmra.mxu0 %v2813
      %v2912 = vpop.f32.mrf.mxu0
      %v2913 = vadd.f32 0.0, %v2912
      %v2914 = vpop.f32.mrf.mxu0
      %v2915 = vpop.f32.mrf.mxu0
      %v2916 = vadd.f32 0.0, %v2915
      %v2917 = vpop.f32.mrf.mxu0
      %2918 = vmatprep.mubr.bf16.mxu0 0
      %2919 = vmatmul.mubr.bf16.gmra.mxu0 %v2816
      %v2920 = vpop.f32.mrf.mxu0
      %v2921 = vadd.f32 0.0, %v2920
      %v2922 = vpop.f32.mrf.mxu0
      %v2923 = vpop.f32.mrf.mxu0
      %v2924 = vadd.f32 0.0, %v2923
      %v2925 = vpop.f32.mrf.mxu0
      %2926 = vmatprep.mubr.bf16.mxu0 0
      %2927 = vmatmul.mubr.bf16.gmra.mxu0 %v2819
      %v2928 = vpop.f32.mrf.mxu0
      %v2929 = vadd.f32 0.0, %v2928
      %v2930 = vpop.f32.mrf.mxu0
      %v2931 = vpop.f32.mrf.mxu0
      %v2932 = vadd.f32 0.0, %v2931
      %v2933 = vpop.f32.mrf.mxu0
      %2934 = vmatprep.mubr.bf16.mxu0 0
      %2935 = vmatmul.mubr.bf16.gmra.mxu0 %v2822
      %v2936 = vpop.f32.mrf.mxu0
      %v2937 = vadd.f32 0.0, %v2936
      %v2938 = vpop.f32.mrf.mxu0
      %v2939 = vpop.f32.mrf.mxu0
      %v2940 = vadd.f32 0.0, %v2939
      %v2941 = vpop.f32.mrf.mxu0
      %2942 = vmatprep.mubr.bf16.mxu0 0
      %2943 = vmatmul.mubr.bf16.gmra.mxu0 %v2825
      %v2944 = vpop.f32.mrf.mxu0
      %v2945 = vadd.f32 0.0, %v2944
      %v2946 = vpop.f32.mrf.mxu0
      %v2947 = vpop.f32.mrf.mxu0
      %v2948 = vadd.f32 0.0, %v2947
      %v2949 = vpop.f32.mrf.mxu0
      %2950 = vmatprep.mubr.bf16.mxu0 0
      %2951 = vmatmul.mubr.bf16.gmra.mxu0 %v2828
      %v2952 = vpop.f32.mrf.mxu0
      %v2953 = vadd.f32 0.0, %v2952
      %v2954 = vpop.f32.mrf.mxu0
      %v2955 = vpop.f32.mrf.mxu0
      %v2956 = vadd.f32 0.0, %v2955
      %v2957 = vpop.f32.mrf.mxu0
      %2958 = vmatprep.mubr.bf16.mxu0 0
      %2959 = vmatmul.mubr.bf16.gmra.mxu0 %v2831
      %v2960 = vpop.f32.mrf.mxu0
      %v2961 = vadd.f32 0.0, %v2960
      %v2962 = vpop.f32.mrf.mxu0
      %v2963 = vpop.f32.mrf.mxu0
      %v2964 = vadd.f32 0.0, %v2963
      %v2965 = vpop.f32.mrf.mxu0
      %2966 = vmatprep.mubr.bf16.mxu0 0
      %2967 = vmatmul.mubr.bf16.gmra.mxu0 %v2834
      %v2968 = vpop.f32.mrf.mxu0
      %v2969 = vadd.f32 0.0, %v2968
      %v2970 = vpop.f32.mrf.mxu0
      %v2971 = vpop.f32.mrf.mxu0
      %v2972 = vadd.f32 0.0, %v2971
      %v2973 = vpop.f32.mrf.mxu0
      %2974 = vmatprep.mubr.bf16.mxu0 0
      %2975 = vmatmul.mubr.bf16.gmra.mxu0 %v2837
      %v2976 = vpop.f32.mrf.mxu0
      %v2977 = vadd.f32 0.0, %v2976
      %v2978 = vpop.f32.mrf.mxu0
      %v2979 = vpop.f32.mrf.mxu0
      %v2980 = vadd.f32 0.0, %v2979
      %v2981 = vpop.f32.mrf.mxu0
      %2982 = vmatprep.mubr.bf16.mxu0 0
      %2983 = vmatmul.mubr.bf16.gmra.mxu0 %v2840
      %v2984 = vpop.f32.mrf.mxu0
      %v2985 = vadd.f32 0.0, %v2984
      %v2986 = vpop.f32.mrf.mxu0
      %v2987 = vpop.f32.mrf.mxu0
      %v2988 = vadd.f32 0.0, %v2987
      %v2989 = vpop.f32.mrf.mxu0
      %2990 = vmatprep.mubr.bf16.mxu0 0
      %2991 = vmatmul.mubr.bf16.gmra.mxu0 %v2843
      %v2992 = vpop.f32.mrf.mxu0
      %v2993 = vadd.f32 0.0, %v2992
      %v2994 = vpop.f32.mrf.mxu0
      %v2995 = vpop.f32.mrf.mxu0
      %v2996 = vadd.f32 0.0, %v2995
      %v2997 = vpop.f32.mrf.mxu0
      %2998 = vmatprep.mubr.bf16.mxu0 0
      %2999 = vmatmul.mubr.bf16.gmra.mxu0 %v2846
      %v3000 = vpop.f32.mrf.mxu0
      %v3001 = vadd.f32 0.0, %v3000
      %v3002 = vpop.f32.mrf.mxu0
      %v3003 = vpop.f32.mrf.mxu0
      %v3004 = vadd.f32 0.0, %v3003
      %v3005 = vpop.f32.mrf.mxu0
      %3006 = vmatprep.mubr.bf16.mxu0 0
      %3007 = vmatmul.mubr.bf16.gmra.mxu0 %v2849
      %v3008 = vpop.f32.mrf.mxu0
      %v3009 = vadd.f32 0.0, %v3008
      %v3010 = vpop.f32.mrf.mxu0
      %v3011 = vpop.f32.mrf.mxu0
      %v3012 = vadd.f32 0.0, %v3011
      %v3013 = vpop.f32.mrf.mxu0
      %3014 = vdwg.mxu0
      %v3015 = vadd.f32 %v2721, %v2889
      %v3016 = vadd.f32 %v2722, %v2892
      %v3017 = vadd.f32 %v2723, %v2897
      %v3018 = vadd.f32 %v2724, %v2900
      %v3019 = vadd.f32 %v2725, %v2905
      %v3020 = vadd.f32 %v2726, %v2908
      %v3021 = vadd.f32 %v2727, %v2913
      %v3022 = vadd.f32 %v2728, %v2916
      %v3023 = vadd.f32 %v2729, %v2921
      %v3024 = vadd.f32 %v2730, %v2924
      %v3025 = vadd.f32 %v2731, %v2929
      %v3026 = vadd.f32 %v2732, %v2932
      %v3027 = vadd.f32 %v2733, %v2937
      %v3028 = vadd.f32 %v2734, %v2940
      %v3029 = vadd.f32 %v2735, %v2945
      %v3030 = vadd.f32 %v2736, %v2948
      %v3031 = vadd.f32 %v2737, %v2953
      %v3032 = vadd.f32 %v2738, %v2956
      %v3033 = vadd.f32 %v2739, %v2961
      %v3034 = vadd.f32 %v2740, %v2964
      %v3035 = vadd.f32 %v2741, %v2969
      %v3036 = vadd.f32 %v2742, %v2972
      %v3037 = vadd.f32 %v2743, %v2977
      %v3038 = vadd.f32 %v2744, %v2980
      %v3039 = vadd.f32 %v2745, %v2985
      %v3040 = vadd.f32 %v2746, %v2988
      %v3041 = vadd.f32 %v2747, %v2993
      %v3042 = vadd.f32 %v2748, %v2996
      %v3043 = vadd.f32 %v2749, %v3001
      %v3044 = vadd.f32 %v2750, %v3004
      %v3045 = vadd.f32 %v2751, %v3009
      %v3046 = vadd.f32 %v2752, %v3012
      %v3047 = vld [vmem:[#allocation2 + $0x22] sm:$0xff]
      %v3048 = vld [vmem:[#allocation2 + $0x2a] sm:$0xff]
      %v3049 = vld [vmem:[#allocation2 + $0x32] sm:$0xff]
      %v3050 = vld [vmem:[#allocation2 + $0x3a] sm:$0xff]
      %v3051 = vld [vmem:[#allocation2 + $0x42] sm:$0xff]
      %v3052 = vld [vmem:[#allocation2 + $0x4a] sm:$0xff]
      %v3053 = vld [vmem:[#allocation2 + $0x52] sm:$0xff]
      %v3054 = vld [vmem:[#allocation2 + $0x5a] sm:$0xff]
      %v3055 = vld [vmem:[#allocation2 + $0x62] sm:$0xff]
      %v3056 = vld [vmem:[#allocation2 + $0x6a] sm:$0xff]
      %v3057 = vld [vmem:[#allocation2 + $0x72] sm:$0xff]
      %v3058 = vld [vmem:[#allocation2 + $0x7a] sm:$0xff]
      %v3059 = vld [vmem:[#allocation2 + $0x82] sm:$0xff]
      %v3060 = vld [vmem:[#allocation2 + $0x8a] sm:$0xff]
      %v3061 = vld [vmem:[#allocation2 + $0x92] sm:$0xff]
      %v3062 = vld [vmem:[#allocation2 + $0x9a] sm:$0xff]
      %v3063 = vld [vmem:[#allocation2 + $0xa2] sm:$0xff]
      %v3064 = vld [vmem:[#allocation2 + $0xaa] sm:$0xff]
      %v3065 = vld [vmem:[#allocation2 + $0xb2] sm:$0xff]
      %v3066 = vld [vmem:[#allocation2 + $0xba] sm:$0xff]
      %v3067 = vld [vmem:[#allocation2 + $0xc2] sm:$0xff]
      %v3068 = vld [vmem:[#allocation2 + $0xca] sm:$0xff]
      %v3069 = vld [vmem:[#allocation2 + $0xd2] sm:$0xff]
      %v3070 = vld [vmem:[#allocation2 + $0xda] sm:$0xff]
      %v3071 = vld [vmem:[#allocation2 + $0xe2] sm:$0xff]
      %v3072 = vld [vmem:[#allocation2 + $0xea] sm:$0xff]
      %v3073 = vld [vmem:[#allocation2 + $0xf2] sm:$0xff]
      %v3074 = vld [vmem:[#allocation2 + $0xfa] sm:$0xff]
      %v3075 = vld [vmem:[#allocation2 + $0x102] sm:$0xff]
      %v3076 = vld [vmem:[#allocation2 + $0x10a] sm:$0xff]
      %v3077 = vld [vmem:[#allocation2 + $0x112] sm:$0xff]
      %v3078 = vld [vmem:[#allocation2 + $0x11a] sm:$0xff]
      %v3079 = vsel %vm1155, %v3047, 0.0
      %v3080 = vsel %vm1156, %v3048, 0.0
      %v3081 = vsel %vm1157, %v3049, 0.0
      %v3082 = vsel %vm1158, %v3050, 0.0
      %v3083 = vsel %vm1159, %v3051, 0.0
      %v3084 = vsel %vm1160, %v3052, 0.0
      %v3085 = vsel %vm1161, %v3053, 0.0
      %v3086 = vsel %vm1162, %v3054, 0.0
      %v3087 = vsel %vm1163, %v3055, 0.0
      %v3088 = vsel %vm1164, %v3056, 0.0
      %v3089 = vsel %vm1165, %v3057, 0.0
      %v3090 = vsel %vm1166, %v3058, 0.0
      %v3091 = vsel %vm1167, %v3059, 0.0
      %v3092 = vsel %vm1168, %v3060, 0.0
      %v3093 = vsel %vm1169, %v3061, 0.0
      %v3094 = vsel %vm1170, %v3062, 0.0
      %v3095 = vsel %vm1171, %v3063, 0.0
      %v3096 = vsel %vm1172, %v3064, 0.0
      %v3097 = vsel %vm1173, %v3065, 0.0
      %v3098 = vsel %vm1174, %v3066, 0.0
      %v3099 = vsel %vm1175, %v3067, 0.0
      %v3100 = vsel %vm1176, %v3068, 0.0
      %v3101 = vsel %vm1177, %v3069, 0.0
      %v3102 = vsel %vm1178, %v3070, 0.0
      %v3103 = vsel %vm1179, %v3071, 0.0
      %v3104 = vsel %vm1180, %v3072, 0.0
      %v3105 = vsel %vm1181, %v3073, 0.0
      %v3106 = vsel %vm1182, %v3074, 0.0
      %v3107 = vsel %vm1183, %v3075, 0.0
      %v3108 = vsel %vm1184, %v3076, 0.0
      %v3109 = vsel %vm1185, %v3077, 0.0
      %v3110 = vsel %vm1186, %v3078, 0.0
      %v3111 = vpack.c.bf16 %v3080, %v3079
      %v3112 = vpack.c.bf16 %v3082, %v3081
      %v3113 = vpack.c.bf16 %v3084, %v3083
      %v3114 = vpack.c.bf16 %v3086, %v3085
      %v3115 = vpack.c.bf16 %v3088, %v3087
      %v3116 = vpack.c.bf16 %v3090, %v3089
      %v3117 = vpack.c.bf16 %v3092, %v3091
      %v3118 = vpack.c.bf16 %v3094, %v3093
      %v3119 = vpack.c.bf16 %v3096, %v3095
      %v3120 = vpack.c.bf16 %v3098, %v3097
      %v3121 = vpack.c.bf16 %v3100, %v3099
      %v3122 = vpack.c.bf16 %v3102, %v3101
      %v3123 = vpack.c.bf16 %v3104, %v3103
      %v3124 = vpack.c.bf16 %v3106, %v3105
      %v3125 = vpack.c.bf16 %v3108, %v3107
      %v3126 = vpack.c.bf16 %v3110, %v3109
      %s3127 = scalar_lea.vmem %s1, 16
      %v3128 = vld [vmem:[%s3127] sm:$0x3]
      %v3130 = vsel %vm300, %v3111, 0
      %v3133 = vsel %vm300, %v3112, 0
      %v3136 = vsel %vm300, %v3113, 0
      %v3139 = vsel %vm300, %v3114, 0
      %v3142 = vsel %vm300, %v3115, 0
      %v3145 = vsel %vm300, %v3116, 0
      %v3148 = vsel %vm300, %v3117, 0
      %v3151 = vsel %vm300, %v3118, 0
      %v3154 = vsel %vm300, %v3119, 0
      %v3157 = vsel %vm300, %v3120, 0
      %v3160 = vsel %vm300, %v3121, 0
      %v3163 = vsel %vm300, %v3122, 0
      %v3166 = vsel %vm300, %v3123, 0
      %v3169 = vsel %vm300, %v3124, 0
      %v3172 = vsel %vm300, %v3125, 0
      %v3175 = vsel %vm300, %v3126, 0
      %v3178 = vand.u32 %v3128, %v714
      %3180 = vmatprep.subr.bf16.mxu0 0
      %3181 = vmatpush1.bf16.msra.mxu0 0
      %3182 = vmatprep.subr.bf16.mxu0 0
      %3183 = vmatpush1.bf16.msra.mxu0 0
      %3184 = vmatprep.subr.bf16.mxu0 0
      %3185 = vmatpush1.bf16.msra.mxu0 0
      %3186 = vmatprep.subr.bf16.mxu0 0
      %3187 = vmatpush1.bf16.msra.mxu0 0
      %3188 = vmatprep.subr.bf16.mxu0 0
      %3189 = vmatpush1.bf16.msra.mxu0 0
      %3190 = vmatprep.subr.bf16.mxu0 0
      %3191 = vmatpush1.bf16.msra.mxu0 0
      %3192 = vmatprep.subr.bf16.mxu0 0
      %3193 = vmatpush1.bf16.msra.mxu0 0
      %3194 = vmatprep.subr.bf16.mxu0 0
      %3195 = vmatpush1.bf16.msra.mxu0 %v3178
      %3196 = vmatprep.subr.bf16.mxu0 0
      %3197 = vmatpush2.bf16.msra.mxu0 0
      %3198 = vmatprep.subr.bf16.mxu0 0
      %3199 = vmatpush2.bf16.msra.mxu0 0
      %3200 = vmatprep.subr.bf16.mxu0 0
      %3201 = vmatpush2.bf16.msra.mxu0 0
      %3202 = vmatprep.subr.bf16.mxu0 0
      %3203 = vmatpush2.bf16.msra.mxu0 0
      %3204 = vmatprep.subr.bf16.mxu0 0
      %3205 = vmatpush2.bf16.msra.mxu0 0
      %3206 = vmatprep.subr.bf16.mxu0 0
      %3207 = vmatpush2.bf16.msra.mxu0 0
      %3208 = vmatprep.subr.bf16.mxu0 0
      %3209 = vmatpush2.bf16.msra.mxu0 0
      %3210 = vmatprep.subr.bf16.mxu0 0
      %3211 = vmatpush2.bf16.msra.mxu0 0
      %3212 = vmatprep.mubr.bf16.mxu0 0
      %3213 = vmatmul.mubr.bf16.gmra.mxu0 %v3130
      %v3214 = vpop.f32.mrf.mxu0
      %v3215 = vadd.f32 0.0, %v3214
      %v3216 = vpop.f32.mrf.mxu0
      %v3217 = vpop.f32.mrf.mxu0
      %v3218 = vadd.f32 0.0, %v3217
      %v3219 = vpop.f32.mrf.mxu0
      %3220 = vmatprep.mubr.bf16.mxu0 0
      %3221 = vmatmul.mubr.bf16.gmra.mxu0 %v3133
      %v3222 = vpop.f32.mrf.mxu0
      %v3223 = vadd.f32 0.0, %v3222
      %v3224 = vpop.f32.mrf.mxu0
      %v3225 = vpop.f32.mrf.mxu0
      %v3226 = vadd.f32 0.0, %v3225
      %v3227 = vpop.f32.mrf.mxu0
      %3228 = vmatprep.mubr.bf16.mxu0 0
      %3229 = vmatmul.mubr.bf16.gmra.mxu0 %v3136
      %v3230 = vpop.f32.mrf.mxu0
      %v3231 = vadd.f32 0.0, %v3230
      %v3232 = vpop.f32.mrf.mxu0
      %v3233 = vpop.f32.mrf.mxu0
      %v3234 = vadd.f32 0.0, %v3233
      %v3235 = vpop.f32.mrf.mxu0
      %3236 = vmatprep.mubr.bf16.mxu0 0
      %3237 = vmatmul.mubr.bf16.gmra.mxu0 %v3139
      %v3238 = vpop.f32.mrf.mxu0
      %v3239 = vadd.f32 0.0, %v3238
      %v3240 = vpop.f32.mrf.mxu0
      %v3241 = vpop.f32.mrf.mxu0
      %v3242 = vadd.f32 0.0, %v3241
      %v3243 = vpop.f32.mrf.mxu0
      %3244 = vmatprep.mubr.bf16.mxu0 0
      %3245 = vmatmul.mubr.bf16.gmra.mxu0 %v3142
      %v3246 = vpop.f32.mrf.mxu0
      %v3247 = vadd.f32 0.0, %v3246
      %v3248 = vpop.f32.mrf.mxu0
      %v3249 = vpop.f32.mrf.mxu0
      %v3250 = vadd.f32 0.0, %v3249
      %v3251 = vpop.f32.mrf.mxu0
      %3252 = vmatprep.mubr.bf16.mxu0 0
      %3253 = vmatmul.mubr.bf16.gmra.mxu0 %v3145
      %v3254 = vpop.f32.mrf.mxu0
      %v3255 = vadd.f32 0.0, %v3254
      %v3256 = vpop.f32.mrf.mxu0
      %v3257 = vpop.f32.mrf.mxu0
      %v3258 = vadd.f32 0.0, %v3257
      %v3259 = vpop.f32.mrf.mxu0
      %3260 = vmatprep.mubr.bf16.mxu0 0
      %3261 = vmatmul.mubr.bf16.gmra.mxu0 %v3148
      %v3262 = vpop.f32.mrf.mxu0
      %v3263 = vadd.f32 0.0, %v3262
      %v3264 = vpop.f32.mrf.mxu0
      %v3265 = vpop.f32.mrf.mxu0
      %v3266 = vadd.f32 0.0, %v3265
      %v3267 = vpop.f32.mrf.mxu0
      %3268 = vmatprep.mubr.bf16.mxu0 0
      %3269 = vmatmul.mubr.bf16.gmra.mxu0 %v3151
      %v3270 = vpop.f32.mrf.mxu0
      %v3271 = vadd.f32 0.0, %v3270
      %v3272 = vpop.f32.mrf.mxu0
      %v3273 = vpop.f32.mrf.mxu0
      %v3274 = vadd.f32 0.0, %v3273
      %v3275 = vpop.f32.mrf.mxu0
      %3276 = vmatprep.mubr.bf16.mxu0 0
      %3277 = vmatmul.mubr.bf16.gmra.mxu0 %v3154
      %v3278 = vpop.f32.mrf.mxu0
      %v3279 = vadd.f32 0.0, %v3278
      %v3280 = vpop.f32.mrf.mxu0
      %v3281 = vpop.f32.mrf.mxu0
      %v3282 = vadd.f32 0.0, %v3281
      %v3283 = vpop.f32.mrf.mxu0
      %3284 = vmatprep.mubr.bf16.mxu0 0
      %3285 = vmatmul.mubr.bf16.gmra.mxu0 %v3157
      %v3286 = vpop.f32.mrf.mxu0
      %v3287 = vadd.f32 0.0, %v3286
      %v3288 = vpop.f32.mrf.mxu0
      %v3289 = vpop.f32.mrf.mxu0
      %v3290 = vadd.f32 0.0, %v3289
      %v3291 = vpop.f32.mrf.mxu0
      %3292 = vmatprep.mubr.bf16.mxu0 0
      %3293 = vmatmul.mubr.bf16.gmra.mxu0 %v3160
      %v3294 = vpop.f32.mrf.mxu0
      %v3295 = vadd.f32 0.0, %v3294
      %v3296 = vpop.f32.mrf.mxu0
      %v3297 = vpop.f32.mrf.mxu0
      %v3298 = vadd.f32 0.0, %v3297
      %v3299 = vpop.f32.mrf.mxu0
      %3300 = vmatprep.mubr.bf16.mxu0 0
      %3301 = vmatmul.mubr.bf16.gmra.mxu0 %v3163
      %v3302 = vpop.f32.mrf.mxu0
      %v3303 = vadd.f32 0.0, %v3302
      %v3304 = vpop.f32.mrf.mxu0
      %v3305 = vpop.f32.mrf.mxu0
      %v3306 = vadd.f32 0.0, %v3305
      %v3307 = vpop.f32.mrf.mxu0
      %3308 = vmatprep.mubr.bf16.mxu0 0
      %3309 = vmatmul.mubr.bf16.gmra.mxu0 %v3166
      %v3310 = vpop.f32.mrf.mxu0
      %v3311 = vadd.f32 0.0, %v3310
      %v3312 = vpop.f32.mrf.mxu0
      %v3313 = vpop.f32.mrf.mxu0
      %v3314 = vadd.f32 0.0, %v3313
      %v3315 = vpop.f32.mrf.mxu0
      %3316 = vmatprep.mubr.bf16.mxu0 0
      %3317 = vmatmul.mubr.bf16.gmra.mxu0 %v3169
      %v3318 = vpop.f32.mrf.mxu0
      %v3319 = vadd.f32 0.0, %v3318
      %v3320 = vpop.f32.mrf.mxu0
      %v3321 = vpop.f32.mrf.mxu0
      %v3322 = vadd.f32 0.0, %v3321
      %v3323 = vpop.f32.mrf.mxu0
      %3324 = vmatprep.mubr.bf16.mxu0 0
      %3325 = vmatmul.mubr.bf16.gmra.mxu0 %v3172
      %v3326 = vpop.f32.mrf.mxu0
      %v3327 = vadd.f32 0.0, %v3326
      %v3328 = vpop.f32.mrf.mxu0
      %v3329 = vpop.f32.mrf.mxu0
      %v3330 = vadd.f32 0.0, %v3329
      %v3331 = vpop.f32.mrf.mxu0
      %3332 = vmatprep.mubr.bf16.mxu0 0
      %3333 = vmatmul.mubr.bf16.gmra.mxu0 %v3175
      %v3334 = vpop.f32.mrf.mxu0
      %v3335 = vadd.f32 0.0, %v3334
      %v3336 = vpop.f32.mrf.mxu0
      %v3337 = vpop.f32.mrf.mxu0
      %v3338 = vadd.f32 0.0, %v3337
      %v3339 = vpop.f32.mrf.mxu0
      %3340 = vdwg.mxu0
      %v3341 = vadd.f32 %v3015, %v3215
      %v3342 = vadd.f32 %v3016, %v3218
      %v3343 = vadd.f32 %v3017, %v3223
      %v3344 = vadd.f32 %v3018, %v3226
      %v3345 = vadd.f32 %v3019, %v3231
      %v3346 = vadd.f32 %v3020, %v3234
      %v3347 = vadd.f32 %v3021, %v3239
      %v3348 = vadd.f32 %v3022, %v3242
      %v3349 = vadd.f32 %v3023, %v3247
      %v3350 = vadd.f32 %v3024, %v3250
      %v3351 = vadd.f32 %v3025, %v3255
      %v3352 = vadd.f32 %v3026, %v3258
      %v3353 = vadd.f32 %v3027, %v3263
      %v3354 = vadd.f32 %v3028, %v3266
      %v3355 = vadd.f32 %v3029, %v3271
      %v3356 = vadd.f32 %v3030, %v3274
      %v3357 = vadd.f32 %v3031, %v3279
      %v3358 = vadd.f32 %v3032, %v3282
      %v3359 = vadd.f32 %v3033, %v3287
      %v3360 = vadd.f32 %v3034, %v3290
      %v3361 = vadd.f32 %v3035, %v3295
      %v3362 = vadd.f32 %v3036, %v3298
      %v3363 = vadd.f32 %v3037, %v3303
      %v3364 = vadd.f32 %v3038, %v3306
      %v3365 = vadd.f32 %v3039, %v3311
      %v3366 = vadd.f32 %v3040, %v3314
      %v3367 = vadd.f32 %v3041, %v3319
      %v3368 = vadd.f32 %v3042, %v3322
      %v3369 = vadd.f32 %v3043, %v3327
      %v3370 = vadd.f32 %v3044, %v3330
      %v3371 = vadd.f32 %v3045, %v3335
      %v3372 = vadd.f32 %v3046, %v3338
      %v3373 = vld [vmem:[%s2] sm:$0x1]
      %v3375 = vlaneseq
      %v3376 = vshrl.u32 %v3375, 7
      %v3377 = vsub.s32 0, %v3376
      %v3378 = vrot.slane %v3373, %v3377
      %v3380 = vmul.f32 %v3341, %v3378
      %v3381 = vmul.f32 %v3342, %v3378
      %v3382 = vmul.f32 %v3343, %v3378
      %v3383 = vmul.f32 %v3344, %v3378
      %v3384 = vmul.f32 %v3345, %v3378
      %v3385 = vmul.f32 %v3346, %v3378
      %v3386 = vmul.f32 %v3347, %v3378
      %v3387 = vmul.f32 %v3348, %v3378
      %v3388 = vmul.f32 %v3349, %v3378
      %v3389 = vmul.f32 %v3350, %v3378
      %v3390 = vmul.f32 %v3351, %v3378
      %v3391 = vmul.f32 %v3352, %v3378
      %v3392 = vmul.f32 %v3353, %v3378
      %v3393 = vmul.f32 %v3354, %v3378
      %v3394 = vmul.f32 %v3355, %v3378
      %v3395 = vmul.f32 %v3356, %v3378
      %v3396 = vmul.f32 %v3357, %v3378
      %v3397 = vmul.f32 %v3358, %v3378
      %v3398 = vmul.f32 %v3359, %v3378
      %v3399 = vmul.f32 %v3360, %v3378
      %v3400 = vmul.f32 %v3361, %v3378
      %v3401 = vmul.f32 %v3362, %v3378
      %v3402 = vmul.f32 %v3363, %v3378
      %v3403 = vmul.f32 %v3364, %v3378
      %v3404 = vmul.f32 %v3365, %v3378
      %v3405 = vmul.f32 %v3366, %v3378
      %v3406 = vmul.f32 %v3367, %v3378
      %v3407 = vmul.f32 %v3368, %v3378
      %v3408 = vmul.f32 %v3369, %v3378
      %v3409 = vmul.f32 %v3370, %v3378
      %v3410 = vmul.f32 %v3371, %v3378
      %v3411 = vmul.f32 %v3372, %v3378
      %v3412 = vld [vmem:[%s3] sm:$0x1]
      %v3414 = vlaneseq
      %v3415 = vshrl.u32 %v3414, 7
      %v3416 = vsub.s32 0, %v3415
      %v3417 = vrot.slane %v3412, %v3416
      %v3419 = vadd.f32 %v3380, %v3417
      %v3420 = vadd.f32 %v3381, %v3417
      %v3421 = vadd.f32 %v3382, %v3417
      %v3422 = vadd.f32 %v3383, %v3417
      %v3423 = vadd.f32 %v3384, %v3417
      %v3424 = vadd.f32 %v3385, %v3417
      %v3425 = vadd.f32 %v3386, %v3417
      %v3426 = vadd.f32 %v3387, %v3417
      %v3427 = vadd.f32 %v3388, %v3417
      %v3428 = vadd.f32 %v3389, %v3417
      %v3429 = vadd.f32 %v3390, %v3417
      %v3430 = vadd.f32 %v3391, %v3417
      %v3431 = vadd.f32 %v3392, %v3417
      %v3432 = vadd.f32 %v3393, %v3417
      %v3433 = vadd.f32 %v3394, %v3417
      %v3434 = vadd.f32 %v3395, %v3417
      %v3435 = vadd.f32 %v3396, %v3417
      %v3436 = vadd.f32 %v3397, %v3417
      %v3437 = vadd.f32 %v3398, %v3417
      %v3438 = vadd.f32 %v3399, %v3417
      %v3439 = vadd.f32 %v3400, %v3417
      %v3440 = vadd.f32 %v3401, %v3417
      %v3441 = vadd.f32 %v3402, %v3417
      %v3442 = vadd.f32 %v3403, %v3417
      %v3443 = vadd.f32 %v3404, %v3417
      %v3444 = vadd.f32 %v3405, %v3417
      %v3445 = vadd.f32 %v3406, %v3417
      %v3446 = vadd.f32 %v3407, %v3417
      %v3447 = vadd.f32 %v3408, %v3417
      %v3448 = vadd.f32 %v3409, %v3417
      %v3449 = vadd.f32 %v3410, %v3417
      %v3450 = vadd.f32 %v3411, %v3417
      %v3451 = vmax.f32 %v3419, 0.0
      %v3452 = vmax.f32 %v3420, 0.0
      %v3453 = vmax.f32 %v3421, 0.0
      %v3454 = vmax.f32 %v3422, 0.0
      %v3455 = vmax.f32 %v3423, 0.0
      %v3456 = vmax.f32 %v3424, 0.0
      %v3457 = vmax.f32 %v3425, 0.0
      %v3458 = vmax.f32 %v3426, 0.0
      %v3459 = vmax.f32 %v3427, 0.0
      %v3460 = vmax.f32 %v3428, 0.0
      %v3461 = vmax.f32 %v3429, 0.0
      %v3462 = vmax.f32 %v3430, 0.0
      %v3463 = vmax.f32 %v3431, 0.0
      %v3464 = vmax.f32 %v3432, 0.0
      %v3465 = vmax.f32 %v3433, 0.0
      %v3466 = vmax.f32 %v3434, 0.0
      %v3467 = vmax.f32 %v3435, 0.0
      %v3468 = vmax.f32 %v3436, 0.0
      %v3469 = vmax.f32 %v3437, 0.0
      %v3470 = vmax.f32 %v3438, 0.0
      %v3471 = vmax.f32 %v3439, 0.0
      %v3472 = vmax.f32 %v3440, 0.0
      %v3473 = vmax.f32 %v3441, 0.0
      %v3474 = vmax.f32 %v3442, 0.0
      %v3475 = vmax.f32 %v3443, 0.0
      %v3476 = vmax.f32 %v3444, 0.0
      %v3477 = vmax.f32 %v3445, 0.0
      %v3478 = vmax.f32 %v3446, 0.0
      %v3479 = vmax.f32 %v3447, 0.0
      %v3480 = vmax.f32 %v3448, 0.0
      %v3481 = vmax.f32 %v3449, 0.0
      %v3482 = vmax.f32 %v3450, 0.0
      %vm3483 = vcmask 261120
      %3484 = vst.msk [vmem:[#allocation3] sm:$0xff] %vm3483, %v3451
      %3485 = vst.msk [vmem:[#allocation3 + $0x8] sm:$0xff] %vm3483, %v3452
      %3486 = vst.msk [vmem:[#allocation3 + $0x10] sm:$0xff] %vm3483, %v3453
      %3487 = vst.msk [vmem:[#allocation3 + $0x18] sm:$0xff] %vm3483, %v3454
      %3488 = vst.msk [vmem:[#allocation3 + $0x20] sm:$0xff] %vm3483, %v3455
      %3489 = vst.msk [vmem:[#allocation3 + $0x28] sm:$0xff] %vm3483, %v3456
      %3490 = vst.msk [vmem:[#allocation3 + $0x30] sm:$0xff] %vm3483, %v3457
      %3491 = vst.msk [vmem:[#allocation3 + $0x38] sm:$0xff] %vm3483, %v3458
      %3492 = vst.msk [vmem:[#allocation3 + $0x40] sm:$0xff] %vm3483, %v3459
      %3493 = vst.msk [vmem:[#allocation3 + $0x48] sm:$0xff] %vm3483, %v3460
      %3494 = vst.msk [vmem:[#allocation3 + $0x50] sm:$0xff] %vm3483, %v3461
      %3495 = vst.msk [vmem:[#allocation3 + $0x58] sm:$0xff] %vm3483, %v3462
      %3496 = vst.msk [vmem:[#allocation3 + $0x60] sm:$0xff] %vm3483, %v3463
      %3497 = vst.msk [vmem:[#allocation3 + $0x68] sm:$0xff] %vm3483, %v3464
      %3498 = vst.msk [vmem:[#allocation3 + $0x70] sm:$0xff] %vm3483, %v3465
      %3499 = vst.msk [vmem:[#allocation3 + $0x78] sm:$0xff] %vm3483, %v3466
      %3500 = vst.msk [vmem:[#allocation3 + $0x80] sm:$0xff] %vm3483, %v3467
      %3501 = vst.msk [vmem:[#allocation3 + $0x88] sm:$0xff] %vm3483, %v3468
      %3502 = vst.msk [vmem:[#allocation3 + $0x90] sm:$0xff] %vm3483, %v3469
      %3503 = vst.msk [vmem:[#allocation3 + $0x98] sm:$0xff] %vm3483, %v3470
      %3504 = vst.msk [vmem:[#allocation3 + $0xa0] sm:$0xff] %vm3483, %v3471
      %3505 = vst.msk [vmem:[#allocation3 + $0xa8] sm:$0xff] %vm3483, %v3472
      %3506 = vst.msk [vmem:[#allocation3 + $0xb0] sm:$0xff] %vm3483, %v3473
      %3507 = vst.msk [vmem:[#allocation3 + $0xb8] sm:$0xff] %vm3483, %v3474
      %3508 = vst.msk [vmem:[#allocation3 + $0xc0] sm:$0xff] %vm3483, %v3475
      %3509 = vst.msk [vmem:[#allocation3 + $0xc8] sm:$0xff] %vm3483, %v3476
      %3510 = vst.msk [vmem:[#allocation3 + $0xd0] sm:$0xff] %vm3483, %v3477
      %3511 = vst.msk [vmem:[#allocation3 + $0xd8] sm:$0xff] %vm3483, %v3478
      %3512 = vst.msk [vmem:[#allocation3 + $0xe0] sm:$0xff] %vm3483, %v3479
      %3513 = vst.msk [vmem:[#allocation3 + $0xe8] sm:$0xff] %vm3483, %v3480
      %3514 = vst.msk [vmem:[#allocation3 + $0xf0] sm:$0xff] %vm3483, %v3481
      %3515 = vst.msk [vmem:[#allocation3 + $0xf8] sm:$0xff] %vm3483, %v3482
      %3516 = vst.msk [vmem:[#allocation3 + $0x100] sm:$0xff] %vm3483, 0.0
      %3517 = vst.msk [vmem:[#allocation3 + $0x108] sm:$0xff] %vm3483, 0.0
      %vm3518 = vcmask 253952
      %3519 = vst.msk [vmem:[#allocation3 + $0x110] sm:$0x1] %vm3518, 0.0
      %v3520 = vld [vmem:[#allocation3 + $0x1] sm:$0xff]
      %v3521 = vld [vmem:[#allocation3 + $0x9] sm:$0xff]
      %v3522 = vld [vmem:[#allocation3 + $0x11] sm:$0xff]
      %v3523 = vld [vmem:[#allocation3 + $0x19] sm:$0xff]
      %v3524 = vld [vmem:[#allocation3 + $0x21] sm:$0xff]
      %v3525 = vld [vmem:[#allocation3 + $0x29] sm:$0xff]
      %v3526 = vld [vmem:[#allocation3 + $0x31] sm:$0xff]
      %v3527 = vld [vmem:[#allocation3 + $0x39] sm:$0xff]
      %v3528 = vld [vmem:[#allocation3 + $0x41] sm:$0xff]
      %v3529 = vld [vmem:[#allocation3 + $0x49] sm:$0xff]
      %v3530 = vld [vmem:[#allocation3 + $0x51] sm:$0xff]
      %v3531 = vld [vmem:[#allocation3 + $0x59] sm:$0xff]
      %v3532 = vld [vmem:[#allocation3 + $0x61] sm:$0xff]
      %v3533 = vld [vmem:[#allocation3 + $0x69] sm:$0xff]
      %v3534 = vld [vmem:[#allocation3 + $0x71] sm:$0xff]
      %v3535 = vld [vmem:[#allocation3 + $0x79] sm:$0xff]
      %v3536 = vld [vmem:[#allocation3 + $0x81] sm:$0xff]
      %v3537 = vld [vmem:[#allocation3 + $0x89] sm:$0xff]
      %v3538 = vld [vmem:[#allocation3 + $0x91] sm:$0xff]
      %v3539 = vld [vmem:[#allocation3 + $0x99] sm:$0xff]
      %v3540 = vld [vmem:[#allocation3 + $0xa1] sm:$0xff]
      %v3541 = vld [vmem:[#allocation3 + $0xa9] sm:$0xff]
      %v3542 = vld [vmem:[#allocation3 + $0xb1] sm:$0xff]
      %v3543 = vld [vmem:[#allocation3 + $0xb9] sm:$0xff]
      %v3544 = vld [vmem:[#allocation3 + $0xc1] sm:$0xff]
      %v3545 = vld [vmem:[#allocation3 + $0xc9] sm:$0xff]
      %v3546 = vld [vmem:[#allocation3 + $0xd1] sm:$0xff]
      %v3547 = vld [vmem:[#allocation3 + $0xd9] sm:$0xff]
      %v3548 = vld [vmem:[#allocation3 + $0xe1] sm:$0xff]
      %v3549 = vld [vmem:[#allocation3 + $0xe9] sm:$0xff]
      %v3550 = vld [vmem:[#allocation3 + $0xf1] sm:$0xff]
      %v3551 = vld [vmem:[#allocation3 + $0xf9] sm:$0xff]
      %v3552 = vmax.f32 %v3451, %v3520
      %v3553 = vmax.f32 %v3452, %v3521
      %v3554 = vmax.f32 %v3453, %v3522
      %v3555 = vmax.f32 %v3454, %v3523
      %v3556 = vmax.f32 %v3455, %v3524
      %v3557 = vmax.f32 %v3456, %v3525
      %v3558 = vmax.f32 %v3457, %v3526
      %v3559 = vmax.f32 %v3458, %v3527
      %v3560 = vmax.f32 %v3459, %v3528
      %v3561 = vmax.f32 %v3460, %v3529
      %v3562 = vmax.f32 %v3461, %v3530
      %v3563 = vmax.f32 %v3462, %v3531
      %v3564 = vmax.f32 %v3463, %v3532
      %v3565 = vmax.f32 %v3464, %v3533
      %v3566 = vmax.f32 %v3465, %v3534
      %v3567 = vmax.f32 %v3466, %v3535
      %v3568 = vmax.f32 %v3467, %v3536
      %v3569 = vmax.f32 %v3468, %v3537
      %v3570 = vmax.f32 %v3469, %v3538
      %v3571 = vmax.f32 %v3470, %v3539
      %v3572 = vmax.f32 %v3471, %v3540
      %v3573 = vmax.f32 %v3472, %v3541
      %v3574 = vmax.f32 %v3473, %v3542
      %v3575 = vmax.f32 %v3474, %v3543
      %v3576 = vmax.f32 %v3475, %v3544
      %v3577 = vmax.f32 %v3476, %v3545
      %v3578 = vmax.f32 %v3477, %v3546
      %v3579 = vmax.f32 %v3478, %v3547
      %v3580 = vmax.f32 %v3479, %v3548
      %v3581 = vmax.f32 %v3480, %v3549
      %v3582 = vmax.f32 %v3481, %v3550
      %v3583 = vmax.f32 %v3482, %v3551
      %v3584 = vld [vmem:[#allocation3 + $0x10] sm:$0xff]
      %v3585 = vld [vmem:[#allocation3 + $0x18] sm:$0xff]
      %v3586 = vld [vmem:[#allocation3 + $0x20] sm:$0xff]
      %v3587 = vld [vmem:[#allocation3 + $0x28] sm:$0xff]
      %v3588 = vld [vmem:[#allocation3 + $0x30] sm:$0xff]
      %v3589 = vld [vmem:[#allocation3 + $0x38] sm:$0xff]
      %v3590 = vld [vmem:[#allocation3 + $0x40] sm:$0xff]
      %v3591 = vld [vmem:[#allocation3 + $0x48] sm:$0xff]
      %v3592 = vld [vmem:[#allocation3 + $0x50] sm:$0xff]
      %v3593 = vld [vmem:[#allocation3 + $0x58] sm:$0xff]
      %v3594 = vld [vmem:[#allocation3 + $0x60] sm:$0xff]
      %v3595 = vld [vmem:[#allocation3 + $0x68] sm:$0xff]
      %v3596 = vld [vmem:[#allocation3 + $0x70] sm:$0xff]
      %v3597 = vld [vmem:[#allocation3 + $0x78] sm:$0xff]
      %v3598 = vld [vmem:[#allocation3 + $0x80] sm:$0xff]
      %v3599 = vld [vmem:[#allocation3 + $0x88] sm:$0xff]
      %v3600 = vld [vmem:[#allocation3 + $0x90] sm:$0xff]
      %v3601 = vld [vmem:[#allocation3 + $0x98] sm:$0xff]
      %v3602 = vld [vmem:[#allocation3 + $0xa0] sm:$0xff]
      %v3603 = vld [vmem:[#allocation3 + $0xa8] sm:$0xff]
      %v3604 = vld [vmem:[#allocation3 + $0xb0] sm:$0xff]
      %v3605 = vld [vmem:[#allocation3 + $0xb8] sm:$0xff]
      %v3606 = vld [vmem:[#allocation3 + $0xc0] sm:$0xff]
      %v3607 = vld [vmem:[#allocation3 + $0xc8] sm:$0xff]
      %v3608 = vld [vmem:[#allocation3 + $0xd0] sm:$0xff]
      %v3609 = vld [vmem:[#allocation3 + $0xd8] sm:$0xff]
      %v3610 = vld [vmem:[#allocation3 + $0xe0] sm:$0xff]
      %v3611 = vld [vmem:[#allocation3 + $0xe8] sm:$0xff]
      %v3612 = vld [vmem:[#allocation3 + $0xf0] sm:$0xff]
      %v3613 = vld [vmem:[#allocation3 + $0xf8] sm:$0xff]
      %v3614 = vld [vmem:[#allocation3 + $0x100] sm:$0xff]
      %v3615 = vld [vmem:[#allocation3 + $0x108] sm:$0xff]
      %v3616 = vld [vmem:[#allocation3 + $0x101] sm:$0xff]
      %v3617 = vld [vmem:[#allocation3 + $0x109] sm:$0xff]
      %v3618 = vmax.f32 %v3584, %v3522
      %v3619 = vmax.f32 %v3585, %v3523
      %v3620 = vmax.f32 %v3586, %v3524
      %v3621 = vmax.f32 %v3587, %v3525
      %v3622 = vmax.f32 %v3588, %v3526
      %v3623 = vmax.f32 %v3589, %v3527
      %v3624 = vmax.f32 %v3590, %v3528
      %v3625 = vmax.f32 %v3591, %v3529
      %v3626 = vmax.f32 %v3592, %v3530
      %v3627 = vmax.f32 %v3593, %v3531
      %v3628 = vmax.f32 %v3594, %v3532
      %v3629 = vmax.f32 %v3595, %v3533
      %v3630 = vmax.f32 %v3596, %v3534
      %v3631 = vmax.f32 %v3597, %v3535
      %v3632 = vmax.f32 %v3598, %v3536
      %v3633 = vmax.f32 %v3599, %v3537
      %v3634 = vmax.f32 %v3600, %v3538
      %v3635 = vmax.f32 %v3601, %v3539
      %v3636 = vmax.f32 %v3602, %v3540
      %v3637 = vmax.f32 %v3603, %v3541
      %v3638 = vmax.f32 %v3604, %v3542
      %v3639 = vmax.f32 %v3605, %v3543
      %v3640 = vmax.f32 %v3606, %v3544
      %v3641 = vmax.f32 %v3607, %v3545
      %v3642 = vmax.f32 %v3608, %v3546
      %v3643 = vmax.f32 %v3609, %v3547
      %v3644 = vmax.f32 %v3610, %v3548
      %v3645 = vmax.f32 %v3611, %v3549
      %v3646 = vmax.f32 %v3612, %v3550
      %v3647 = vmax.f32 %v3613, %v3551
      %v3648 = vmax.f32 %v3614, %v3616
      %v3649 = vmax.f32 %v3615, %v3617
      %v3650 = vmax.f32 %v3552, %v3618
      %v3651 = vmax.f32 %v3553, %v3619
      %v3652 = vmax.f32 %v3554, %v3620
      %v3653 = vmax.f32 %v3555, %v3621
      %v3654 = vmax.f32 %v3556, %v3622
      %v3655 = vmax.f32 %v3557, %v3623
      %v3656 = vmax.f32 %v3558, %v3624
      %v3657 = vmax.f32 %v3559, %v3625
      %v3658 = vmax.f32 %v3560, %v3626
      %v3659 = vmax.f32 %v3561, %v3627
      %v3660 = vmax.f32 %v3562, %v3628
      %v3661 = vmax.f32 %v3563, %v3629
      %v3662 = vmax.f32 %v3564, %v3630
      %v3663 = vmax.f32 %v3565, %v3631
      %v3664 = vmax.f32 %v3566, %v3632
      %v3665 = vmax.f32 %v3567, %v3633
      %v3666 = vmax.f32 %v3568, %v3634
      %v3667 = vmax.f32 %v3569, %v3635
      %v3668 = vmax.f32 %v3570, %v3636
      %v3669 = vmax.f32 %v3571, %v3637
      %v3670 = vmax.f32 %v3572, %v3638
      %v3671 = vmax.f32 %v3573, %v3639
      %v3672 = vmax.f32 %v3574, %v3640
      %v3673 = vmax.f32 %v3575, %v3641
      %v3674 = vmax.f32 %v3576, %v3642
      %v3675 = vmax.f32 %v3577, %v3643
      %v3676 = vmax.f32 %v3578, %v3644
      %v3677 = vmax.f32 %v3579, %v3645
      %v3678 = vmax.f32 %v3580, %v3646
      %v3679 = vmax.f32 %v3581, %v3647
      %v3680 = vmax.f32 %v3582, %v3648
      %v3681 = vmax.f32 %v3583, %v3649
      %v3682 = vld [vmem:[%s4] sm:$0xff]
      %v3683 = vld [vmem:[%s4 + $0x8] sm:$0xff]
      %v3684 = vld [vmem:[%s4 + $0x10] sm:$0xff]
      %v3685 = vld [vmem:[%s4 + $0x18] sm:$0xff]
      %v3686 = vld [vmem:[%s4 + $0x20] sm:$0xff]
      %v3687 = vld [vmem:[%s4 + $0x28] sm:$0xff]
      %v3688 = vld [vmem:[%s4 + $0x30] sm:$0xff]
      %v3689 = vld [vmem:[%s4 + $0x38] sm:$0xff]
      %v3690 = vpack.c.bf16 %v3651, %v3650
      %v3691 = vpack.c.bf16 %v3653, %v3652
      %v3692 = vpack.c.bf16 %v3655, %v3654
      %v3693 = vpack.c.bf16 %v3657, %v3656
      %v3694 = vpack.c.bf16 %v3659, %v3658
      %v3695 = vpack.c.bf16 %v3661, %v3660
      %v3696 = vpack.c.bf16 %v3663, %v3662
      %v3697 = vpack.c.bf16 %v3665, %v3664
      %v3698 = vpack.c.bf16 %v3667, %v3666
      %v3699 = vpack.c.bf16 %v3669, %v3668
      %v3700 = vpack.c.bf16 %v3671, %v3670
      %v3701 = vpack.c.bf16 %v3673, %v3672
      %v3702 = vpack.c.bf16 %v3675, %v3674
      %v3703 = vpack.c.bf16 %v3677, %v3676
      %v3704 = vpack.c.bf16 %v3679, %v3678
      %v3705 = vpack.c.bf16 %v3681, %v3680
      %v3714 = vunpack.c.l.b16 %v3682
      %v3715 = vunpack.c.h.b16 %v3682
      %v3716 = vunpack.c.l.b16 %v3683
      %v3717 = vunpack.c.h.b16 %v3683
      %v3718 = vunpack.c.l.b16 %v3684
      %v3719 = vunpack.c.h.b16 %v3684
      %v3720 = vunpack.c.l.b16 %v3685
      %v3721 = vunpack.c.h.b16 %v3685
      %v3722 = vunpack.c.l.b16 %v3686
      %v3723 = vunpack.c.h.b16 %v3686
      %v3724 = vunpack.c.l.b16 %v3687
      %v3725 = vunpack.c.h.b16 %v3687
      %v3726 = vunpack.c.l.b16 %v3688
      %v3727 = vunpack.c.h.b16 %v3688
      %v3728 = vunpack.c.l.b16 %v3689
      %v3729 = vunpack.c.h.b16 %v3689
      %v3730 = vpack.c.b16 %v3716, %v3714
      %v3731 = vpack.c.b16 %v3717, %v3715
      %v3732 = vpack.c.b16 %v3720, %v3718
      %v3733 = vpack.c.b16 %v3721, %v3719
      %v3734 = vpack.c.b16 %v3724, %v3722
      %v3735 = vpack.c.b16 %v3725, %v3723
      %v3736 = vpack.c.b16 %v3728, %v3726
      %v3737 = vpack.c.b16 %v3729, %v3727
      %3746 = vmatprep.subr.bf16.mxu0 0
      %3747 = vmatpush1.bf16.msra.mxu0 %v3697
      %3748 = vmatprep.subr.bf16.mxu0 0
      %3749 = vmatpush1.bf16.msra.mxu0 %v3696
      %3750 = vmatprep.subr.bf16.mxu0 0
      %3751 = vmatpush1.bf16.msra.mxu0 %v3695
      %3752 = vmatprep.subr.bf16.mxu0 0
      %3753 = vmatpush1.bf16.msra.mxu0 %v3694
      %3754 = vmatprep.subr.bf16.mxu0 0
      %3755 = vmatpush1.bf16.msra.mxu0 %v3693
      %3756 = vmatprep.subr.bf16.mxu0 0
      %3757 = vmatpush1.bf16.msra.mxu0 %v3692
      %3758 = vmatprep.subr.bf16.mxu0 0
      %3759 = vmatpush1.bf16.msra.mxu0 %v3691
      %3760 = vmatprep.subr.bf16.mxu0 0
      %3761 = vmatpush1.bf16.msra.mxu0 %v3690
      %3762 = vmatprep.subr.bf16.mxu0 0
      %3763 = vmatpush2.bf16.msra.mxu0 %v3705
      %3764 = vmatprep.subr.bf16.mxu0 0
      %3765 = vmatpush2.bf16.msra.mxu0 %v3704
      %3766 = vmatprep.subr.bf16.mxu0 0
      %3767 = vmatpush2.bf16.msra.mxu0 %v3703
      %3768 = vmatprep.subr.bf16.mxu0 0
      %3769 = vmatpush2.bf16.msra.mxu0 %v3702
      %3770 = vmatprep.subr.bf16.mxu0 0
      %3771 = vmatpush2.bf16.msra.mxu0 %v3701
      %3772 = vmatprep.subr.bf16.mxu0 0
      %3773 = vmatpush2.bf16.msra.mxu0 %v3700
      %3774 = vmatprep.subr.bf16.mxu0 0
      %3775 = vmatpush2.bf16.msra.mxu0 %v3699
      %3776 = vmatprep.subr.bf16.mxu0 0
      %3777 = vmatpush2.bf16.msra.mxu0 %v3698
      %3778 = vmatprep.mubr.bf16.mxu0 %v3731
      %3779 = vmatmul.mubr.bf16.gmra.mxu0 %v3730
      %v3780 = vpop.f32.mrf.mxu0
      %v3781 = vadd.f32 0.0, %v3780
      %v3782 = vpop.f32.mrf.mxu0
      %v3783 = vpop.f32.mrf.mxu0
      %v3784 = vadd.f32 0.0, %v3783
      %v3785 = vpop.f32.mrf.mxu0
      %3786 = vmatprep.mubr.bf16.mxu0 %v3733
      %3787 = vmatmul.mubr.bf16.gmra.mxu0 %v3732
      %v3788 = vpop.f32.mrf.mxu0
      %v3789 = vadd.f32 0.0, %v3788
      %v3790 = vpop.f32.mrf.mxu0
      %v3791 = vpop.f32.mrf.mxu0
      %v3792 = vadd.f32 0.0, %v3791
      %v3793 = vpop.f32.mrf.mxu0
      %3794 = vmatprep.mubr.bf16.mxu0 %v3735
      %3795 = vmatmul.mubr.bf16.gmra.mxu0 %v3734
      %v3796 = vpop.f32.mrf.mxu0
      %v3797 = vadd.f32 0.0, %v3796
      %v3798 = vpop.f32.mrf.mxu0
      %v3799 = vpop.f32.mrf.mxu0
      %v3800 = vadd.f32 0.0, %v3799
      %v3801 = vpop.f32.mrf.mxu0
      %3802 = vmatprep.mubr.bf16.mxu0 %v3737
      %3803 = vmatmul.mubr.bf16.gmra.mxu0 %v3736
      %v3804 = vpop.f32.mrf.mxu0
      %v3805 = vadd.f32 0.0, %v3804
      %v3806 = vpop.f32.mrf.mxu0
      %v3807 = vpop.f32.mrf.mxu0
      %v3808 = vadd.f32 0.0, %v3807
      %v3809 = vpop.f32.mrf.mxu0
      %3810 = vdwg.mxu0
      %v3811 = vpack.c.bf16 %v3784, %v3781
      %v3812 = vpack.c.bf16 %v3792, %v3789
      %v3813 = vpack.c.bf16 %v3800, %v3797
      %v3814 = vpack.c.bf16 %v3808, %v3805
      %v3819 = vunpack.c.l.b16 %v3811
      %v3820 = vunpack.c.h.b16 %v3811
      %v3821 = vunpack.c.l.b16 %v3812
      %v3822 = vunpack.c.h.b16 %v3812
      %v3823 = vunpack.c.l.b16 %v3813
      %v3824 = vunpack.c.h.b16 %v3813
      %v3825 = vunpack.c.l.b16 %v3814
      %v3826 = vunpack.c.h.b16 %v3814
      %v3827 = vpack.c.b16 %v3819, %v3819
      %v3828 = vpack.c.b16 %v3820, %v3820
      %v3829 = vpack.c.b16 %v3821, %v3821
      %v3830 = vpack.c.b16 %v3822, %v3822
      %v3831 = vpack.c.b16 %v3823, %v3823
      %v3832 = vpack.c.b16 %v3824, %v3824
      %v3833 = vpack.c.b16 %v3825, %v3825
      %v3834 = vpack.c.b16 %v3826, %v3826
      %vm3843 = vcmask 257024
      %3844 = vst.msk [vmem:[%s224] sm:$0xf] %vm3843, %v3827
      %3845 = vst.msk [vmem:[%s224 + $0x4] sm:$0xf] %vm3843, %v3828
      %3846 = vst.msk [vmem:[%s224 + $0x8] sm:$0xf] %vm3843, %v3829
      %3847 = vst.msk [vmem:[%s224 + $0xc] sm:$0xf] %vm3843, %v3830
      %3848 = vst.msk [vmem:[%s224 + $0x10] sm:$0xf] %vm3843, %v3831
      %3849 = vst.msk [vmem:[%s224 + $0x14] sm:$0xf] %vm3843, %v3832
      %3850 = vst.msk [vmem:[%s224 + $0x18] sm:$0xf] %vm3843, %v3833
      %3851 = vst.msk [vmem:[%s224 + $0x1c] sm:$0xf] %vm3843, %v3834
      %p3852 = scmp.lt.s32.totalorder %s16, 1
      %s3853 = scalar_select %p3852, %s16, 1
      %s3854 = smul.addr %s3853, 8
      %s3855 = smul.addr %s3854, 4
      %s3856 = scalar_lea.vmem %s5, %s3855
      // Predicated region
      $region41: #{basic_cnn_forward.4} parent=39 // pred_check
        %p3857 = pneg %p144
      $region42: #{basic_cnn_forward.4} parent=39 // pred_check_branch
        %3859 = sbr.rel (%p3857) target = $region44
      $region43: #{basic_cnn_forward.4} parent=39 // pred_region
        _
      $region44: #{basic_cnn_forward.4} parent=39 // pred_fallthru
        _
    $region40: #{basic_cnn_forward.4} parent=5 // pred_fallthru
      _
    %p3860 = scmp.le.s32.totalorder 2, %s11
    // Predicated region
    $region45: #{basic_cnn_forward.4} parent=5 // pred_check
      %p3861 = pneg %p3860
    $region46: #{basic_cnn_forward.4} parent=5 // pred_check_branch
      %3863 = sbr.rel (%p3861) target = $region48
    $region47: #{basic_cnn_forward.4} parent=5 // pred_region
      %s3864 = ssub.s32 %s11, 2
      // Predicated region
      $region49: #{basic_cnn_forward.4} parent=47 // pred_check
        %p3865 = pneg %p150
      $region50: #{basic_cnn_forward.4} parent=47 // pred_check_branch
        %3867 = sbr.rel (%p3865) target = $region52
      $region51: #{basic_cnn_forward.4} parent=47 // pred_region
        %p3868 = scmp.lt.s32.totalorder %s17, 1
        %s3869 = scalar_select %p3868, %s17, 1
        %s3870 = smul.addr %s3869, 8
        %s3871 = smul.addr %s3870, 4
        %s3872 = scalar_lea.vmem %s5, %s3871
      $region52: #{basic_cnn_forward.4} parent=47 // pred_fallthru
        _
    $region48: #{basic_cnn_forward.4} parent=5 // pred_fallthru
      _
  $region6: #{basic_cnn_forward.4} parent=0 // loop_footer
    %s15 = sadd.s32 1, %s11
  $region7: #{basic_cnn_forward.4} parent=0 // loop_footer_branch
    %10 = sbr.rel target = $region3
  $region8: #{basic_cnn_forward.4} parent=0 // loop_exit
    _

</llo_original>
